<compile_context>
chip_gen: v7x
topology: tpu7x:2x2x1
jax: 0.10.0
libtpu: 0.0.40
codegen_flags: <defaults>
</compile_context>

<pallas_src>
import functools

import jax
import jax.numpy as jnp
import numpy as np
from jax.experimental import pallas as pl
from jax.experimental.pallas import tpu as pltpu

C = 64          # Basic2 hard-codes 64 channels
EPS = 1e-5      # BatchNorm eps
PAD = 128       # lane-aligned zero padding of the flattened spatial axis


# ---------------------------------------------------------------------------
# Fused Pallas kernel: whole RGC forward for one image per grid step
# ---------------------------------------------------------------------------
def _rgc_kernel(x1_ref, x2_ref, w_ref, s_ref, b_ref, out_ref,
                xpad_ref, patch_ref, *, H, W):
    """x1_ref, x2_ref : (1, C, H*W)      f32   channels on sublanes, spatial on lanes
       w_ref          : (6, C, 9*C)      bf16  K ordering = (kh*3+kw)*C + cin
       s_ref, b_ref   : (6, C, 1)        f32   folded BN scale / bias per conv layer
       out_ref        : (1, C, H*W)      f32
       xpad_ref       : (C, H*W + 2*PAD) f32   persistent padded-activation scratch
       patch_ref      : (9*C, H*W)       bf16  persistent im2col patch scratch
    """
    Cc = x1_ref.shape[1]
    HW = H * W

    # Zero the two lane-aligned borders of the padded scratch once per grid
    # step; each conv rewrites only the centre HW lanes, the borders never are.
    xpad_ref[:, :PAD] = jnp.zeros((Cc, PAD), jnp.float32)
    xpad_ref[:, PAD + HW:] = jnp.zeros((Cc, PAD), jnp.float32)

    # Column-boundary masks (shared by all six conv layers): a tap shifted by
    # dx = -1 / +1 must not read across a row boundary of the flattened axis.
    # Kept in f32 (v5e has no bf16 VPU); the multiply fuses with the bf16 cast.
    col = jax.lax.broadcasted_iota(jnp.int32, (1, HW), 1)
    col = (col & (W - 1)) if (W & (W - 1)) == 0 else (col % W)
    not_left = (col != 0).astype(jnp.float32)          # valid taps for dx = -1
    not_right = (col != (W - 1)).astype(jnp.float32)   # valid taps for dx = +1

    def conv_bn_relu(x, li):
        # x: (C, HW) f32 -> (C, HW) f32
        # Row (dy) boundary zeros come from the persistent lane-aligned pad,
        # column (dx) boundaries from the masks above.
        xpad_ref[:, PAD:PAD + HW] = x
        # Build the im2col patch matrix directly in bf16 inside the reused
        # scratch; each per-tap store bounds its live range.
        for ky in range(3):
            for kx in range(3):
                t = ky * 3 + kx
                shift = (ky - 1) * W + (kx - 1)
                tap = xpad_ref[:, PAD + shift:PAD + shift + HW]   # (C, HW) f32
                if kx == 0:
                    tap = tap * not_left
                elif kx == 2:
                    tap = tap * not_right
                patch_ref[t * Cc:(t + 1) * Cc, :] = tap.astype(jnp.bfloat16)
        # ONE MXU matmul per conv, K = 9*C = 576, bf16 operands / f32 acc.
        y = jnp.dot(w_ref[li], patch_ref[...],
                    preferred_element_type=jnp.float32)           # (C, HW) f32
        # Folded BN + ReLU, f32 epilogue (v5e-safe).
        return jnp.maximum(y * s_ref[li] + b_ref[li], 0.0)

    def basic2(x, layer0):
        h = conv_bn_relu(x, layer0)
        return conv_bn_relu(h, layer0 + 1) + x     # residual after second ReLU

    y1 = basic2(x1_ref[0], 0)
    y2 = basic2(x2_ref[0], 2)

    # sigmoid(adaptive_max_pool(y2, 1)) per-channel gate, fused in-kernel.
    # Exact sigmoid: only C scalars, and it scales every later activation.
    m = jnp.max(y2, axis=1, keepdims=True)                        # (C, 1)
    gate = 1.0 / (1.0 + jnp.exp(-m))

    out_ref[0] = basic2(y1 * gate, 4)


# ---------------------------------------------------------------------------
# Wrapper (takes / returns PyTorch-style NCHW; reshape only, no transpose)
# ---------------------------------------------------------------------------
@jax.jit
def rgc_forward(x1_nchw, x2_nchw, w, scale, bias):
    N, Cc, H, W = x1_nchw.shape
    HW = H * W
    x1 = x1_nchw.reshape(N, Cc, HW)
    x2 = x2_nchw.reshape(N, Cc, HW)

    out = pl.pallas_call(
        functools.partial(_rgc_kernel, H=H, W=W),
        out_shape=jax.ShapeDtypeStruct((N, Cc, HW), jnp.float32),
        grid_spec=pltpu.PrefetchScalarGridSpec(
            num_scalar_prefetch=0,
            grid=(N,),
            in_specs=[
                pl.BlockSpec((1, Cc, HW), lambda b: (b, 0, 0)),
                pl.BlockSpec((1, Cc, HW), lambda b: (b, 0, 0)),
                pl.BlockSpec((6, Cc, 9 * Cc), lambda b: (0, 0, 0)),
                pl.BlockSpec((6, Cc, 1), lambda b: (0, 0, 0)),
                pl.BlockSpec((6, Cc, 1), lambda b: (0, 0, 0)),
            ],
            out_specs=pl.BlockSpec((1, Cc, HW), lambda b: (b, 0, 0)),
            scratch_shapes=[
                pltpu.VMEM((Cc, HW + 2 * PAD), jnp.float32),   # padded activation
                pltpu.VMEM((9 * Cc, HW), jnp.bfloat16),        # im2col patches
            ],
        ),
        compiler_params=pltpu.CompilerParams(
            dimension_semantics=("parallel",)),
    )(x1, x2, w, scale, bias)
    return out.reshape(N, Cc, H, W)


# ---------------------------------------------------------------------------
# Deterministic parameter construction (folded conv + BN, inference mode)
# ---------------------------------------------------------------------------
def make_params(key):
    keys = jax.random.split(key, 6)   # 6 conv layers: basic1(2), basic2(2), basic3(2)
    ws, ss, bs = [], [], []
    for k in keys:
        kw, kg, kb, km, kv = jax.random.split(k, 5)
        w = 0.05 * jax.random.normal(kw, (C, C, 3, 3), jnp.float32)   # OIHW
        gamma = 1.0 + 0.1 * jax.random.normal(kg, (C,), jnp.float32)
        beta = 0.1 * jax.random.normal(kb, (C,), jnp.float32)
        rmean = 0.1 * jax.random.normal(km, (C,), jnp.float32)
        rvar = 1.0 + 0.1 * jax.random.uniform(kv, (C,), jnp.float32)
        scale = gamma / jnp.sqrt(rvar + EPS)
        bias = beta - rmean * scale
        ws.append(w)
        ss.append(scale)
        bs.append(bias)
    w_oihw = jnp.stack(ws)                                    # (6, Cout, Cin, 3, 3)
    # Kernel weight layout: (6, Cout, 9*Cin) bf16, K = (kh*3+kw)*Cin + cin.
    w_mxu = (jnp.transpose(w_oihw, (0, 1, 3, 4, 2))
             .reshape(6, C, 9 * C).astype(jnp.bfloat16))
    return {
        "w_oihw": w_oihw,                                     # f32, for the reference
        "w": w_mxu,
        "scale": jnp.stack(ss).reshape(6, C, 1),
        "bias": jnp.stack(bs).reshape(6, C, 1),
    }


# ---------------------------------------------------------------------------
# Pure-JAX reference (NCHW) for validation
# ---------------------------------------------------------------------------
def _conv_ref(x, w_oihw, scale, bias):
    y = jax.lax.conv_general_dilated(
        x, w_oihw, window_strides=(1, 1), padding=((1, 1), (1, 1)),
        dimension_numbers=("NCHW", "OIHW", "NCHW"))
    return jnp.maximum(y * scale.reshape(1, -1, 1, 1) + bias.reshape(1, -1, 1, 1), 0.0)


def _basic2_ref(x, p, base):
    h = _conv_ref(x, p["w_oihw"][base], p["scale"][base], p["bias"][base])
    h = _conv_ref(h, p["w_oihw"][base + 1], p["scale"][base + 1], p["bias"][base + 1])
    return h + x


def rgc_ref(x1, x2, p):
    y1 = _basic2_ref(x1, p, 0)
    y2 = _basic2_ref(x2, p, 2)
    g = jax.nn.sigmoid(jnp.max(y2, axis=(2, 3), keepdims=True))
    return _basic2_ref(g * y1, p, 4)


# ---------------------------------------------------------------------------
if __name__ == "__main__":
    key = jax.random.PRNGKey(0)
    k1, k2, kp = jax.random.split(key, 3)

    N, H, W = 2, 16, 16
    # PyTorch-style NCHW inputs (Basic2 requires 64 channels)
    x1 = jax.random.normal(k1, (N, C, H, W), jnp.float32)
    x2 = jax.random.normal(k2, (N, C, H, W), jnp.float32)
    params = make_params(kp)

    out = jax.block_until_ready(
        rgc_forward(x1, x2, params["w"], params["scale"], params["bias"]))
    ref = jax.block_until_ready(rgc_ref(x1, x2, params))

    # bf16 matmul operands with f32 accumulation vs. a pure-f32 reference.
    np.testing.assert_allclose(np.asarray(out), np.asarray(ref),
                               rtol=5e-2, atol=5e-2)
    assert out.shape == (N, C, H, W)
    print("KERNEL_OK")
</pallas_src>

<mosaic_0001>
module attributes {stable_mosaic.version = 11 : i64} {
  func.func @_rgc_kernel(%arg0: i32, %arg1: memref<1x64x256xf32, #tpu.memory_space<vmem>>, %arg2: memref<1x64x256xf32, #tpu.memory_space<vmem>>, %arg3: memref<6x64x576xbf16, #tpu.memory_space<vmem>>, %arg4: memref<6x64x1xf32, #tpu.memory_space<vmem>>, %arg5: memref<6x64x1xf32, #tpu.memory_space<vmem>>, %arg6: memref<1x64x256xf32, #tpu.memory_space<vmem>>, %arg7: memref<64x512xf32, #tpu.memory_space<vmem>>, %arg8: memref<576x256xbf16, #tpu.memory_space<vmem>>) attributes {dimension_semantics = [#tpu.dimension_semantics<parallel>], iteration_bounds = array<i64: 2>, scalar_prefetch = 0 : i64, scratch_operands = 2 : i64, tpu.core_type = #tpu.core_type<tc>, window_params = [{transform_indices = @transform_0, window_bounds = array<i64: 1, 64, 256>}, {transform_indices = @transform_1, window_bounds = array<i64: 1, 64, 256>}, {pipeline_mode = #tpu.pipeline_mode<synchronous>, transform_indices = @transform_2, window_bounds = array<i64: 6, 64, 576>}, {pipeline_mode = #tpu.pipeline_mode<synchronous>, transform_indices = @transform_3, window_bounds = array<i64: 6, 64, 1>}, {pipeline_mode = #tpu.pipeline_mode<synchronous>, transform_indices = @transform_4, window_bounds = array<i64: 6, 64, 1>}, {transform_indices = @transform_5, window_bounds = array<i64: 1, 64, 256>}]} {
    %cst = arith.constant 0.000000e+00 : f32
    %0 = vector.broadcast %cst : f32 to vector<64x128xf32>
    %c0 = arith.constant 0 : index
    %c0_0 = arith.constant 0 : index
    %1 = vector.load %arg7[%c0, %c0_0] : memref<64x512xf32, #tpu.memory_space<vmem>>, vector<64x128xf32>
    tpu.vector_store %arg7[%c0, %c0_0], %0 {strides = array<i32>} : memref<64x512xf32, #tpu.memory_space<vmem>>, vector<64x128xf32>,
    %cst_1 = arith.constant 0.000000e+00 : f32
    %2 = vector.broadcast %cst_1 : f32 to vector<64x128xf32>
    %c0_2 = arith.constant 0 : index
    %c384 = arith.constant 384 : index
    %3 = vector.load %arg7[%c0_2, %c384] : memref<64x512xf32, #tpu.memory_space<vmem>>, vector<64x128xf32>
    tpu.vector_store %arg7[%c0_2, %c384], %2 {strides = array<i32>} : memref<64x512xf32, #tpu.memory_space<vmem>>, vector<64x128xf32>,
    %4 = tpu.iota {dimensions = array<i32: 1>} : vector<1x256xi32>
    %c15_i32 = arith.constant 15 : i32
    %5 = vector.broadcast %c15_i32 : i32 to vector<1x256xi32>
    %6 = arith.andi %4, %5 : vector<1x256xi32>
    %c0_i32 = arith.constant 0 : i32
    %7 = vector.broadcast %c0_i32 : i32 to vector<1x256xi32>
    %8 = arith.cmpi ne, %6, %7 : vector<1x256xi32>
    %9 = arith.extui %8 : vector<1x256xi1> to vector<1x256xi32>
    %10 = arith.sitofp %9 : vector<1x256xi32> to vector<1x256xf32>
    %c15_i32_3 = arith.constant 15 : i32
    %11 = vector.broadcast %c15_i32_3 : i32 to vector<1x256xi32>
    %12 = arith.cmpi ne, %6, %11 : vector<1x256xi32>
    %13 = arith.extui %12 : vector<1x256xi1> to vector<1x256xi32>
    %14 = arith.sitofp %13 : vector<1x256xi32> to vector<1x256xf32>
    %c0_4 = arith.constant 0 : index
    %c0_5 = arith.constant 0 : index
    %c0_6 = arith.constant 0 : index
    %15 = vector.load %arg1[%c0_4, %c0_5, %c0_6] : memref<1x64x256xf32, #tpu.memory_space<vmem>>, vector<1x64x256xf32>
    %16 = vector.shape_cast %15 : vector<1x64x256xf32> to vector<64x256xf32>
    %c0_7 = arith.constant 0 : index
    %c128 = arith.constant 128 : index
    %17 = vector.load %arg7[%c0_7, %c128] : memref<64x512xf32, #tpu.memory_space<vmem>>, vector<64x256xf32>
    tpu.vector_store %arg7[%c0_7, %c128], %16 {strides = array<i32>} : memref<64x512xf32, #tpu.memory_space<vmem>>, vector<64x256xf32>,
    %c0_8 = arith.constant 0 : index
    %c111 = arith.constant 111 : index
    %18 = vector.load %arg7[%c0_8, %c111] : memref<64x512xf32, #tpu.memory_space<vmem>>, vector<64x256xf32>
    %19 = vector.broadcast %10 : vector<1x256xf32> to vector<64x256xf32>
    %20 = arith.mulf %18, %19 : vector<64x256xf32>
    %21 = arith.truncf %20 : vector<64x256xf32> to vector<64x256xbf16>
    %c0_9 = arith.constant 0 : index
    %c0_10 = arith.constant 0 : index
    %22 = vector.load %arg8[%c0_9, %c0_10] : memref<576x256xbf16, #tpu.memory_space<vmem>>, vector<64x256xbf16>
    tpu.vector_store %arg8[%c0_9, %c0_10], %21 {strides = array<i32>} : memref<576x256xbf16, #tpu.memory_space<vmem>>, vector<64x256xbf16>,
    %c0_11 = arith.constant 0 : index
    %c112 = arith.constant 112 : index
    %23 = vector.load %arg7[%c0_11, %c112] : memref<64x512xf32, #tpu.memory_space<vmem>>, vector<64x256xf32>
    %24 = arith.truncf %23 : vector<64x256xf32> to vector<64x256xbf16>
    %c64 = arith.constant 64 : index
    %c0_12 = arith.constant 0 : index
    %25 = vector.load %arg8[%c64, %c0_12] : memref<576x256xbf16, #tpu.memory_space<vmem>>, vector<64x256xbf16>
    tpu.vector_store %arg8[%c64, %c0_12], %24 {strides = array<i32>} : memref<576x256xbf16, #tpu.memory_space<vmem>>, vector<64x256xbf16>,
    %c0_13 = arith.constant 0 : index
    %c113 = arith.constant 113 : index
    %26 = vector.load %arg7[%c0_13, %c113] : memref<64x512xf32, #tpu.memory_space<vmem>>, vector<64x256xf32>
    %27 = vector.broadcast %14 : vector<1x256xf32> to vector<64x256xf32>
    %28 = arith.mulf %26, %27 : vector<64x256xf32>
    %29 = arith.truncf %28 : vector<64x256xf32> to vector<64x256xbf16>
    %c128_14 = arith.constant 128 : index
    %c0_15 = arith.constant 0 : index
    %30 = vector.load %arg8[%c128_14, %c0_15] : memref<576x256xbf16, #tpu.memory_space<vmem>>, vector<64x256xbf16>
    tpu.vector_store %arg8[%c128_14, %c0_15], %29 {strides = array<i32>} : memref<576x256xbf16, #tpu.memory_space<vmem>>, vector<64x256xbf16>,
    %c0_16 = arith.constant 0 : index
    %c127 = arith.constant 127 : index
    %31 = vector.load %arg7[%c0_16, %c127] : memref<64x512xf32, #tpu.memory_space<vmem>>, vector<64x256xf32>
    %32 = vector.broadcast %10 : vector<1x256xf32> to vector<64x256xf32>
    %33 = arith.mulf %31, %32 : vector<64x256xf32>
    %34 = arith.truncf %33 : vector<64x256xf32> to vector<64x256xbf16>
    %c192 = arith.constant 192 : index
    %c0_17 = arith.constant 0 : index
    %35 = vector.load %arg8[%c192, %c0_17] : memref<576x256xbf16, #tpu.memory_space<vmem>>, vector<64x256xbf16>
    tpu.vector_store %arg8[%c192, %c0_17], %34 {strides = array<i32>} : memref<576x256xbf16, #tpu.memory_space<vmem>>, vector<64x256xbf16>,
    %c0_18 = arith.constant 0 : index
    %c128_19 = arith.constant 128 : index
    %36 = vector.load %arg7[%c0_18, %c128_19] : memref<64x512xf32, #tpu.memory_space<vmem>>, vector<64x256xf32>
    %37 = arith.truncf %36 : vector<64x256xf32> to vector<64x256xbf16>
    %c256 = arith.constant 256 : index
    %c0_20 = arith.constant 0 : index
    %38 = vector.load %arg8[%c256, %c0_20] : memref<576x256xbf16, #tpu.memory_space<vmem>>, vector<64x256xbf16>
    tpu.vector_store %arg8[%c256, %c0_20], %37 {strides = array<i32>} : memref<576x256xbf16, #tpu.memory_space<vmem>>, vector<64x256xbf16>,
    %c0_21 = arith.constant 0 : index
    %c129 = arith.constant 129 : index
    %39 = vector.load %arg7[%c0_21, %c129] : memref<64x512xf32, #tpu.memory_space<vmem>>, vector<64x256xf32>
    %40 = vector.broadcast %14 : vector<1x256xf32> to vector<64x256xf32>
    %41 = arith.mulf %39, %40 : vector<64x256xf32>
    %42 = arith.truncf %41 : vector<64x256xf32> to vector<64x256xbf16>
    %c320 = arith.constant 320 : index
    %c0_22 = arith.constant 0 : index
    %43 = vector.load %arg8[%c320, %c0_22] : memref<576x256xbf16, #tpu.memory_space<vmem>>, vector<64x256xbf16>
    tpu.vector_store %arg8[%c320, %c0_22], %42 {strides = array<i32>} : memref<576x256xbf16, #tpu.memory_space<vmem>>, vector<64x256xbf16>,
    %c0_23 = arith.constant 0 : index
    %c143 = arith.constant 143 : index
    %44 = vector.load %arg7[%c0_23, %c143] : memref<64x512xf32, #tpu.memory_space<vmem>>, vector<64x256xf32>
    %45 = vector.broadcast %10 : vector<1x256xf32> to vector<64x256xf32>
    %46 = arith.mulf %44, %45 : vector<64x256xf32>
    %47 = arith.truncf %46 : vector<64x256xf32> to vector<64x256xbf16>
    %c384_24 = arith.constant 384 : index
    %c0_25 = arith.constant 0 : index
    %48 = vector.load %arg8[%c384_24, %c0_25] : memref<576x256xbf16, #tpu.memory_space<vmem>>, vector<64x256xbf16>
    tpu.vector_store %arg8[%c384_24, %c0_25], %47 {strides = array<i32>} : memref<576x256xbf16, #tpu.memory_space<vmem>>, vector<64x256xbf16>,
    %c0_26 = arith.constant 0 : index
    %c144 = arith.constant 144 : index
    %49 = vector.load %arg7[%c0_26, %c144] : memref<64x512xf32, #tpu.memory_space<vmem>>, vector<64x256xf32>
    %50 = arith.truncf %49 : vector<64x256xf32> to vector<64x256xbf16>
    %c448 = arith.constant 448 : index
    %c0_27 = arith.constant 0 : index
    %51 = vector.load %arg8[%c448, %c0_27] : memref<576x256xbf16, #tpu.memory_space<vmem>>, vector<64x256xbf16>
    tpu.vector_store %arg8[%c448, %c0_27], %50 {strides = array<i32>} : memref<576x256xbf16, #tpu.memory_space<vmem>>, vector<64x256xbf16>,
    %c0_28 = arith.constant 0 : index
    %c145 = arith.constant 145 : index
    %52 = vector.load %arg7[%c0_28, %c145] : memref<64x512xf32, #tpu.memory_space<vmem>>, vector<64x256xf32>
    %53 = vector.broadcast %14 : vector<1x256xf32> to vector<64x256xf32>
    %54 = arith.mulf %52, %53 : vector<64x256xf32>
    %55 = arith.truncf %54 : vector<64x256xf32> to vector<64x256xbf16>
    %c512 = arith.constant 512 : index
    %c0_29 = arith.constant 0 : index
    %56 = vector.load %arg8[%c512, %c0_29] : memref<576x256xbf16, #tpu.memory_space<vmem>>, vector<64x256xbf16>
    tpu.vector_store %arg8[%c512, %c0_29], %55 {strides = array<i32>} : memref<576x256xbf16, #tpu.memory_space<vmem>>, vector<64x256xbf16>,
    %c0_30 = arith.constant 0 : index
    %c0_31 = arith.constant 0 : index
    %c0_32 = arith.constant 0 : index
    %57 = vector.load %arg3[%c0_30, %c0_31, %c0_32] : memref<6x64x576xbf16, #tpu.memory_space<vmem>>, vector<1x64x576xbf16>
    %58 = vector.shape_cast %57 : vector<1x64x576xbf16> to vector<64x576xbf16>
    %c0_33 = arith.constant 0 : index
    %c0_34 = arith.constant 0 : index
    %59 = vector.load %arg8[%c0_33, %c0_34] : memref<576x256xbf16, #tpu.memory_space<vmem>>, vector<576x256xbf16>
    %cst_35 = arith.constant dense<0.000000e+00> : vector<64x256xf32>
    %60 = tpu.matmul %58, %59, %cst_35 {dimension_numbers = #tpu.dot_dimension_numbers<[1], [0], [0], [1], [0, 0, 1, 1], [], []>} : vector<64x576xbf16>, vector<576x256xbf16>, vector<64x256xf32> -> vector<64x256xf32>
    %c0_36 = arith.constant 0 : index
    %c0_37 = arith.constant 0 : index
    %c0_38 = arith.constant 0 : index
    %61 = vector.load %arg4[%c0_36, %c0_37, %c0_38] : memref<6x64x1xf32, #tpu.memory_space<vmem>>, vector<1x64x1xf32>
    %62 = vector.shape_cast %61 : vector<1x64x1xf32> to vector<64x1xf32>
    %63 = vector.broadcast %62 : vector<64x1xf32> to vector<64x256xf32>
    %64 = arith.mulf %60, %63 : vector<64x256xf32>
    %c0_39 = arith.constant 0 : index
    %c0_40 = arith.constant 0 : index
    %c0_41 = arith.constant 0 : index
    %65 = vector.load %arg5[%c0_39, %c0_40, %c0_41] : memref<6x64x1xf32, #tpu.memory_space<vmem>>, vector<1x64x1xf32>
    %66 = vector.shape_cast %65 : vector<1x64x1xf32> to vector<64x1xf32>
    %67 = vector.broadcast %66 : vector<64x1xf32> to vector<64x256xf32>
    %68 = arith.addf %64, %67 : vector<64x256xf32>
    %cst_42 = arith.constant 0.000000e+00 : f32
    %69 = vector.broadcast %cst_42 : f32 to vector<64x256xf32>
    %70 = arith.maximumf %68, %69 : vector<64x256xf32>
    %c0_43 = arith.constant 0 : index
    %c128_44 = arith.constant 128 : index
    %71 = vector.load %arg7[%c0_43, %c128_44] : memref<64x512xf32, #tpu.memory_space<vmem>>, vector<64x256xf32>
    tpu.vector_store %arg7[%c0_43, %c128_44], %70 {strides = array<i32>} : memref<64x512xf32, #tpu.memory_space<vmem>>, vector<64x256xf32>,
    %c0_45 = arith.constant 0 : index
    %c111_46 = arith.constant 111 : index
    %72 = vector.load %arg7[%c0_45, %c111_46] : memref<64x512xf32, #tpu.memory_space<vmem>>, vector<64x256xf32>
    %73 = vector.broadcast %10 : vector<1x256xf32> to vector<64x256xf32>
    %74 = arith.mulf %72, %73 : vector<64x256xf32>
    %75 = arith.truncf %74 : vector<64x256xf32> to vector<64x256xbf16>
    %c0_47 = arith.constant 0 : index
    %c0_48 = arith.constant 0 : index
    %76 = vector.load %arg8[%c0_47, %c0_48] : memref<576x256xbf16, #tpu.memory_space<vmem>>, vector<64x256xbf16>
    tpu.vector_store %arg8[%c0_47, %c0_48], %75 {strides = array<i32>} : memref<576x256xbf16, #tpu.memory_space<vmem>>, vector<64x256xbf16>,
    %c0_49 = arith.constant 0 : index
    %c112_50 = arith.constant 112 : index
    %77 = vector.load %arg7[%c0_49, %c112_50] : memref<64x512xf32, #tpu.memory_space<vmem>>, vector<64x256xf32>
    %78 = arith.truncf %77 : vector<64x256xf32> to vector<64x256xbf16>
    %c64_51 = arith.constant 64 : index
    %c0_52 = arith.constant 0 : index
    %79 = vector.load %arg8[%c64_51, %c0_52] : memref<576x256xbf16, #tpu.memory_space<vmem>>, vector<64x256xbf16>
    tpu.vector_store %arg8[%c64_51, %c0_52], %78 {strides = array<i32>} : memref<576x256xbf16, #tpu.memory_space<vmem>>, vector<64x256xbf16>,
    %c0_53 = arith.constant 0 : index
    %c113_54 = arith.constant 113 : index
    %80 = vector.load %arg7[%c0_53, %c113_54] : memref<64x512xf32, #tpu.memory_space<vmem>>, vector<64x256xf32>
    %81 = vector.broadcast %14 : vector<1x256xf32> to vector<64x256xf32>
    %82 = arith.mulf %80, %81 : vector<64x256xf32>
    %83 = arith.truncf %82 : vector<64x256xf32> to vector<64x256xbf16>
    %c128_55 = arith.constant 128 : index
    %c0_56 = arith.constant 0 : index
    %84 = vector.load %arg8[%c128_55, %c0_56] : memref<576x256xbf16, #tpu.memory_space<vmem>>, vector<64x256xbf16>
    tpu.vector_store %arg8[%c128_55, %c0_56], %83 {strides = array<i32>} : memref<576x256xbf16, #tpu.memory_space<vmem>>, vector<64x256xbf16>,
    %c0_57 = arith.constant 0 : index
    %c127_58 = arith.constant 127 : index
    %85 = vector.load %arg7[%c0_57, %c127_58] : memref<64x512xf32, #tpu.memory_space<vmem>>, vector<64x256xf32>
    %86 = vector.broadcast %10 : vector<1x256xf32> to vector<64x256xf32>
    %87 = arith.mulf %85, %86 : vector<64x256xf32>
    %88 = arith.truncf %87 : vector<64x256xf32> to vector<64x256xbf16>
    %c192_59 = arith.constant 192 : index
    %c0_60 = arith.constant 0 : index
    %89 = vector.load %arg8[%c192_59, %c0_60] : memref<576x256xbf16, #tpu.memory_space<vmem>>, vector<64x256xbf16>
    tpu.vector_store %arg8[%c192_59, %c0_60], %88 {strides = array<i32>} : memref<576x256xbf16, #tpu.memory_space<vmem>>, vector<64x256xbf16>,
    %c0_61 = arith.constant 0 : index
    %c128_62 = arith.constant 128 : index
    %90 = vector.load %arg7[%c0_61, %c128_62] : memref<64x512xf32, #tpu.memory_space<vmem>>, vector<64x256xf32>
    %91 = arith.truncf %90 : vector<64x256xf32> to vector<64x256xbf16>
    %c256_63 = arith.constant 256 : index
    %c0_64 = arith.constant 0 : index
    %92 = vector.load %arg8[%c256_63, %c0_64] : memref<576x256xbf16, #tpu.memory_space<vmem>>, vector<64x256xbf16>
    tpu.vector_store %arg8[%c256_63, %c0_64], %91 {strides = array<i32>} : memref<576x256xbf16, #tpu.memory_space<vmem>>, vector<64x256xbf16>,
    %c0_65 = arith.constant 0 : index
    %c129_66 = arith.constant 129 : index
    %93 = vector.load %arg7[%c0_65, %c129_66] : memref<64x512xf32, #tpu.memory_space<vmem>>, vector<64x256xf32>
    %94 = vector.broadcast %14 : vector<1x256xf32> to vector<64x256xf32>
    %95 = arith.mulf %93, %94 : vector<64x256xf32>
    %96 = arith.truncf %95 : vector<64x256xf32> to vector<64x256xbf16>
    %c320_67 = arith.constant 320 : index
    %c0_68 = arith.constant 0 : index
    %97 = vector.load %arg8[%c320_67, %c0_68] : memref<576x256xbf16, #tpu.memory_space<vmem>>, vector<64x256xbf16>
    tpu.vector_store %arg8[%c320_67, %c0_68], %96 {strides = array<i32>} : memref<576x256xbf16, #tpu.memory_space<vmem>>, vector<64x256xbf16>,
    %c0_69 = arith.constant 0 : index
    %c143_70 = arith.constant 143 : index
    %98 = vector.load %arg7[%c0_69, %c143_70] : memref<64x512xf32, #tpu.memory_space<vmem>>, vector<64x256xf32>
    %99 = vector.broadcast %10 : vector<1x256xf32> to vector<64x256xf32>
    %100 = arith.mulf %98, %99 : vector<64x256xf32>
    %101 = arith.truncf %100 : vector<64x256xf32> to vector<64x256xbf16>
    %c384_71 = arith.constant 384 : index
    %c0_72 = arith.constant 0 : index
    %102 = vector.load %arg8[%c384_71, %c0_72] : memref<576x256xbf16, #tpu.memory_space<vmem>>, vector<64x256xbf16>
    tpu.vector_store %arg8[%c384_71, %c0_72], %101 {strides = array<i32>} : memref<576x256xbf16, #tpu.memory_space<vmem>>, vector<64x256xbf16>,
    %c0_73 = arith.constant 0 : index
    %c144_74 = arith.constant 144 : index
    %103 = vector.load %arg7[%c0_73, %c144_74] : memref<64x512xf32, #tpu.memory_space<vmem>>, vector<64x256xf32>
    %104 = arith.truncf %103 : vector<64x256xf32> to vector<64x256xbf16>
    %c448_75 = arith.constant 448 : index
    %c0_76 = arith.constant 0 : index
    %105 = vector.load %arg8[%c448_75, %c0_76] : memref<576x256xbf16, #tpu.memory_space<vmem>>, vector<64x256xbf16>
    tpu.vector_store %arg8[%c448_75, %c0_76], %104 {strides = array<i32>} : memref<576x256xbf16, #tpu.memory_space<vmem>>, vector<64x256xbf16>,
    %c0_77 = arith.constant 0 : index
    %c145_78 = arith.constant 145 : index
    %106 = vector.load %arg7[%c0_77, %c145_78] : memref<64x512xf32, #tpu.memory_space<vmem>>, vector<64x256xf32>
    %107 = vector.broadcast %14 : vector<1x256xf32> to vector<64x256xf32>
    %108 = arith.mulf %106, %107 : vector<64x256xf32>
    %109 = arith.truncf %108 : vector<64x256xf32> to vector<64x256xbf16>
    %c512_79 = arith.constant 512 : index
    %c0_80 = arith.constant 0 : index
    %110 = vector.load %arg8[%c512_79, %c0_80] : memref<576x256xbf16, #tpu.memory_space<vmem>>, vector<64x256xbf16>
    tpu.vector_store %arg8[%c512_79, %c0_80], %109 {strides = array<i32>} : memref<576x256xbf16, #tpu.memory_space<vmem>>, vector<64x256xbf16>,
    %c1 = arith.constant 1 : index
    %c0_81 = arith.constant 0 : index
    %c0_82 = arith.constant 0 : index
    %111 = vector.load %arg3[%c1, %c0_81, %c0_82] : memref<6x64x576xbf16, #tpu.memory_space<vmem>>, vector<1x64x576xbf16>
    %112 = vector.shape_cast %111 : vector<1x64x576xbf16> to vector<64x576xbf16>
    %c0_83 = arith.constant 0 : index
    %c0_84 = arith.constant 0 : index
    %113 = vector.load %arg8[%c0_83, %c0_84] : memref<576x256xbf16, #tpu.memory_space<vmem>>, vector<576x256xbf16>
    %cst_85 = arith.constant dense<0.000000e+00> : vector<64x256xf32>
    %114 = tpu.matmul %112, %113, %cst_85 {dimension_numbers = #tpu.dot_dimension_numbers<[1], [0], [0], [1], [0, 0, 1, 1], [], []>} : vector<64x576xbf16>, vector<576x256xbf16>, vector<64x256xf32> -> vector<64x256xf32>
    %c1_86 = arith.constant 1 : index
    %c0_87 = arith.constant 0 : index
    %c0_88 = arith.constant 0 : index
    %115 = vector.load %arg4[%c1_86, %c0_87, %c0_88] : memref<6x64x1xf32, #tpu.memory_space<vmem>>, vector<1x64x1xf32>
    %116 = vector.shape_cast %115 : vector<1x64x1xf32> to vector<64x1xf32>
    %117 = vector.broadcast %116 : vector<64x1xf32> to vector<64x256xf32>
    %118 = arith.mulf %114, %117 : vector<64x256xf32>
    %c1_89 = arith.constant 1 : index
    %c0_90 = arith.constant 0 : index
    %c0_91 = arith.constant 0 : index
    %119 = vector.load %arg5[%c1_89, %c0_90, %c0_91] : memref<6x64x1xf32, #tpu.memory_space<vmem>>, vector<1x64x1xf32>
    %120 = vector.shape_cast %119 : vector<1x64x1xf32> to vector<64x1xf32>
    %121 = vector.broadcast %120 : vector<64x1xf32> to vector<64x256xf32>
    %122 = arith.addf %118, %121 : vector<64x256xf32>
    %cst_92 = arith.constant 0.000000e+00 : f32
    %123 = vector.broadcast %cst_92 : f32 to vector<64x256xf32>
    %124 = arith.maximumf %122, %123 : vector<64x256xf32>
    %125 = arith.addf %124, %16 : vector<64x256xf32>
    %c0_93 = arith.constant 0 : index
    %c0_94 = arith.constant 0 : index
    %c0_95 = arith.constant 0 : index
    %126 = vector.load %arg2[%c0_93, %c0_94, %c0_95] : memref<1x64x256xf32, #tpu.memory_space<vmem>>, vector<1x64x256xf32>
    %127 = vector.shape_cast %126 : vector<1x64x256xf32> to vector<64x256xf32>
    %c0_96 = arith.constant 0 : index
    %c128_97 = arith.constant 128 : index
    %128 = vector.load %arg7[%c0_96, %c128_97] : memref<64x512xf32, #tpu.memory_space<vmem>>, vector<64x256xf32>
    tpu.vector_store %arg7[%c0_96, %c128_97], %127 {strides = array<i32>} : memref<64x512xf32, #tpu.memory_space<vmem>>, vector<64x256xf32>,
    %c0_98 = arith.constant 0 : index
    %c111_99 = arith.constant 111 : index
    %129 = vector.load %arg7[%c0_98, %c111_99] : memref<64x512xf32, #tpu.memory_space<vmem>>, vector<64x256xf32>
    %130 = vector.broadcast %10 : vector<1x256xf32> to vector<64x256xf32>
    %131 = arith.mulf %129, %130 : vector<64x256xf32>
    %132 = arith.truncf %131 : vector<64x256xf32> to vector<64x256xbf16>
    %c0_100 = arith.constant 0 : index
    %c0_101 = arith.constant 0 : index
    %133 = vector.load %arg8[%c0_100, %c0_101] : memref<576x256xbf16, #tpu.memory_space<vmem>>, vector<64x256xbf16>
    tpu.vector_store %arg8[%c0_100, %c0_101], %132 {strides = array<i32>} : memref<576x256xbf16, #tpu.memory_space<vmem>>, vector<64x256xbf16>,
    %c0_102 = arith.constant 0 : index
    %c112_103 = arith.constant 112 : index
    %134 = vector.load %arg7[%c0_102, %c112_103] : memref<64x512xf32, #tpu.memory_space<vmem>>, vector<64x256xf32>
    %135 = arith.truncf %134 : vector<64x256xf32> to vector<64x256xbf16>
    %c64_104 = arith.constant 64 : index
    %c0_105 = arith.constant 0 : index
    %136 = vector.load %arg8[%c64_104, %c0_105] : memref<576x256xbf16, #tpu.memory_space<vmem>>, vector<64x256xbf16>
    tpu.vector_store %arg8[%c64_104, %c0_105], %135 {strides = array<i32>} : memref<576x256xbf16, #tpu.memory_space<vmem>>, vector<64x256xbf16>,
    %c0_106 = arith.constant 0 : index
    %c113_107 = arith.constant 113 : index
    %137 = vector.load %arg7[%c0_106, %c113_107] : memref<64x512xf32, #tpu.memory_space<vmem>>, vector<64x256xf32>
    %138 = vector.broadcast %14 : vector<1x256xf32> to vector<64x256xf32>
    %139 = arith.mulf %137, %138 : vector<64x256xf32>
    %140 = arith.truncf %139 : vector<64x256xf32> to vector<64x256xbf16>
    %c128_108 = arith.constant 128 : index
    %c0_109 = arith.constant 0 : index
    %141 = vector.load %arg8[%c128_108, %c0_109] : memref<576x256xbf16, #tpu.memory_space<vmem>>, vector<64x256xbf16>
    tpu.vector_store %arg8[%c128_108, %c0_109], %140 {strides = array<i32>} : memref<576x256xbf16, #tpu.memory_space<vmem>>, vector<64x256xbf16>,
    %c0_110 = arith.constant 0 : index
    %c127_111 = arith.constant 127 : index
    %142 = vector.load %arg7[%c0_110, %c127_111] : memref<64x512xf32, #tpu.memory_space<vmem>>, vector<64x256xf32>
    %143 = vector.broadcast %10 : vector<1x256xf32> to vector<64x256xf32>
    %144 = arith.mulf %142, %143 : vector<64x256xf32>
    %145 = arith.truncf %144 : vector<64x256xf32> to vector<64x256xbf16>
    %c192_112 = arith.constant 192 : index
    %c0_113 = arith.constant 0 : index
    %146 = vector.load %arg8[%c192_112, %c0_113] : memref<576x256xbf16, #tpu.memory_space<vmem>>, vector<64x256xbf16>
    tpu.vector_store %arg8[%c192_112, %c0_113], %145 {strides = array<i32>} : memref<576x256xbf16, #tpu.memory_space<vmem>>, vector<64x256xbf16>,
    %c0_114 = arith.constant 0 : index
    %c128_115 = arith.constant 128 : index
    %147 = vector.load %arg7[%c0_114, %c128_115] : memref<64x512xf32, #tpu.memory_space<vmem>>, vector<64x256xf32>
    %148 = arith.truncf %147 : vector<64x256xf32> to vector<64x256xbf16>
    %c256_116 = arith.constant 256 : index
    %c0_117 = arith.constant 0 : index
    %149 = vector.load %arg8[%c256_116, %c0_117] : memref<576x256xbf16, #tpu.memory_space<vmem>>, vector<64x256xbf16>
    tpu.vector_store %arg8[%c256_116, %c0_117], %148 {strides = array<i32>} : memref<576x256xbf16, #tpu.memory_space<vmem>>, vector<64x256xbf16>,
    %c0_118 = arith.constant 0 : index
    %c129_119 = arith.constant 129 : index
    %150 = vector.load %arg7[%c0_118, %c129_119] : memref<64x512xf32, #tpu.memory_space<vmem>>, vector<64x256xf32>
    %151 = vector.broadcast %14 : vector<1x256xf32> to vector<64x256xf32>
    %152 = arith.mulf %150, %151 : vector<64x256xf32>
    %153 = arith.truncf %152 : vector<64x256xf32> to vector<64x256xbf16>
    %c320_120 = arith.constant 320 : index
    %c0_121 = arith.constant 0 : index
    %154 = vector.load %arg8[%c320_120, %c0_121] : memref<576x256xbf16, #tpu.memory_space<vmem>>, vector<64x256xbf16>
    tpu.vector_store %arg8[%c320_120, %c0_121], %153 {strides = array<i32>} : memref<576x256xbf16, #tpu.memory_space<vmem>>, vector<64x256xbf16>,
    %c0_122 = arith.constant 0 : index
    %c143_123 = arith.constant 143 : index
    %155 = vector.load %arg7[%c0_122, %c143_123] : memref<64x512xf32, #tpu.memory_space<vmem>>, vector<64x256xf32>
    %156 = vector.broadcast %10 : vector<1x256xf32> to vector<64x256xf32>
    %157 = arith.mulf %155, %156 : vector<64x256xf32>
    %158 = arith.truncf %157 : vector<64x256xf32> to vector<64x256xbf16>
    %c384_124 = arith.constant 384 : index
    %c0_125 = arith.constant 0 : index
    %159 = vector.load %arg8[%c384_124, %c0_125] : memref<576x256xbf16, #tpu.memory_space<vmem>>, vector<64x256xbf16>
    tpu.vector_store %arg8[%c384_124, %c0_125], %158 {strides = array<i32>} : memref<576x256xbf16, #tpu.memory_space<vmem>>, vector<64x256xbf16>,
    %c0_126 = arith.constant 0 : index
    %c144_127 = arith.constant 144 : index
    %160 = vector.load %arg7[%c0_126, %c144_127] : memref<64x512xf32, #tpu.memory_space<vmem>>, vector<64x256xf32>
    %161 = arith.truncf %160 : vector<64x256xf32> to vector<64x256xbf16>
    %c448_128 = arith.constant 448 : index
    %c0_129 = arith.constant 0 : index
    %162 = vector.load %arg8[%c448_128, %c0_129] : memref<576x256xbf16, #tpu.memory_space<vmem>>, vector<64x256xbf16>
    tpu.vector_store %arg8[%c448_128, %c0_129], %161 {strides = array<i32>} : memref<576x256xbf16, #tpu.memory_space<vmem>>, vector<64x256xbf16>,
    %c0_130 = arith.constant 0 : index
    %c145_131 = arith.constant 145 : index
    %163 = vector.load %arg7[%c0_130, %c145_131] : memref<64x512xf32, #tpu.memory_space<vmem>>, vector<64x256xf32>
    %164 = vector.broadcast %14 : vector<1x256xf32> to vector<64x256xf32>
    %165 = arith.mulf %163, %164 : vector<64x256xf32>
    %166 = arith.truncf %165 : vector<64x256xf32> to vector<64x256xbf16>
    %c512_132 = arith.constant 512 : index
    %c0_133 = arith.constant 0 : index
    %167 = vector.load %arg8[%c512_132, %c0_133] : memref<576x256xbf16, #tpu.memory_space<vmem>>, vector<64x256xbf16>
    tpu.vector_store %arg8[%c512_132, %c0_133], %166 {strides = array<i32>} : memref<576x256xbf16, #tpu.memory_space<vmem>>, vector<64x256xbf16>,
    %c2 = arith.constant 2 : index
    %c0_134 = arith.constant 0 : index
    %c0_135 = arith.constant 0 : index
    %168 = vector.load %arg3[%c2, %c0_134, %c0_135] : memref<6x64x576xbf16, #tpu.memory_space<vmem>>, vector<1x64x576xbf16>
    %169 = vector.shape_cast %168 : vector<1x64x576xbf16> to vector<64x576xbf16>
    %c0_136 = arith.constant 0 : index
    %c0_137 = arith.constant 0 : index
    %170 = vector.load %arg8[%c0_136, %c0_137] : memref<576x256xbf16, #tpu.memory_space<vmem>>, vector<576x256xbf16>
    %cst_138 = arith.constant dense<0.000000e+00> : vector<64x256xf32>
    %171 = tpu.matmul %169, %170, %cst_138 {dimension_numbers = #tpu.dot_dimension_numbers<[1], [0], [0], [1], [0, 0, 1, 1], [], []>} : vector<64x576xbf16>, vector<576x256xbf16>, vector<64x256xf32> -> vector<64x256xf32>
    %c2_139 = arith.constant 2 : index
    %c0_140 = arith.constant 0 : index
    %c0_141 = arith.constant 0 : index
    %172 = vector.load %arg4[%c2_139, %c0_140, %c0_141] : memref<6x64x1xf32, #tpu.memory_space<vmem>>, vector<1x64x1xf32>
    %173 = vector.shape_cast %172 : vector<1x64x1xf32> to vector<64x1xf32>
    %174 = vector.broadcast %173 : vector<64x1xf32> to vector<64x256xf32>
    %175 = arith.mulf %171, %174 : vector<64x256xf32>
    %c2_142 = arith.constant 2 : index
    %c0_143 = arith.constant 0 : index
    %c0_144 = arith.constant 0 : index
    %176 = vector.load %arg5[%c2_142, %c0_143, %c0_144] : memref<6x64x1xf32, #tpu.memory_space<vmem>>, vector<1x64x1xf32>
    %177 = vector.shape_cast %176 : vector<1x64x1xf32> to vector<64x1xf32>
    %178 = vector.broadcast %177 : vector<64x1xf32> to vector<64x256xf32>
    %179 = arith.addf %175, %178 : vector<64x256xf32>
    %cst_145 = arith.constant 0.000000e+00 : f32
    %180 = vector.broadcast %cst_145 : f32 to vector<64x256xf32>
    %181 = arith.maximumf %179, %180 : vector<64x256xf32>
    %c0_146 = arith.constant 0 : index
    %c128_147 = arith.constant 128 : index
    %182 = vector.load %arg7[%c0_146, %c128_147] : memref<64x512xf32, #tpu.memory_space<vmem>>, vector<64x256xf32>
    tpu.vector_store %arg7[%c0_146, %c128_147], %181 {strides = array<i32>} : memref<64x512xf32, #tpu.memory_space<vmem>>, vector<64x256xf32>,
    %c0_148 = arith.constant 0 : index
    %c111_149 = arith.constant 111 : index
    %183 = vector.load %arg7[%c0_148, %c111_149] : memref<64x512xf32, #tpu.memory_space<vmem>>, vector<64x256xf32>
    %184 = vector.broadcast %10 : vector<1x256xf32> to vector<64x256xf32>
    %185 = arith.mulf %183, %184 : vector<64x256xf32>
    %186 = arith.truncf %185 : vector<64x256xf32> to vector<64x256xbf16>
    %c0_150 = arith.constant 0 : index
    %c0_151 = arith.constant 0 : index
    %187 = vector.load %arg8[%c0_150, %c0_151] : memref<576x256xbf16, #tpu.memory_space<vmem>>, vector<64x256xbf16>
    tpu.vector_store %arg8[%c0_150, %c0_151], %186 {strides = array<i32>} : memref<576x256xbf16, #tpu.memory_space<vmem>>, vector<64x256xbf16>,
    %c0_152 = arith.constant 0 : index
    %c112_153 = arith.constant 112 : index
    %188 = vector.load %arg7[%c0_152, %c112_153] : memref<64x512xf32, #tpu.memory_space<vmem>>, vector<64x256xf32>
    %189 = arith.truncf %188 : vector<64x256xf32> to vector<64x256xbf16>
    %c64_154 = arith.constant 64 : index
    %c0_155 = arith.constant 0 : index
    %190 = vector.load %arg8[%c64_154, %c0_155] : memref<576x256xbf16, #tpu.memory_space<vmem>>, vector<64x256xbf16>
    tpu.vector_store %arg8[%c64_154, %c0_155], %189 {strides = array<i32>} : memref<576x256xbf16, #tpu.memory_space<vmem>>, vector<64x256xbf16>,
    %c0_156 = arith.constant 0 : index
    %c113_157 = arith.constant 113 : index
    %191 = vector.load %arg7[%c0_156, %c113_157] : memref<64x512xf32, #tpu.memory_space<vmem>>, vector<64x256xf32>
    %192 = vector.broadcast %14 : vector<1x256xf32> to vector<64x256xf32>
    %193 = arith.mulf %191, %192 : vector<64x256xf32>
    %194 = arith.truncf %193 : vector<64x256xf32> to vector<64x256xbf16>
    %c128_158 = arith.constant 128 : index
    %c0_159 = arith.constant 0 : index
    %195 = vector.load %arg8[%c128_158, %c0_159] : memref<576x256xbf16, #tpu.memory_space<vmem>>, vector<64x256xbf16>
    tpu.vector_store %arg8[%c128_158, %c0_159], %194 {strides = array<i32>} : memref<576x256xbf16, #tpu.memory_space<vmem>>, vector<64x256xbf16>,
    %c0_160 = arith.constant 0 : index
    %c127_161 = arith.constant 127 : index
    %196 = vector.load %arg7[%c0_160, %c127_161] : memref<64x512xf32, #tpu.memory_space<vmem>>, vector<64x256xf32>
    %197 = vector.broadcast %10 : vector<1x256xf32> to vector<64x256xf32>
    %198 = arith.mulf %196, %197 : vector<64x256xf32>
    %199 = arith.truncf %198 : vector<64x256xf32> to vector<64x256xbf16>
    %c192_162 = arith.constant 192 : index
    %c0_163 = arith.constant 0 : index
    %200 = vector.load %arg8[%c192_162, %c0_163] : memref<576x256xbf16, #tpu.memory_space<vmem>>, vector<64x256xbf16>
    tpu.vector_store %arg8[%c192_162, %c0_163], %199 {strides = array<i32>} : memref<576x256xbf16, #tpu.memory_space<vmem>>, vector<64x256xbf16>,
    %c0_164 = arith.constant 0 : index
    %c128_165 = arith.constant 128 : index
    %201 = vector.load %arg7[%c0_164, %c128_165] : memref<64x512xf32, #tpu.memory_space<vmem>>, vector<64x256xf32>
    %202 = arith.truncf %201 : vector<64x256xf32> to vector<64x256xbf16>
    %c256_166 = arith.constant 256 : index
    %c0_167 = arith.constant 0 : index
    %203 = vector.load %arg8[%c256_166, %c0_167] : memref<576x256xbf16, #tpu.memory_space<vmem>>, vector<64x256xbf16>
    tpu.vector_store %arg8[%c256_166, %c0_167], %202 {strides = array<i32>} : memref<576x256xbf16, #tpu.memory_space<vmem>>, vector<64x256xbf16>,
    %c0_168 = arith.constant 0 : index
    %c129_169 = arith.constant 129 : index
    %204 = vector.load %arg7[%c0_168, %c129_169] : memref<64x512xf32, #tpu.memory_space<vmem>>, vector<64x256xf32>
    %205 = vector.broadcast %14 : vector<1x256xf32> to vector<64x256xf32>
    %206 = arith.mulf %204, %205 : vector<64x256xf32>
    %207 = arith.truncf %206 : vector<64x256xf32> to vector<64x256xbf16>
    %c320_170 = arith.constant 320 : index
    %c0_171 = arith.constant 0 : index
    %208 = vector.load %arg8[%c320_170, %c0_171] : memref<576x256xbf16, #tpu.memory_space<vmem>>, vector<64x256xbf16>
    tpu.vector_store %arg8[%c320_170, %c0_171], %207 {strides = array<i32>} : memref<576x256xbf16, #tpu.memory_space<vmem>>, vector<64x256xbf16>,
    %c0_172 = arith.constant 0 : index
    %c143_173 = arith.constant 143 : index
    %209 = vector.load %arg7[%c0_172, %c143_173] : memref<64x512xf32, #tpu.memory_space<vmem>>, vector<64x256xf32>
    %210 = vector.broadcast %10 : vector<1x256xf32> to vector<64x256xf32>
    %211 = arith.mulf %209, %210 : vector<64x256xf32>
    %212 = arith.truncf %211 : vector<64x256xf32> to vector<64x256xbf16>
    %c384_174 = arith.constant 384 : index
    %c0_175 = arith.constant 0 : index
    %213 = vector.load %arg8[%c384_174, %c0_175] : memref<576x256xbf16, #tpu.memory_space<vmem>>, vector<64x256xbf16>
    tpu.vector_store %arg8[%c384_174, %c0_175], %212 {strides = array<i32>} : memref<576x256xbf16, #tpu.memory_space<vmem>>, vector<64x256xbf16>,
    %c0_176 = arith.constant 0 : index
    %c144_177 = arith.constant 144 : index
    %214 = vector.load %arg7[%c0_176, %c144_177] : memref<64x512xf32, #tpu.memory_space<vmem>>, vector<64x256xf32>
    %215 = arith.truncf %214 : vector<64x256xf32> to vector<64x256xbf16>
    %c448_178 = arith.constant 448 : index
    %c0_179 = arith.constant 0 : index
    %216 = vector.load %arg8[%c448_178, %c0_179] : memref<576x256xbf16, #tpu.memory_space<vmem>>, vector<64x256xbf16>
    tpu.vector_store %arg8[%c448_178, %c0_179], %215 {strides = array<i32>} : memref<576x256xbf16, #tpu.memory_space<vmem>>, vector<64x256xbf16>,
    %c0_180 = arith.constant 0 : index
    %c145_181 = arith.constant 145 : index
    %217 = vector.load %arg7[%c0_180, %c145_181] : memref<64x512xf32, #tpu.memory_space<vmem>>, vector<64x256xf32>
    %218 = vector.broadcast %14 : vector<1x256xf32> to vector<64x256xf32>
    %219 = arith.mulf %217, %218 : vector<64x256xf32>
    %220 = arith.truncf %219 : vector<64x256xf32> to vector<64x256xbf16>
    %c512_182 = arith.constant 512 : index
    %c0_183 = arith.constant 0 : index
    %221 = vector.load %arg8[%c512_182, %c0_183] : memref<576x256xbf16, #tpu.memory_space<vmem>>, vector<64x256xbf16>
    tpu.vector_store %arg8[%c512_182, %c0_183], %220 {strides = array<i32>} : memref<576x256xbf16, #tpu.memory_space<vmem>>, vector<64x256xbf16>,
    %c3 = arith.constant 3 : index
    %c0_184 = arith.constant 0 : index
    %c0_185 = arith.constant 0 : index
    %222 = vector.load %arg3[%c3, %c0_184, %c0_185] : memref<6x64x576xbf16, #tpu.memory_space<vmem>>, vector<1x64x576xbf16>
    %223 = vector.shape_cast %222 : vector<1x64x576xbf16> to vector<64x576xbf16>
    %c0_186 = arith.constant 0 : index
    %c0_187 = arith.constant 0 : index
    %224 = vector.load %arg8[%c0_186, %c0_187] : memref<576x256xbf16, #tpu.memory_space<vmem>>, vector<576x256xbf16>
    %cst_188 = arith.constant dense<0.000000e+00> : vector<64x256xf32>
    %225 = tpu.matmul %223, %224, %cst_188 {dimension_numbers = #tpu.dot_dimension_numbers<[1], [0], [0], [1], [0, 0, 1, 1], [], []>} : vector<64x576xbf16>, vector<576x256xbf16>, vector<64x256xf32> -> vector<64x256xf32>
    %c3_189 = arith.constant 3 : index
    %c0_190 = arith.constant 0 : index
    %c0_191 = arith.constant 0 : index
    %226 = vector.load %arg4[%c3_189, %c0_190, %c0_191] : memref<6x64x1xf32, #tpu.memory_space<vmem>>, vector<1x64x1xf32>
    %227 = vector.shape_cast %226 : vector<1x64x1xf32> to vector<64x1xf32>
    %228 = vector.broadcast %227 : vector<64x1xf32> to vector<64x256xf32>
    %229 = arith.mulf %225, %228 : vector<64x256xf32>
    %c3_192 = arith.constant 3 : index
    %c0_193 = arith.constant 0 : index
    %c0_194 = arith.constant 0 : index
    %230 = vector.load %arg5[%c3_192, %c0_193, %c0_194] : memref<6x64x1xf32, #tpu.memory_space<vmem>>, vector<1x64x1xf32>
    %231 = vector.shape_cast %230 : vector<1x64x1xf32> to vector<64x1xf32>
    %232 = vector.broadcast %231 : vector<64x1xf32> to vector<64x256xf32>
    %233 = arith.addf %229, %232 : vector<64x256xf32>
    %cst_195 = arith.constant 0.000000e+00 : f32
    %234 = vector.broadcast %cst_195 : f32 to vector<64x256xf32>
    %235 = arith.maximumf %233, %234 : vector<64x256xf32>
    %236 = arith.addf %235, %127 : vector<64x256xf32>
    %cst_196 = arith.constant dense<0xFF800000> : vector<64xf32>
    %237 = vector.multi_reduction <maximumf>, %236, %cst_196 [1] : vector<64x256xf32> to vector<64xf32>
    %238 = vector.shape_cast %237 : vector<64xf32> to vector<64x1xf32>
    %cst_197 = arith.constant 0.000000e+00 : f32
    %239 = vector.broadcast %cst_197 : f32 to vector<64x1xf32>
    %240 = arith.subf %239, %238 : vector<64x1xf32>
    %241 = math.exp %240 : vector<64x1xf32>
    %cst_198 = arith.constant 1.000000e+00 : f32
    %242 = vector.broadcast %cst_198 : f32 to vector<64x1xf32>
    %243 = arith.addf %242, %241 : vector<64x1xf32>
    %cst_199 = arith.constant 1.000000e+00 : f32
    %244 = vector.broadcast %cst_199 : f32 to vector<64x1xf32>
    %245 = arith.divf %244, %243 : vector<64x1xf32>
    %246 = vector.broadcast %245 : vector<64x1xf32> to vector<64x256xf32>
    %247 = arith.mulf %125, %246 : vector<64x256xf32>
    %c0_200 = arith.constant 0 : index
    %c128_201 = arith.constant 128 : index
    %248 = vector.load %arg7[%c0_200, %c128_201] : memref<64x512xf32, #tpu.memory_space<vmem>>, vector<64x256xf32>
    tpu.vector_store %arg7[%c0_200, %c128_201], %247 {strides = array<i32>} : memref<64x512xf32, #tpu.memory_space<vmem>>, vector<64x256xf32>,
    %c0_202 = arith.constant 0 : index
    %c111_203 = arith.constant 111 : index
    %249 = vector.load %arg7[%c0_202, %c111_203] : memref<64x512xf32, #tpu.memory_space<vmem>>, vector<64x256xf32>
    %250 = vector.broadcast %10 : vector<1x256xf32> to vector<64x256xf32>
    %251 = arith.mulf %249, %250 : vector<64x256xf32>
    %252 = arith.truncf %251 : vector<64x256xf32> to vector<64x256xbf16>
    %c0_204 = arith.constant 0 : index
    %c0_205 = arith.constant 0 : index
    %253 = vector.load %arg8[%c0_204, %c0_205] : memref<576x256xbf16, #tpu.memory_space<vmem>>, vector<64x256xbf16>
    tpu.vector_store %arg8[%c0_204, %c0_205], %252 {strides = array<i32>} : memref<576x256xbf16, #tpu.memory_space<vmem>>, vector<64x256xbf16>,
    %c0_206 = arith.constant 0 : index
    %c112_207 = arith.constant 112 : index
    %254 = vector.load %arg7[%c0_206, %c112_207] : memref<64x512xf32, #tpu.memory_space<vmem>>, vector<64x256xf32>
    %255 = arith.truncf %254 : vector<64x256xf32> to vector<64x256xbf16>
    %c64_208 = arith.constant 64 : index
    %c0_209 = arith.constant 0 : index
    %256 = vector.load %arg8[%c64_208, %c0_209] : memref<576x256xbf16, #tpu.memory_space<vmem>>, vector<64x256xbf16>
    tpu.vector_store %arg8[%c64_208, %c0_209], %255 {strides = array<i32>} : memref<576x256xbf16, #tpu.memory_space<vmem>>, vector<64x256xbf16>,
    %c0_210 = arith.constant 0 : index
    %c113_211 = arith.constant 113 : index
    %257 = vector.load %arg7[%c0_210, %c113_211] : memref<64x512xf32, #tpu.memory_space<vmem>>, vector<64x256xf32>
    %258 = vector.broadcast %14 : vector<1x256xf32> to vector<64x256xf32>
    %259 = arith.mulf %257, %258 : vector<64x256xf32>
    %260 = arith.truncf %259 : vector<64x256xf32> to vector<64x256xbf16>
    %c128_212 = arith.constant 128 : index
    %c0_213 = arith.constant 0 : index
    %261 = vector.load %arg8[%c128_212, %c0_213] : memref<576x256xbf16, #tpu.memory_space<vmem>>, vector<64x256xbf16>
    tpu.vector_store %arg8[%c128_212, %c0_213], %260 {strides = array<i32>} : memref<576x256xbf16, #tpu.memory_space<vmem>>, vector<64x256xbf16>,
    %c0_214 = arith.constant 0 : index
    %c127_215 = arith.constant 127 : index
    %262 = vector.load %arg7[%c0_214, %c127_215] : memref<64x512xf32, #tpu.memory_space<vmem>>, vector<64x256xf32>
    %263 = vector.broadcast %10 : vector<1x256xf32> to vector<64x256xf32>
    %264 = arith.mulf %262, %263 : vector<64x256xf32>
    %265 = arith.truncf %264 : vector<64x256xf32> to vector<64x256xbf16>
    %c192_216 = arith.constant 192 : index
    %c0_217 = arith.constant 0 : index
    %266 = vector.load %arg8[%c192_216, %c0_217] : memref<576x256xbf16, #tpu.memory_space<vmem>>, vector<64x256xbf16>
    tpu.vector_store %arg8[%c192_216, %c0_217], %265 {strides = array<i32>} : memref<576x256xbf16, #tpu.memory_space<vmem>>, vector<64x256xbf16>,
    %c0_218 = arith.constant 0 : index
    %c128_219 = arith.constant 128 : index
    %267 = vector.load %arg7[%c0_218, %c128_219] : memref<64x512xf32, #tpu.memory_space<vmem>>, vector<64x256xf32>
    %268 = arith.truncf %267 : vector<64x256xf32> to vector<64x256xbf16>
    %c256_220 = arith.constant 256 : index
    %c0_221 = arith.constant 0 : index
    %269 = vector.load %arg8[%c256_220, %c0_221] : memref<576x256xbf16, #tpu.memory_space<vmem>>, vector<64x256xbf16>
    tpu.vector_store %arg8[%c256_220, %c0_221], %268 {strides = array<i32>} : memref<576x256xbf16, #tpu.memory_space<vmem>>, vector<64x256xbf16>,
    %c0_222 = arith.constant 0 : index
    %c129_223 = arith.constant 129 : index
    %270 = vector.load %arg7[%c0_222, %c129_223] : memref<64x512xf32, #tpu.memory_space<vmem>>, vector<64x256xf32>
    %271 = vector.broadcast %14 : vector<1x256xf32> to vector<64x256xf32>
    %272 = arith.mulf %270, %271 : vector<64x256xf32>
    %273 = arith.truncf %272 : vector<64x256xf32> to vector<64x256xbf16>
    %c320_224 = arith.constant 320 : index
    %c0_225 = arith.constant 0 : index
    %274 = vector.load %arg8[%c320_224, %c0_225] : memref<576x256xbf16, #tpu.memory_space<vmem>>, vector<64x256xbf16>
    tpu.vector_store %arg8[%c320_224, %c0_225], %273 {strides = array<i32>} : memref<576x256xbf16, #tpu.memory_space<vmem>>, vector<64x256xbf16>,
    %c0_226 = arith.constant 0 : index
    %c143_227 = arith.constant 143 : index
    %275 = vector.load %arg7[%c0_226, %c143_227] : memref<64x512xf32, #tpu.memory_space<vmem>>, vector<64x256xf32>
    %276 = vector.broadcast %10 : vector<1x256xf32> to vector<64x256xf32>
    %277 = arith.mulf %275, %276 : vector<64x256xf32>
    %278 = arith.truncf %277 : vector<64x256xf32> to vector<64x256xbf16>
    %c384_228 = arith.constant 384 : index
    %c0_229 = arith.constant 0 : index
    %279 = vector.load %arg8[%c384_228, %c0_229] : memref<576x256xbf16, #tpu.memory_space<vmem>>, vector<64x256xbf16>
    tpu.vector_store %arg8[%c384_228, %c0_229], %278 {strides = array<i32>} : memref<576x256xbf16, #tpu.memory_space<vmem>>, vector<64x256xbf16>,
    %c0_230 = arith.constant 0 : index
    %c144_231 = arith.constant 144 : index
    %280 = vector.load %arg7[%c0_230, %c144_231] : memref<64x512xf32, #tpu.memory_space<vmem>>, vector<64x256xf32>
    %281 = arith.truncf %280 : vector<64x256xf32> to vector<64x256xbf16>
    %c448_232 = arith.constant 448 : index
    %c0_233 = arith.constant 0 : index
    %282 = vector.load %arg8[%c448_232, %c0_233] : memref<576x256xbf16, #tpu.memory_space<vmem>>, vector<64x256xbf16>
    tpu.vector_store %arg8[%c448_232, %c0_233], %281 {strides = array<i32>} : memref<576x256xbf16, #tpu.memory_space<vmem>>, vector<64x256xbf16>,
    %c0_234 = arith.constant 0 : index
    %c145_235 = arith.constant 145 : index
    %283 = vector.load %arg7[%c0_234, %c145_235] : memref<64x512xf32, #tpu.memory_space<vmem>>, vector<64x256xf32>
    %284 = vector.broadcast %14 : vector<1x256xf32> to vector<64x256xf32>
    %285 = arith.mulf %283, %284 : vector<64x256xf32>
    %286 = arith.truncf %285 : vector<64x256xf32> to vector<64x256xbf16>
    %c512_236 = arith.constant 512 : index
    %c0_237 = arith.constant 0 : index
    %287 = vector.load %arg8[%c512_236, %c0_237] : memref<576x256xbf16, #tpu.memory_space<vmem>>, vector<64x256xbf16>
    tpu.vector_store %arg8[%c512_236, %c0_237], %286 {strides = array<i32>} : memref<576x256xbf16, #tpu.memory_space<vmem>>, vector<64x256xbf16>,
    %c4 = arith.constant 4 : index
    %c0_238 = arith.constant 0 : index
    %c0_239 = arith.constant 0 : index
    %288 = vector.load %arg3[%c4, %c0_238, %c0_239] : memref<6x64x576xbf16, #tpu.memory_space<vmem>>, vector<1x64x576xbf16>
    %289 = vector.shape_cast %288 : vector<1x64x576xbf16> to vector<64x576xbf16>
    %c0_240 = arith.constant 0 : index
    %c0_241 = arith.constant 0 : index
    %290 = vector.load %arg8[%c0_240, %c0_241] : memref<576x256xbf16, #tpu.memory_space<vmem>>, vector<576x256xbf16>
    %cst_242 = arith.constant dense<0.000000e+00> : vector<64x256xf32>
    %291 = tpu.matmul %289, %290, %cst_242 {dimension_numbers = #tpu.dot_dimension_numbers<[1], [0], [0], [1], [0, 0, 1, 1], [], []>} : vector<64x576xbf16>, vector<576x256xbf16>, vector<64x256xf32> -> vector<64x256xf32>
    %c4_243 = arith.constant 4 : index
    %c0_244 = arith.constant 0 : index
    %c0_245 = arith.constant 0 : index
    %292 = vector.load %arg4[%c4_243, %c0_244, %c0_245] : memref<6x64x1xf32, #tpu.memory_space<vmem>>, vector<1x64x1xf32>
    %293 = vector.shape_cast %292 : vector<1x64x1xf32> to vector<64x1xf32>
    %294 = vector.broadcast %293 : vector<64x1xf32> to vector<64x256xf32>
    %295 = arith.mulf %291, %294 : vector<64x256xf32>
    %c4_246 = arith.constant 4 : index
    %c0_247 = arith.constant 0 : index
    %c0_248 = arith.constant 0 : index
    %296 = vector.load %arg5[%c4_246, %c0_247, %c0_248] : memref<6x64x1xf32, #tpu.memory_space<vmem>>, vector<1x64x1xf32>
    %297 = vector.shape_cast %296 : vector<1x64x1xf32> to vector<64x1xf32>
    %298 = vector.broadcast %297 : vector<64x1xf32> to vector<64x256xf32>
    %299 = arith.addf %295, %298 : vector<64x256xf32>
    %cst_249 = arith.constant 0.000000e+00 : f32
    %300 = vector.broadcast %cst_249 : f32 to vector<64x256xf32>
    %301 = arith.maximumf %299, %300 : vector<64x256xf32>
    %c0_250 = arith.constant 0 : index
    %c128_251 = arith.constant 128 : index
    %302 = vector.load %arg7[%c0_250, %c128_251] : memref<64x512xf32, #tpu.memory_space<vmem>>, vector<64x256xf32>
    tpu.vector_store %arg7[%c0_250, %c128_251], %301 {strides = array<i32>} : memref<64x512xf32, #tpu.memory_space<vmem>>, vector<64x256xf32>,
    %c0_252 = arith.constant 0 : index
    %c111_253 = arith.constant 111 : index
    %303 = vector.load %arg7[%c0_252, %c111_253] : memref<64x512xf32, #tpu.memory_space<vmem>>, vector<64x256xf32>
    %304 = vector.broadcast %10 : vector<1x256xf32> to vector<64x256xf32>
    %305 = arith.mulf %303, %304 : vector<64x256xf32>
    %306 = arith.truncf %305 : vector<64x256xf32> to vector<64x256xbf16>
    %c0_254 = arith.constant 0 : index
    %c0_255 = arith.constant 0 : index
    %307 = vector.load %arg8[%c0_254, %c0_255] : memref<576x256xbf16, #tpu.memory_space<vmem>>, vector<64x256xbf16>
    tpu.vector_store %arg8[%c0_254, %c0_255], %306 {strides = array<i32>} : memref<576x256xbf16, #tpu.memory_space<vmem>>, vector<64x256xbf16>,
    %c0_256 = arith.constant 0 : index
    %c112_257 = arith.constant 112 : index
    %308 = vector.load %arg7[%c0_256, %c112_257] : memref<64x512xf32, #tpu.memory_space<vmem>>, vector<64x256xf32>
    %309 = arith.truncf %308 : vector<64x256xf32> to vector<64x256xbf16>
    %c64_258 = arith.constant 64 : index
    %c0_259 = arith.constant 0 : index
    %310 = vector.load %arg8[%c64_258, %c0_259] : memref<576x256xbf16, #tpu.memory_space<vmem>>, vector<64x256xbf16>
    tpu.vector_store %arg8[%c64_258, %c0_259], %309 {strides = array<i32>} : memref<576x256xbf16, #tpu.memory_space<vmem>>, vector<64x256xbf16>,
    %c0_260 = arith.constant 0 : index
    %c113_261 = arith.constant 113 : index
    %311 = vector.load %arg7[%c0_260, %c113_261] : memref<64x512xf32, #tpu.memory_space<vmem>>, vector<64x256xf32>
    %312 = vector.broadcast %14 : vector<1x256xf32> to vector<64x256xf32>
    %313 = arith.mulf %311, %312 : vector<64x256xf32>
    %314 = arith.truncf %313 : vector<64x256xf32> to vector<64x256xbf16>
    %c128_262 = arith.constant 128 : index
    %c0_263 = arith.constant 0 : index
    %315 = vector.load %arg8[%c128_262, %c0_263] : memref<576x256xbf16, #tpu.memory_space<vmem>>, vector<64x256xbf16>
    tpu.vector_store %arg8[%c128_262, %c0_263], %314 {strides = array<i32>} : memref<576x256xbf16, #tpu.memory_space<vmem>>, vector<64x256xbf16>,
    %c0_264 = arith.constant 0 : index
    %c127_265 = arith.constant 127 : index
    %316 = vector.load %arg7[%c0_264, %c127_265] : memref<64x512xf32, #tpu.memory_space<vmem>>, vector<64x256xf32>
    %317 = vector.broadcast %10 : vector<1x256xf32> to vector<64x256xf32>
    %318 = arith.mulf %316, %317 : vector<64x256xf32>
    %319 = arith.truncf %318 : vector<64x256xf32> to vector<64x256xbf16>
    %c192_266 = arith.constant 192 : index
    %c0_267 = arith.constant 0 : index
    %320 = vector.load %arg8[%c192_266, %c0_267] : memref<576x256xbf16, #tpu.memory_space<vmem>>, vector<64x256xbf16>
    tpu.vector_store %arg8[%c192_266, %c0_267], %319 {strides = array<i32>} : memref<576x256xbf16, #tpu.memory_space<vmem>>, vector<64x256xbf16>,
    %c0_268 = arith.constant 0 : index
    %c128_269 = arith.constant 128 : index
    %321 = vector.load %arg7[%c0_268, %c128_269] : memref<64x512xf32, #tpu.memory_space<vmem>>, vector<64x256xf32>
    %322 = arith.truncf %321 : vector<64x256xf32> to vector<64x256xbf16>
    %c256_270 = arith.constant 256 : index
    %c0_271 = arith.constant 0 : index
    %323 = vector.load %arg8[%c256_270, %c0_271] : memref<576x256xbf16, #tpu.memory_space<vmem>>, vector<64x256xbf16>
    tpu.vector_store %arg8[%c256_270, %c0_271], %322 {strides = array<i32>} : memref<576x256xbf16, #tpu.memory_space<vmem>>, vector<64x256xbf16>,
    %c0_272 = arith.constant 0 : index
    %c129_273 = arith.constant 129 : index
    %324 = vector.load %arg7[%c0_272, %c129_273] : memref<64x512xf32, #tpu.memory_space<vmem>>, vector<64x256xf32>
    %325 = vector.broadcast %14 : vector<1x256xf32> to vector<64x256xf32>
    %326 = arith.mulf %324, %325 : vector<64x256xf32>
    %327 = arith.truncf %326 : vector<64x256xf32> to vector<64x256xbf16>
    %c320_274 = arith.constant 320 : index
    %c0_275 = arith.constant 0 : index
    %328 = vector.load %arg8[%c320_274, %c0_275] : memref<576x256xbf16, #tpu.memory_space<vmem>>, vector<64x256xbf16>
    tpu.vector_store %arg8[%c320_274, %c0_275], %327 {strides = array<i32>} : memref<576x256xbf16, #tpu.memory_space<vmem>>, vector<64x256xbf16>,
    %c0_276 = arith.constant 0 : index
    %c143_277 = arith.constant 143 : index
    %329 = vector.load %arg7[%c0_276, %c143_277] : memref<64x512xf32, #tpu.memory_space<vmem>>, vector<64x256xf32>
    %330 = vector.broadcast %10 : vector<1x256xf32> to vector<64x256xf32>
    %331 = arith.mulf %329, %330 : vector<64x256xf32>
    %332 = arith.truncf %331 : vector<64x256xf32> to vector<64x256xbf16>
    %c384_278 = arith.constant 384 : index
    %c0_279 = arith.constant 0 : index
    %333 = vector.load %arg8[%c384_278, %c0_279] : memref<576x256xbf16, #tpu.memory_space<vmem>>, vector<64x256xbf16>
    tpu.vector_store %arg8[%c384_278, %c0_279], %332 {strides = array<i32>} : memref<576x256xbf16, #tpu.memory_space<vmem>>, vector<64x256xbf16>,
    %c0_280 = arith.constant 0 : index
    %c144_281 = arith.constant 144 : index
    %334 = vector.load %arg7[%c0_280, %c144_281] : memref<64x512xf32, #tpu.memory_space<vmem>>, vector<64x256xf32>
    %335 = arith.truncf %334 : vector<64x256xf32> to vector<64x256xbf16>
    %c448_282 = arith.constant 448 : index
    %c0_283 = arith.constant 0 : index
    %336 = vector.load %arg8[%c448_282, %c0_283] : memref<576x256xbf16, #tpu.memory_space<vmem>>, vector<64x256xbf16>
    tpu.vector_store %arg8[%c448_282, %c0_283], %335 {strides = array<i32>} : memref<576x256xbf16, #tpu.memory_space<vmem>>, vector<64x256xbf16>,
    %c0_284 = arith.constant 0 : index
    %c145_285 = arith.constant 145 : index
    %337 = vector.load %arg7[%c0_284, %c145_285] : memref<64x512xf32, #tpu.memory_space<vmem>>, vector<64x256xf32>
    %338 = vector.broadcast %14 : vector<1x256xf32> to vector<64x256xf32>
    %339 = arith.mulf %337, %338 : vector<64x256xf32>
    %340 = arith.truncf %339 : vector<64x256xf32> to vector<64x256xbf16>
    %c512_286 = arith.constant 512 : index
    %c0_287 = arith.constant 0 : index
    %341 = vector.load %arg8[%c512_286, %c0_287] : memref<576x256xbf16, #tpu.memory_space<vmem>>, vector<64x256xbf16>
    tpu.vector_store %arg8[%c512_286, %c0_287], %340 {strides = array<i32>} : memref<576x256xbf16, #tpu.memory_space<vmem>>, vector<64x256xbf16>,
    %c5 = arith.constant 5 : index
    %c0_288 = arith.constant 0 : index
    %c0_289 = arith.constant 0 : index
    %342 = vector.load %arg3[%c5, %c0_288, %c0_289] : memref<6x64x576xbf16, #tpu.memory_space<vmem>>, vector<1x64x576xbf16>
    %343 = vector.shape_cast %342 : vector<1x64x576xbf16> to vector<64x576xbf16>
    %c0_290 = arith.constant 0 : index
    %c0_291 = arith.constant 0 : index
    %344 = vector.load %arg8[%c0_290, %c0_291] : memref<576x256xbf16, #tpu.memory_space<vmem>>, vector<576x256xbf16>
    %cst_292 = arith.constant dense<0.000000e+00> : vector<64x256xf32>
    %345 = tpu.matmul %343, %344, %cst_292 {dimension_numbers = #tpu.dot_dimension_numbers<[1], [0], [0], [1], [0, 0, 1, 1], [], []>} : vector<64x576xbf16>, vector<576x256xbf16>, vector<64x256xf32> -> vector<64x256xf32>
    %c5_293 = arith.constant 5 : index
    %c0_294 = arith.constant 0 : index
    %c0_295 = arith.constant 0 : index
    %346 = vector.load %arg4[%c5_293, %c0_294, %c0_295] : memref<6x64x1xf32, #tpu.memory_space<vmem>>, vector<1x64x1xf32>
    %347 = vector.shape_cast %346 : vector<1x64x1xf32> to vector<64x1xf32>
    %348 = vector.broadcast %347 : vector<64x1xf32> to vector<64x256xf32>
    %349 = arith.mulf %345, %348 : vector<64x256xf32>
    %c5_296 = arith.constant 5 : index
    %c0_297 = arith.constant 0 : index
    %c0_298 = arith.constant 0 : index
    %350 = vector.load %arg5[%c5_296, %c0_297, %c0_298] : memref<6x64x1xf32, #tpu.memory_space<vmem>>, vector<1x64x1xf32>
    %351 = vector.shape_cast %350 : vector<1x64x1xf32> to vector<64x1xf32>
    %352 = vector.broadcast %351 : vector<64x1xf32> to vector<64x256xf32>
    %353 = arith.addf %349, %352 : vector<64x256xf32>
    %cst_299 = arith.constant 0.000000e+00 : f32
    %354 = vector.broadcast %cst_299 : f32 to vector<64x256xf32>
    %355 = arith.maximumf %353, %354 : vector<64x256xf32>
    %356 = arith.addf %355, %247 : vector<64x256xf32>
    %c0_300 = arith.constant 0 : index
    %c0_301 = arith.constant 0 : index
    %c0_302 = arith.constant 0 : index
    %357 = vector.load %arg6[%c0_300, %c0_301, %c0_302] : memref<1x64x256xf32, #tpu.memory_space<vmem>>, vector<1x64x256xf32>
    %358 = vector.shape_cast %357 : vector<1x64x256xf32> to vector<64x256xf32>
    %359 = vector.shape_cast %356 : vector<64x256xf32> to vector<1x64x256xf32>
    tpu.vector_store %arg6[%c0_300, %c0_301, %c0_302], %359 {strides = array<i32>} : memref<1x64x256xf32, #tpu.memory_space<vmem>>, vector<1x64x256xf32>,
    return
  }
  func.func @transform_0(%arg0: i32) -> (i32, i32, i32) {
    %c0_i32 = arith.constant 0 : i32
    %c0_i32_0 = arith.constant 0 : i32
    %c0_i32_1 = arith.constant 0 : i32
    return %arg0, %c0_i32, %c0_i32_0 : i32, i32, i32
  }
  func.func @transform_1(%arg0: i32) -> (i32, i32, i32) {
    %c0_i32 = arith.constant 0 : i32
    %c0_i32_0 = arith.constant 0 : i32
    %c0_i32_1 = arith.constant 0 : i32
    return %arg0, %c0_i32, %c0_i32_0 : i32, i32, i32
  }
  func.func @transform_2(%arg0: i32) -> (i32, i32, i32) {
    %c0_i32 = arith.constant 0 : i32
    %c0_i32_0 = arith.constant 0 : i32
    %c0_i32_1 = arith.constant 0 : i32
    %c0_i32_2 = arith.constant 0 : i32
    return %c0_i32, %c0_i32_0, %c0_i32_1 : i32, i32, i32
  }
  func.func @transform_3(%arg0: i32) -> (i32, i32, i32) {
    %c0_i32 = arith.constant 0 : i32
    %c0_i32_0 = arith.constant 0 : i32
    %c0_i32_1 = arith.constant 0 : i32
    %c0_i32_2 = arith.constant 0 : i32
    return %c0_i32, %c0_i32_0, %c0_i32_1 : i32, i32, i32
  }
  func.func @transform_4(%arg0: i32) -> (i32, i32, i32) {
    %c0_i32 = arith.constant 0 : i32
    %c0_i32_0 = arith.constant 0 : i32
    %c0_i32_1 = arith.constant 0 : i32
    %c0_i32_2 = arith.constant 0 : i32
    return %c0_i32, %c0_i32_0, %c0_i32_1 : i32, i32, i32
  }
  func.func @transform_5(%arg0: i32) -> (i32, i32, i32) {
    %c0_i32 = arith.constant 0 : i32
    %c0_i32_0 = arith.constant 0 : i32
    %c0_i32_1 = arith.constant 0 : i32
    return %arg0, %c0_i32, %c0_i32_0 : i32, i32, i32
  }
}

</mosaic_0001>

<llo_original>
// kernel: rgc_forward.1
$region0: #{rgc_forward.1}
  #allocation0 [shape = 'u32[]', space=smem, size = 0x4, offset = 0x4, fixed_abs, tag = 'smem constant byte address 0x4 - core index']
  #allocation1 [shape = 'u32[144,128]{1,0:T(1,128)}', space=vmem, size = 0x12000, scoped, tag = 'internal scratch']
  #allocation2 [shape = 'f32[64,512]{1,0:T(8,128)}', space=vmem, size = 0x20000, scoped, tag = 'scratch operand']
  #allocation3 [shape = 'bf16[576,256]{1,0:T(16,128)(2,1)}', space=vmem, size = 0x48000, scoped, tag = 'scratch operand']
  %s0 = inlined_call_operand.vmem [shape: f32[2,64,256], index: 0, kind: input, shape index: {}]
  %s1 = inlined_call_operand.vmem [shape: f32[2,64,256], index: 1, kind: input, shape index: {}]
  %s2 = inlined_call_operand.vmem [shape: bf16[6,64,576], index: 2, kind: input, shape index: {}]
  %s3 = inlined_call_operand.vmem [shape: f32[6,64,1], index: 3, kind: input, shape index: {}]
  %s4 = inlined_call_operand.vmem [shape: f32[6,64,1], index: 4, kind: input, shape index: {}]
  %s5 = inlined_call_operand.vmem [shape: f32[2,64,256], index: 5, kind: output, shape index: {}]
  %s6 = sld [smem:[#allocation0]]
  $region53: #{rgc_forward.1} parent=0
    _
  %s8 = ssub.s32 1, %s6
  %s9 = scalar_select 0, %s8, %s6
  loop: start=0, step=1, limit=4
  $region2: #{rgc_forward.1} parent=0 // loop_pre_header
    _
  $region3: #{rgc_forward.1} parent=0 // loop_header
    %s11 = sphi 0, %s15
    %p12 = scmp.ge.s32.totalorder %s11, 4
    %s21 = sphi 0, %s23
    %s24 = sphi 0, %s21
    %s25 = sphi 0, %s24
    %s41 = sphi 0, %s25
    %s47 = sphi 0, %s49
    %s50 = sphi 0, %s47
    %s51 = sphi 0, %s50
    %s67 = sphi 0, %s51
    %s71 = sphi 0, %s71
    %s73 = sphi 0, %s71
    %s74 = sphi 0, %s73
    %s88 = sphi 0, %s74
    %s92 = sphi 0, %s92
    %s94 = sphi 0, %s92
    %s95 = sphi 0, %s94
    %s109 = sphi 0, %s95
    %s113 = sphi 0, %s113
    %s115 = sphi 0, %s113
    %s116 = sphi 0, %s115
    %s130 = sphi 0, %s116
    %s136 = sphi 0, %s138
    %s139 = sphi 0, %s136
    %s140 = sphi 0, %s139
    %s156 = sphi 0, %s140
  $region4: #{rgc_forward.1} parent=0 // loop_header_branch
    %14 = sbr.rel (%p12) target = $region8
  $region5: #{rgc_forward.1} parent=0 // loop_body
    %s16 = ssub.s32 %s11, 1
    %s17 = ssub.s32 %s11, 2
    %s18 = sadd.s32 %s11, 1
    %s19 = ssub.s32 %s11, %s18
    %p20 = scmp.eq.s32.totalorder %s19, 0
    %s22 = sadd.s32 %s21, 1
    %s23 = scalar_select %p20, %s21, %s22
    %p26 = pneg %p20
    %p27 = scmp.eq.s32.totalorder %s11, 1
    %p28 = por %p26, %p27
    %p29 = scmp.ne.s32.totalorder %s21, %s24
    %p30 = scmp.eq.s32.totalorder %s11, 0
    %p31 = por %p29, %p30
    %p32 = scmp.ne.s32.totalorder %s21, %s24
    %p33 = scmp.eq.s32.totalorder %s16, 1
    %p34 = por %p32, %p33
    %p35 = scmp.ne.s32.totalorder %s24, %s25
    %p36 = scmp.eq.s32.totalorder %s16, 0
    %p37 = por %p35, %p36
    %p38 = scmp.ne.s32.totalorder %s24, %s25
    %p39 = scmp.eq.s32.totalorder %s17, 1
    %p40 = por %p38, %p39
    %p42 = scmp.ne.s32.totalorder %s25, %s41
    %p43 = scmp.eq.s32.totalorder %s17, 0
    %p44 = por %p42, %p43
    %s45 = ssub.s32 %s11, %s18
    %p46 = scmp.eq.s32.totalorder %s45, 0
    %s48 = sadd.s32 %s47, 1
    %s49 = scalar_select %p46, %s47, %s48
    %p52 = pneg %p46
    %p53 = scmp.eq.s32.totalorder %s11, 1
    %p54 = por %p52, %p53
    %p55 = scmp.ne.s32.totalorder %s47, %s50
    %p56 = scmp.eq.s32.totalorder %s11, 0
    %p57 = por %p55, %p56
    %p58 = scmp.ne.s32.totalorder %s47, %s50
    %p59 = scmp.eq.s32.totalorder %s16, 1
    %p60 = por %p58, %p59
    %p61 = scmp.ne.s32.totalorder %s50, %s51
    %p62 = scmp.eq.s32.totalorder %s16, 0
    %p63 = por %p61, %p62
    %p64 = scmp.ne.s32.totalorder %s50, %s51
    %p65 = scmp.eq.s32.totalorder %s17, 1
    %p66 = por %p64, %p65
    %p68 = scmp.ne.s32.totalorder %s51, %s67
    %p69 = scmp.eq.s32.totalorder %s17, 0
    %p70 = por %p68, %p69
    %s72 = sadd.s32 %s71, 1
    %p75 = scmp.eq.s32.totalorder %s11, 1
    %p76 = scmp.ne.s32.totalorder %s71, %s73
    %p77 = scmp.eq.s32.totalorder %s11, 0
    %p78 = por %p76, %p77
    %p79 = scmp.ne.s32.totalorder %s71, %s73
    %p80 = scmp.eq.s32.totalorder %s16, 1
    %p81 = por %p79, %p80
    %p82 = scmp.ne.s32.totalorder %s73, %s74
    %p83 = scmp.eq.s32.totalorder %s16, 0
    %p84 = por %p82, %p83
    %p85 = scmp.ne.s32.totalorder %s73, %s74
    %p86 = scmp.eq.s32.totalorder %s17, 1
    %p87 = por %p85, %p86
    %p89 = scmp.ne.s32.totalorder %s74, %s88
    %p90 = scmp.eq.s32.totalorder %s17, 0
    %p91 = por %p89, %p90
    %s93 = sadd.s32 %s92, 1
    %p96 = scmp.eq.s32.totalorder %s11, 1
    %p97 = scmp.ne.s32.totalorder %s92, %s94
    %p98 = scmp.eq.s32.totalorder %s11, 0
    %p99 = por %p97, %p98
    %p100 = scmp.ne.s32.totalorder %s92, %s94
    %p101 = scmp.eq.s32.totalorder %s16, 1
    %p102 = por %p100, %p101
    %p103 = scmp.ne.s32.totalorder %s94, %s95
    %p104 = scmp.eq.s32.totalorder %s16, 0
    %p105 = por %p103, %p104
    %p106 = scmp.ne.s32.totalorder %s94, %s95
    %p107 = scmp.eq.s32.totalorder %s17, 1
    %p108 = por %p106, %p107
    %p110 = scmp.ne.s32.totalorder %s95, %s109
    %p111 = scmp.eq.s32.totalorder %s17, 0
    %p112 = por %p110, %p111
    %s114 = sadd.s32 %s113, 1
    %p117 = scmp.eq.s32.totalorder %s11, 1
    %p118 = scmp.ne.s32.totalorder %s113, %s115
    %p119 = scmp.eq.s32.totalorder %s11, 0
    %p120 = por %p118, %p119
    %p121 = scmp.ne.s32.totalorder %s113, %s115
    %p122 = scmp.eq.s32.totalorder %s16, 1
    %p123 = por %p121, %p122
    %p124 = scmp.ne.s32.totalorder %s115, %s116
    %p125 = scmp.eq.s32.totalorder %s16, 0
    %p126 = por %p124, %p125
    %p127 = scmp.ne.s32.totalorder %s115, %s116
    %p128 = scmp.eq.s32.totalorder %s17, 1
    %p129 = por %p127, %p128
    %p131 = scmp.ne.s32.totalorder %s116, %s130
    %p132 = scmp.eq.s32.totalorder %s17, 0
    %p133 = por %p131, %p132
    %s134 = ssub.s32 %s11, %s18
    %p135 = scmp.eq.s32.totalorder %s134, 0
    %s137 = sadd.s32 %s136, 1
    %s138 = scalar_select %p135, %s136, %s137
    %p141 = pneg %p135
    %p142 = scmp.eq.s32.totalorder %s11, 1
    %p143 = por %p141, %p142
    %p144 = scmp.ne.s32.totalorder %s136, %s139
    %p145 = scmp.eq.s32.totalorder %s11, 0
    %p146 = por %p144, %p145
    %p147 = scmp.ne.s32.totalorder %s136, %s139
    %p148 = scmp.eq.s32.totalorder %s16, 1
    %p149 = por %p147, %p148
    %p150 = scmp.ne.s32.totalorder %s139, %s140
    %p151 = scmp.eq.s32.totalorder %s16, 0
    %p152 = por %p150, %p151
    %p153 = scmp.ne.s32.totalorder %s139, %s140
    %p154 = scmp.eq.s32.totalorder %s17, 1
    %p155 = por %p153, %p154
    %p157 = scmp.ne.s32.totalorder %s140, %s156
    %p158 = scmp.eq.s32.totalorder %s17, 0
    %p159 = por %p157, %p158
    %p160 = scmp.le.s32.totalorder 1, %s11
    %p161 = scmp.lt.s32.totalorder %s11, 3
    %p162 = pnand %p160, %p161
    %p163 = pneg %p162
    // Predicated region
    $region9: #{rgc_forward.1} parent=5 // pred_check
      _
    $region10: #{rgc_forward.1} parent=5 // pred_check_branch
      %165 = sbr.rel (%p162) target = $region12
    $region11: #{rgc_forward.1} parent=5 // pred_region
      %s166 = ssub.s32 %s11, 1
      // Predicated region
      $region13: #{rgc_forward.1} parent=11 // pred_check
        %p167 = pneg %p84
      $region14: #{rgc_forward.1} parent=11 // pred_check_branch
        %169 = sbr.rel (%p167) target = $region16
      $region15: #{rgc_forward.1} parent=11 // pred_region
        _
      $region16: #{rgc_forward.1} parent=11 // pred_fallthru
        _
      // Predicated region
      $region17: #{rgc_forward.1} parent=11 // pred_check
        %p170 = pneg %p105
      $region18: #{rgc_forward.1} parent=11 // pred_check_branch
        %172 = sbr.rel (%p170) target = $region20
      $region19: #{rgc_forward.1} parent=11 // pred_region
        _
      $region20: #{rgc_forward.1} parent=11 // pred_fallthru
        _
      // Predicated region
      $region21: #{rgc_forward.1} parent=11 // pred_check
        %p173 = pneg %p126
      $region22: #{rgc_forward.1} parent=11 // pred_check_branch
        %175 = sbr.rel (%p173) target = $region24
      $region23: #{rgc_forward.1} parent=11 // pred_region
        _
      $region24: #{rgc_forward.1} parent=11 // pred_fallthru
        _
    $region12: #{rgc_forward.1} parent=5 // pred_fallthru
      _
    %p176 = scmp.lt.s32.totalorder %s11, 2
    // Predicated region
    $region25: #{rgc_forward.1} parent=5 // pred_check
      %p177 = pneg %p176
    $region26: #{rgc_forward.1} parent=5 // pred_check_branch
      %179 = sbr.rel (%p177) target = $region28
    $region27: #{rgc_forward.1} parent=5 // pred_region
      // Predicated region
      $region29: #{rgc_forward.1} parent=27 // pred_check
        %p180 = pneg %p31
      $region30: #{rgc_forward.1} parent=27 // pred_check_branch
        %182 = sbr.rel (%p180) target = $region32
      $region31: #{rgc_forward.1} parent=27 // pred_region
        %p183 = scmp.lt.s32.totalorder %s11, 1
        %s184 = scalar_select %p183, %s11, 1
        %s185 = smul.addr %s184, 16
        %s186 = smul.addr %s185, 8
        %s187 = scalar_lea.vmem %s0, %s186
      $region32: #{rgc_forward.1} parent=27 // pred_fallthru
        _
      // Predicated region
      $region33: #{rgc_forward.1} parent=27 // pred_check
        %p188 = pneg %p57
      $region34: #{rgc_forward.1} parent=27 // pred_check_branch
        %190 = sbr.rel (%p188) target = $region36
      $region35: #{rgc_forward.1} parent=27 // pred_region
        %p191 = scmp.lt.s32.totalorder %s11, 1
        %s192 = scalar_select %p191, %s11, 1
        %s193 = smul.addr %s192, 16
        %s194 = smul.addr %s193, 8
        %s195 = scalar_lea.vmem %s1, %s194
      $region36: #{rgc_forward.1} parent=27 // pred_fallthru
        _
    $region28: #{rgc_forward.1} parent=5 // pred_fallthru
      _
    %p196 = scmp.le.s32.totalorder 1, %s11
    %p197 = scmp.lt.s32.totalorder %s11, 3
    %p198 = pnand %p196, %p197
    %p199 = pneg %p198
    // Predicated region
    $region37: #{rgc_forward.1} parent=5 // pred_check
      _
    $region38: #{rgc_forward.1} parent=5 // pred_check_branch
      %201 = sbr.rel (%p198) target = $region40
    $region39: #{rgc_forward.1} parent=5 // pred_region
      %s202 = ssub.s32 %s11, 1
      %p203 = scmp.lt.s32.totalorder %s16, 1
      %s204 = scalar_select %p203, %s16, 1
      %s205 = smul.addr %s204, 16
      %s206 = smul.addr %s205, 8
      %s207 = scalar_lea.vmem %s0, %s206
      %p208 = pneg %p37
      %p209 = pneg %p34
      %p210 = scmp.lt.s32.totalorder %s16, 1
      %s211 = scalar_select %p210, %s16, 1
      %s212 = smul.addr %s211, 16
      %s213 = smul.addr %s212, 8
      %s214 = scalar_lea.vmem %s1, %s213
      %p215 = pneg %p63
      %p216 = pneg %p60
      %p217 = pneg %p84
      %p218 = pneg %p81
      %p219 = pneg %p105
      %p220 = pneg %p102
      %p221 = pneg %p126
      %p222 = pneg %p123
      %p223 = pneg %p152
      %p224 = pneg %p149
      %p225 = scmp.lt.s32.totalorder %s16, 1
      %s226 = scalar_select %p225, %s16, 1
      %s227 = smul.addr %s226, 16
      %s228 = smul.addr %s227, 8
      %s229 = scalar_lea.vmem %s5, %s228
      %p230 = scmp.lt.s32.totalorder %s16, 1
      %s231 = scalar_select %p230, %s16, 1
      %s232 = smul.addr %s231, 16
      %s233 = smul.addr %s232, 8
      %s234 = scalar_lea.vmem %s0, %s233
      %p235 = scmp.lt.s32.totalorder %s16, 1
      %s236 = scalar_select %p235, %s16, 1
      %s237 = smul.addr %s236, 16
      %s238 = smul.addr %s237, 8
      %s239 = scalar_lea.vmem %s1, %s238
      %p240 = scmp.lt.s32.totalorder %s16, 1
      %s241 = scalar_select %p240, %s16, 1
      %s242 = smul.addr %s241, 16
      %s243 = smul.addr %s242, 8
      %s244 = scalar_lea.vmem %s5, %s243
      %246 = vst [vmem:[#allocation2] sm:$0xff] 0.0
      %247 = vst [vmem:[#allocation2 + $0x20] sm:$0xff] 0.0
      %248 = vst [vmem:[#allocation2 + $0x40] sm:$0xff] 0.0
      %249 = vst [vmem:[#allocation2 + $0x60] sm:$0xff] 0.0
      %250 = vst [vmem:[#allocation2 + $0x80] sm:$0xff] 0.0
      %251 = vst [vmem:[#allocation2 + $0xa0] sm:$0xff] 0.0
      %252 = vst [vmem:[#allocation2 + $0xc0] sm:$0xff] 0.0
      %253 = vst [vmem:[#allocation2 + $0xe0] sm:$0xff] 0.0
      %254 = vst [vmem:[#allocation2 + $0x18] sm:$0xff] 0.0
      %255 = vst [vmem:[#allocation2 + $0x38] sm:$0xff] 0.0
      %256 = vst [vmem:[#allocation2 + $0x58] sm:$0xff] 0.0
      %257 = vst [vmem:[#allocation2 + $0x78] sm:$0xff] 0.0
      %258 = vst [vmem:[#allocation2 + $0x98] sm:$0xff] 0.0
      %259 = vst [vmem:[#allocation2 + $0xb8] sm:$0xff] 0.0
      %260 = vst [vmem:[#allocation2 + $0xd8] sm:$0xff] 0.0
      %261 = vst [vmem:[#allocation2 + $0xf8] sm:$0xff] 0.0
      %v262 = vlaneseq
      %v263 = vand.u32 %v262, 127
      %v264 = vadd.s32 %v263, 128
      %v265 = vand.u32 %v263, 15
      %v266 = vand.u32 %v264, 15
      %vm267 = vcmp.ne.s32.totalorder %v265, 0
      %vm268 = vcmp.ne.s32.totalorder %v266, 0
      %v269 = vsel %vm267, 1, 0
      %v270 = vsel %vm268, 1, 0
      %v271 = vcvt.s32.f32 %v269
      %v272 = vcvt.s32.f32 %v270
      %vm273 = vcmp.ne.s32.totalorder %v265, 15
      %vm274 = vcmp.ne.s32.totalorder %v266, 15
      %v275 = vsel %vm273, 1, 0
      %v276 = vsel %vm274, 1, 0
      %v277 = vcvt.s32.f32 %v275
      %v278 = vcvt.s32.f32 %v276
      %v279 = vld [vmem:[%s234] sm:$0xff]
      %v280 = vld [vmem:[%s234 + $0x8] sm:$0xff]
      %v281 = vld [vmem:[%s234 + $0x10] sm:$0xff]
      %v282 = vld [vmem:[%s234 + $0x18] sm:$0xff]
      %v283 = vld [vmem:[%s234 + $0x20] sm:$0xff]
      %v284 = vld [vmem:[%s234 + $0x28] sm:$0xff]
      %v285 = vld [vmem:[%s234 + $0x30] sm:$0xff]
      %v286 = vld [vmem:[%s234 + $0x38] sm:$0xff]
      %v287 = vld [vmem:[%s234 + $0x40] sm:$0xff]
      %v288 = vld [vmem:[%s234 + $0x48] sm:$0xff]
      %v289 = vld [vmem:[%s234 + $0x50] sm:$0xff]
      %v290 = vld [vmem:[%s234 + $0x58] sm:$0xff]
      %v291 = vld [vmem:[%s234 + $0x60] sm:$0xff]
      %v292 = vld [vmem:[%s234 + $0x68] sm:$0xff]
      %v293 = vld [vmem:[%s234 + $0x70] sm:$0xff]
      %v294 = vld [vmem:[%s234 + $0x78] sm:$0xff]
      %295 = vst [vmem:[#allocation2 + $0x8] sm:$0xff] %v279
      %296 = vst [vmem:[#allocation2 + $0x10] sm:$0xff] %v280
      %297 = vst [vmem:[#allocation2 + $0x28] sm:$0xff] %v281
      %298 = vst [vmem:[#allocation2 + $0x30] sm:$0xff] %v282
      %299 = vst [vmem:[#allocation2 + $0x48] sm:$0xff] %v283
      %300 = vst [vmem:[#allocation2 + $0x50] sm:$0xff] %v284
      %301 = vst [vmem:[#allocation2 + $0x68] sm:$0xff] %v285
      %302 = vst [vmem:[#allocation2 + $0x70] sm:$0xff] %v286
      %303 = vst [vmem:[#allocation2 + $0x88] sm:$0xff] %v287
      %304 = vst [vmem:[#allocation2 + $0x90] sm:$0xff] %v288
      %305 = vst [vmem:[#allocation2 + $0xa8] sm:$0xff] %v289
      %306 = vst [vmem:[#allocation2 + $0xb0] sm:$0xff] %v290
      %307 = vst [vmem:[#allocation2 + $0xc8] sm:$0xff] %v291
      %308 = vst [vmem:[#allocation2 + $0xd0] sm:$0xff] %v292
      %309 = vst [vmem:[#allocation2 + $0xe8] sm:$0xff] %v293
      %310 = vst [vmem:[#allocation2 + $0xf0] sm:$0xff] %v294
      %v311 = vld [vmem:[#allocation2] sm:$0xff]
      %v312 = vld [vmem:[#allocation2 + $0x8] sm:$0xff]
      %v313 = vld [vmem:[#allocation2 + $0x10] sm:$0xff]
      %v314 = vld [vmem:[#allocation2 + $0x20] sm:$0xff]
      %v315 = vld [vmem:[#allocation2 + $0x28] sm:$0xff]
      %v316 = vld [vmem:[#allocation2 + $0x30] sm:$0xff]
      %v317 = vld [vmem:[#allocation2 + $0x40] sm:$0xff]
      %v318 = vld [vmem:[#allocation2 + $0x48] sm:$0xff]
      %v319 = vld [vmem:[#allocation2 + $0x50] sm:$0xff]
      %v320 = vld [vmem:[#allocation2 + $0x60] sm:$0xff]
      %v321 = vld [vmem:[#allocation2 + $0x68] sm:$0xff]
      %v322 = vld [vmem:[#allocation2 + $0x70] sm:$0xff]
      %v323 = vld [vmem:[#allocation2 + $0x80] sm:$0xff]
      %v324 = vld [vmem:[#allocation2 + $0x88] sm:$0xff]
      %v325 = vld [vmem:[#allocation2 + $0x90] sm:$0xff]
      %v326 = vld [vmem:[#allocation2 + $0xa0] sm:$0xff]
      %v327 = vld [vmem:[#allocation2 + $0xa8] sm:$0xff]
      %v328 = vld [vmem:[#allocation2 + $0xb0] sm:$0xff]
      %v329 = vld [vmem:[#allocation2 + $0xc0] sm:$0xff]
      %v330 = vld [vmem:[#allocation2 + $0xc8] sm:$0xff]
      %v331 = vld [vmem:[#allocation2 + $0xd0] sm:$0xff]
      %v332 = vld [vmem:[#allocation2 + $0xe0] sm:$0xff]
      %v333 = vld [vmem:[#allocation2 + $0xe8] sm:$0xff]
      %v334 = vld [vmem:[#allocation2 + $0xf0] sm:$0xff]
      %337 = vrot.lane.b32.xlu0 %v271, 111
      %v338 = vpop.permute.xlu0 %337
      %339 = vrot.lane.b32.xlu0 %v272, 111
      %v340 = vpop.permute.xlu0 %339
      %vm341 = vcmask 908288
      %v342 = vsel %vm341, %v338, %v340
      %v346 = vmul.f32 %v311, %v338
      %v347 = vmul.f32 %v312, %v342
      %v348 = vmul.f32 %v313, %v340
      %v349 = vmul.f32 %v314, %v338
      %v350 = vmul.f32 %v315, %v342
      %v351 = vmul.f32 %v316, %v340
      %v352 = vmul.f32 %v317, %v338
      %v353 = vmul.f32 %v318, %v342
      %v354 = vmul.f32 %v319, %v340
      %v355 = vmul.f32 %v320, %v338
      %v356 = vmul.f32 %v321, %v342
      %v357 = vmul.f32 %v322, %v340
      %v358 = vmul.f32 %v323, %v338
      %v359 = vmul.f32 %v324, %v342
      %v360 = vmul.f32 %v325, %v340
      %v361 = vmul.f32 %v326, %v338
      %v362 = vmul.f32 %v327, %v342
      %v363 = vmul.f32 %v328, %v340
      %v364 = vmul.f32 %v329, %v338
      %v365 = vmul.f32 %v330, %v342
      %v366 = vmul.f32 %v331, %v340
      %v367 = vmul.f32 %v332, %v338
      %v368 = vmul.f32 %v333, %v342
      %v369 = vmul.f32 %v334, %v340
      %v370 = vpack.c.bf16 %v349, %v346
      %v371 = vpack.c.bf16 %v350, %v347
      %v372 = vpack.c.bf16 %v351, %v348
      %v373 = vpack.c.bf16 %v355, %v352
      %v374 = vpack.c.bf16 %v356, %v353
      %v375 = vpack.c.bf16 %v357, %v354
      %v376 = vpack.c.bf16 %v361, %v358
      %v377 = vpack.c.bf16 %v362, %v359
      %v378 = vpack.c.bf16 %v363, %v360
      %v379 = vpack.c.bf16 %v367, %v364
      %v380 = vpack.c.bf16 %v368, %v365
      %v381 = vpack.c.bf16 %v369, %v366
      %394 = vrot.lane.b32.xlu0 %v370, 17
      %v395 = vpop.permute.xlu0 %394
      %396 = vrot.lane.b32.xlu0 %v371, 17
      %v397 = vpop.permute.xlu0 %396
      %398 = vrot.lane.b32.xlu0 %v372, 17
      %v399 = vpop.permute.xlu0 %398
      %400 = vrot.lane.b32.xlu0 %v373, 17
      %v401 = vpop.permute.xlu0 %400
      %402 = vrot.lane.b32.xlu0 %v374, 17
      %v403 = vpop.permute.xlu0 %402
      %404 = vrot.lane.b32.xlu0 %v375, 17
      %v405 = vpop.permute.xlu0 %404
      %406 = vrot.lane.b32.xlu0 %v376, 17
      %v407 = vpop.permute.xlu0 %406
      %408 = vrot.lane.b32.xlu0 %v377, 17
      %v409 = vpop.permute.xlu0 %408
      %410 = vrot.lane.b32.xlu0 %v378, 17
      %v411 = vpop.permute.xlu0 %410
      %412 = vrot.lane.b32.xlu0 %v379, 17
      %v413 = vpop.permute.xlu0 %412
      %414 = vrot.lane.b32.xlu0 %v380, 17
      %v415 = vpop.permute.xlu0 %414
      %416 = vrot.lane.b32.xlu0 %v381, 17
      %v417 = vpop.permute.xlu0 %416
      %vm418 = vcmask 138240
      %v419 = vsel %vm418, %v395, %v397
      %v420 = vsel %vm418, %v397, %v399
      %v421 = vsel %vm418, %v401, %v403
      %v422 = vsel %vm418, %v403, %v405
      %v423 = vsel %vm418, %v407, %v409
      %v424 = vsel %vm418, %v409, %v411
      %v425 = vsel %vm418, %v413, %v415
      %v426 = vsel %vm418, %v415, %v417
      %435 = vst [vmem:[#allocation3] sm:$0xff] %v419
      %436 = vst [vmem:[#allocation3 + $0x8] sm:$0xff] %v420
      %437 = vst [vmem:[#allocation3 + $0x10] sm:$0xff] %v421
      %438 = vst [vmem:[#allocation3 + $0x18] sm:$0xff] %v422
      %439 = vst [vmem:[#allocation3 + $0x20] sm:$0xff] %v423
      %440 = vst [vmem:[#allocation3 + $0x28] sm:$0xff] %v424
      %441 = vst [vmem:[#allocation3 + $0x30] sm:$0xff] %v425
      %442 = vst [vmem:[#allocation3 + $0x38] sm:$0xff] %v426
      %v443 = vld [vmem:[#allocation2] sm:$0xff]
      %v444 = vld [vmem:[#allocation2 + $0x8] sm:$0xff]
      %v445 = vld [vmem:[#allocation2 + $0x10] sm:$0xff]
      %v446 = vld [vmem:[#allocation2 + $0x20] sm:$0xff]
      %v447 = vld [vmem:[#allocation2 + $0x28] sm:$0xff]
      %v448 = vld [vmem:[#allocation2 + $0x30] sm:$0xff]
      %v449 = vld [vmem:[#allocation2 + $0x40] sm:$0xff]
      %v450 = vld [vmem:[#allocation2 + $0x48] sm:$0xff]
      %v451 = vld [vmem:[#allocation2 + $0x50] sm:$0xff]
      %v452 = vld [vmem:[#allocation2 + $0x60] sm:$0xff]
      %v453 = vld [vmem:[#allocation2 + $0x68] sm:$0xff]
      %v454 = vld [vmem:[#allocation2 + $0x70] sm:$0xff]
      %v455 = vld [vmem:[#allocation2 + $0x80] sm:$0xff]
      %v456 = vld [vmem:[#allocation2 + $0x88] sm:$0xff]
      %v457 = vld [vmem:[#allocation2 + $0x90] sm:$0xff]
      %v458 = vld [vmem:[#allocation2 + $0xa0] sm:$0xff]
      %v459 = vld [vmem:[#allocation2 + $0xa8] sm:$0xff]
      %v460 = vld [vmem:[#allocation2 + $0xb0] sm:$0xff]
      %v461 = vld [vmem:[#allocation2 + $0xc0] sm:$0xff]
      %v462 = vld [vmem:[#allocation2 + $0xc8] sm:$0xff]
      %v463 = vld [vmem:[#allocation2 + $0xd0] sm:$0xff]
      %v464 = vld [vmem:[#allocation2 + $0xe0] sm:$0xff]
      %v465 = vld [vmem:[#allocation2 + $0xe8] sm:$0xff]
      %v466 = vld [vmem:[#allocation2 + $0xf0] sm:$0xff]
      %v467 = vpack.c.bf16 %v446, %v443
      %v468 = vpack.c.bf16 %v447, %v444
      %v469 = vpack.c.bf16 %v448, %v445
      %v470 = vpack.c.bf16 %v452, %v449
      %v471 = vpack.c.bf16 %v453, %v450
      %v472 = vpack.c.bf16 %v454, %v451
      %v473 = vpack.c.bf16 %v458, %v455
      %v474 = vpack.c.bf16 %v459, %v456
      %v475 = vpack.c.bf16 %v460, %v457
      %v476 = vpack.c.bf16 %v464, %v461
      %v477 = vpack.c.bf16 %v465, %v462
      %v478 = vpack.c.bf16 %v466, %v463
      %491 = vrot.lane.b32.xlu0 %v467, 16
      %v492 = vpop.permute.xlu0 %491
      %493 = vrot.lane.b32.xlu0 %v468, 16
      %v494 = vpop.permute.xlu0 %493
      %495 = vrot.lane.b32.xlu0 %v469, 16
      %v496 = vpop.permute.xlu0 %495
      %497 = vrot.lane.b32.xlu0 %v470, 16
      %v498 = vpop.permute.xlu0 %497
      %499 = vrot.lane.b32.xlu0 %v471, 16
      %v500 = vpop.permute.xlu0 %499
      %501 = vrot.lane.b32.xlu0 %v472, 16
      %v502 = vpop.permute.xlu0 %501
      %503 = vrot.lane.b32.xlu0 %v473, 16
      %v504 = vpop.permute.xlu0 %503
      %505 = vrot.lane.b32.xlu0 %v474, 16
      %v506 = vpop.permute.xlu0 %505
      %507 = vrot.lane.b32.xlu0 %v475, 16
      %v508 = vpop.permute.xlu0 %507
      %509 = vrot.lane.b32.xlu0 %v476, 16
      %v510 = vpop.permute.xlu0 %509
      %511 = vrot.lane.b32.xlu0 %v477, 16
      %v512 = vpop.permute.xlu0 %511
      %513 = vrot.lane.b32.xlu0 %v478, 16
      %v514 = vpop.permute.xlu0 %513
      %vm515 = vcmask 130048
      %v516 = vsel %vm515, %v492, %v494
      %v517 = vsel %vm515, %v494, %v496
      %v518 = vsel %vm515, %v498, %v500
      %v519 = vsel %vm515, %v500, %v502
      %v520 = vsel %vm515, %v504, %v506
      %v521 = vsel %vm515, %v506, %v508
      %v522 = vsel %vm515, %v510, %v512
      %v523 = vsel %vm515, %v512, %v514
      %532 = vst [vmem:[#allocation3 + $0x40] sm:$0xff] %v516
      %533 = vst [vmem:[#allocation3 + $0x48] sm:$0xff] %v517
      %534 = vst [vmem:[#allocation3 + $0x50] sm:$0xff] %v518
      %535 = vst [vmem:[#allocation3 + $0x58] sm:$0xff] %v519
      %536 = vst [vmem:[#allocation3 + $0x60] sm:$0xff] %v520
      %537 = vst [vmem:[#allocation3 + $0x68] sm:$0xff] %v521
      %538 = vst [vmem:[#allocation3 + $0x70] sm:$0xff] %v522
      %539 = vst [vmem:[#allocation3 + $0x78] sm:$0xff] %v523
      %v540 = vld [vmem:[#allocation2] sm:$0xff]
      %v541 = vld [vmem:[#allocation2 + $0x8] sm:$0xff]
      %v542 = vld [vmem:[#allocation2 + $0x10] sm:$0xff]
      %v543 = vld [vmem:[#allocation2 + $0x20] sm:$0xff]
      %v544 = vld [vmem:[#allocation2 + $0x28] sm:$0xff]
      %v545 = vld [vmem:[#allocation2 + $0x30] sm:$0xff]
      %v546 = vld [vmem:[#allocation2 + $0x40] sm:$0xff]
      %v547 = vld [vmem:[#allocation2 + $0x48] sm:$0xff]
      %v548 = vld [vmem:[#allocation2 + $0x50] sm:$0xff]
      %v549 = vld [vmem:[#allocation2 + $0x60] sm:$0xff]
      %v550 = vld [vmem:[#allocation2 + $0x68] sm:$0xff]
      %v551 = vld [vmem:[#allocation2 + $0x70] sm:$0xff]
      %v552 = vld [vmem:[#allocation2 + $0x80] sm:$0xff]
      %v553 = vld [vmem:[#allocation2 + $0x88] sm:$0xff]
      %v554 = vld [vmem:[#allocation2 + $0x90] sm:$0xff]
      %v555 = vld [vmem:[#allocation2 + $0xa0] sm:$0xff]
      %v556 = vld [vmem:[#allocation2 + $0xa8] sm:$0xff]
      %v557 = vld [vmem:[#allocation2 + $0xb0] sm:$0xff]
      %v558 = vld [vmem:[#allocation2 + $0xc0] sm:$0xff]
      %v559 = vld [vmem:[#allocation2 + $0xc8] sm:$0xff]
      %v560 = vld [vmem:[#allocation2 + $0xd0] sm:$0xff]
      %v561 = vld [vmem:[#allocation2 + $0xe0] sm:$0xff]
      %v562 = vld [vmem:[#allocation2 + $0xe8] sm:$0xff]
      %v563 = vld [vmem:[#allocation2 + $0xf0] sm:$0xff]
      %566 = vrot.lane.b32.xlu0 %v277, 113
      %v567 = vpop.permute.xlu0 %566
      %568 = vrot.lane.b32.xlu0 %v278, 113
      %v569 = vpop.permute.xlu0 %568
      %vm570 = vcmask 924672
      %v571 = vsel %vm570, %v567, %v569
      %v575 = vmul.f32 %v540, %v567
      %v576 = vmul.f32 %v541, %v571
      %v577 = vmul.f32 %v542, %v569
      %v578 = vmul.f32 %v543, %v567
      %v579 = vmul.f32 %v544, %v571
      %v580 = vmul.f32 %v545, %v569
      %v581 = vmul.f32 %v546, %v567
      %v582 = vmul.f32 %v547, %v571
      %v583 = vmul.f32 %v548, %v569
      %v584 = vmul.f32 %v549, %v567
      %v585 = vmul.f32 %v550, %v571
      %v586 = vmul.f32 %v551, %v569
      %v587 = vmul.f32 %v552, %v567
      %v588 = vmul.f32 %v553, %v571
      %v589 = vmul.f32 %v554, %v569
      %v590 = vmul.f32 %v555, %v567
      %v591 = vmul.f32 %v556, %v571
      %v592 = vmul.f32 %v557, %v569
      %v593 = vmul.f32 %v558, %v567
      %v594 = vmul.f32 %v559, %v571
      %v595 = vmul.f32 %v560, %v569
      %v596 = vmul.f32 %v561, %v567
      %v597 = vmul.f32 %v562, %v571
      %v598 = vmul.f32 %v563, %v569
      %v599 = vpack.c.bf16 %v578, %v575
      %v600 = vpack.c.bf16 %v579, %v576
      %v601 = vpack.c.bf16 %v580, %v577
      %v602 = vpack.c.bf16 %v584, %v581
      %v603 = vpack.c.bf16 %v585, %v582
      %v604 = vpack.c.bf16 %v586, %v583
      %v605 = vpack.c.bf16 %v590, %v587
      %v606 = vpack.c.bf16 %v591, %v588
      %v607 = vpack.c.bf16 %v592, %v589
      %v608 = vpack.c.bf16 %v596, %v593
      %v609 = vpack.c.bf16 %v597, %v594
      %v610 = vpack.c.bf16 %v598, %v595
      %623 = vrot.lane.b32.xlu0 %v599, 15
      %v624 = vpop.permute.xlu0 %623
      %625 = vrot.lane.b32.xlu0 %v600, 15
      %v626 = vpop.permute.xlu0 %625
      %627 = vrot.lane.b32.xlu0 %v601, 15
      %v628 = vpop.permute.xlu0 %627
      %629 = vrot.lane.b32.xlu0 %v602, 15
      %v630 = vpop.permute.xlu0 %629
      %631 = vrot.lane.b32.xlu0 %v603, 15
      %v632 = vpop.permute.xlu0 %631
      %633 = vrot.lane.b32.xlu0 %v604, 15
      %v634 = vpop.permute.xlu0 %633
      %635 = vrot.lane.b32.xlu0 %v605, 15
      %v636 = vpop.permute.xlu0 %635
      %637 = vrot.lane.b32.xlu0 %v606, 15
      %v638 = vpop.permute.xlu0 %637
      %639 = vrot.lane.b32.xlu0 %v607, 15
      %v640 = vpop.permute.xlu0 %639
      %641 = vrot.lane.b32.xlu0 %v608, 15
      %v642 = vpop.permute.xlu0 %641
      %643 = vrot.lane.b32.xlu0 %v609, 15
      %v644 = vpop.permute.xlu0 %643
      %645 = vrot.lane.b32.xlu0 %v610, 15
      %v646 = vpop.permute.xlu0 %645
      %vm647 = vcmask 121856
      %v648 = vsel %vm647, %v624, %v626
      %v649 = vsel %vm647, %v626, %v628
      %v650 = vsel %vm647, %v630, %v632
      %v651 = vsel %vm647, %v632, %v634
      %v652 = vsel %vm647, %v636, %v638
      %v653 = vsel %vm647, %v638, %v640
      %v654 = vsel %vm647, %v642, %v644
      %v655 = vsel %vm647, %v644, %v646
      %664 = vst [vmem:[#allocation3 + $0x80] sm:$0xff] %v648
      %665 = vst [vmem:[#allocation3 + $0x88] sm:$0xff] %v649
      %666 = vst [vmem:[#allocation3 + $0x90] sm:$0xff] %v650
      %667 = vst [vmem:[#allocation3 + $0x98] sm:$0xff] %v651
      %668 = vst [vmem:[#allocation3 + $0xa0] sm:$0xff] %v652
      %669 = vst [vmem:[#allocation3 + $0xa8] sm:$0xff] %v653
      %670 = vst [vmem:[#allocation3 + $0xb0] sm:$0xff] %v654
      %671 = vst [vmem:[#allocation3 + $0xb8] sm:$0xff] %v655
      %v672 = vld [vmem:[#allocation2] sm:$0xff]
      %v673 = vld [vmem:[#allocation2 + $0x8] sm:$0xff]
      %v674 = vld [vmem:[#allocation2 + $0x10] sm:$0xff]
      %v675 = vld [vmem:[#allocation2 + $0x20] sm:$0xff]
      %v676 = vld [vmem:[#allocation2 + $0x28] sm:$0xff]
      %v677 = vld [vmem:[#allocation2 + $0x30] sm:$0xff]
      %v678 = vld [vmem:[#allocation2 + $0x40] sm:$0xff]
      %v679 = vld [vmem:[#allocation2 + $0x48] sm:$0xff]
      %v680 = vld [vmem:[#allocation2 + $0x50] sm:$0xff]
      %v681 = vld [vmem:[#allocation2 + $0x60] sm:$0xff]
      %v682 = vld [vmem:[#allocation2 + $0x68] sm:$0xff]
      %v683 = vld [vmem:[#allocation2 + $0x70] sm:$0xff]
      %v684 = vld [vmem:[#allocation2 + $0x80] sm:$0xff]
      %v685 = vld [vmem:[#allocation2 + $0x88] sm:$0xff]
      %v686 = vld [vmem:[#allocation2 + $0x90] sm:$0xff]
      %v687 = vld [vmem:[#allocation2 + $0xa0] sm:$0xff]
      %v688 = vld [vmem:[#allocation2 + $0xa8] sm:$0xff]
      %v689 = vld [vmem:[#allocation2 + $0xb0] sm:$0xff]
      %v690 = vld [vmem:[#allocation2 + $0xc0] sm:$0xff]
      %v691 = vld [vmem:[#allocation2 + $0xc8] sm:$0xff]
      %v692 = vld [vmem:[#allocation2 + $0xd0] sm:$0xff]
      %v693 = vld [vmem:[#allocation2 + $0xe0] sm:$0xff]
      %v694 = vld [vmem:[#allocation2 + $0xe8] sm:$0xff]
      %v695 = vld [vmem:[#allocation2 + $0xf0] sm:$0xff]
      %696 = vrot.lane.b32.xlu0 %v271, 127
      %v697 = vpop.permute.xlu0 %696
      %698 = vrot.lane.b32.xlu0 %v272, 127
      %v699 = vpop.permute.xlu0 %698
      %vm700 = vcmask 1039360
      %v701 = vsel %vm700, %v697, %v699
      %v705 = vmul.f32 %v672, %v697
      %v706 = vmul.f32 %v673, %v701
      %v707 = vmul.f32 %v674, %v699
      %v708 = vmul.f32 %v675, %v697
      %v709 = vmul.f32 %v676, %v701
      %v710 = vmul.f32 %v677, %v699
      %v711 = vmul.f32 %v678, %v697
      %v712 = vmul.f32 %v679, %v701
      %v713 = vmul.f32 %v680, %v699
      %v714 = vmul.f32 %v681, %v697
      %v715 = vmul.f32 %v682, %v701
      %v716 = vmul.f32 %v683, %v699
      %v717 = vmul.f32 %v684, %v697
      %v718 = vmul.f32 %v685, %v701
      %v719 = vmul.f32 %v686, %v699
      %v720 = vmul.f32 %v687, %v697
      %v721 = vmul.f32 %v688, %v701
      %v722 = vmul.f32 %v689, %v699
      %v723 = vmul.f32 %v690, %v697
      %v724 = vmul.f32 %v691, %v701
      %v725 = vmul.f32 %v692, %v699
      %v726 = vmul.f32 %v693, %v697
      %v727 = vmul.f32 %v694, %v701
      %v728 = vmul.f32 %v695, %v699
      %v729 = vpack.c.bf16 %v708, %v705
      %v730 = vpack.c.bf16 %v709, %v706
      %v731 = vpack.c.bf16 %v710, %v707
      %v732 = vpack.c.bf16 %v714, %v711
      %v733 = vpack.c.bf16 %v715, %v712
      %v734 = vpack.c.bf16 %v716, %v713
      %v735 = vpack.c.bf16 %v720, %v717
      %v736 = vpack.c.bf16 %v721, %v718
      %v737 = vpack.c.bf16 %v722, %v719
      %v738 = vpack.c.bf16 %v726, %v723
      %v739 = vpack.c.bf16 %v727, %v724
      %v740 = vpack.c.bf16 %v728, %v725
      %753 = vrot.lane.b32.xlu0 %v729, 1
      %v754 = vpop.permute.xlu0 %753
      %755 = vrot.lane.b32.xlu0 %v730, 1
      %v756 = vpop.permute.xlu0 %755
      %757 = vrot.lane.b32.xlu0 %v731, 1
      %v758 = vpop.permute.xlu0 %757
      %759 = vrot.lane.b32.xlu0 %v732, 1
      %v760 = vpop.permute.xlu0 %759
      %761 = vrot.lane.b32.xlu0 %v733, 1
      %v762 = vpop.permute.xlu0 %761
      %763 = vrot.lane.b32.xlu0 %v734, 1
      %v764 = vpop.permute.xlu0 %763
      %765 = vrot.lane.b32.xlu0 %v735, 1
      %v766 = vpop.permute.xlu0 %765
      %767 = vrot.lane.b32.xlu0 %v736, 1
      %v768 = vpop.permute.xlu0 %767
      %769 = vrot.lane.b32.xlu0 %v737, 1
      %v770 = vpop.permute.xlu0 %769
      %771 = vrot.lane.b32.xlu0 %v738, 1
      %v772 = vpop.permute.xlu0 %771
      %773 = vrot.lane.b32.xlu0 %v739, 1
      %v774 = vpop.permute.xlu0 %773
      %775 = vrot.lane.b32.xlu0 %v740, 1
      %v776 = vpop.permute.xlu0 %775
      %vm777 = vcmask 7168
      %v778 = vsel %vm777, %v754, %v756
      %v779 = vsel %vm777, %v756, %v758
      %v780 = vsel %vm777, %v760, %v762
      %v781 = vsel %vm777, %v762, %v764
      %v782 = vsel %vm777, %v766, %v768
      %v783 = vsel %vm777, %v768, %v770
      %v784 = vsel %vm777, %v772, %v774
      %v785 = vsel %vm777, %v774, %v776
      %794 = vst [vmem:[#allocation3 + $0xc0] sm:$0xff] %v778
      %795 = vst [vmem:[#allocation3 + $0xc8] sm:$0xff] %v779
      %796 = vst [vmem:[#allocation3 + $0xd0] sm:$0xff] %v780
      %797 = vst [vmem:[#allocation3 + $0xd8] sm:$0xff] %v781
      %798 = vst [vmem:[#allocation3 + $0xe0] sm:$0xff] %v782
      %799 = vst [vmem:[#allocation3 + $0xe8] sm:$0xff] %v783
      %800 = vst [vmem:[#allocation3 + $0xf0] sm:$0xff] %v784
      %801 = vst [vmem:[#allocation3 + $0xf8] sm:$0xff] %v785
      %v802 = vld [vmem:[#allocation2 + $0x8] sm:$0xff]
      %v803 = vld [vmem:[#allocation2 + $0x10] sm:$0xff]
      %v804 = vld [vmem:[#allocation2 + $0x28] sm:$0xff]
      %v805 = vld [vmem:[#allocation2 + $0x30] sm:$0xff]
      %v806 = vld [vmem:[#allocation2 + $0x48] sm:$0xff]
      %v807 = vld [vmem:[#allocation2 + $0x50] sm:$0xff]
      %v808 = vld [vmem:[#allocation2 + $0x68] sm:$0xff]
      %v809 = vld [vmem:[#allocation2 + $0x70] sm:$0xff]
      %v810 = vld [vmem:[#allocation2 + $0x88] sm:$0xff]
      %v811 = vld [vmem:[#allocation2 + $0x90] sm:$0xff]
      %v812 = vld [vmem:[#allocation2 + $0xa8] sm:$0xff]
      %v813 = vld [vmem:[#allocation2 + $0xb0] sm:$0xff]
      %v814 = vld [vmem:[#allocation2 + $0xc8] sm:$0xff]
      %v815 = vld [vmem:[#allocation2 + $0xd0] sm:$0xff]
      %v816 = vld [vmem:[#allocation2 + $0xe8] sm:$0xff]
      %v817 = vld [vmem:[#allocation2 + $0xf0] sm:$0xff]
      %v818 = vpack.c.bf16 %v804, %v802
      %v819 = vpack.c.bf16 %v805, %v803
      %v820 = vpack.c.bf16 %v808, %v806
      %v821 = vpack.c.bf16 %v809, %v807
      %v822 = vpack.c.bf16 %v812, %v810
      %v823 = vpack.c.bf16 %v813, %v811
      %v824 = vpack.c.bf16 %v816, %v814
      %v825 = vpack.c.bf16 %v817, %v815
      %826 = vst [vmem:[#allocation3 + $0x100] sm:$0xff] %v818
      %827 = vst [vmem:[#allocation3 + $0x108] sm:$0xff] %v819
      %828 = vst [vmem:[#allocation3 + $0x110] sm:$0xff] %v820
      %829 = vst [vmem:[#allocation3 + $0x118] sm:$0xff] %v821
      %830 = vst [vmem:[#allocation3 + $0x120] sm:$0xff] %v822
      %831 = vst [vmem:[#allocation3 + $0x128] sm:$0xff] %v823
      %832 = vst [vmem:[#allocation3 + $0x130] sm:$0xff] %v824
      %833 = vst [vmem:[#allocation3 + $0x138] sm:$0xff] %v825
      %v834 = vld [vmem:[#allocation2 + $0x8] sm:$0xff]
      %v835 = vld [vmem:[#allocation2 + $0x10] sm:$0xff]
      %v836 = vld [vmem:[#allocation2 + $0x18] sm:$0xff]
      %v837 = vld [vmem:[#allocation2 + $0x28] sm:$0xff]
      %v838 = vld [vmem:[#allocation2 + $0x30] sm:$0xff]
      %v839 = vld [vmem:[#allocation2 + $0x38] sm:$0xff]
      %v840 = vld [vmem:[#allocation2 + $0x48] sm:$0xff]
      %v841 = vld [vmem:[#allocation2 + $0x50] sm:$0xff]
      %v842 = vld [vmem:[#allocation2 + $0x58] sm:$0xff]
      %v843 = vld [vmem:[#allocation2 + $0x68] sm:$0xff]
      %v844 = vld [vmem:[#allocation2 + $0x70] sm:$0xff]
      %v845 = vld [vmem:[#allocation2 + $0x78] sm:$0xff]
      %v846 = vld [vmem:[#allocation2 + $0x88] sm:$0xff]
      %v847 = vld [vmem:[#allocation2 + $0x90] sm:$0xff]
      %v848 = vld [vmem:[#allocation2 + $0x98] sm:$0xff]
      %v849 = vld [vmem:[#allocation2 + $0xa8] sm:$0xff]
      %v850 = vld [vmem:[#allocation2 + $0xb0] sm:$0xff]
      %v851 = vld [vmem:[#allocation2 + $0xb8] sm:$0xff]
      %v852 = vld [vmem:[#allocation2 + $0xc8] sm:$0xff]
      %v853 = vld [vmem:[#allocation2 + $0xd0] sm:$0xff]
      %v854 = vld [vmem:[#allocation2 + $0xd8] sm:$0xff]
      %v855 = vld [vmem:[#allocation2 + $0xe8] sm:$0xff]
      %v856 = vld [vmem:[#allocation2 + $0xf0] sm:$0xff]
      %v857 = vld [vmem:[#allocation2 + $0xf8] sm:$0xff]
      %858 = vrot.lane.b32.xlu0 %v277, 1
      %v859 = vpop.permute.xlu0 %858
      %860 = vrot.lane.b32.xlu0 %v278, 1
      %v861 = vpop.permute.xlu0 %860
      %vm862 = vcmask 7168
      %v863 = vsel %vm862, %v859, %v861
      %v867 = vmul.f32 %v834, %v859
      %v868 = vmul.f32 %v835, %v863
      %v869 = vmul.f32 %v836, %v861
      %v870 = vmul.f32 %v837, %v859
      %v871 = vmul.f32 %v838, %v863
      %v872 = vmul.f32 %v839, %v861
      %v873 = vmul.f32 %v840, %v859
      %v874 = vmul.f32 %v841, %v863
      %v875 = vmul.f32 %v842, %v861
      %v876 = vmul.f32 %v843, %v859
      %v877 = vmul.f32 %v844, %v863
      %v878 = vmul.f32 %v845, %v861
      %v879 = vmul.f32 %v846, %v859
      %v880 = vmul.f32 %v847, %v863
      %v881 = vmul.f32 %v848, %v861
      %v882 = vmul.f32 %v849, %v859
      %v883 = vmul.f32 %v850, %v863
      %v884 = vmul.f32 %v851, %v861
      %v885 = vmul.f32 %v852, %v859
      %v886 = vmul.f32 %v853, %v863
      %v887 = vmul.f32 %v854, %v861
      %v888 = vmul.f32 %v855, %v859
      %v889 = vmul.f32 %v856, %v863
      %v890 = vmul.f32 %v857, %v861
      %v891 = vpack.c.bf16 %v870, %v867
      %v892 = vpack.c.bf16 %v871, %v868
      %v893 = vpack.c.bf16 %v872, %v869
      %v894 = vpack.c.bf16 %v876, %v873
      %v895 = vpack.c.bf16 %v877, %v874
      %v896 = vpack.c.bf16 %v878, %v875
      %v897 = vpack.c.bf16 %v882, %v879
      %v898 = vpack.c.bf16 %v883, %v880
      %v899 = vpack.c.bf16 %v884, %v881
      %v900 = vpack.c.bf16 %v888, %v885
      %v901 = vpack.c.bf16 %v889, %v886
      %v902 = vpack.c.bf16 %v890, %v887
      %915 = vrot.lane.b32.xlu0 %v891, 127
      %v916 = vpop.permute.xlu0 %915
      %917 = vrot.lane.b32.xlu0 %v892, 127
      %v918 = vpop.permute.xlu0 %917
      %919 = vrot.lane.b32.xlu0 %v893, 127
      %v920 = vpop.permute.xlu0 %919
      %921 = vrot.lane.b32.xlu0 %v894, 127
      %v922 = vpop.permute.xlu0 %921
      %923 = vrot.lane.b32.xlu0 %v895, 127
      %v924 = vpop.permute.xlu0 %923
      %925 = vrot.lane.b32.xlu0 %v896, 127
      %v926 = vpop.permute.xlu0 %925
      %927 = vrot.lane.b32.xlu0 %v897, 127
      %v928 = vpop.permute.xlu0 %927
      %929 = vrot.lane.b32.xlu0 %v898, 127
      %v930 = vpop.permute.xlu0 %929
      %931 = vrot.lane.b32.xlu0 %v899, 127
      %v932 = vpop.permute.xlu0 %931
      %933 = vrot.lane.b32.xlu0 %v900, 127
      %v934 = vpop.permute.xlu0 %933
      %935 = vrot.lane.b32.xlu0 %v901, 127
      %v936 = vpop.permute.xlu0 %935
      %937 = vrot.lane.b32.xlu0 %v902, 127
      %v938 = vpop.permute.xlu0 %937
      %vm939 = vcmask 1039360
      %v940 = vsel %vm939, %v916, %v918
      %v941 = vsel %vm939, %v918, %v920
      %v942 = vsel %vm939, %v922, %v924
      %v943 = vsel %vm939, %v924, %v926
      %v944 = vsel %vm939, %v928, %v930
      %v945 = vsel %vm939, %v930, %v932
      %v946 = vsel %vm939, %v934, %v936
      %v947 = vsel %vm939, %v936, %v938
      %956 = vst [vmem:[#allocation3 + $0x140] sm:$0xff] %v940
      %957 = vst [vmem:[#allocation3 + $0x148] sm:$0xff] %v941
      %958 = vst [vmem:[#allocation3 + $0x150] sm:$0xff] %v942
      %959 = vst [vmem:[#allocation3 + $0x158] sm:$0xff] %v943
      %960 = vst [vmem:[#allocation3 + $0x160] sm:$0xff] %v944
      %961 = vst [vmem:[#allocation3 + $0x168] sm:$0xff] %v945
      %962 = vst [vmem:[#allocation3 + $0x170] sm:$0xff] %v946
      %963 = vst [vmem:[#allocation3 + $0x178] sm:$0xff] %v947
      %v964 = vld [vmem:[#allocation2 + $0x8] sm:$0xff]
      %v965 = vld [vmem:[#allocation2 + $0x10] sm:$0xff]
      %v966 = vld [vmem:[#allocation2 + $0x18] sm:$0xff]
      %v967 = vld [vmem:[#allocation2 + $0x28] sm:$0xff]
      %v968 = vld [vmem:[#allocation2 + $0x30] sm:$0xff]
      %v969 = vld [vmem:[#allocation2 + $0x38] sm:$0xff]
      %v970 = vld [vmem:[#allocation2 + $0x48] sm:$0xff]
      %v971 = vld [vmem:[#allocation2 + $0x50] sm:$0xff]
      %v972 = vld [vmem:[#allocation2 + $0x58] sm:$0xff]
      %v973 = vld [vmem:[#allocation2 + $0x68] sm:$0xff]
      %v974 = vld [vmem:[#allocation2 + $0x70] sm:$0xff]
      %v975 = vld [vmem:[#allocation2 + $0x78] sm:$0xff]
      %v976 = vld [vmem:[#allocation2 + $0x88] sm:$0xff]
      %v977 = vld [vmem:[#allocation2 + $0x90] sm:$0xff]
      %v978 = vld [vmem:[#allocation2 + $0x98] sm:$0xff]
      %v979 = vld [vmem:[#allocation2 + $0xa8] sm:$0xff]
      %v980 = vld [vmem:[#allocation2 + $0xb0] sm:$0xff]
      %v981 = vld [vmem:[#allocation2 + $0xb8] sm:$0xff]
      %v982 = vld [vmem:[#allocation2 + $0xc8] sm:$0xff]
      %v983 = vld [vmem:[#allocation2 + $0xd0] sm:$0xff]
      %v984 = vld [vmem:[#allocation2 + $0xd8] sm:$0xff]
      %v985 = vld [vmem:[#allocation2 + $0xe8] sm:$0xff]
      %v986 = vld [vmem:[#allocation2 + $0xf0] sm:$0xff]
      %v987 = vld [vmem:[#allocation2 + $0xf8] sm:$0xff]
      %988 = vrot.lane.b32.xlu0 %v271, 15
      %v989 = vpop.permute.xlu0 %988
      %990 = vrot.lane.b32.xlu0 %v272, 15
      %v991 = vpop.permute.xlu0 %990
      %vm992 = vcmask 121856
      %v993 = vsel %vm992, %v989, %v991
      %v997 = vmul.f32 %v964, %v989
      %v998 = vmul.f32 %v965, %v993
      %v999 = vmul.f32 %v966, %v991
      %v1000 = vmul.f32 %v967, %v989
      %v1001 = vmul.f32 %v968, %v993
      %v1002 = vmul.f32 %v969, %v991
      %v1003 = vmul.f32 %v970, %v989
      %v1004 = vmul.f32 %v971, %v993
      %v1005 = vmul.f32 %v972, %v991
      %v1006 = vmul.f32 %v973, %v989
      %v1007 = vmul.f32 %v974, %v993
      %v1008 = vmul.f32 %v975, %v991
      %v1009 = vmul.f32 %v976, %v989
      %v1010 = vmul.f32 %v977, %v993
      %v1011 = vmul.f32 %v978, %v991
      %v1012 = vmul.f32 %v979, %v989
      %v1013 = vmul.f32 %v980, %v993
      %v1014 = vmul.f32 %v981, %v991
      %v1015 = vmul.f32 %v982, %v989
      %v1016 = vmul.f32 %v983, %v993
      %v1017 = vmul.f32 %v984, %v991
      %v1018 = vmul.f32 %v985, %v989
      %v1019 = vmul.f32 %v986, %v993
      %v1020 = vmul.f32 %v987, %v991
      %v1021 = vpack.c.bf16 %v1000, %v997
      %v1022 = vpack.c.bf16 %v1001, %v998
      %v1023 = vpack.c.bf16 %v1002, %v999
      %v1024 = vpack.c.bf16 %v1006, %v1003
      %v1025 = vpack.c.bf16 %v1007, %v1004
      %v1026 = vpack.c.bf16 %v1008, %v1005
      %v1027 = vpack.c.bf16 %v1012, %v1009
      %v1028 = vpack.c.bf16 %v1013, %v1010
      %v1029 = vpack.c.bf16 %v1014, %v1011
      %v1030 = vpack.c.bf16 %v1018, %v1015
      %v1031 = vpack.c.bf16 %v1019, %v1016
      %v1032 = vpack.c.bf16 %v1020, %v1017
      %1045 = vrot.lane.b32.xlu0 %v1021, 113
      %v1046 = vpop.permute.xlu0 %1045
      %1047 = vrot.lane.b32.xlu0 %v1022, 113
      %v1048 = vpop.permute.xlu0 %1047
      %1049 = vrot.lane.b32.xlu0 %v1023, 113
      %v1050 = vpop.permute.xlu0 %1049
      %1051 = vrot.lane.b32.xlu0 %v1024, 113
      %v1052 = vpop.permute.xlu0 %1051
      %1053 = vrot.lane.b32.xlu0 %v1025, 113
      %v1054 = vpop.permute.xlu0 %1053
      %1055 = vrot.lane.b32.xlu0 %v1026, 113
      %v1056 = vpop.permute.xlu0 %1055
      %1057 = vrot.lane.b32.xlu0 %v1027, 113
      %v1058 = vpop.permute.xlu0 %1057
      %1059 = vrot.lane.b32.xlu0 %v1028, 113
      %v1060 = vpop.permute.xlu0 %1059
      %1061 = vrot.lane.b32.xlu0 %v1029, 113
      %v1062 = vpop.permute.xlu0 %1061
      %1063 = vrot.lane.b32.xlu0 %v1030, 113
      %v1064 = vpop.permute.xlu0 %1063
      %1065 = vrot.lane.b32.xlu0 %v1031, 113
      %v1066 = vpop.permute.xlu0 %1065
      %1067 = vrot.lane.b32.xlu0 %v1032, 113
      %v1068 = vpop.permute.xlu0 %1067
      %vm1069 = vcmask 924672
      %v1070 = vsel %vm1069, %v1046, %v1048
      %v1071 = vsel %vm1069, %v1048, %v1050
      %v1072 = vsel %vm1069, %v1052, %v1054
      %v1073 = vsel %vm1069, %v1054, %v1056
      %v1074 = vsel %vm1069, %v1058, %v1060
      %v1075 = vsel %vm1069, %v1060, %v1062
      %v1076 = vsel %vm1069, %v1064, %v1066
      %v1077 = vsel %vm1069, %v1066, %v1068
      %1086 = vst [vmem:[#allocation3 + $0x180] sm:$0xff] %v1070
      %1087 = vst [vmem:[#allocation3 + $0x188] sm:$0xff] %v1071
      %1088 = vst [vmem:[#allocation3 + $0x190] sm:$0xff] %v1072
      %1089 = vst [vmem:[#allocation3 + $0x198] sm:$0xff] %v1073
      %1090 = vst [vmem:[#allocation3 + $0x1a0] sm:$0xff] %v1074
      %1091 = vst [vmem:[#allocation3 + $0x1a8] sm:$0xff] %v1075
      %1092 = vst [vmem:[#allocation3 + $0x1b0] sm:$0xff] %v1076
      %1093 = vst [vmem:[#allocation3 + $0x1b8] sm:$0xff] %v1077
      %v1094 = vld [vmem:[#allocation2 + $0x8] sm:$0xff]
      %v1095 = vld [vmem:[#allocation2 + $0x10] sm:$0xff]
      %v1096 = vld [vmem:[#allocation2 + $0x18] sm:$0xff]
      %v1097 = vld [vmem:[#allocation2 + $0x28] sm:$0xff]
      %v1098 = vld [vmem:[#allocation2 + $0x30] sm:$0xff]
      %v1099 = vld [vmem:[#allocation2 + $0x38] sm:$0xff]
      %v1100 = vld [vmem:[#allocation2 + $0x48] sm:$0xff]
      %v1101 = vld [vmem:[#allocation2 + $0x50] sm:$0xff]
      %v1102 = vld [vmem:[#allocation2 + $0x58] sm:$0xff]
      %v1103 = vld [vmem:[#allocation2 + $0x68] sm:$0xff]
      %v1104 = vld [vmem:[#allocation2 + $0x70] sm:$0xff]
      %v1105 = vld [vmem:[#allocation2 + $0x78] sm:$0xff]
      %v1106 = vld [vmem:[#allocation2 + $0x88] sm:$0xff]
      %v1107 = vld [vmem:[#allocation2 + $0x90] sm:$0xff]
      %v1108 = vld [vmem:[#allocation2 + $0x98] sm:$0xff]
      %v1109 = vld [vmem:[#allocation2 + $0xa8] sm:$0xff]
      %v1110 = vld [vmem:[#allocation2 + $0xb0] sm:$0xff]
      %v1111 = vld [vmem:[#allocation2 + $0xb8] sm:$0xff]
      %v1112 = vld [vmem:[#allocation2 + $0xc8] sm:$0xff]
      %v1113 = vld [vmem:[#allocation2 + $0xd0] sm:$0xff]
      %v1114 = vld [vmem:[#allocation2 + $0xd8] sm:$0xff]
      %v1115 = vld [vmem:[#allocation2 + $0xe8] sm:$0xff]
      %v1116 = vld [vmem:[#allocation2 + $0xf0] sm:$0xff]
      %v1117 = vld [vmem:[#allocation2 + $0xf8] sm:$0xff]
      %v1118 = vpack.c.bf16 %v1097, %v1094
      %v1119 = vpack.c.bf16 %v1098, %v1095
      %v1120 = vpack.c.bf16 %v1099, %v1096
      %v1121 = vpack.c.bf16 %v1103, %v1100
      %v1122 = vpack.c.bf16 %v1104, %v1101
      %v1123 = vpack.c.bf16 %v1105, %v1102
      %v1124 = vpack.c.bf16 %v1109, %v1106
      %v1125 = vpack.c.bf16 %v1110, %v1107
      %v1126 = vpack.c.bf16 %v1111, %v1108
      %v1127 = vpack.c.bf16 %v1115, %v1112
      %v1128 = vpack.c.bf16 %v1116, %v1113
      %v1129 = vpack.c.bf16 %v1117, %v1114
      %1142 = vrot.lane.b32.xlu0 %v1118, 112
      %v1143 = vpop.permute.xlu0 %1142
      %1144 = vrot.lane.b32.xlu0 %v1119, 112
      %v1145 = vpop.permute.xlu0 %1144
      %1146 = vrot.lane.b32.xlu0 %v1120, 112
      %v1147 = vpop.permute.xlu0 %1146
      %1148 = vrot.lane.b32.xlu0 %v1121, 112
      %v1149 = vpop.permute.xlu0 %1148
      %1150 = vrot.lane.b32.xlu0 %v1122, 112
      %v1151 = vpop.permute.xlu0 %1150
      %1152 = vrot.lane.b32.xlu0 %v1123, 112
      %v1153 = vpop.permute.xlu0 %1152
      %1154 = vrot.lane.b32.xlu0 %v1124, 112
      %v1155 = vpop.permute.xlu0 %1154
      %1156 = vrot.lane.b32.xlu0 %v1125, 112
      %v1157 = vpop.permute.xlu0 %1156
      %1158 = vrot.lane.b32.xlu0 %v1126, 112
      %v1159 = vpop.permute.xlu0 %1158
      %1160 = vrot.lane.b32.xlu0 %v1127, 112
      %v1161 = vpop.permute.xlu0 %1160
      %1162 = vrot.lane.b32.xlu0 %v1128, 112
      %v1163 = vpop.permute.xlu0 %1162
      %1164 = vrot.lane.b32.xlu0 %v1129, 112
      %v1165 = vpop.permute.xlu0 %1164
      %vm1166 = vcmask 916480
      %v1167 = vsel %vm1166, %v1143, %v1145
      %v1168 = vsel %vm1166, %v1145, %v1147
      %v1169 = vsel %vm1166, %v1149, %v1151
      %v1170 = vsel %vm1166, %v1151, %v1153
      %v1171 = vsel %vm1166, %v1155, %v1157
      %v1172 = vsel %vm1166, %v1157, %v1159
      %v1173 = vsel %vm1166, %v1161, %v1163
      %v1174 = vsel %vm1166, %v1163, %v1165
      %1183 = vst [vmem:[#allocation3 + $0x1c0] sm:$0xff] %v1167
      %1184 = vst [vmem:[#allocation3 + $0x1c8] sm:$0xff] %v1168
      %1185 = vst [vmem:[#allocation3 + $0x1d0] sm:$0xff] %v1169
      %1186 = vst [vmem:[#allocation3 + $0x1d8] sm:$0xff] %v1170
      %1187 = vst [vmem:[#allocation3 + $0x1e0] sm:$0xff] %v1171
      %1188 = vst [vmem:[#allocation3 + $0x1e8] sm:$0xff] %v1172
      %1189 = vst [vmem:[#allocation3 + $0x1f0] sm:$0xff] %v1173
      %1190 = vst [vmem:[#allocation3 + $0x1f8] sm:$0xff] %v1174
      %v1191 = vld [vmem:[#allocation2 + $0x8] sm:$0xff]
      %v1192 = vld [vmem:[#allocation2 + $0x10] sm:$0xff]
      %v1193 = vld [vmem:[#allocation2 + $0x18] sm:$0xff]
      %v1194 = vld [vmem:[#allocation2 + $0x28] sm:$0xff]
      %v1195 = vld [vmem:[#allocation2 + $0x30] sm:$0xff]
      %v1196 = vld [vmem:[#allocation2 + $0x38] sm:$0xff]
      %v1197 = vld [vmem:[#allocation2 + $0x48] sm:$0xff]
      %v1198 = vld [vmem:[#allocation2 + $0x50] sm:$0xff]
      %v1199 = vld [vmem:[#allocation2 + $0x58] sm:$0xff]
      %v1200 = vld [vmem:[#allocation2 + $0x68] sm:$0xff]
      %v1201 = vld [vmem:[#allocation2 + $0x70] sm:$0xff]
      %v1202 = vld [vmem:[#allocation2 + $0x78] sm:$0xff]
      %v1203 = vld [vmem:[#allocation2 + $0x88] sm:$0xff]
      %v1204 = vld [vmem:[#allocation2 + $0x90] sm:$0xff]
      %v1205 = vld [vmem:[#allocation2 + $0x98] sm:$0xff]
      %v1206 = vld [vmem:[#allocation2 + $0xa8] sm:$0xff]
      %v1207 = vld [vmem:[#allocation2 + $0xb0] sm:$0xff]
      %v1208 = vld [vmem:[#allocation2 + $0xb8] sm:$0xff]
      %v1209 = vld [vmem:[#allocation2 + $0xc8] sm:$0xff]
      %v1210 = vld [vmem:[#allocation2 + $0xd0] sm:$0xff]
      %v1211 = vld [vmem:[#allocation2 + $0xd8] sm:$0xff]
      %v1212 = vld [vmem:[#allocation2 + $0xe8] sm:$0xff]
      %v1213 = vld [vmem:[#allocation2 + $0xf0] sm:$0xff]
      %v1214 = vld [vmem:[#allocation2 + $0xf8] sm:$0xff]
      %1215 = vrot.lane.b32.xlu0 %v277, 17
      %v1216 = vpop.permute.xlu0 %1215
      %1217 = vrot.lane.b32.xlu0 %v278, 17
      %v1218 = vpop.permute.xlu0 %1217
      %vm1219 = vcmask 138240
      %v1220 = vsel %vm1219, %v1216, %v1218
      %v1224 = vmul.f32 %v1191, %v1216
      %v1225 = vmul.f32 %v1192, %v1220
      %v1226 = vmul.f32 %v1193, %v1218
      %v1227 = vmul.f32 %v1194, %v1216
      %v1228 = vmul.f32 %v1195, %v1220
      %v1229 = vmul.f32 %v1196, %v1218
      %v1230 = vmul.f32 %v1197, %v1216
      %v1231 = vmul.f32 %v1198, %v1220
      %v1232 = vmul.f32 %v1199, %v1218
      %v1233 = vmul.f32 %v1200, %v1216
      %v1234 = vmul.f32 %v1201, %v1220
      %v1235 = vmul.f32 %v1202, %v1218
      %v1236 = vmul.f32 %v1203, %v1216
      %v1237 = vmul.f32 %v1204, %v1220
      %v1238 = vmul.f32 %v1205, %v1218
      %v1239 = vmul.f32 %v1206, %v1216
      %v1240 = vmul.f32 %v1207, %v1220
      %v1241 = vmul.f32 %v1208, %v1218
      %v1242 = vmul.f32 %v1209, %v1216
      %v1243 = vmul.f32 %v1210, %v1220
      %v1244 = vmul.f32 %v1211, %v1218
      %v1245 = vmul.f32 %v1212, %v1216
      %v1246 = vmul.f32 %v1213, %v1220
      %v1247 = vmul.f32 %v1214, %v1218
      %v1248 = vpack.c.bf16 %v1227, %v1224
      %v1249 = vpack.c.bf16 %v1228, %v1225
      %v1250 = vpack.c.bf16 %v1229, %v1226
      %v1251 = vpack.c.bf16 %v1233, %v1230
      %v1252 = vpack.c.bf16 %v1234, %v1231
      %v1253 = vpack.c.bf16 %v1235, %v1232
      %v1254 = vpack.c.bf16 %v1239, %v1236
      %v1255 = vpack.c.bf16 %v1240, %v1237
      %v1256 = vpack.c.bf16 %v1241, %v1238
      %v1257 = vpack.c.bf16 %v1245, %v1242
      %v1258 = vpack.c.bf16 %v1246, %v1243
      %v1259 = vpack.c.bf16 %v1247, %v1244
      %1272 = vrot.lane.b32.xlu0 %v1248, 111
      %v1273 = vpop.permute.xlu0 %1272
      %1274 = vrot.lane.b32.xlu0 %v1249, 111
      %v1275 = vpop.permute.xlu0 %1274
      %1276 = vrot.lane.b32.xlu0 %v1250, 111
      %v1277 = vpop.permute.xlu0 %1276
      %1278 = vrot.lane.b32.xlu0 %v1251, 111
      %v1279 = vpop.permute.xlu0 %1278
      %1280 = vrot.lane.b32.xlu0 %v1252, 111
      %v1281 = vpop.permute.xlu0 %1280
      %1282 = vrot.lane.b32.xlu0 %v1253, 111
      %v1283 = vpop.permute.xlu0 %1282
      %1284 = vrot.lane.b32.xlu0 %v1254, 111
      %v1285 = vpop.permute.xlu0 %1284
      %1286 = vrot.lane.b32.xlu0 %v1255, 111
      %v1287 = vpop.permute.xlu0 %1286
      %1288 = vrot.lane.b32.xlu0 %v1256, 111
      %v1289 = vpop.permute.xlu0 %1288
      %1290 = vrot.lane.b32.xlu0 %v1257, 111
      %v1291 = vpop.permute.xlu0 %1290
      %1292 = vrot.lane.b32.xlu0 %v1258, 111
      %v1293 = vpop.permute.xlu0 %1292
      %1294 = vrot.lane.b32.xlu0 %v1259, 111
      %v1295 = vpop.permute.xlu0 %1294
      %vm1296 = vcmask 908288
      %v1297 = vsel %vm1296, %v1273, %v1275
      %v1298 = vsel %vm1296, %v1275, %v1277
      %v1299 = vsel %vm1296, %v1279, %v1281
      %v1300 = vsel %vm1296, %v1281, %v1283
      %v1301 = vsel %vm1296, %v1285, %v1287
      %v1302 = vsel %vm1296, %v1287, %v1289
      %v1303 = vsel %vm1296, %v1291, %v1293
      %v1304 = vsel %vm1296, %v1293, %v1295
      %1313 = vst [vmem:[#allocation3 + $0x200] sm:$0xff] %v1297
      %1314 = vst [vmem:[#allocation3 + $0x208] sm:$0xff] %v1298
      %1315 = vst [vmem:[#allocation3 + $0x210] sm:$0xff] %v1299
      %1316 = vst [vmem:[#allocation3 + $0x218] sm:$0xff] %v1300
      %1317 = vst [vmem:[#allocation3 + $0x220] sm:$0xff] %v1301
      %1318 = vst [vmem:[#allocation3 + $0x228] sm:$0xff] %v1302
      %1319 = vst [vmem:[#allocation3 + $0x230] sm:$0xff] %v1303
      %1320 = vst [vmem:[#allocation3 + $0x238] sm:$0xff] %v1304
      %v1321 = vld [vmem:[%s2] sm:$0xff]
      %v1322 = vld [vmem:[%s2 + $0x8] sm:$0xff]
      %v1323 = vld [vmem:[%s2 + $0x10] sm:$0xf]
      %v1324 = vld [vmem:[%s2 + $0x14] sm:$0xff]
      %v1325 = vld [vmem:[%s2 + $0x1c] sm:$0xff]
      %v1326 = vld [vmem:[%s2 + $0x24] sm:$0xf]
      %v1327 = vld [vmem:[%s2 + $0x28] sm:$0xff]
      %v1328 = vld [vmem:[%s2 + $0x30] sm:$0xff]
      %v1329 = vld [vmem:[%s2 + $0x38] sm:$0xf]
      %v1330 = vld [vmem:[%s2 + $0x3c] sm:$0xff]
      %v1331 = vld [vmem:[%s2 + $0x44] sm:$0xff]
      %v1332 = vld [vmem:[%s2 + $0x4c] sm:$0xf]
      %v1333 = vld [vmem:[%s2 + $0x50] sm:$0xff]
      %v1334 = vld [vmem:[%s2 + $0x58] sm:$0xff]
      %v1335 = vld [vmem:[%s2 + $0x60] sm:$0xf]
      %v1336 = vld [vmem:[%s2 + $0x64] sm:$0xff]
      %v1337 = vld [vmem:[%s2 + $0x6c] sm:$0xff]
      %v1338 = vld [vmem:[%s2 + $0x74] sm:$0xf]
      %v1339 = vld [vmem:[%s2 + $0x78] sm:$0xff]
      %v1340 = vld [vmem:[%s2 + $0x80] sm:$0xff]
      %v1341 = vld [vmem:[%s2 + $0x88] sm:$0xf]
      %v1342 = vld [vmem:[%s2 + $0x8c] sm:$0xff]
      %v1343 = vld [vmem:[%s2 + $0x94] sm:$0xff]
      %v1344 = vld [vmem:[%s2 + $0x9c] sm:$0xf]
      %v1345 = vld [vmem:[#allocation3] sm:$0xff]
      %v1346 = vld [vmem:[#allocation3 + $0x8] sm:$0xff]
      %v1347 = vld [vmem:[#allocation3 + $0x10] sm:$0xff]
      %v1348 = vld [vmem:[#allocation3 + $0x18] sm:$0xff]
      %v1349 = vld [vmem:[#allocation3 + $0x20] sm:$0xff]
      %v1350 = vld [vmem:[#allocation3 + $0x28] sm:$0xff]
      %v1351 = vld [vmem:[#allocation3 + $0x30] sm:$0xff]
      %v1352 = vld [vmem:[#allocation3 + $0x38] sm:$0xff]
      %v1353 = vld [vmem:[#allocation3 + $0x40] sm:$0xff]
      %v1354 = vld [vmem:[#allocation3 + $0x48] sm:$0xff]
      %v1355 = vld [vmem:[#allocation3 + $0x50] sm:$0xff]
      %v1356 = vld [vmem:[#allocation3 + $0x58] sm:$0xff]
      %v1357 = vld [vmem:[#allocation3 + $0x60] sm:$0xff]
      %v1358 = vld [vmem:[#allocation3 + $0x68] sm:$0xff]
      %v1359 = vld [vmem:[#allocation3 + $0x70] sm:$0xff]
      %v1360 = vld [vmem:[#allocation3 + $0x78] sm:$0xff]
      %v1361 = vld [vmem:[#allocation3 + $0x80] sm:$0xff]
      %v1362 = vld [vmem:[#allocation3 + $0x88] sm:$0xff]
      %v1363 = vld [vmem:[#allocation3 + $0x90] sm:$0xff]
      %v1364 = vld [vmem:[#allocation3 + $0x98] sm:$0xff]
      %v1365 = vld [vmem:[#allocation3 + $0xa0] sm:$0xff]
      %v1366 = vld [vmem:[#allocation3 + $0xa8] sm:$0xff]
      %v1367 = vld [vmem:[#allocation3 + $0xb0] sm:$0xff]
      %v1368 = vld [vmem:[#allocation3 + $0xb8] sm:$0xff]
      %v1369 = vld [vmem:[#allocation3 + $0xc0] sm:$0xff]
      %v1370 = vld [vmem:[#allocation3 + $0xc8] sm:$0xff]
      %v1371 = vld [vmem:[#allocation3 + $0xd0] sm:$0xff]
      %v1372 = vld [vmem:[#allocation3 + $0xd8] sm:$0xff]
      %v1373 = vld [vmem:[#allocation3 + $0xe0] sm:$0xff]
      %v1374 = vld [vmem:[#allocation3 + $0xe8] sm:$0xff]
      %v1375 = vld [vmem:[#allocation3 + $0xf0] sm:$0xff]
      %v1376 = vld [vmem:[#allocation3 + $0xf8] sm:$0xff]
      %v1377 = vld [vmem:[#allocation3 + $0x100] sm:$0xff]
      %v1378 = vld [vmem:[#allocation3 + $0x108] sm:$0xff]
      %v1379 = vld [vmem:[#allocation3 + $0x110] sm:$0xff]
      %v1380 = vld [vmem:[#allocation3 + $0x118] sm:$0xff]
      %v1381 = vld [vmem:[#allocation3 + $0x120] sm:$0xff]
      %v1382 = vld [vmem:[#allocation3 + $0x128] sm:$0xff]
      %v1383 = vld [vmem:[#allocation3 + $0x130] sm:$0xff]
      %v1384 = vld [vmem:[#allocation3 + $0x138] sm:$0xff]
      %v1385 = vld [vmem:[#allocation3 + $0x140] sm:$0xff]
      %v1386 = vld [vmem:[#allocation3 + $0x148] sm:$0xff]
      %v1387 = vld [vmem:[#allocation3 + $0x150] sm:$0xff]
      %v1388 = vld [vmem:[#allocation3 + $0x158] sm:$0xff]
      %v1389 = vld [vmem:[#allocation3 + $0x160] sm:$0xff]
      %v1390 = vld [vmem:[#allocation3 + $0x168] sm:$0xff]
      %v1391 = vld [vmem:[#allocation3 + $0x170] sm:$0xff]
      %v1392 = vld [vmem:[#allocation3 + $0x178] sm:$0xff]
      %v1393 = vld [vmem:[#allocation3 + $0x180] sm:$0xff]
      %v1394 = vld [vmem:[#allocation3 + $0x188] sm:$0xff]
      %v1395 = vld [vmem:[#allocation3 + $0x190] sm:$0xff]
      %v1396 = vld [vmem:[#allocation3 + $0x198] sm:$0xff]
      %v1397 = vld [vmem:[#allocation3 + $0x1a0] sm:$0xff]
      %v1398 = vld [vmem:[#allocation3 + $0x1a8] sm:$0xff]
      %v1399 = vld [vmem:[#allocation3 + $0x1b0] sm:$0xff]
      %v1400 = vld [vmem:[#allocation3 + $0x1b8] sm:$0xff]
      %v1401 = vld [vmem:[#allocation3 + $0x1c0] sm:$0xff]
      %v1402 = vld [vmem:[#allocation3 + $0x1c8] sm:$0xff]
      %v1403 = vld [vmem:[#allocation3 + $0x1d0] sm:$0xff]
      %v1404 = vld [vmem:[#allocation3 + $0x1d8] sm:$0xff]
      %v1405 = vld [vmem:[#allocation3 + $0x1e0] sm:$0xff]
      %v1406 = vld [vmem:[#allocation3 + $0x1e8] sm:$0xff]
      %v1407 = vld [vmem:[#allocation3 + $0x1f0] sm:$0xff]
      %v1408 = vld [vmem:[#allocation3 + $0x1f8] sm:$0xff]
      %v1409 = vld [vmem:[#allocation3 + $0x200] sm:$0xff]
      %v1410 = vld [vmem:[#allocation3 + $0x208] sm:$0xff]
      %v1411 = vld [vmem:[#allocation3 + $0x210] sm:$0xff]
      %v1412 = vld [vmem:[#allocation3 + $0x218] sm:$0xff]
      %v1413 = vld [vmem:[#allocation3 + $0x220] sm:$0xff]
      %v1414 = vld [vmem:[#allocation3 + $0x228] sm:$0xff]
      %v1415 = vld [vmem:[#allocation3 + $0x230] sm:$0xff]
      %v1416 = vld [vmem:[#allocation3 + $0x238] sm:$0xff]
      %v1441 = vunpack.c.l.b16 %v1321
      %v1442 = vunpack.c.h.b16 %v1321
      %v1443 = vunpack.c.l.b16 %v1322
      %v1444 = vunpack.c.h.b16 %v1322
      %v1445 = vunpack.c.l.b16 %v1323
      %v1446 = vunpack.c.l.b16 %v1324
      %v1447 = vunpack.c.h.b16 %v1324
      %v1448 = vunpack.c.l.b16 %v1325
      %v1449 = vunpack.c.h.b16 %v1325
      %v1450 = vunpack.c.l.b16 %v1326
      %v1451 = vunpack.c.l.b16 %v1327
      %v1452 = vunpack.c.h.b16 %v1327
      %v1453 = vunpack.c.l.b16 %v1328
      %v1454 = vunpack.c.h.b16 %v1328
      %v1455 = vunpack.c.l.b16 %v1329
      %v1456 = vunpack.c.l.b16 %v1330
      %v1457 = vunpack.c.h.b16 %v1330
      %v1458 = vunpack.c.l.b16 %v1331
      %v1459 = vunpack.c.h.b16 %v1331
      %v1460 = vunpack.c.l.b16 %v1332
      %v1461 = vunpack.c.l.b16 %v1333
      %v1462 = vunpack.c.h.b16 %v1333
      %v1463 = vunpack.c.l.b16 %v1334
      %v1464 = vunpack.c.h.b16 %v1334
      %v1465 = vunpack.c.l.b16 %v1335
      %v1466 = vunpack.c.l.b16 %v1336
      %v1467 = vunpack.c.h.b16 %v1336
      %v1468 = vunpack.c.l.b16 %v1337
      %v1469 = vunpack.c.h.b16 %v1337
      %v1470 = vunpack.c.l.b16 %v1338
      %v1471 = vunpack.c.l.b16 %v1339
      %v1472 = vunpack.c.h.b16 %v1339
      %v1473 = vunpack.c.l.b16 %v1340
      %v1474 = vunpack.c.h.b16 %v1340
      %v1475 = vunpack.c.l.b16 %v1341
      %v1476 = vunpack.c.l.b16 %v1342
      %v1477 = vunpack.c.h.b16 %v1342
      %v1478 = vunpack.c.l.b16 %v1343
      %v1479 = vunpack.c.h.b16 %v1343
      %v1480 = vunpack.c.l.b16 %v1344
      %v1481 = vpack.c.b16 %v1446, %v1441
      %v1482 = vpack.c.b16 %v1447, %v1442
      %v1483 = vpack.c.b16 %v1448, %v1443
      %v1484 = vpack.c.b16 %v1449, %v1444
      %v1485 = vpack.c.b16 %v1450, %v1445
      %v1486 = vpack.c.b16 %v1456, %v1451
      %v1487 = vpack.c.b16 %v1457, %v1452
      %v1488 = vpack.c.b16 %v1458, %v1453
      %v1489 = vpack.c.b16 %v1459, %v1454
      %v1490 = vpack.c.b16 %v1460, %v1455
      %v1491 = vpack.c.b16 %v1466, %v1461
      %v1492 = vpack.c.b16 %v1467, %v1462
      %v1493 = vpack.c.b16 %v1468, %v1463
      %v1494 = vpack.c.b16 %v1469, %v1464
      %v1495 = vpack.c.b16 %v1470, %v1465
      %v1496 = vpack.c.b16 %v1476, %v1471
      %v1497 = vpack.c.b16 %v1477, %v1472
      %v1498 = vpack.c.b16 %v1478, %v1473
      %v1499 = vpack.c.b16 %v1479, %v1474
      %v1500 = vpack.c.b16 %v1480, %v1475
      %vm1517 = vcmask 523264
      %v1519 = vsel %vm1517, %v1485, 0
      %v1522 = vsel %vm1517, %v1490, 0
      %v1525 = vsel %vm1517, %v1495, 0
      %v1528 = vsel %vm1517, %v1500, 0
      %1530 = vmatprep.subr.bf16.mxu0 %v1346
      %1531 = vmatpush1.bf16.msra.mxu0 %v1345
      %1532 = vmatprep.subr.bf16.mxu0 %v1348
      %1533 = vmatpush1.bf16.msra.mxu0 %v1347
      %1534 = vmatprep.subr.bf16.mxu0 %v1350
      %1535 = vmatpush1.bf16.msra.mxu0 %v1349
      %1536 = vmatprep.subr.bf16.mxu0 %v1352
      %1537 = vmatpush1.bf16.msra.mxu0 %v1351
      %1538 = vmatprep.subr.bf16.mxu0 %v1354
      %1539 = vmatpush1.bf16.msra.mxu0 %v1353
      %1540 = vmatprep.subr.bf16.mxu0 %v1356
      %1541 = vmatpush1.bf16.msra.mxu0 %v1355
      %1542 = vmatprep.subr.bf16.mxu0 %v1358
      %1543 = vmatpush1.bf16.msra.mxu0 %v1357
      %1544 = vmatprep.subr.bf16.mxu0 %v1360
      %1545 = vmatpush1.bf16.msra.mxu0 %v1359
      %1546 = vmatprep.subr.bf16.mxu0 %v1362
      %1547 = vmatpush1.bf16.msra.mxu0 %v1361
      %1548 = vmatprep.subr.bf16.mxu0 %v1364
      %1549 = vmatpush1.bf16.msra.mxu0 %v1363
      %1550 = vmatprep.subr.bf16.mxu0 %v1366
      %1551 = vmatpush1.bf16.msra.mxu0 %v1365
      %1552 = vmatprep.subr.bf16.mxu0 %v1368
      %1553 = vmatpush1.bf16.msra.mxu0 %v1367
      %1554 = vmatprep.subr.bf16.mxu0 %v1370
      %1555 = vmatpush1.bf16.msra.mxu0 %v1369
      %1556 = vmatprep.subr.bf16.mxu0 %v1372
      %1557 = vmatpush1.bf16.msra.mxu0 %v1371
      %1558 = vmatprep.subr.bf16.mxu0 %v1374
      %1559 = vmatpush1.bf16.msra.mxu0 %v1373
      %1560 = vmatprep.subr.bf16.mxu0 %v1376
      %1561 = vmatpush1.bf16.msra.mxu0 %v1375
      %1562 = vmatprep.mubr.bf16.mxu0 %v1482
      %1563 = vmatmul.mubr.bf16.gmra.mrb[0].mxu0 %v1481
      %v1564 = vpop.f32.mrb[0].mxu0
      %v1565 = vadd.f32 0.0, %v1564
      %v1566 = vpop.f32.mrb[0].mxu0
      %v1567 = vadd.f32 0.0, %v1566
      %v1568 = vpop.f32.mrb[0].mxu0
      %v1569 = vadd.f32 0.0, %v1568
      %v1570 = vpop.f32.mrb[0].mxu0
      %v1571 = vadd.f32 0.0, %v1570
      %1572 = vmatprep.mubr.bf16.mxu0 %v1487
      %1573 = vmatmul.mubr.bf16.gmra.mrb[0].mxu0 %v1486
      %v1574 = vpop.f32.mrb[0].mxu0
      %v1575 = vadd.f32 0.0, %v1574
      %v1576 = vpop.f32.mrb[0].mxu0
      %v1577 = vadd.f32 0.0, %v1576
      %v1578 = vpop.f32.mrb[0].mxu0
      %v1579 = vadd.f32 0.0, %v1578
      %v1580 = vpop.f32.mrb[0].mxu0
      %v1581 = vadd.f32 0.0, %v1580
      %1582 = vmatprep.mubr.bf16.mxu0 %v1492
      %1583 = vmatmul.mubr.bf16.gmra.mrb[0].mxu0 %v1491
      %v1584 = vpop.f32.mrb[0].mxu0
      %v1585 = vadd.f32 0.0, %v1584
      %v1586 = vpop.f32.mrb[0].mxu0
      %v1587 = vadd.f32 0.0, %v1586
      %v1588 = vpop.f32.mrb[0].mxu0
      %v1589 = vadd.f32 0.0, %v1588
      %v1590 = vpop.f32.mrb[0].mxu0
      %v1591 = vadd.f32 0.0, %v1590
      %1592 = vmatprep.mubr.bf16.mxu0 %v1497
      %1593 = vmatmul.mubr.bf16.gmra.mrb[0].mxu0 %v1496
      %v1594 = vpop.f32.mrb[0].mxu0
      %v1595 = vadd.f32 0.0, %v1594
      %v1596 = vpop.f32.mrb[0].mxu0
      %v1597 = vadd.f32 0.0, %v1596
      %v1598 = vpop.f32.mrb[0].mxu0
      %v1599 = vadd.f32 0.0, %v1598
      %v1600 = vpop.f32.mrb[0].mxu0
      %v1601 = vadd.f32 0.0, %v1600
      %1602 = vdwg.mxu0
      %1603 = vmatprep.subr.bf16.mxu0 %v1378
      %1604 = vmatpush1.bf16.msra.mxu0 %v1377
      %1605 = vmatprep.subr.bf16.mxu0 %v1380
      %1606 = vmatpush1.bf16.msra.mxu0 %v1379
      %1607 = vmatprep.subr.bf16.mxu0 %v1382
      %1608 = vmatpush1.bf16.msra.mxu0 %v1381
      %1609 = vmatprep.subr.bf16.mxu0 %v1384
      %1610 = vmatpush1.bf16.msra.mxu0 %v1383
      %1611 = vmatprep.subr.bf16.mxu0 %v1386
      %1612 = vmatpush1.bf16.msra.mxu0 %v1385
      %1613 = vmatprep.subr.bf16.mxu0 %v1388
      %1614 = vmatpush1.bf16.msra.mxu0 %v1387
      %1615 = vmatprep.subr.bf16.mxu0 %v1390
      %1616 = vmatpush1.bf16.msra.mxu0 %v1389
      %1617 = vmatprep.subr.bf16.mxu0 %v1392
      %1618 = vmatpush1.bf16.msra.mxu0 %v1391
      %1619 = vmatprep.subr.bf16.mxu0 %v1394
      %1620 = vmatpush1.bf16.msra.mxu0 %v1393
      %1621 = vmatprep.subr.bf16.mxu0 %v1396
      %1622 = vmatpush1.bf16.msra.mxu0 %v1395
      %1623 = vmatprep.subr.bf16.mxu0 %v1398
      %1624 = vmatpush1.bf16.msra.mxu0 %v1397
      %1625 = vmatprep.subr.bf16.mxu0 %v1400
      %1626 = vmatpush1.bf16.msra.mxu0 %v1399
      %1627 = vmatprep.subr.bf16.mxu0 %v1402
      %1628 = vmatpush1.bf16.msra.mxu0 %v1401
      %1629 = vmatprep.subr.bf16.mxu0 %v1404
      %1630 = vmatpush1.bf16.msra.mxu0 %v1403
      %1631 = vmatprep.subr.bf16.mxu0 %v1406
      %1632 = vmatpush1.bf16.msra.mxu0 %v1405
      %1633 = vmatprep.subr.bf16.mxu0 %v1408
      %1634 = vmatpush1.bf16.msra.mxu0 %v1407
      %1635 = vmatprep.mubr.bf16.mxu0 %v1484
      %1636 = vmatmul.mubr.bf16.gmra.mrb[0].mxu0 %v1483
      %v1637 = vpop.f32.mrb[0].mxu0
      %v1638 = vadd.f32 %v1565, %v1637
      %v1639 = vpop.f32.mrb[0].mxu0
      %v1640 = vadd.f32 %v1567, %v1639
      %v1641 = vpop.f32.mrb[0].mxu0
      %v1642 = vadd.f32 %v1569, %v1641
      %v1643 = vpop.f32.mrb[0].mxu0
      %v1644 = vadd.f32 %v1571, %v1643
      %1645 = vmatprep.mubr.bf16.mxu0 %v1489
      %1646 = vmatmul.mubr.bf16.gmra.mrb[0].mxu0 %v1488
      %v1647 = vpop.f32.mrb[0].mxu0
      %v1648 = vadd.f32 %v1575, %v1647
      %v1649 = vpop.f32.mrb[0].mxu0
      %v1650 = vadd.f32 %v1577, %v1649
      %v1651 = vpop.f32.mrb[0].mxu0
      %v1652 = vadd.f32 %v1579, %v1651
      %v1653 = vpop.f32.mrb[0].mxu0
      %v1654 = vadd.f32 %v1581, %v1653
      %1655 = vmatprep.mubr.bf16.mxu0 %v1494
      %1656 = vmatmul.mubr.bf16.gmra.mrb[0].mxu0 %v1493
      %v1657 = vpop.f32.mrb[0].mxu0
      %v1658 = vadd.f32 %v1585, %v1657
      %v1659 = vpop.f32.mrb[0].mxu0
      %v1660 = vadd.f32 %v1587, %v1659
      %v1661 = vpop.f32.mrb[0].mxu0
      %v1662 = vadd.f32 %v1589, %v1661
      %v1663 = vpop.f32.mrb[0].mxu0
      %v1664 = vadd.f32 %v1591, %v1663
      %1665 = vmatprep.mubr.bf16.mxu0 %v1499
      %1666 = vmatmul.mubr.bf16.gmra.mrb[0].mxu0 %v1498
      %v1667 = vpop.f32.mrb[0].mxu0
      %v1668 = vadd.f32 %v1595, %v1667
      %v1669 = vpop.f32.mrb[0].mxu0
      %v1670 = vadd.f32 %v1597, %v1669
      %v1671 = vpop.f32.mrb[0].mxu0
      %v1672 = vadd.f32 %v1599, %v1671
      %v1673 = vpop.f32.mrb[0].mxu0
      %v1674 = vadd.f32 %v1601, %v1673
      %1675 = vdwg.mxu0
      %1676 = vmatprep.subr.bf16.mxu0 %v1410
      %1677 = vmatpush1.bf16.msra.mxu0 %v1409
      %1678 = vmatprep.subr.bf16.mxu0 %v1412
      %1679 = vmatpush1.bf16.msra.mxu0 %v1411
      %1680 = vmatprep.subr.bf16.mxu0 %v1414
      %1681 = vmatpush1.bf16.msra.mxu0 %v1413
      %1682 = vmatprep.subr.bf16.mxu0 %v1416
      %1683 = vmatpush1.bf16.msra.mxu0 %v1415
      %1684 = vmatprep.subr.bf16.mxu0 0
      %1685 = vmatpush1.bf16.msra.mxu0 0
      %1686 = vmatprep.subr.bf16.mxu0 0
      %1687 = vmatpush1.bf16.msra.mxu0 0
      %1688 = vmatprep.subr.bf16.mxu0 0
      %1689 = vmatpush1.bf16.msra.mxu0 0
      %1690 = vmatprep.subr.bf16.mxu0 0
      %1691 = vmatpush1.bf16.msra.mxu0 0
      %1692 = vmatprep.subr.bf16.mxu0 0
      %1693 = vmatpush1.bf16.msra.mxu0 0
      %1694 = vmatprep.subr.bf16.mxu0 0
      %1695 = vmatpush1.bf16.msra.mxu0 0
      %1696 = vmatprep.subr.bf16.mxu0 0
      %1697 = vmatpush1.bf16.msra.mxu0 0
      %1698 = vmatprep.subr.bf16.mxu0 0
      %1699 = vmatpush1.bf16.msra.mxu0 0
      %1700 = vmatprep.subr.bf16.mxu0 0
      %1701 = vmatpush1.bf16.msra.mxu0 0
      %1702 = vmatprep.subr.bf16.mxu0 0
      %1703 = vmatpush1.bf16.msra.mxu0 0
      %1704 = vmatprep.subr.bf16.mxu0 0
      %1705 = vmatpush1.bf16.msra.mxu0 0
      %1706 = vmatprep.subr.bf16.mxu0 0
      %1707 = vmatpush1.bf16.msra.mxu0 0
      %1708 = vmatprep.mubr.bf16.mxu0 0
      %1709 = vmatmul.mubr.bf16.gmra.mrb[0].mxu0 %v1519
      %v1710 = vpop.f32.mrb[0].mxu0
      %v1711 = vadd.f32 %v1638, %v1710
      %v1712 = vpop.f32.mrb[0].mxu0
      %v1713 = vadd.f32 %v1640, %v1712
      %v1714 = vpop.f32.mrb[0].mxu0
      %v1715 = vadd.f32 %v1642, %v1714
      %v1716 = vpop.f32.mrb[0].mxu0
      %v1717 = vadd.f32 %v1644, %v1716
      %1718 = vmatprep.mubr.bf16.mxu0 0
      %1719 = vmatmul.mubr.bf16.gmra.mrb[0].mxu0 %v1522
      %v1720 = vpop.f32.mrb[0].mxu0
      %v1721 = vadd.f32 %v1648, %v1720
      %v1722 = vpop.f32.mrb[0].mxu0
      %v1723 = vadd.f32 %v1650, %v1722
      %v1724 = vpop.f32.mrb[0].mxu0
      %v1725 = vadd.f32 %v1652, %v1724
      %v1726 = vpop.f32.mrb[0].mxu0
      %v1727 = vadd.f32 %v1654, %v1726
      %1728 = vmatprep.mubr.bf16.mxu0 0
      %1729 = vmatmul.mubr.bf16.gmra.mrb[0].mxu0 %v1525
      %v1730 = vpop.f32.mrb[0].mxu0
      %v1731 = vadd.f32 %v1658, %v1730
      %v1732 = vpop.f32.mrb[0].mxu0
      %v1733 = vadd.f32 %v1660, %v1732
      %v1734 = vpop.f32.mrb[0].mxu0
      %v1735 = vadd.f32 %v1662, %v1734
      %v1736 = vpop.f32.mrb[0].mxu0
      %v1737 = vadd.f32 %v1664, %v1736
      %1738 = vmatprep.mubr.bf16.mxu0 0
      %1739 = vmatmul.mubr.bf16.gmra.mrb[0].mxu0 %v1528
      %v1740 = vpop.f32.mrb[0].mxu0
      %v1741 = vadd.f32 %v1668, %v1740
      %v1742 = vpop.f32.mrb[0].mxu0
      %v1743 = vadd.f32 %v1670, %v1742
      %v1744 = vpop.f32.mrb[0].mxu0
      %v1745 = vadd.f32 %v1672, %v1744
      %v1746 = vpop.f32.mrb[0].mxu0
      %v1747 = vadd.f32 %v1674, %v1746
      %1748 = vdwg.mxu0
      %v1749 = vld [vmem:[%s3] sm:$0xff]
      %v1750 = vld [vmem:[%s3 + $0x8] sm:$0xff]
      %v1751 = vld [vmem:[%s3 + $0x10] sm:$0xff]
      %v1752 = vld [vmem:[%s3 + $0x18] sm:$0xff]
      %v1753 = vld [vmem:[%s3 + $0x20] sm:$0xff]
      %v1754 = vld [vmem:[%s3 + $0x28] sm:$0xff]
      %v1755 = vld [vmem:[%s3 + $0x30] sm:$0xff]
      %v1756 = vld [vmem:[%s3 + $0x38] sm:$0xff]
      %1758 = vset.pattern.permute.xlu0 0
      %1759 = vperm.xlu0 %1758, %v1749
      %v1760 = vpop.permute.xlu0 %1759
      %1763 = vset.pattern.permute.xlu0 0
      %1764 = vperm.xlu0 %1763, %v1750
      %v1765 = vpop.permute.xlu0 %1764
      %1768 = vset.pattern.permute.xlu0 0
      %1769 = vperm.xlu0 %1768, %v1751
      %v1770 = vpop.permute.xlu0 %1769
      %1773 = vset.pattern.permute.xlu0 0
      %1774 = vperm.xlu0 %1773, %v1752
      %v1775 = vpop.permute.xlu0 %1774
      %1778 = vset.pattern.permute.xlu0 0
      %1779 = vperm.xlu0 %1778, %v1753
      %v1780 = vpop.permute.xlu0 %1779
      %1783 = vset.pattern.permute.xlu0 0
      %1784 = vperm.xlu0 %1783, %v1754
      %v1785 = vpop.permute.xlu0 %1784
      %1788 = vset.pattern.permute.xlu0 0
      %1789 = vperm.xlu0 %1788, %v1755
      %v1790 = vpop.permute.xlu0 %1789
      %1793 = vset.pattern.permute.xlu0 0
      %1794 = vperm.xlu0 %1793, %v1756
      %v1795 = vpop.permute.xlu0 %1794
      %v1797 = vmul.f32 %v1711, %v1760
      %v1798 = vmul.f32 %v1713, %v1760
      %v1799 = vmul.f32 %v1715, %v1765
      %v1800 = vmul.f32 %v1717, %v1765
      %v1801 = vmul.f32 %v1721, %v1770
      %v1802 = vmul.f32 %v1723, %v1770
      %v1803 = vmul.f32 %v1725, %v1775
      %v1804 = vmul.f32 %v1727, %v1775
      %v1805 = vmul.f32 %v1731, %v1780
      %v1806 = vmul.f32 %v1733, %v1780
      %v1807 = vmul.f32 %v1735, %v1785
      %v1808 = vmul.f32 %v1737, %v1785
      %v1809 = vmul.f32 %v1741, %v1790
      %v1810 = vmul.f32 %v1743, %v1790
      %v1811 = vmul.f32 %v1745, %v1795
      %v1812 = vmul.f32 %v1747, %v1795
      %v1813 = vld [vmem:[%s4] sm:$0xff]
      %v1814 = vld [vmem:[%s4 + $0x8] sm:$0xff]
      %v1815 = vld [vmem:[%s4 + $0x10] sm:$0xff]
      %v1816 = vld [vmem:[%s4 + $0x18] sm:$0xff]
      %v1817 = vld [vmem:[%s4 + $0x20] sm:$0xff]
      %v1818 = vld [vmem:[%s4 + $0x28] sm:$0xff]
      %v1819 = vld [vmem:[%s4 + $0x30] sm:$0xff]
      %v1820 = vld [vmem:[%s4 + $0x38] sm:$0xff]
      %1822 = vset.pattern.permute.xlu0 0
      %1823 = vperm.xlu0 %1822, %v1813
      %v1824 = vpop.permute.xlu0 %1823
      %1827 = vset.pattern.permute.xlu0 0
      %1828 = vperm.xlu0 %1827, %v1814
      %v1829 = vpop.permute.xlu0 %1828
      %1832 = vset.pattern.permute.xlu0 0
      %1833 = vperm.xlu0 %1832, %v1815
      %v1834 = vpop.permute.xlu0 %1833
      %1837 = vset.pattern.permute.xlu0 0
      %1838 = vperm.xlu0 %1837, %v1816
      %v1839 = vpop.permute.xlu0 %1838
      %1842 = vset.pattern.permute.xlu0 0
      %1843 = vperm.xlu0 %1842, %v1817
      %v1844 = vpop.permute.xlu0 %1843
      %1847 = vset.pattern.permute.xlu0 0
      %1848 = vperm.xlu0 %1847, %v1818
      %v1849 = vpop.permute.xlu0 %1848
      %1852 = vset.pattern.permute.xlu0 0
      %1853 = vperm.xlu0 %1852, %v1819
      %v1854 = vpop.permute.xlu0 %1853
      %1857 = vset.pattern.permute.xlu0 0
      %1858 = vperm.xlu0 %1857, %v1820
      %v1859 = vpop.permute.xlu0 %1858
      %v1861 = vadd.f32 %v1797, %v1824
      %v1862 = vadd.f32 %v1798, %v1824
      %v1863 = vadd.f32 %v1799, %v1829
      %v1864 = vadd.f32 %v1800, %v1829
      %v1865 = vadd.f32 %v1801, %v1834
      %v1866 = vadd.f32 %v1802, %v1834
      %v1867 = vadd.f32 %v1803, %v1839
      %v1868 = vadd.f32 %v1804, %v1839
      %v1869 = vadd.f32 %v1805, %v1844
      %v1870 = vadd.f32 %v1806, %v1844
      %v1871 = vadd.f32 %v1807, %v1849
      %v1872 = vadd.f32 %v1808, %v1849
      %v1873 = vadd.f32 %v1809, %v1854
      %v1874 = vadd.f32 %v1810, %v1854
      %v1875 = vadd.f32 %v1811, %v1859
      %v1876 = vadd.f32 %v1812, %v1859
      %v1877 = vmax.f32 %v1861, 0.0
      %v1878 = vmax.f32 %v1862, 0.0
      %v1879 = vmax.f32 %v1863, 0.0
      %v1880 = vmax.f32 %v1864, 0.0
      %v1881 = vmax.f32 %v1865, 0.0
      %v1882 = vmax.f32 %v1866, 0.0
      %v1883 = vmax.f32 %v1867, 0.0
      %v1884 = vmax.f32 %v1868, 0.0
      %v1885 = vmax.f32 %v1869, 0.0
      %v1886 = vmax.f32 %v1870, 0.0
      %v1887 = vmax.f32 %v1871, 0.0
      %v1888 = vmax.f32 %v1872, 0.0
      %v1889 = vmax.f32 %v1873, 0.0
      %v1890 = vmax.f32 %v1874, 0.0
      %v1891 = vmax.f32 %v1875, 0.0
      %v1892 = vmax.f32 %v1876, 0.0
      %1893 = vst [vmem:[#allocation2 + $0x8] sm:$0xff] %v1877
      %1894 = vst [vmem:[#allocation2 + $0x10] sm:$0xff] %v1878
      %1895 = vst [vmem:[#allocation2 + $0x28] sm:$0xff] %v1879
      %1896 = vst [vmem:[#allocation2 + $0x30] sm:$0xff] %v1880
      %1897 = vst [vmem:[#allocation2 + $0x48] sm:$0xff] %v1881
      %1898 = vst [vmem:[#allocation2 + $0x50] sm:$0xff] %v1882
      %1899 = vst [vmem:[#allocation2 + $0x68] sm:$0xff] %v1883
      %1900 = vst [vmem:[#allocation2 + $0x70] sm:$0xff] %v1884
      %1901 = vst [vmem:[#allocation2 + $0x88] sm:$0xff] %v1885
      %1902 = vst [vmem:[#allocation2 + $0x90] sm:$0xff] %v1886
      %1903 = vst [vmem:[#allocation2 + $0xa8] sm:$0xff] %v1887
      %1904 = vst [vmem:[#allocation2 + $0xb0] sm:$0xff] %v1888
      %1905 = vst [vmem:[#allocation2 + $0xc8] sm:$0xff] %v1889
      %1906 = vst [vmem:[#allocation2 + $0xd0] sm:$0xff] %v1890
      %1907 = vst [vmem:[#allocation2 + $0xe8] sm:$0xff] %v1891
      %1908 = vst [vmem:[#allocation2 + $0xf0] sm:$0xff] %v1892
      %v1909 = vld [vmem:[#allocation2] sm:$0xff]
      %v1910 = vld [vmem:[#allocation2 + $0x8] sm:$0xff]
      %v1911 = vld [vmem:[#allocation2 + $0x10] sm:$0xff]
      %v1912 = vld [vmem:[#allocation2 + $0x20] sm:$0xff]
      %v1913 = vld [vmem:[#allocation2 + $0x28] sm:$0xff]
      %v1914 = vld [vmem:[#allocation2 + $0x30] sm:$0xff]
      %v1915 = vld [vmem:[#allocation2 + $0x40] sm:$0xff]
      %v1916 = vld [vmem:[#allocation2 + $0x48] sm:$0xff]
      %v1917 = vld [vmem:[#allocation2 + $0x50] sm:$0xff]
      %v1918 = vld [vmem:[#allocation2 + $0x60] sm:$0xff]
      %v1919 = vld [vmem:[#allocation2 + $0x68] sm:$0xff]
      %v1920 = vld [vmem:[#allocation2 + $0x70] sm:$0xff]
      %v1921 = vld [vmem:[#allocation2 + $0x80] sm:$0xff]
      %v1922 = vld [vmem:[#allocation2 + $0x88] sm:$0xff]
      %v1923 = vld [vmem:[#allocation2 + $0x90] sm:$0xff]
      %v1924 = vld [vmem:[#allocation2 + $0xa0] sm:$0xff]
      %v1925 = vld [vmem:[#allocation2 + $0xa8] sm:$0xff]
      %v1926 = vld [vmem:[#allocation2 + $0xb0] sm:$0xff]
      %v1927 = vld [vmem:[#allocation2 + $0xc0] sm:$0xff]
      %v1928 = vld [vmem:[#allocation2 + $0xc8] sm:$0xff]
      %v1929 = vld [vmem:[#allocation2 + $0xd0] sm:$0xff]
      %v1930 = vld [vmem:[#allocation2 + $0xe0] sm:$0xff]
      %v1931 = vld [vmem:[#allocation2 + $0xe8] sm:$0xff]
      %v1932 = vld [vmem:[#allocation2 + $0xf0] sm:$0xff]
      %v1933 = vmul.f32 %v1909, %v338
      %v1934 = vmul.f32 %v1910, %v342
      %v1935 = vmul.f32 %v1911, %v340
      %v1936 = vmul.f32 %v1912, %v338
      %v1937 = vmul.f32 %v1913, %v342
      %v1938 = vmul.f32 %v1914, %v340
      %v1939 = vmul.f32 %v1915, %v338
      %v1940 = vmul.f32 %v1916, %v342
      %v1941 = vmul.f32 %v1917, %v340
      %v1942 = vmul.f32 %v1918, %v338
      %v1943 = vmul.f32 %v1919, %v342
      %v1944 = vmul.f32 %v1920, %v340
      %v1945 = vmul.f32 %v1921, %v338
      %v1946 = vmul.f32 %v1922, %v342
      %v1947 = vmul.f32 %v1923, %v340
      %v1948 = vmul.f32 %v1924, %v338
      %v1949 = vmul.f32 %v1925, %v342
      %v1950 = vmul.f32 %v1926, %v340
      %v1951 = vmul.f32 %v1927, %v338
      %v1952 = vmul.f32 %v1928, %v342
      %v1953 = vmul.f32 %v1929, %v340
      %v1954 = vmul.f32 %v1930, %v338
      %v1955 = vmul.f32 %v1931, %v342
      %v1956 = vmul.f32 %v1932, %v340
      %v1957 = vpack.c.bf16 %v1936, %v1933
      %v1958 = vpack.c.bf16 %v1937, %v1934
      %v1959 = vpack.c.bf16 %v1938, %v1935
      %v1960 = vpack.c.bf16 %v1942, %v1939
      %v1961 = vpack.c.bf16 %v1943, %v1940
      %v1962 = vpack.c.bf16 %v1944, %v1941
      %v1963 = vpack.c.bf16 %v1948, %v1945
      %v1964 = vpack.c.bf16 %v1949, %v1946
      %v1965 = vpack.c.bf16 %v1950, %v1947
      %v1966 = vpack.c.bf16 %v1954, %v1951
      %v1967 = vpack.c.bf16 %v1955, %v1952
      %v1968 = vpack.c.bf16 %v1956, %v1953
      %1981 = vrot.lane.b32.xlu0 %v1957, 17
      %v1982 = vpop.permute.xlu0 %1981
      %1983 = vrot.lane.b32.xlu0 %v1958, 17
      %v1984 = vpop.permute.xlu0 %1983
      %1985 = vrot.lane.b32.xlu0 %v1959, 17
      %v1986 = vpop.permute.xlu0 %1985
      %1987 = vrot.lane.b32.xlu0 %v1960, 17
      %v1988 = vpop.permute.xlu0 %1987
      %1989 = vrot.lane.b32.xlu0 %v1961, 17
      %v1990 = vpop.permute.xlu0 %1989
      %1991 = vrot.lane.b32.xlu0 %v1962, 17
      %v1992 = vpop.permute.xlu0 %1991
      %1993 = vrot.lane.b32.xlu0 %v1963, 17
      %v1994 = vpop.permute.xlu0 %1993
      %1995 = vrot.lane.b32.xlu0 %v1964, 17
      %v1996 = vpop.permute.xlu0 %1995
      %1997 = vrot.lane.b32.xlu0 %v1965, 17
      %v1998 = vpop.permute.xlu0 %1997
      %1999 = vrot.lane.b32.xlu0 %v1966, 17
      %v2000 = vpop.permute.xlu0 %1999
      %2001 = vrot.lane.b32.xlu0 %v1967, 17
      %v2002 = vpop.permute.xlu0 %2001
      %2003 = vrot.lane.b32.xlu0 %v1968, 17
      %v2004 = vpop.permute.xlu0 %2003
      %v2005 = vsel %vm418, %v1982, %v1984
      %v2006 = vsel %vm418, %v1984, %v1986
      %v2007 = vsel %vm418, %v1988, %v1990
      %v2008 = vsel %vm418, %v1990, %v1992
      %v2009 = vsel %vm418, %v1994, %v1996
      %v2010 = vsel %vm418, %v1996, %v1998
      %v2011 = vsel %vm418, %v2000, %v2002
      %v2012 = vsel %vm418, %v2002, %v2004
      %2021 = vst [vmem:[#allocation3] sm:$0xff] %v2005
      %2022 = vst [vmem:[#allocation3 + $0x8] sm:$0xff] %v2006
      %2023 = vst [vmem:[#allocation3 + $0x10] sm:$0xff] %v2007
      %2024 = vst [vmem:[#allocation3 + $0x18] sm:$0xff] %v2008
      %2025 = vst [vmem:[#allocation3 + $0x20] sm:$0xff] %v2009
      %2026 = vst [vmem:[#allocation3 + $0x28] sm:$0xff] %v2010
      %2027 = vst [vmem:[#allocation3 + $0x30] sm:$0xff] %v2011
      %2028 = vst [vmem:[#allocation3 + $0x38] sm:$0xff] %v2012
      %v2029 = vld [vmem:[#allocation2] sm:$0xff]
      %v2030 = vld [vmem:[#allocation2 + $0x8] sm:$0xff]
      %v2031 = vld [vmem:[#allocation2 + $0x10] sm:$0xff]
      %v2032 = vld [vmem:[#allocation2 + $0x20] sm:$0xff]
      %v2033 = vld [vmem:[#allocation2 + $0x28] sm:$0xff]
      %v2034 = vld [vmem:[#allocation2 + $0x30] sm:$0xff]
      %v2035 = vld [vmem:[#allocation2 + $0x40] sm:$0xff]
      %v2036 = vld [vmem:[#allocation2 + $0x48] sm:$0xff]
      %v2037 = vld [vmem:[#allocation2 + $0x50] sm:$0xff]
      %v2038 = vld [vmem:[#allocation2 + $0x60] sm:$0xff]
      %v2039 = vld [vmem:[#allocation2 + $0x68] sm:$0xff]
      %v2040 = vld [vmem:[#allocation2 + $0x70] sm:$0xff]
      %v2041 = vld [vmem:[#allocation2 + $0x80] sm:$0xff]
      %v2042 = vld [vmem:[#allocation2 + $0x88] sm:$0xff]
      %v2043 = vld [vmem:[#allocation2 + $0x90] sm:$0xff]
      %v2044 = vld [vmem:[#allocation2 + $0xa0] sm:$0xff]
      %v2045 = vld [vmem:[#allocation2 + $0xa8] sm:$0xff]
      %v2046 = vld [vmem:[#allocation2 + $0xb0] sm:$0xff]
      %v2047 = vld [vmem:[#allocation2 + $0xc0] sm:$0xff]
      %v2048 = vld [vmem:[#allocation2 + $0xc8] sm:$0xff]
      %v2049 = vld [vmem:[#allocation2 + $0xd0] sm:$0xff]
      %v2050 = vld [vmem:[#allocation2 + $0xe0] sm:$0xff]
      %v2051 = vld [vmem:[#allocation2 + $0xe8] sm:$0xff]
      %v2052 = vld [vmem:[#allocation2 + $0xf0] sm:$0xff]
      %v2053 = vpack.c.bf16 %v2032, %v2029
      %v2054 = vpack.c.bf16 %v2033, %v2030
      %v2055 = vpack.c.bf16 %v2034, %v2031
      %v2056 = vpack.c.bf16 %v2038, %v2035
      %v2057 = vpack.c.bf16 %v2039, %v2036
      %v2058 = vpack.c.bf16 %v2040, %v2037
      %v2059 = vpack.c.bf16 %v2044, %v2041
      %v2060 = vpack.c.bf16 %v2045, %v2042
      %v2061 = vpack.c.bf16 %v2046, %v2043
      %v2062 = vpack.c.bf16 %v2050, %v2047
      %v2063 = vpack.c.bf16 %v2051, %v2048
      %v2064 = vpack.c.bf16 %v2052, %v2049
      %2077 = vrot.lane.b32.xlu0 %v2053, 16
      %v2078 = vpop.permute.xlu0 %2077
      %2079 = vrot.lane.b32.xlu0 %v2054, 16
      %v2080 = vpop.permute.xlu0 %2079
      %2081 = vrot.lane.b32.xlu0 %v2055, 16
      %v2082 = vpop.permute.xlu0 %2081
      %2083 = vrot.lane.b32.xlu0 %v2056, 16
      %v2084 = vpop.permute.xlu0 %2083
      %2085 = vrot.lane.b32.xlu0 %v2057, 16
      %v2086 = vpop.permute.xlu0 %2085
      %2087 = vrot.lane.b32.xlu0 %v2058, 16
      %v2088 = vpop.permute.xlu0 %2087
      %2089 = vrot.lane.b32.xlu0 %v2059, 16
      %v2090 = vpop.permute.xlu0 %2089
      %2091 = vrot.lane.b32.xlu0 %v2060, 16
      %v2092 = vpop.permute.xlu0 %2091
      %2093 = vrot.lane.b32.xlu0 %v2061, 16
      %v2094 = vpop.permute.xlu0 %2093
      %2095 = vrot.lane.b32.xlu0 %v2062, 16
      %v2096 = vpop.permute.xlu0 %2095
      %2097 = vrot.lane.b32.xlu0 %v2063, 16
      %v2098 = vpop.permute.xlu0 %2097
      %2099 = vrot.lane.b32.xlu0 %v2064, 16
      %v2100 = vpop.permute.xlu0 %2099
      %v2101 = vsel %vm515, %v2078, %v2080
      %v2102 = vsel %vm515, %v2080, %v2082
      %v2103 = vsel %vm515, %v2084, %v2086
      %v2104 = vsel %vm515, %v2086, %v2088
      %v2105 = vsel %vm515, %v2090, %v2092
      %v2106 = vsel %vm515, %v2092, %v2094
      %v2107 = vsel %vm515, %v2096, %v2098
      %v2108 = vsel %vm515, %v2098, %v2100
      %2117 = vst [vmem:[#allocation3 + $0x40] sm:$0xff] %v2101
      %2118 = vst [vmem:[#allocation3 + $0x48] sm:$0xff] %v2102
      %2119 = vst [vmem:[#allocation3 + $0x50] sm:$0xff] %v2103
      %2120 = vst [vmem:[#allocation3 + $0x58] sm:$0xff] %v2104
      %2121 = vst [vmem:[#allocation3 + $0x60] sm:$0xff] %v2105
      %2122 = vst [vmem:[#allocation3 + $0x68] sm:$0xff] %v2106
      %2123 = vst [vmem:[#allocation3 + $0x70] sm:$0xff] %v2107
      %2124 = vst [vmem:[#allocation3 + $0x78] sm:$0xff] %v2108
      %v2125 = vld [vmem:[#allocation2] sm:$0xff]
      %v2126 = vld [vmem:[#allocation2 + $0x8] sm:$0xff]
      %v2127 = vld [vmem:[#allocation2 + $0x10] sm:$0xff]
      %v2128 = vld [vmem:[#allocation2 + $0x20] sm:$0xff]
      %v2129 = vld [vmem:[#allocation2 + $0x28] sm:$0xff]
      %v2130 = vld [vmem:[#allocation2 + $0x30] sm:$0xff]
      %v2131 = vld [vmem:[#allocation2 + $0x40] sm:$0xff]
      %v2132 = vld [vmem:[#allocation2 + $0x48] sm:$0xff]
      %v2133 = vld [vmem:[#allocation2 + $0x50] sm:$0xff]
      %v2134 = vld [vmem:[#allocation2 + $0x60] sm:$0xff]
      %v2135 = vld [vmem:[#allocation2 + $0x68] sm:$0xff]
      %v2136 = vld [vmem:[#allocation2 + $0x70] sm:$0xff]
      %v2137 = vld [vmem:[#allocation2 + $0x80] sm:$0xff]
      %v2138 = vld [vmem:[#allocation2 + $0x88] sm:$0xff]
      %v2139 = vld [vmem:[#allocation2 + $0x90] sm:$0xff]
      %v2140 = vld [vmem:[#allocation2 + $0xa0] sm:$0xff]
      %v2141 = vld [vmem:[#allocation2 + $0xa8] sm:$0xff]
      %v2142 = vld [vmem:[#allocation2 + $0xb0] sm:$0xff]
      %v2143 = vld [vmem:[#allocation2 + $0xc0] sm:$0xff]
      %v2144 = vld [vmem:[#allocation2 + $0xc8] sm:$0xff]
      %v2145 = vld [vmem:[#allocation2 + $0xd0] sm:$0xff]
      %v2146 = vld [vmem:[#allocation2 + $0xe0] sm:$0xff]
      %v2147 = vld [vmem:[#allocation2 + $0xe8] sm:$0xff]
      %v2148 = vld [vmem:[#allocation2 + $0xf0] sm:$0xff]
      %v2149 = vmul.f32 %v2125, %v567
      %v2150 = vmul.f32 %v2126, %v571
      %v2151 = vmul.f32 %v2127, %v569
      %v2152 = vmul.f32 %v2128, %v567
      %v2153 = vmul.f32 %v2129, %v571
      %v2154 = vmul.f32 %v2130, %v569
      %v2155 = vmul.f32 %v2131, %v567
      %v2156 = vmul.f32 %v2132, %v571
      %v2157 = vmul.f32 %v2133, %v569
      %v2158 = vmul.f32 %v2134, %v567
      %v2159 = vmul.f32 %v2135, %v571
      %v2160 = vmul.f32 %v2136, %v569
      %v2161 = vmul.f32 %v2137, %v567
      %v2162 = vmul.f32 %v2138, %v571
      %v2163 = vmul.f32 %v2139, %v569
      %v2164 = vmul.f32 %v2140, %v567
      %v2165 = vmul.f32 %v2141, %v571
      %v2166 = vmul.f32 %v2142, %v569
      %v2167 = vmul.f32 %v2143, %v567
      %v2168 = vmul.f32 %v2144, %v571
      %v2169 = vmul.f32 %v2145, %v569
      %v2170 = vmul.f32 %v2146, %v567
      %v2171 = vmul.f32 %v2147, %v571
      %v2172 = vmul.f32 %v2148, %v569
      %v2173 = vpack.c.bf16 %v2152, %v2149
      %v2174 = vpack.c.bf16 %v2153, %v2150
      %v2175 = vpack.c.bf16 %v2154, %v2151
      %v2176 = vpack.c.bf16 %v2158, %v2155
      %v2177 = vpack.c.bf16 %v2159, %v2156
      %v2178 = vpack.c.bf16 %v2160, %v2157
      %v2179 = vpack.c.bf16 %v2164, %v2161
      %v2180 = vpack.c.bf16 %v2165, %v2162
      %v2181 = vpack.c.bf16 %v2166, %v2163
      %v2182 = vpack.c.bf16 %v2170, %v2167
      %v2183 = vpack.c.bf16 %v2171, %v2168
      %v2184 = vpack.c.bf16 %v2172, %v2169
      %2197 = vrot.lane.b32.xlu0 %v2173, 15
      %v2198 = vpop.permute.xlu0 %2197
      %2199 = vrot.lane.b32.xlu0 %v2174, 15
      %v2200 = vpop.permute.xlu0 %2199
      %2201 = vrot.lane.b32.xlu0 %v2175, 15
      %v2202 = vpop.permute.xlu0 %2201
      %2203 = vrot.lane.b32.xlu0 %v2176, 15
      %v2204 = vpop.permute.xlu0 %2203
      %2205 = vrot.lane.b32.xlu0 %v2177, 15
      %v2206 = vpop.permute.xlu0 %2205
      %2207 = vrot.lane.b32.xlu0 %v2178, 15
      %v2208 = vpop.permute.xlu0 %2207
      %2209 = vrot.lane.b32.xlu0 %v2179, 15
      %v2210 = vpop.permute.xlu0 %2209
      %2211 = vrot.lane.b32.xlu0 %v2180, 15
      %v2212 = vpop.permute.xlu0 %2211
      %2213 = vrot.lane.b32.xlu0 %v2181, 15
      %v2214 = vpop.permute.xlu0 %2213
      %2215 = vrot.lane.b32.xlu0 %v2182, 15
      %v2216 = vpop.permute.xlu0 %2215
      %2217 = vrot.lane.b32.xlu0 %v2183, 15
      %v2218 = vpop.permute.xlu0 %2217
      %2219 = vrot.lane.b32.xlu0 %v2184, 15
      %v2220 = vpop.permute.xlu0 %2219
      %v2221 = vsel %vm647, %v2198, %v2200
      %v2222 = vsel %vm647, %v2200, %v2202
      %v2223 = vsel %vm647, %v2204, %v2206
      %v2224 = vsel %vm647, %v2206, %v2208
      %v2225 = vsel %vm647, %v2210, %v2212
      %v2226 = vsel %vm647, %v2212, %v2214
      %v2227 = vsel %vm647, %v2216, %v2218
      %v2228 = vsel %vm647, %v2218, %v2220
      %2237 = vst [vmem:[#allocation3 + $0x80] sm:$0xff] %v2221
      %2238 = vst [vmem:[#allocation3 + $0x88] sm:$0xff] %v2222
      %2239 = vst [vmem:[#allocation3 + $0x90] sm:$0xff] %v2223
      %2240 = vst [vmem:[#allocation3 + $0x98] sm:$0xff] %v2224
      %2241 = vst [vmem:[#allocation3 + $0xa0] sm:$0xff] %v2225
      %2242 = vst [vmem:[#allocation3 + $0xa8] sm:$0xff] %v2226
      %2243 = vst [vmem:[#allocation3 + $0xb0] sm:$0xff] %v2227
      %2244 = vst [vmem:[#allocation3 + $0xb8] sm:$0xff] %v2228
      %v2245 = vld [vmem:[#allocation2] sm:$0xff]
      %v2246 = vld [vmem:[#allocation2 + $0x8] sm:$0xff]
      %v2247 = vld [vmem:[#allocation2 + $0x10] sm:$0xff]
      %v2248 = vld [vmem:[#allocation2 + $0x20] sm:$0xff]
      %v2249 = vld [vmem:[#allocation2 + $0x28] sm:$0xff]
      %v2250 = vld [vmem:[#allocation2 + $0x30] sm:$0xff]
      %v2251 = vld [vmem:[#allocation2 + $0x40] sm:$0xff]
      %v2252 = vld [vmem:[#allocation2 + $0x48] sm:$0xff]
      %v2253 = vld [vmem:[#allocation2 + $0x50] sm:$0xff]
      %v2254 = vld [vmem:[#allocation2 + $0x60] sm:$0xff]
      %v2255 = vld [vmem:[#allocation2 + $0x68] sm:$0xff]
      %v2256 = vld [vmem:[#allocation2 + $0x70] sm:$0xff]
      %v2257 = vld [vmem:[#allocation2 + $0x80] sm:$0xff]
      %v2258 = vld [vmem:[#allocation2 + $0x88] sm:$0xff]
      %v2259 = vld [vmem:[#allocation2 + $0x90] sm:$0xff]
      %v2260 = vld [vmem:[#allocation2 + $0xa0] sm:$0xff]
      %v2261 = vld [vmem:[#allocation2 + $0xa8] sm:$0xff]
      %v2262 = vld [vmem:[#allocation2 + $0xb0] sm:$0xff]
      %v2263 = vld [vmem:[#allocation2 + $0xc0] sm:$0xff]
      %v2264 = vld [vmem:[#allocation2 + $0xc8] sm:$0xff]
      %v2265 = vld [vmem:[#allocation2 + $0xd0] sm:$0xff]
      %v2266 = vld [vmem:[#allocation2 + $0xe0] sm:$0xff]
      %v2267 = vld [vmem:[#allocation2 + $0xe8] sm:$0xff]
      %v2268 = vld [vmem:[#allocation2 + $0xf0] sm:$0xff]
      %v2269 = vmul.f32 %v2245, %v697
      %v2270 = vmul.f32 %v2246, %v701
      %v2271 = vmul.f32 %v2247, %v699
      %v2272 = vmul.f32 %v2248, %v697
      %v2273 = vmul.f32 %v2249, %v701
      %v2274 = vmul.f32 %v2250, %v699
      %v2275 = vmul.f32 %v2251, %v697
      %v2276 = vmul.f32 %v2252, %v701
      %v2277 = vmul.f32 %v2253, %v699
      %v2278 = vmul.f32 %v2254, %v697
      %v2279 = vmul.f32 %v2255, %v701
      %v2280 = vmul.f32 %v2256, %v699
      %v2281 = vmul.f32 %v2257, %v697
      %v2282 = vmul.f32 %v2258, %v701
      %v2283 = vmul.f32 %v2259, %v699
      %v2284 = vmul.f32 %v2260, %v697
      %v2285 = vmul.f32 %v2261, %v701
      %v2286 = vmul.f32 %v2262, %v699
      %v2287 = vmul.f32 %v2263, %v697
      %v2288 = vmul.f32 %v2264, %v701
      %v2289 = vmul.f32 %v2265, %v699
      %v2290 = vmul.f32 %v2266, %v697
      %v2291 = vmul.f32 %v2267, %v701
      %v2292 = vmul.f32 %v2268, %v699
      %v2293 = vpack.c.bf16 %v2272, %v2269
      %v2294 = vpack.c.bf16 %v2273, %v2270
      %v2295 = vpack.c.bf16 %v2274, %v2271
      %v2296 = vpack.c.bf16 %v2278, %v2275
      %v2297 = vpack.c.bf16 %v2279, %v2276
      %v2298 = vpack.c.bf16 %v2280, %v2277
      %v2299 = vpack.c.bf16 %v2284, %v2281
      %v2300 = vpack.c.bf16 %v2285, %v2282
      %v2301 = vpack.c.bf16 %v2286, %v2283
      %v2302 = vpack.c.bf16 %v2290, %v2287
      %v2303 = vpack.c.bf16 %v2291, %v2288
      %v2304 = vpack.c.bf16 %v2292, %v2289
      %2317 = vrot.lane.b32.xlu0 %v2293, 1
      %v2318 = vpop.permute.xlu0 %2317
      %2319 = vrot.lane.b32.xlu0 %v2294, 1
      %v2320 = vpop.permute.xlu0 %2319
      %2321 = vrot.lane.b32.xlu0 %v2295, 1
      %v2322 = vpop.permute.xlu0 %2321
      %2323 = vrot.lane.b32.xlu0 %v2296, 1
      %v2324 = vpop.permute.xlu0 %2323
      %2325 = vrot.lane.b32.xlu0 %v2297, 1
      %v2326 = vpop.permute.xlu0 %2325
      %2327 = vrot.lane.b32.xlu0 %v2298, 1
      %v2328 = vpop.permute.xlu0 %2327
      %2329 = vrot.lane.b32.xlu0 %v2299, 1
      %v2330 = vpop.permute.xlu0 %2329
      %2331 = vrot.lane.b32.xlu0 %v2300, 1
      %v2332 = vpop.permute.xlu0 %2331
      %2333 = vrot.lane.b32.xlu0 %v2301, 1
      %v2334 = vpop.permute.xlu0 %2333
      %2335 = vrot.lane.b32.xlu0 %v2302, 1
      %v2336 = vpop.permute.xlu0 %2335
      %2337 = vrot.lane.b32.xlu0 %v2303, 1
      %v2338 = vpop.permute.xlu0 %2337
      %2339 = vrot.lane.b32.xlu0 %v2304, 1
      %v2340 = vpop.permute.xlu0 %2339
      %v2341 = vsel %vm777, %v2318, %v2320
      %v2342 = vsel %vm777, %v2320, %v2322
      %v2343 = vsel %vm777, %v2324, %v2326
      %v2344 = vsel %vm777, %v2326, %v2328
      %v2345 = vsel %vm777, %v2330, %v2332
      %v2346 = vsel %vm777, %v2332, %v2334
      %v2347 = vsel %vm777, %v2336, %v2338
      %v2348 = vsel %vm777, %v2338, %v2340
      %2357 = vst [vmem:[#allocation3 + $0xc0] sm:$0xff] %v2341
      %2358 = vst [vmem:[#allocation3 + $0xc8] sm:$0xff] %v2342
      %2359 = vst [vmem:[#allocation3 + $0xd0] sm:$0xff] %v2343
      %2360 = vst [vmem:[#allocation3 + $0xd8] sm:$0xff] %v2344
      %2361 = vst [vmem:[#allocation3 + $0xe0] sm:$0xff] %v2345
      %2362 = vst [vmem:[#allocation3 + $0xe8] sm:$0xff] %v2346
      %2363 = vst [vmem:[#allocation3 + $0xf0] sm:$0xff] %v2347
      %2364 = vst [vmem:[#allocation3 + $0xf8] sm:$0xff] %v2348
      %v2365 = vld [vmem:[#allocation2 + $0x8] sm:$0xff]
      %v2366 = vld [vmem:[#allocation2 + $0x10] sm:$0xff]
      %v2367 = vld [vmem:[#allocation2 + $0x28] sm:$0xff]
      %v2368 = vld [vmem:[#allocation2 + $0x30] sm:$0xff]
      %v2369 = vld [vmem:[#allocation2 + $0x48] sm:$0xff]
      %v2370 = vld [vmem:[#allocation2 + $0x50] sm:$0xff]
      %v2371 = vld [vmem:[#allocation2 + $0x68] sm:$0xff]
      %v2372 = vld [vmem:[#allocation2 + $0x70] sm:$0xff]
      %v2373 = vld [vmem:[#allocation2 + $0x88] sm:$0xff]
      %v2374 = vld [vmem:[#allocation2 + $0x90] sm:$0xff]
      %v2375 = vld [vmem:[#allocation2 + $0xa8] sm:$0xff]
      %v2376 = vld [vmem:[#allocation2 + $0xb0] sm:$0xff]
      %v2377 = vld [vmem:[#allocation2 + $0xc8] sm:$0xff]
      %v2378 = vld [vmem:[#allocation2 + $0xd0] sm:$0xff]
      %v2379 = vld [vmem:[#allocation2 + $0xe8] sm:$0xff]
      %v2380 = vld [vmem:[#allocation2 + $0xf0] sm:$0xff]
      %v2381 = vpack.c.bf16 %v2367, %v2365
      %v2382 = vpack.c.bf16 %v2368, %v2366
      %v2383 = vpack.c.bf16 %v2371, %v2369
      %v2384 = vpack.c.bf16 %v2372, %v2370
      %v2385 = vpack.c.bf16 %v2375, %v2373
      %v2386 = vpack.c.bf16 %v2376, %v2374
      %v2387 = vpack.c.bf16 %v2379, %v2377
      %v2388 = vpack.c.bf16 %v2380, %v2378
      %2389 = vst [vmem:[#allocation3 + $0x100] sm:$0xff] %v2381
      %2390 = vst [vmem:[#allocation3 + $0x108] sm:$0xff] %v2382
      %2391 = vst [vmem:[#allocation3 + $0x110] sm:$0xff] %v2383
      %2392 = vst [vmem:[#allocation3 + $0x118] sm:$0xff] %v2384
      %2393 = vst [vmem:[#allocation3 + $0x120] sm:$0xff] %v2385
      %2394 = vst [vmem:[#allocation3 + $0x128] sm:$0xff] %v2386
      %2395 = vst [vmem:[#allocation3 + $0x130] sm:$0xff] %v2387
      %2396 = vst [vmem:[#allocation3 + $0x138] sm:$0xff] %v2388
      %v2397 = vld [vmem:[#allocation2 + $0x8] sm:$0xff]
      %v2398 = vld [vmem:[#allocation2 + $0x10] sm:$0xff]
      %v2399 = vld [vmem:[#allocation2 + $0x18] sm:$0xff]
      %v2400 = vld [vmem:[#allocation2 + $0x28] sm:$0xff]
      %v2401 = vld [vmem:[#allocation2 + $0x30] sm:$0xff]
      %v2402 = vld [vmem:[#allocation2 + $0x38] sm:$0xff]
      %v2403 = vld [vmem:[#allocation2 + $0x48] sm:$0xff]
      %v2404 = vld [vmem:[#allocation2 + $0x50] sm:$0xff]
      %v2405 = vld [vmem:[#allocation2 + $0x58] sm:$0xff]
      %v2406 = vld [vmem:[#allocation2 + $0x68] sm:$0xff]
      %v2407 = vld [vmem:[#allocation2 + $0x70] sm:$0xff]
      %v2408 = vld [vmem:[#allocation2 + $0x78] sm:$0xff]
      %v2409 = vld [vmem:[#allocation2 + $0x88] sm:$0xff]
      %v2410 = vld [vmem:[#allocation2 + $0x90] sm:$0xff]
      %v2411 = vld [vmem:[#allocation2 + $0x98] sm:$0xff]
      %v2412 = vld [vmem:[#allocation2 + $0xa8] sm:$0xff]
      %v2413 = vld [vmem:[#allocation2 + $0xb0] sm:$0xff]
      %v2414 = vld [vmem:[#allocation2 + $0xb8] sm:$0xff]
      %v2415 = vld [vmem:[#allocation2 + $0xc8] sm:$0xff]
      %v2416 = vld [vmem:[#allocation2 + $0xd0] sm:$0xff]
      %v2417 = vld [vmem:[#allocation2 + $0xd8] sm:$0xff]
      %v2418 = vld [vmem:[#allocation2 + $0xe8] sm:$0xff]
      %v2419 = vld [vmem:[#allocation2 + $0xf0] sm:$0xff]
      %v2420 = vld [vmem:[#allocation2 + $0xf8] sm:$0xff]
      %v2421 = vmul.f32 %v2397, %v859
      %v2422 = vmul.f32 %v2398, %v863
      %v2423 = vmul.f32 %v2399, %v861
      %v2424 = vmul.f32 %v2400, %v859
      %v2425 = vmul.f32 %v2401, %v863
      %v2426 = vmul.f32 %v2402, %v861
      %v2427 = vmul.f32 %v2403, %v859
      %v2428 = vmul.f32 %v2404, %v863
      %v2429 = vmul.f32 %v2405, %v861
      %v2430 = vmul.f32 %v2406, %v859
      %v2431 = vmul.f32 %v2407, %v863
      %v2432 = vmul.f32 %v2408, %v861
      %v2433 = vmul.f32 %v2409, %v859
      %v2434 = vmul.f32 %v2410, %v863
      %v2435 = vmul.f32 %v2411, %v861
      %v2436 = vmul.f32 %v2412, %v859
      %v2437 = vmul.f32 %v2413, %v863
      %v2438 = vmul.f32 %v2414, %v861
      %v2439 = vmul.f32 %v2415, %v859
      %v2440 = vmul.f32 %v2416, %v863
      %v2441 = vmul.f32 %v2417, %v861
      %v2442 = vmul.f32 %v2418, %v859
      %v2443 = vmul.f32 %v2419, %v863
      %v2444 = vmul.f32 %v2420, %v861
      %v2445 = vpack.c.bf16 %v2424, %v2421
      %v2446 = vpack.c.bf16 %v2425, %v2422
      %v2447 = vpack.c.bf16 %v2426, %v2423
      %v2448 = vpack.c.bf16 %v2430, %v2427
      %v2449 = vpack.c.bf16 %v2431, %v2428
      %v2450 = vpack.c.bf16 %v2432, %v2429
      %v2451 = vpack.c.bf16 %v2436, %v2433
      %v2452 = vpack.c.bf16 %v2437, %v2434
      %v2453 = vpack.c.bf16 %v2438, %v2435
      %v2454 = vpack.c.bf16 %v2442, %v2439
      %v2455 = vpack.c.bf16 %v2443, %v2440
      %v2456 = vpack.c.bf16 %v2444, %v2441
      %2469 = vrot.lane.b32.xlu0 %v2445, 127
      %v2470 = vpop.permute.xlu0 %2469
      %2471 = vrot.lane.b32.xlu0 %v2446, 127
      %v2472 = vpop.permute.xlu0 %2471
      %2473 = vrot.lane.b32.xlu0 %v2447, 127
      %v2474 = vpop.permute.xlu0 %2473
      %2475 = vrot.lane.b32.xlu0 %v2448, 127
      %v2476 = vpop.permute.xlu0 %2475
      %2477 = vrot.lane.b32.xlu0 %v2449, 127
      %v2478 = vpop.permute.xlu0 %2477
      %2479 = vrot.lane.b32.xlu0 %v2450, 127
      %v2480 = vpop.permute.xlu0 %2479
      %2481 = vrot.lane.b32.xlu0 %v2451, 127
      %v2482 = vpop.permute.xlu0 %2481
      %2483 = vrot.lane.b32.xlu0 %v2452, 127
      %v2484 = vpop.permute.xlu0 %2483
      %2485 = vrot.lane.b32.xlu0 %v2453, 127
      %v2486 = vpop.permute.xlu0 %2485
      %2487 = vrot.lane.b32.xlu0 %v2454, 127
      %v2488 = vpop.permute.xlu0 %2487
      %2489 = vrot.lane.b32.xlu0 %v2455, 127
      %v2490 = vpop.permute.xlu0 %2489
      %2491 = vrot.lane.b32.xlu0 %v2456, 127
      %v2492 = vpop.permute.xlu0 %2491
      %v2493 = vsel %vm939, %v2470, %v2472
      %v2494 = vsel %vm939, %v2472, %v2474
      %v2495 = vsel %vm939, %v2476, %v2478
      %v2496 = vsel %vm939, %v2478, %v2480
      %v2497 = vsel %vm939, %v2482, %v2484
      %v2498 = vsel %vm939, %v2484, %v2486
      %v2499 = vsel %vm939, %v2488, %v2490
      %v2500 = vsel %vm939, %v2490, %v2492
      %2509 = vst [vmem:[#allocation3 + $0x140] sm:$0xff] %v2493
      %2510 = vst [vmem:[#allocation3 + $0x148] sm:$0xff] %v2494
      %2511 = vst [vmem:[#allocation3 + $0x150] sm:$0xff] %v2495
      %2512 = vst [vmem:[#allocation3 + $0x158] sm:$0xff] %v2496
      %2513 = vst [vmem:[#allocation3 + $0x160] sm:$0xff] %v2497
      %2514 = vst [vmem:[#allocation3 + $0x168] sm:$0xff] %v2498
      %2515 = vst [vmem:[#allocation3 + $0x170] sm:$0xff] %v2499
      %2516 = vst [vmem:[#allocation3 + $0x178] sm:$0xff] %v2500
      %v2517 = vld [vmem:[#allocation2 + $0x8] sm:$0xff]
      %v2518 = vld [vmem:[#allocation2 + $0x10] sm:$0xff]
      %v2519 = vld [vmem:[#allocation2 + $0x18] sm:$0xff]
      %v2520 = vld [vmem:[#allocation2 + $0x28] sm:$0xff]
      %v2521 = vld [vmem:[#allocation2 + $0x30] sm:$0xff]
      %v2522 = vld [vmem:[#allocation2 + $0x38] sm:$0xff]
      %v2523 = vld [vmem:[#allocation2 + $0x48] sm:$0xff]
      %v2524 = vld [vmem:[#allocation2 + $0x50] sm:$0xff]
      %v2525 = vld [vmem:[#allocation2 + $0x58] sm:$0xff]
      %v2526 = vld [vmem:[#allocation2 + $0x68] sm:$0xff]
      %v2527 = vld [vmem:[#allocation2 + $0x70] sm:$0xff]
      %v2528 = vld [vmem:[#allocation2 + $0x78] sm:$0xff]
      %v2529 = vld [vmem:[#allocation2 + $0x88] sm:$0xff]
      %v2530 = vld [vmem:[#allocation2 + $0x90] sm:$0xff]
      %v2531 = vld [vmem:[#allocation2 + $0x98] sm:$0xff]
      %v2532 = vld [vmem:[#allocation2 + $0xa8] sm:$0xff]
      %v2533 = vld [vmem:[#allocation2 + $0xb0] sm:$0xff]
      %v2534 = vld [vmem:[#allocation2 + $0xb8] sm:$0xff]
      %v2535 = vld [vmem:[#allocation2 + $0xc8] sm:$0xff]
      %v2536 = vld [vmem:[#allocation2 + $0xd0] sm:$0xff]
      %v2537 = vld [vmem:[#allocation2 + $0xd8] sm:$0xff]
      %v2538 = vld [vmem:[#allocation2 + $0xe8] sm:$0xff]
      %v2539 = vld [vmem:[#allocation2 + $0xf0] sm:$0xff]
      %v2540 = vld [vmem:[#allocation2 + $0xf8] sm:$0xff]
      %v2541 = vmul.f32 %v2517, %v989
      %v2542 = vmul.f32 %v2518, %v993
      %v2543 = vmul.f32 %v2519, %v991
      %v2544 = vmul.f32 %v2520, %v989
      %v2545 = vmul.f32 %v2521, %v993
      %v2546 = vmul.f32 %v2522, %v991
      %v2547 = vmul.f32 %v2523, %v989
      %v2548 = vmul.f32 %v2524, %v993
      %v2549 = vmul.f32 %v2525, %v991
      %v2550 = vmul.f32 %v2526, %v989
      %v2551 = vmul.f32 %v2527, %v993
      %v2552 = vmul.f32 %v2528, %v991
      %v2553 = vmul.f32 %v2529, %v989
      %v2554 = vmul.f32 %v2530, %v993
      %v2555 = vmul.f32 %v2531, %v991
      %v2556 = vmul.f32 %v2532, %v989
      %v2557 = vmul.f32 %v2533, %v993
      %v2558 = vmul.f32 %v2534, %v991
      %v2559 = vmul.f32 %v2535, %v989
      %v2560 = vmul.f32 %v2536, %v993
      %v2561 = vmul.f32 %v2537, %v991
      %v2562 = vmul.f32 %v2538, %v989
      %v2563 = vmul.f32 %v2539, %v993
      %v2564 = vmul.f32 %v2540, %v991
      %v2565 = vpack.c.bf16 %v2544, %v2541
      %v2566 = vpack.c.bf16 %v2545, %v2542
      %v2567 = vpack.c.bf16 %v2546, %v2543
      %v2568 = vpack.c.bf16 %v2550, %v2547
      %v2569 = vpack.c.bf16 %v2551, %v2548
      %v2570 = vpack.c.bf16 %v2552, %v2549
      %v2571 = vpack.c.bf16 %v2556, %v2553
      %v2572 = vpack.c.bf16 %v2557, %v2554
      %v2573 = vpack.c.bf16 %v2558, %v2555
      %v2574 = vpack.c.bf16 %v2562, %v2559
      %v2575 = vpack.c.bf16 %v2563, %v2560
      %v2576 = vpack.c.bf16 %v2564, %v2561
      %2589 = vrot.lane.b32.xlu0 %v2565, 113
      %v2590 = vpop.permute.xlu0 %2589
      %2591 = vrot.lane.b32.xlu0 %v2566, 113
      %v2592 = vpop.permute.xlu0 %2591
      %2593 = vrot.lane.b32.xlu0 %v2567, 113
      %v2594 = vpop.permute.xlu0 %2593
      %2595 = vrot.lane.b32.xlu0 %v2568, 113
      %v2596 = vpop.permute.xlu0 %2595
      %2597 = vrot.lane.b32.xlu0 %v2569, 113
      %v2598 = vpop.permute.xlu0 %2597
      %2599 = vrot.lane.b32.xlu0 %v2570, 113
      %v2600 = vpop.permute.xlu0 %2599
      %2601 = vrot.lane.b32.xlu0 %v2571, 113
      %v2602 = vpop.permute.xlu0 %2601
      %2603 = vrot.lane.b32.xlu0 %v2572, 113
      %v2604 = vpop.permute.xlu0 %2603
      %2605 = vrot.lane.b32.xlu0 %v2573, 113
      %v2606 = vpop.permute.xlu0 %2605
      %2607 = vrot.lane.b32.xlu0 %v2574, 113
      %v2608 = vpop.permute.xlu0 %2607
      %2609 = vrot.lane.b32.xlu0 %v2575, 113
      %v2610 = vpop.permute.xlu0 %2609
      %2611 = vrot.lane.b32.xlu0 %v2576, 113
      %v2612 = vpop.permute.xlu0 %2611
      %v2613 = vsel %vm1069, %v2590, %v2592
      %v2614 = vsel %vm1069, %v2592, %v2594
      %v2615 = vsel %vm1069, %v2596, %v2598
      %v2616 = vsel %vm1069, %v2598, %v2600
      %v2617 = vsel %vm1069, %v2602, %v2604
      %v2618 = vsel %vm1069, %v2604, %v2606
      %v2619 = vsel %vm1069, %v2608, %v2610
      %v2620 = vsel %vm1069, %v2610, %v2612
      %2629 = vst [vmem:[#allocation3 + $0x180] sm:$0xff] %v2613
      %2630 = vst [vmem:[#allocation3 + $0x188] sm:$0xff] %v2614
      %2631 = vst [vmem:[#allocation3 + $0x190] sm:$0xff] %v2615
      %2632 = vst [vmem:[#allocation3 + $0x198] sm:$0xff] %v2616
      %2633 = vst [vmem:[#allocation3 + $0x1a0] sm:$0xff] %v2617
      %2634 = vst [vmem:[#allocation3 + $0x1a8] sm:$0xff] %v2618
      %2635 = vst [vmem:[#allocation3 + $0x1b0] sm:$0xff] %v2619
      %2636 = vst [vmem:[#allocation3 + $0x1b8] sm:$0xff] %v2620
      %v2637 = vld [vmem:[#allocation2 + $0x8] sm:$0xff]
      %v2638 = vld [vmem:[#allocation2 + $0x10] sm:$0xff]
      %v2639 = vld [vmem:[#allocation2 + $0x18] sm:$0xff]
      %v2640 = vld [vmem:[#allocation2 + $0x28] sm:$0xff]
      %v2641 = vld [vmem:[#allocation2 + $0x30] sm:$0xff]
      %v2642 = vld [vmem:[#allocation2 + $0x38] sm:$0xff]
      %v2643 = vld [vmem:[#allocation2 + $0x48] sm:$0xff]
      %v2644 = vld [vmem:[#allocation2 + $0x50] sm:$0xff]
      %v2645 = vld [vmem:[#allocation2 + $0x58] sm:$0xff]
      %v2646 = vld [vmem:[#allocation2 + $0x68] sm:$0xff]
      %v2647 = vld [vmem:[#allocation2 + $0x70] sm:$0xff]
      %v2648 = vld [vmem:[#allocation2 + $0x78] sm:$0xff]
      %v2649 = vld [vmem:[#allocation2 + $0x88] sm:$0xff]
      %v2650 = vld [vmem:[#allocation2 + $0x90] sm:$0xff]
      %v2651 = vld [vmem:[#allocation2 + $0x98] sm:$0xff]
      %v2652 = vld [vmem:[#allocation2 + $0xa8] sm:$0xff]
      %v2653 = vld [vmem:[#allocation2 + $0xb0] sm:$0xff]
      %v2654 = vld [vmem:[#allocation2 + $0xb8] sm:$0xff]
      %v2655 = vld [vmem:[#allocation2 + $0xc8] sm:$0xff]
      %v2656 = vld [vmem:[#allocation2 + $0xd0] sm:$0xff]
      %v2657 = vld [vmem:[#allocation2 + $0xd8] sm:$0xff]
      %v2658 = vld [vmem:[#allocation2 + $0xe8] sm:$0xff]
      %v2659 = vld [vmem:[#allocation2 + $0xf0] sm:$0xff]
      %v2660 = vld [vmem:[#allocation2 + $0xf8] sm:$0xff]
      %v2661 = vpack.c.bf16 %v2640, %v2637
      %v2662 = vpack.c.bf16 %v2641, %v2638
      %v2663 = vpack.c.bf16 %v2642, %v2639
      %v2664 = vpack.c.bf16 %v2646, %v2643
      %v2665 = vpack.c.bf16 %v2647, %v2644
      %v2666 = vpack.c.bf16 %v2648, %v2645
      %v2667 = vpack.c.bf16 %v2652, %v2649
      %v2668 = vpack.c.bf16 %v2653, %v2650
      %v2669 = vpack.c.bf16 %v2654, %v2651
      %v2670 = vpack.c.bf16 %v2658, %v2655
      %v2671 = vpack.c.bf16 %v2659, %v2656
      %v2672 = vpack.c.bf16 %v2660, %v2657
      %2685 = vrot.lane.b32.xlu0 %v2661, 112
      %v2686 = vpop.permute.xlu0 %2685
      %2687 = vrot.lane.b32.xlu0 %v2662, 112
      %v2688 = vpop.permute.xlu0 %2687
      %2689 = vrot.lane.b32.xlu0 %v2663, 112
      %v2690 = vpop.permute.xlu0 %2689
      %2691 = vrot.lane.b32.xlu0 %v2664, 112
      %v2692 = vpop.permute.xlu0 %2691
      %2693 = vrot.lane.b32.xlu0 %v2665, 112
      %v2694 = vpop.permute.xlu0 %2693
      %2695 = vrot.lane.b32.xlu0 %v2666, 112
      %v2696 = vpop.permute.xlu0 %2695
      %2697 = vrot.lane.b32.xlu0 %v2667, 112
      %v2698 = vpop.permute.xlu0 %2697
      %2699 = vrot.lane.b32.xlu0 %v2668, 112
      %v2700 = vpop.permute.xlu0 %2699
      %2701 = vrot.lane.b32.xlu0 %v2669, 112
      %v2702 = vpop.permute.xlu0 %2701
      %2703 = vrot.lane.b32.xlu0 %v2670, 112
      %v2704 = vpop.permute.xlu0 %2703
      %2705 = vrot.lane.b32.xlu0 %v2671, 112
      %v2706 = vpop.permute.xlu0 %2705
      %2707 = vrot.lane.b32.xlu0 %v2672, 112
      %v2708 = vpop.permute.xlu0 %2707
      %v2709 = vsel %vm1166, %v2686, %v2688
      %v2710 = vsel %vm1166, %v2688, %v2690
      %v2711 = vsel %vm1166, %v2692, %v2694
      %v2712 = vsel %vm1166, %v2694, %v2696
      %v2713 = vsel %vm1166, %v2698, %v2700
      %v2714 = vsel %vm1166, %v2700, %v2702
      %v2715 = vsel %vm1166, %v2704, %v2706
      %v2716 = vsel %vm1166, %v2706, %v2708
      %2725 = vst [vmem:[#allocation3 + $0x1c0] sm:$0xff] %v2709
      %2726 = vst [vmem:[#allocation3 + $0x1c8] sm:$0xff] %v2710
      %2727 = vst [vmem:[#allocation3 + $0x1d0] sm:$0xff] %v2711
      %2728 = vst [vmem:[#allocation3 + $0x1d8] sm:$0xff] %v2712
      %2729 = vst [vmem:[#allocation3 + $0x1e0] sm:$0xff] %v2713
      %2730 = vst [vmem:[#allocation3 + $0x1e8] sm:$0xff] %v2714
      %2731 = vst [vmem:[#allocation3 + $0x1f0] sm:$0xff] %v2715
      %2732 = vst [vmem:[#allocation3 + $0x1f8] sm:$0xff] %v2716
      %v2733 = vld [vmem:[#allocation2 + $0x8] sm:$0xff]
      %v2734 = vld [vmem:[#allocation2 + $0x10] sm:$0xff]
      %v2735 = vld [vmem:[#allocation2 + $0x18] sm:$0xff]
      %v2736 = vld [vmem:[#allocation2 + $0x28] sm:$0xff]
      %v2737 = vld [vmem:[#allocation2 + $0x30] sm:$0xff]
      %v2738 = vld [vmem:[#allocation2 + $0x38] sm:$0xff]
      %v2739 = vld [vmem:[#allocation2 + $0x48] sm:$0xff]
      %v2740 = vld [vmem:[#allocation2 + $0x50] sm:$0xff]
      %v2741 = vld [vmem:[#allocation2 + $0x58] sm:$0xff]
      %v2742 = vld [vmem:[#allocation2 + $0x68] sm:$0xff]
      %v2743 = vld [vmem:[#allocation2 + $0x70] sm:$0xff]
      %v2744 = vld [vmem:[#allocation2 + $0x78] sm:$0xff]
      %v2745 = vld [vmem:[#allocation2 + $0x88] sm:$0xff]
      %v2746 = vld [vmem:[#allocation2 + $0x90] sm:$0xff]
      %v2747 = vld [vmem:[#allocation2 + $0x98] sm:$0xff]
      %v2748 = vld [vmem:[#allocation2 + $0xa8] sm:$0xff]
      %v2749 = vld [vmem:[#allocation2 + $0xb0] sm:$0xff]
      %v2750 = vld [vmem:[#allocation2 + $0xb8] sm:$0xff]
      %v2751 = vld [vmem:[#allocation2 + $0xc8] sm:$0xff]
      %v2752 = vld [vmem:[#allocation2 + $0xd0] sm:$0xff]
      %v2753 = vld [vmem:[#allocation2 + $0xd8] sm:$0xff]
      %v2754 = vld [vmem:[#allocation2 + $0xe8] sm:$0xff]
      %v2755 = vld [vmem:[#allocation2 + $0xf0] sm:$0xff]
      %v2756 = vld [vmem:[#allocation2 + $0xf8] sm:$0xff]
      %v2757 = vmul.f32 %v2733, %v1216
      %v2758 = vmul.f32 %v2734, %v1220
      %v2759 = vmul.f32 %v2735, %v1218
      %v2760 = vmul.f32 %v2736, %v1216
      %v2761 = vmul.f32 %v2737, %v1220
      %v2762 = vmul.f32 %v2738, %v1218
      %v2763 = vmul.f32 %v2739, %v1216
      %v2764 = vmul.f32 %v2740, %v1220
      %v2765 = vmul.f32 %v2741, %v1218
      %v2766 = vmul.f32 %v2742, %v1216
      %v2767 = vmul.f32 %v2743, %v1220
      %v2768 = vmul.f32 %v2744, %v1218
      %v2769 = vmul.f32 %v2745, %v1216
      %v2770 = vmul.f32 %v2746, %v1220
      %v2771 = vmul.f32 %v2747, %v1218
      %v2772 = vmul.f32 %v2748, %v1216
      %v2773 = vmul.f32 %v2749, %v1220
      %v2774 = vmul.f32 %v2750, %v1218
      %v2775 = vmul.f32 %v2751, %v1216
      %v2776 = vmul.f32 %v2752, %v1220
      %v2777 = vmul.f32 %v2753, %v1218
      %v2778 = vmul.f32 %v2754, %v1216
      %v2779 = vmul.f32 %v2755, %v1220
      %v2780 = vmul.f32 %v2756, %v1218
      %v2781 = vpack.c.bf16 %v2760, %v2757
      %v2782 = vpack.c.bf16 %v2761, %v2758
      %v2783 = vpack.c.bf16 %v2762, %v2759
      %v2784 = vpack.c.bf16 %v2766, %v2763
      %v2785 = vpack.c.bf16 %v2767, %v2764
      %v2786 = vpack.c.bf16 %v2768, %v2765
      %v2787 = vpack.c.bf16 %v2772, %v2769
      %v2788 = vpack.c.bf16 %v2773, %v2770
      %v2789 = vpack.c.bf16 %v2774, %v2771
      %v2790 = vpack.c.bf16 %v2778, %v2775
      %v2791 = vpack.c.bf16 %v2779, %v2776
      %v2792 = vpack.c.bf16 %v2780, %v2777
      %2805 = vrot.lane.b32.xlu0 %v2781, 111
      %v2806 = vpop.permute.xlu0 %2805
      %2807 = vrot.lane.b32.xlu0 %v2782, 111
      %v2808 = vpop.permute.xlu0 %2807
      %2809 = vrot.lane.b32.xlu0 %v2783, 111
      %v2810 = vpop.permute.xlu0 %2809
      %2811 = vrot.lane.b32.xlu0 %v2784, 111
      %v2812 = vpop.permute.xlu0 %2811
      %2813 = vrot.lane.b32.xlu0 %v2785, 111
      %v2814 = vpop.permute.xlu0 %2813
      %2815 = vrot.lane.b32.xlu0 %v2786, 111
      %v2816 = vpop.permute.xlu0 %2815
      %2817 = vrot.lane.b32.xlu0 %v2787, 111
      %v2818 = vpop.permute.xlu0 %2817
      %2819 = vrot.lane.b32.xlu0 %v2788, 111
      %v2820 = vpop.permute.xlu0 %2819
      %2821 = vrot.lane.b32.xlu0 %v2789, 111
      %v2822 = vpop.permute.xlu0 %2821
      %2823 = vrot.lane.b32.xlu0 %v2790, 111
      %v2824 = vpop.permute.xlu0 %2823
      %2825 = vrot.lane.b32.xlu0 %v2791, 111
      %v2826 = vpop.permute.xlu0 %2825
      %2827 = vrot.lane.b32.xlu0 %v2792, 111
      %v2828 = vpop.permute.xlu0 %2827
      %v2829 = vsel %vm1296, %v2806, %v2808
      %v2830 = vsel %vm1296, %v2808, %v2810
      %v2831 = vsel %vm1296, %v2812, %v2814
      %v2832 = vsel %vm1296, %v2814, %v2816
      %v2833 = vsel %vm1296, %v2818, %v2820
      %v2834 = vsel %vm1296, %v2820, %v2822
      %v2835 = vsel %vm1296, %v2824, %v2826
      %v2836 = vsel %vm1296, %v2826, %v2828
      %2845 = vst [vmem:[#allocation3 + $0x200] sm:$0xff] %v2829
      %2846 = vst [vmem:[#allocation3 + $0x208] sm:$0xff] %v2830
      %2847 = vst [vmem:[#allocation3 + $0x210] sm:$0xff] %v2831
      %2848 = vst [vmem:[#allocation3 + $0x218] sm:$0xff] %v2832
      %2849 = vst [vmem:[#allocation3 + $0x220] sm:$0xff] %v2833
      %2850 = vst [vmem:[#allocation3 + $0x228] sm:$0xff] %v2834
      %2851 = vst [vmem:[#allocation3 + $0x230] sm:$0xff] %v2835
      %2852 = vst [vmem:[#allocation3 + $0x238] sm:$0xff] %v2836
      %s2853 = scalar_lea.vmem %s2, 160
      %v2854 = vld [vmem:[%s2853] sm:$0xff]
      %v2855 = vld [vmem:[%s2853 + $0x8] sm:$0xff]
      %v2856 = vld [vmem:[%s2853 + $0x10] sm:$0xf]
      %v2857 = vld [vmem:[%s2853 + $0x14] sm:$0xff]
      %v2858 = vld [vmem:[%s2853 + $0x1c] sm:$0xff]
      %v2859 = vld [vmem:[%s2853 + $0x24] sm:$0xf]
      %v2860 = vld [vmem:[%s2853 + $0x28] sm:$0xff]
      %v2861 = vld [vmem:[%s2853 + $0x30] sm:$0xff]
      %v2862 = vld [vmem:[%s2853 + $0x38] sm:$0xf]
      %v2863 = vld [vmem:[%s2853 + $0x3c] sm:$0xff]
      %v2864 = vld [vmem:[%s2853 + $0x44] sm:$0xff]
      %v2865 = vld [vmem:[%s2853 + $0x4c] sm:$0xf]
      %v2866 = vld [vmem:[%s2853 + $0x50] sm:$0xff]
      %v2867 = vld [vmem:[%s2853 + $0x58] sm:$0xff]
      %v2868 = vld [vmem:[%s2853 + $0x60] sm:$0xf]
      %v2869 = vld [vmem:[%s2853 + $0x64] sm:$0xff]
      %v2870 = vld [vmem:[%s2853 + $0x6c] sm:$0xff]
      %v2871 = vld [vmem:[%s2853 + $0x74] sm:$0xf]
      %v2872 = vld [vmem:[%s2853 + $0x78] sm:$0xff]
      %v2873 = vld [vmem:[%s2853 + $0x80] sm:$0xff]
      %v2874 = vld [vmem:[%s2853 + $0x88] sm:$0xf]
      %v2875 = vld [vmem:[%s2853 + $0x8c] sm:$0xff]
      %v2876 = vld [vmem:[%s2853 + $0x94] sm:$0xff]
      %v2877 = vld [vmem:[%s2853 + $0x9c] sm:$0xf]
      %v2878 = vld [vmem:[#allocation3] sm:$0xff]
      %v2879 = vld [vmem:[#allocation3 + $0x8] sm:$0xff]
      %v2880 = vld [vmem:[#allocation3 + $0x10] sm:$0xff]
      %v2881 = vld [vmem:[#allocation3 + $0x18] sm:$0xff]
      %v2882 = vld [vmem:[#allocation3 + $0x20] sm:$0xff]
      %v2883 = vld [vmem:[#allocation3 + $0x28] sm:$0xff]
      %v2884 = vld [vmem:[#allocation3 + $0x30] sm:$0xff]
      %v2885 = vld [vmem:[#allocation3 + $0x38] sm:$0xff]
      %v2886 = vld [vmem:[#allocation3 + $0x40] sm:$0xff]
      %v2887 = vld [vmem:[#allocation3 + $0x48] sm:$0xff]
      %v2888 = vld [vmem:[#allocation3 + $0x50] sm:$0xff]
      %v2889 = vld [vmem:[#allocation3 + $0x58] sm:$0xff]
      %v2890 = vld [vmem:[#allocation3 + $0x60] sm:$0xff]
      %v2891 = vld [vmem:[#allocation3 + $0x68] sm:$0xff]
      %v2892 = vld [vmem:[#allocation3 + $0x70] sm:$0xff]
      %v2893 = vld [vmem:[#allocation3 + $0x78] sm:$0xff]
      %v2894 = vld [vmem:[#allocation3 + $0x80] sm:$0xff]
      %v2895 = vld [vmem:[#allocation3 + $0x88] sm:$0xff]
      %v2896 = vld [vmem:[#allocation3 + $0x90] sm:$0xff]
      %v2897 = vld [vmem:[#allocation3 + $0x98] sm:$0xff]
      %v2898 = vld [vmem:[#allocation3 + $0xa0] sm:$0xff]
      %v2899 = vld [vmem:[#allocation3 + $0xa8] sm:$0xff]
      %v2900 = vld [vmem:[#allocation3 + $0xb0] sm:$0xff]
      %v2901 = vld [vmem:[#allocation3 + $0xb8] sm:$0xff]
      %v2902 = vld [vmem:[#allocation3 + $0xc0] sm:$0xff]
      %v2903 = vld [vmem:[#allocation3 + $0xc8] sm:$0xff]
      %v2904 = vld [vmem:[#allocation3 + $0xd0] sm:$0xff]
      %v2905 = vld [vmem:[#allocation3 + $0xd8] sm:$0xff]
      %v2906 = vld [vmem:[#allocation3 + $0xe0] sm:$0xff]
      %v2907 = vld [vmem:[#allocation3 + $0xe8] sm:$0xff]
      %v2908 = vld [vmem:[#allocation3 + $0xf0] sm:$0xff]
      %v2909 = vld [vmem:[#allocation3 + $0xf8] sm:$0xff]
      %v2910 = vld [vmem:[#allocation3 + $0x100] sm:$0xff]
      %v2911 = vld [vmem:[#allocation3 + $0x108] sm:$0xff]
      %v2912 = vld [vmem:[#allocation3 + $0x110] sm:$0xff]
      %v2913 = vld [vmem:[#allocation3 + $0x118] sm:$0xff]
      %v2914 = vld [vmem:[#allocation3 + $0x120] sm:$0xff]
      %v2915 = vld [vmem:[#allocation3 + $0x128] sm:$0xff]
      %v2916 = vld [vmem:[#allocation3 + $0x130] sm:$0xff]
      %v2917 = vld [vmem:[#allocation3 + $0x138] sm:$0xff]
      %v2918 = vld [vmem:[#allocation3 + $0x140] sm:$0xff]
      %v2919 = vld [vmem:[#allocation3 + $0x148] sm:$0xff]
      %v2920 = vld [vmem:[#allocation3 + $0x150] sm:$0xff]
      %v2921 = vld [vmem:[#allocation3 + $0x158] sm:$0xff]
      %v2922 = vld [vmem:[#allocation3 + $0x160] sm:$0xff]
      %v2923 = vld [vmem:[#allocation3 + $0x168] sm:$0xff]
      %v2924 = vld [vmem:[#allocation3 + $0x170] sm:$0xff]
      %v2925 = vld [vmem:[#allocation3 + $0x178] sm:$0xff]
      %v2926 = vld [vmem:[#allocation3 + $0x180] sm:$0xff]
      %v2927 = vld [vmem:[#allocation3 + $0x188] sm:$0xff]
      %v2928 = vld [vmem:[#allocation3 + $0x190] sm:$0xff]
      %v2929 = vld [vmem:[#allocation3 + $0x198] sm:$0xff]
      %v2930 = vld [vmem:[#allocation3 + $0x1a0] sm:$0xff]
      %v2931 = vld [vmem:[#allocation3 + $0x1a8] sm:$0xff]
      %v2932 = vld [vmem:[#allocation3 + $0x1b0] sm:$0xff]
      %v2933 = vld [vmem:[#allocation3 + $0x1b8] sm:$0xff]
      %v2934 = vld [vmem:[#allocation3 + $0x1c0] sm:$0xff]
      %v2935 = vld [vmem:[#allocation3 + $0x1c8] sm:$0xff]
      %v2936 = vld [vmem:[#allocation3 + $0x1d0] sm:$0xff]
      %v2937 = vld [vmem:[#allocation3 + $0x1d8] sm:$0xff]
      %v2938 = vld [vmem:[#allocation3 + $0x1e0] sm:$0xff]
      %v2939 = vld [vmem:[#allocation3 + $0x1e8] sm:$0xff]
      %v2940 = vld [vmem:[#allocation3 + $0x1f0] sm:$0xff]
      %v2941 = vld [vmem:[#allocation3 + $0x1f8] sm:$0xff]
      %v2942 = vld [vmem:[#allocation3 + $0x200] sm:$0xff]
      %v2943 = vld [vmem:[#allocation3 + $0x208] sm:$0xff]
      %v2944 = vld [vmem:[#allocation3 + $0x210] sm:$0xff]
      %v2945 = vld [vmem:[#allocation3 + $0x218] sm:$0xff]
      %v2946 = vld [vmem:[#allocation3 + $0x220] sm:$0xff]
      %v2947 = vld [vmem:[#allocation3 + $0x228] sm:$0xff]
      %v2948 = vld [vmem:[#allocation3 + $0x230] sm:$0xff]
      %v2949 = vld [vmem:[#allocation3 + $0x238] sm:$0xff]
      %v2974 = vunpack.c.l.b16 %v2854
      %v2975 = vunpack.c.h.b16 %v2854
      %v2976 = vunpack.c.l.b16 %v2855
      %v2977 = vunpack.c.h.b16 %v2855
      %v2978 = vunpack.c.l.b16 %v2856
      %v2979 = vunpack.c.l.b16 %v2857
      %v2980 = vunpack.c.h.b16 %v2857
      %v2981 = vunpack.c.l.b16 %v2858
      %v2982 = vunpack.c.h.b16 %v2858
      %v2983 = vunpack.c.l.b16 %v2859
      %v2984 = vunpack.c.l.b16 %v2860
      %v2985 = vunpack.c.h.b16 %v2860
      %v2986 = vunpack.c.l.b16 %v2861
      %v2987 = vunpack.c.h.b16 %v2861
      %v2988 = vunpack.c.l.b16 %v2862
      %v2989 = vunpack.c.l.b16 %v2863
      %v2990 = vunpack.c.h.b16 %v2863
      %v2991 = vunpack.c.l.b16 %v2864
      %v2992 = vunpack.c.h.b16 %v2864
      %v2993 = vunpack.c.l.b16 %v2865
      %v2994 = vunpack.c.l.b16 %v2866
      %v2995 = vunpack.c.h.b16 %v2866
      %v2996 = vunpack.c.l.b16 %v2867
      %v2997 = vunpack.c.h.b16 %v2867
      %v2998 = vunpack.c.l.b16 %v2868
      %v2999 = vunpack.c.l.b16 %v2869
      %v3000 = vunpack.c.h.b16 %v2869
      %v3001 = vunpack.c.l.b16 %v2870
      %v3002 = vunpack.c.h.b16 %v2870
      %v3003 = vunpack.c.l.b16 %v2871
      %v3004 = vunpack.c.l.b16 %v2872
      %v3005 = vunpack.c.h.b16 %v2872
      %v3006 = vunpack.c.l.b16 %v2873
      %v3007 = vunpack.c.h.b16 %v2873
      %v3008 = vunpack.c.l.b16 %v2874
      %v3009 = vunpack.c.l.b16 %v2875
      %v3010 = vunpack.c.h.b16 %v2875
      %v3011 = vunpack.c.l.b16 %v2876
      %v3012 = vunpack.c.h.b16 %v2876
      %v3013 = vunpack.c.l.b16 %v2877
      %v3014 = vpack.c.b16 %v2979, %v2974
      %v3015 = vpack.c.b16 %v2980, %v2975
      %v3016 = vpack.c.b16 %v2981, %v2976
      %v3017 = vpack.c.b16 %v2982, %v2977
      %v3018 = vpack.c.b16 %v2983, %v2978
      %v3019 = vpack.c.b16 %v2989, %v2984
      %v3020 = vpack.c.b16 %v2990, %v2985
      %v3021 = vpack.c.b16 %v2991, %v2986
      %v3022 = vpack.c.b16 %v2992, %v2987
      %v3023 = vpack.c.b16 %v2993, %v2988
      %v3024 = vpack.c.b16 %v2999, %v2994
      %v3025 = vpack.c.b16 %v3000, %v2995
      %v3026 = vpack.c.b16 %v3001, %v2996
      %v3027 = vpack.c.b16 %v3002, %v2997
      %v3028 = vpack.c.b16 %v3003, %v2998
      %v3029 = vpack.c.b16 %v3009, %v3004
      %v3030 = vpack.c.b16 %v3010, %v3005
      %v3031 = vpack.c.b16 %v3011, %v3006
      %v3032 = vpack.c.b16 %v3012, %v3007
      %v3033 = vpack.c.b16 %v3013, %v3008
      %v3051 = vsel %vm1517, %v3018, 0
      %v3054 = vsel %vm1517, %v3023, 0
      %v3057 = vsel %vm1517, %v3028, 0
      %v3060 = vsel %vm1517, %v3033, 0
      %3062 = vmatprep.subr.bf16.mxu0 %v2879
      %3063 = vmatpush1.bf16.msra.mxu0 %v2878
      %3064 = vmatprep.subr.bf16.mxu0 %v2881
      %3065 = vmatpush1.bf16.msra.mxu0 %v2880
      %3066 = vmatprep.subr.bf16.mxu0 %v2883
      %3067 = vmatpush1.bf16.msra.mxu0 %v2882
      %3068 = vmatprep.subr.bf16.mxu0 %v2885
      %3069 = vmatpush1.bf16.msra.mxu0 %v2884
      %3070 = vmatprep.subr.bf16.mxu0 %v2887
      %3071 = vmatpush1.bf16.msra.mxu0 %v2886
      %3072 = vmatprep.subr.bf16.mxu0 %v2889
      %3073 = vmatpush1.bf16.msra.mxu0 %v2888
      %3074 = vmatprep.subr.bf16.mxu0 %v2891
      %3075 = vmatpush1.bf16.msra.mxu0 %v2890
      %3076 = vmatprep.subr.bf16.mxu0 %v2893
      %3077 = vmatpush1.bf16.msra.mxu0 %v2892
      %3078 = vmatprep.subr.bf16.mxu0 %v2895
      %3079 = vmatpush1.bf16.msra.mxu0 %v2894
      %3080 = vmatprep.subr.bf16.mxu0 %v2897
      %3081 = vmatpush1.bf16.msra.mxu0 %v2896
      %3082 = vmatprep.subr.bf16.mxu0 %v2899
      %3083 = vmatpush1.bf16.msra.mxu0 %v2898
      %3084 = vmatprep.subr.bf16.mxu0 %v2901
      %3085 = vmatpush1.bf16.msra.mxu0 %v2900
      %3086 = vmatprep.subr.bf16.mxu0 %v2903
      %3087 = vmatpush1.bf16.msra.mxu0 %v2902
      %3088 = vmatprep.subr.bf16.mxu0 %v2905
      %3089 = vmatpush1.bf16.msra.mxu0 %v2904
      %3090 = vmatprep.subr.bf16.mxu0 %v2907
      %3091 = vmatpush1.bf16.msra.mxu0 %v2906
      %3092 = vmatprep.subr.bf16.mxu0 %v2909
      %3093 = vmatpush1.bf16.msra.mxu0 %v2908
      %3094 = vmatprep.mubr.bf16.mxu0 %v3015
      %3095 = vmatmul.mubr.bf16.gmra.mrb[0].mxu0 %v3014
      %v3096 = vpop.f32.mrb[0].mxu0
      %v3097 = vadd.f32 0.0, %v3096
      %v3098 = vpop.f32.mrb[0].mxu0
      %v3099 = vadd.f32 0.0, %v3098
      %v3100 = vpop.f32.mrb[0].mxu0
      %v3101 = vadd.f32 0.0, %v3100
      %v3102 = vpop.f32.mrb[0].mxu0
      %v3103 = vadd.f32 0.0, %v3102
      %3104 = vmatprep.mubr.bf16.mxu0 %v3020
      %3105 = vmatmul.mubr.bf16.gmra.mrb[0].mxu0 %v3019
      %v3106 = vpop.f32.mrb[0].mxu0
      %v3107 = vadd.f32 0.0, %v3106
      %v3108 = vpop.f32.mrb[0].mxu0
      %v3109 = vadd.f32 0.0, %v3108
      %v3110 = vpop.f32.mrb[0].mxu0
      %v3111 = vadd.f32 0.0, %v3110
      %v3112 = vpop.f32.mrb[0].mxu0
      %v3113 = vadd.f32 0.0, %v3112
      %3114 = vmatprep.mubr.bf16.mxu0 %v3025
      %3115 = vmatmul.mubr.bf16.gmra.mrb[0].mxu0 %v3024
      %v3116 = vpop.f32.mrb[0].mxu0
      %v3117 = vadd.f32 0.0, %v3116
      %v3118 = vpop.f32.mrb[0].mxu0
      %v3119 = vadd.f32 0.0, %v3118
      %v3120 = vpop.f32.mrb[0].mxu0
      %v3121 = vadd.f32 0.0, %v3120
      %v3122 = vpop.f32.mrb[0].mxu0
      %v3123 = vadd.f32 0.0, %v3122
      %3124 = vmatprep.mubr.bf16.mxu0 %v3030
      %3125 = vmatmul.mubr.bf16.gmra.mrb[0].mxu0 %v3029
      %v3126 = vpop.f32.mrb[0].mxu0
      %v3127 = vadd.f32 0.0, %v3126
      %v3128 = vpop.f32.mrb[0].mxu0
      %v3129 = vadd.f32 0.0, %v3128
      %v3130 = vpop.f32.mrb[0].mxu0
      %v3131 = vadd.f32 0.0, %v3130
      %v3132 = vpop.f32.mrb[0].mxu0
      %v3133 = vadd.f32 0.0, %v3132
      %3134 = vdwg.mxu0
      %3135 = vmatprep.subr.bf16.mxu0 %v2911
      %3136 = vmatpush1.bf16.msra.mxu0 %v2910
      %3137 = vmatprep.subr.bf16.mxu0 %v2913
      %3138 = vmatpush1.bf16.msra.mxu0 %v2912
      %3139 = vmatprep.subr.bf16.mxu0 %v2915
      %3140 = vmatpush1.bf16.msra.mxu0 %v2914
      %3141 = vmatprep.subr.bf16.mxu0 %v2917
      %3142 = vmatpush1.bf16.msra.mxu0 %v2916
      %3143 = vmatprep.subr.bf16.mxu0 %v2919
      %3144 = vmatpush1.bf16.msra.mxu0 %v2918
      %3145 = vmatprep.subr.bf16.mxu0 %v2921
      %3146 = vmatpush1.bf16.msra.mxu0 %v2920
      %3147 = vmatprep.subr.bf16.mxu0 %v2923
      %3148 = vmatpush1.bf16.msra.mxu0 %v2922
      %3149 = vmatprep.subr.bf16.mxu0 %v2925
      %3150 = vmatpush1.bf16.msra.mxu0 %v2924
      %3151 = vmatprep.subr.bf16.mxu0 %v2927
      %3152 = vmatpush1.bf16.msra.mxu0 %v2926
      %3153 = vmatprep.subr.bf16.mxu0 %v2929
      %3154 = vmatpush1.bf16.msra.mxu0 %v2928
      %3155 = vmatprep.subr.bf16.mxu0 %v2931
      %3156 = vmatpush1.bf16.msra.mxu0 %v2930
      %3157 = vmatprep.subr.bf16.mxu0 %v2933
      %3158 = vmatpush1.bf16.msra.mxu0 %v2932
      %3159 = vmatprep.subr.bf16.mxu0 %v2935
      %3160 = vmatpush1.bf16.msra.mxu0 %v2934
      %3161 = vmatprep.subr.bf16.mxu0 %v2937
      %3162 = vmatpush1.bf16.msra.mxu0 %v2936
      %3163 = vmatprep.subr.bf16.mxu0 %v2939
      %3164 = vmatpush1.bf16.msra.mxu0 %v2938
      %3165 = vmatprep.subr.bf16.mxu0 %v2941
      %3166 = vmatpush1.bf16.msra.mxu0 %v2940
      %3167 = vmatprep.mubr.bf16.mxu0 %v3017
      %3168 = vmatmul.mubr.bf16.gmra.mrb[0].mxu0 %v3016
      %v3169 = vpop.f32.mrb[0].mxu0
      %v3170 = vadd.f32 %v3097, %v3169
      %v3171 = vpop.f32.mrb[0].mxu0
      %v3172 = vadd.f32 %v3099, %v3171
      %v3173 = vpop.f32.mrb[0].mxu0
      %v3174 = vadd.f32 %v3101, %v3173
      %v3175 = vpop.f32.mrb[0].mxu0
      %v3176 = vadd.f32 %v3103, %v3175
      %3177 = vmatprep.mubr.bf16.mxu0 %v3022
      %3178 = vmatmul.mubr.bf16.gmra.mrb[0].mxu0 %v3021
      %v3179 = vpop.f32.mrb[0].mxu0
      %v3180 = vadd.f32 %v3107, %v3179
      %v3181 = vpop.f32.mrb[0].mxu0
      %v3182 = vadd.f32 %v3109, %v3181
      %v3183 = vpop.f32.mrb[0].mxu0
      %v3184 = vadd.f32 %v3111, %v3183
      %v3185 = vpop.f32.mrb[0].mxu0
      %v3186 = vadd.f32 %v3113, %v3185
      %3187 = vmatprep.mubr.bf16.mxu0 %v3027
      %3188 = vmatmul.mubr.bf16.gmra.mrb[0].mxu0 %v3026
      %v3189 = vpop.f32.mrb[0].mxu0
      %v3190 = vadd.f32 %v3117, %v3189
      %v3191 = vpop.f32.mrb[0].mxu0
      %v3192 = vadd.f32 %v3119, %v3191
      %v3193 = vpop.f32.mrb[0].mxu0
      %v3194 = vadd.f32 %v3121, %v3193
      %v3195 = vpop.f32.mrb[0].mxu0
      %v3196 = vadd.f32 %v3123, %v3195
      %3197 = vmatprep.mubr.bf16.mxu0 %v3032
      %3198 = vmatmul.mubr.bf16.gmra.mrb[0].mxu0 %v3031
      %v3199 = vpop.f32.mrb[0].mxu0
      %v3200 = vadd.f32 %v3127, %v3199
      %v3201 = vpop.f32.mrb[0].mxu0
      %v3202 = vadd.f32 %v3129, %v3201
      %v3203 = vpop.f32.mrb[0].mxu0
      %v3204 = vadd.f32 %v3131, %v3203
      %v3205 = vpop.f32.mrb[0].mxu0
      %v3206 = vadd.f32 %v3133, %v3205
      %3207 = vdwg.mxu0
      %3208 = vmatprep.subr.bf16.mxu0 %v2943
      %3209 = vmatpush1.bf16.msra.mxu0 %v2942
      %3210 = vmatprep.subr.bf16.mxu0 %v2945
      %3211 = vmatpush1.bf16.msra.mxu0 %v2944
      %3212 = vmatprep.subr.bf16.mxu0 %v2947
      %3213 = vmatpush1.bf16.msra.mxu0 %v2946
      %3214 = vmatprep.subr.bf16.mxu0 %v2949
      %3215 = vmatpush1.bf16.msra.mxu0 %v2948
      %3216 = vmatprep.subr.bf16.mxu0 0
      %3217 = vmatpush1.bf16.msra.mxu0 0
      %3218 = vmatprep.subr.bf16.mxu0 0
      %3219 = vmatpush1.bf16.msra.mxu0 0
      %3220 = vmatprep.subr.bf16.mxu0 0
      %3221 = vmatpush1.bf16.msra.mxu0 0
      %3222 = vmatprep.subr.bf16.mxu0 0
      %3223 = vmatpush1.bf16.msra.mxu0 0
      %3224 = vmatprep.subr.bf16.mxu0 0
      %3225 = vmatpush1.bf16.msra.mxu0 0
      %3226 = vmatprep.subr.bf16.mxu0 0
      %3227 = vmatpush1.bf16.msra.mxu0 0
      %3228 = vmatprep.subr.bf16.mxu0 0
      %3229 = vmatpush1.bf16.msra.mxu0 0
      %3230 = vmatprep.subr.bf16.mxu0 0
      %3231 = vmatpush1.bf16.msra.mxu0 0
      %3232 = vmatprep.subr.bf16.mxu0 0
      %3233 = vmatpush1.bf16.msra.mxu0 0
      %3234 = vmatprep.subr.bf16.mxu0 0
      %3235 = vmatpush1.bf16.msra.mxu0 0
      %3236 = vmatprep.subr.bf16.mxu0 0
      %3237 = vmatpush1.bf16.msra.mxu0 0
      %3238 = vmatprep.subr.bf16.mxu0 0
      %3239 = vmatpush1.bf16.msra.mxu0 0
      %3240 = vmatprep.mubr.bf16.mxu0 0
      %3241 = vmatmul.mubr.bf16.gmra.mrb[0].mxu0 %v3051
      %v3242 = vpop.f32.mrb[0].mxu0
      %v3243 = vadd.f32 %v3170, %v3242
      %v3244 = vpop.f32.mrb[0].mxu0
      %v3245 = vadd.f32 %v3172, %v3244
      %v3246 = vpop.f32.mrb[0].mxu0
      %v3247 = vadd.f32 %v3174, %v3246
      %v3248 = vpop.f32.mrb[0].mxu0
      %v3249 = vadd.f32 %v3176, %v3248
      %3250 = vmatprep.mubr.bf16.mxu0 0
      %3251 = vmatmul.mubr.bf16.gmra.mrb[0].mxu0 %v3054
      %v3252 = vpop.f32.mrb[0].mxu0
      %v3253 = vadd.f32 %v3180, %v3252
      %v3254 = vpop.f32.mrb[0].mxu0
      %v3255 = vadd.f32 %v3182, %v3254
      %v3256 = vpop.f32.mrb[0].mxu0
      %v3257 = vadd.f32 %v3184, %v3256
      %v3258 = vpop.f32.mrb[0].mxu0
      %v3259 = vadd.f32 %v3186, %v3258
      %3260 = vmatprep.mubr.bf16.mxu0 0
      %3261 = vmatmul.mubr.bf16.gmra.mrb[0].mxu0 %v3057
      %v3262 = vpop.f32.mrb[0].mxu0
      %v3263 = vadd.f32 %v3190, %v3262
      %v3264 = vpop.f32.mrb[0].mxu0
      %v3265 = vadd.f32 %v3192, %v3264
      %v3266 = vpop.f32.mrb[0].mxu0
      %v3267 = vadd.f32 %v3194, %v3266
      %v3268 = vpop.f32.mrb[0].mxu0
      %v3269 = vadd.f32 %v3196, %v3268
      %3270 = vmatprep.mubr.bf16.mxu0 0
      %3271 = vmatmul.mubr.bf16.gmra.mrb[0].mxu0 %v3060
      %v3272 = vpop.f32.mrb[0].mxu0
      %v3273 = vadd.f32 %v3200, %v3272
      %v3274 = vpop.f32.mrb[0].mxu0
      %v3275 = vadd.f32 %v3202, %v3274
      %v3276 = vpop.f32.mrb[0].mxu0
      %v3277 = vadd.f32 %v3204, %v3276
      %v3278 = vpop.f32.mrb[0].mxu0
      %v3279 = vadd.f32 %v3206, %v3278
      %3280 = vdwg.mxu0
      %s3281 = scalar_lea.vmem %s3, 64
      %v3282 = vld [vmem:[%s3281] sm:$0xff]
      %v3283 = vld [vmem:[%s3281 + $0x8] sm:$0xff]
      %v3284 = vld [vmem:[%s3281 + $0x10] sm:$0xff]
      %v3285 = vld [vmem:[%s3281 + $0x18] sm:$0xff]
      %v3286 = vld [vmem:[%s3281 + $0x20] sm:$0xff]
      %v3287 = vld [vmem:[%s3281 + $0x28] sm:$0xff]
      %v3288 = vld [vmem:[%s3281 + $0x30] sm:$0xff]
      %v3289 = vld [vmem:[%s3281 + $0x38] sm:$0xff]
      %3291 = vset.pattern.permute.xlu0 0
      %3292 = vperm.xlu0 %3291, %v3282
      %v3293 = vpop.permute.xlu0 %3292
      %3296 = vset.pattern.permute.xlu0 0
      %3297 = vperm.xlu0 %3296, %v3283
      %v3298 = vpop.permute.xlu0 %3297
      %3301 = vset.pattern.permute.xlu0 0
      %3302 = vperm.xlu0 %3301, %v3284
      %v3303 = vpop.permute.xlu0 %3302
      %3306 = vset.pattern.permute.xlu0 0
      %3307 = vperm.xlu0 %3306, %v3285
      %v3308 = vpop.permute.xlu0 %3307
      %3311 = vset.pattern.permute.xlu0 0
      %3312 = vperm.xlu0 %3311, %v3286
      %v3313 = vpop.permute.xlu0 %3312
      %3316 = vset.pattern.permute.xlu0 0
      %3317 = vperm.xlu0 %3316, %v3287
      %v3318 = vpop.permute.xlu0 %3317
      %3321 = vset.pattern.permute.xlu0 0
      %3322 = vperm.xlu0 %3321, %v3288
      %v3323 = vpop.permute.xlu0 %3322
      %3326 = vset.pattern.permute.xlu0 0
      %3327 = vperm.xlu0 %3326, %v3289
      %v3328 = vpop.permute.xlu0 %3327
      %v3330 = vmul.f32 %v3243, %v3293
      %v3331 = vmul.f32 %v3245, %v3293
      %v3332 = vmul.f32 %v3247, %v3298
      %v3333 = vmul.f32 %v3249, %v3298
      %v3334 = vmul.f32 %v3253, %v3303
      %v3335 = vmul.f32 %v3255, %v3303
      %v3336 = vmul.f32 %v3257, %v3308
      %v3337 = vmul.f32 %v3259, %v3308
      %v3338 = vmul.f32 %v3263, %v3313
      %v3339 = vmul.f32 %v3265, %v3313
      %v3340 = vmul.f32 %v3267, %v3318
      %v3341 = vmul.f32 %v3269, %v3318
      %v3342 = vmul.f32 %v3273, %v3323
      %v3343 = vmul.f32 %v3275, %v3323
      %v3344 = vmul.f32 %v3277, %v3328
      %v3345 = vmul.f32 %v3279, %v3328
      %s3346 = scalar_lea.vmem %s4, 64
      %v3347 = vld [vmem:[%s3346] sm:$0xff]
      %v3348 = vld [vmem:[%s3346 + $0x8] sm:$0xff]
      %v3349 = vld [vmem:[%s3346 + $0x10] sm:$0xff]
      %v3350 = vld [vmem:[%s3346 + $0x18] sm:$0xff]
      %v3351 = vld [vmem:[%s3346 + $0x20] sm:$0xff]
      %v3352 = vld [vmem:[%s3346 + $0x28] sm:$0xff]
      %v3353 = vld [vmem:[%s3346 + $0x30] sm:$0xff]
      %v3354 = vld [vmem:[%s3346 + $0x38] sm:$0xff]
      %3356 = vset.pattern.permute.xlu0 0
      %3357 = vperm.xlu0 %3356, %v3347
      %v3358 = vpop.permute.xlu0 %3357
      %3361 = vset.pattern.permute.xlu0 0
      %3362 = vperm.xlu0 %3361, %v3348
      %v3363 = vpop.permute.xlu0 %3362
      %3366 = vset.pattern.permute.xlu0 0
      %3367 = vperm.xlu0 %3366, %v3349
      %v3368 = vpop.permute.xlu0 %3367
      %3371 = vset.pattern.permute.xlu0 0
      %3372 = vperm.xlu0 %3371, %v3350
      %v3373 = vpop.permute.xlu0 %3372
      %3376 = vset.pattern.permute.xlu0 0
      %3377 = vperm.xlu0 %3376, %v3351
      %v3378 = vpop.permute.xlu0 %3377
      %3381 = vset.pattern.permute.xlu0 0
      %3382 = vperm.xlu0 %3381, %v3352
      %v3383 = vpop.permute.xlu0 %3382
      %3386 = vset.pattern.permute.xlu0 0
      %3387 = vperm.xlu0 %3386, %v3353
      %v3388 = vpop.permute.xlu0 %3387
      %3391 = vset.pattern.permute.xlu0 0
      %3392 = vperm.xlu0 %3391, %v3354
      %v3393 = vpop.permute.xlu0 %3392
      %v3395 = vadd.f32 %v3330, %v3358
      %v3396 = vadd.f32 %v3331, %v3358
      %v3397 = vadd.f32 %v3332, %v3363
      %v3398 = vadd.f32 %v3333, %v3363
      %v3399 = vadd.f32 %v3334, %v3368
      %v3400 = vadd.f32 %v3335, %v3368
      %v3401 = vadd.f32 %v3336, %v3373
      %v3402 = vadd.f32 %v3337, %v3373
      %v3403 = vadd.f32 %v3338, %v3378
      %v3404 = vadd.f32 %v3339, %v3378
      %v3405 = vadd.f32 %v3340, %v3383
      %v3406 = vadd.f32 %v3341, %v3383
      %v3407 = vadd.f32 %v3342, %v3388
      %v3408 = vadd.f32 %v3343, %v3388
      %v3409 = vadd.f32 %v3344, %v3393
      %v3410 = vadd.f32 %v3345, %v3393
      %v3411 = vmax.f32 %v3395, 0.0
      %v3412 = vmax.f32 %v3396, 0.0
      %v3413 = vmax.f32 %v3397, 0.0
      %v3414 = vmax.f32 %v3398, 0.0
      %v3415 = vmax.f32 %v3399, 0.0
      %v3416 = vmax.f32 %v3400, 0.0
      %v3417 = vmax.f32 %v3401, 0.0
      %v3418 = vmax.f32 %v3402, 0.0
      %v3419 = vmax.f32 %v3403, 0.0
      %v3420 = vmax.f32 %v3404, 0.0
      %v3421 = vmax.f32 %v3405, 0.0
      %v3422 = vmax.f32 %v3406, 0.0
      %v3423 = vmax.f32 %v3407, 0.0
      %v3424 = vmax.f32 %v3408, 0.0
      %v3425 = vmax.f32 %v3409, 0.0
      %v3426 = vmax.f32 %v3410, 0.0
      %v3427 = vadd.f32 %v3411, %v279
      %v3428 = vadd.f32 %v3412, %v280
      %v3429 = vadd.f32 %v3413, %v281
      %v3430 = vadd.f32 %v3414, %v282
      %v3431 = vadd.f32 %v3415, %v283
      %v3432 = vadd.f32 %v3416, %v284
      %v3433 = vadd.f32 %v3417, %v285
      %v3434 = vadd.f32 %v3418, %v286
      %v3435 = vadd.f32 %v3419, %v287
      %v3436 = vadd.f32 %v3420, %v288
      %v3437 = vadd.f32 %v3421, %v289
      %v3438 = vadd.f32 %v3422, %v290
      %v3439 = vadd.f32 %v3423, %v291
      %v3440 = vadd.f32 %v3424, %v292
      %v3441 = vadd.f32 %v3425, %v293
      %v3442 = vadd.f32 %v3426, %v294
      %v3443 = vld [vmem:[%s239] sm:$0xff]
      %v3444 = vld [vmem:[%s239 + $0x8] sm:$0xff]
      %v3445 = vld [vmem:[%s239 + $0x10] sm:$0xff]
      %v3446 = vld [vmem:[%s239 + $0x18] sm:$0xff]
      %v3447 = vld [vmem:[%s239 + $0x20] sm:$0xff]
      %v3448 = vld [vmem:[%s239 + $0x28] sm:$0xff]
      %v3449 = vld [vmem:[%s239 + $0x30] sm:$0xff]
      %v3450 = vld [vmem:[%s239 + $0x38] sm:$0xff]
      %v3451 = vld [vmem:[%s239 + $0x40] sm:$0xff]
      %v3452 = vld [vmem:[%s239 + $0x48] sm:$0xff]
      %v3453 = vld [vmem:[%s239 + $0x50] sm:$0xff]
      %v3454 = vld [vmem:[%s239 + $0x58] sm:$0xff]
      %v3455 = vld [vmem:[%s239 + $0x60] sm:$0xff]
      %v3456 = vld [vmem:[%s239 + $0x68] sm:$0xff]
      %v3457 = vld [vmem:[%s239 + $0x70] sm:$0xff]
      %v3458 = vld [vmem:[%s239 + $0x78] sm:$0xff]
      %3459 = vst [vmem:[#allocation2 + $0x8] sm:$0xff] %v3443
      %3460 = vst [vmem:[#allocation2 + $0x10] sm:$0xff] %v3444
      %3461 = vst [vmem:[#allocation2 + $0x28] sm:$0xff] %v3445
      %3462 = vst [vmem:[#allocation2 + $0x30] sm:$0xff] %v3446
      %3463 = vst [vmem:[#allocation2 + $0x48] sm:$0xff] %v3447
      %3464 = vst [vmem:[#allocation2 + $0x50] sm:$0xff] %v3448
      %3465 = vst [vmem:[#allocation2 + $0x68] sm:$0xff] %v3449
      %3466 = vst [vmem:[#allocation2 + $0x70] sm:$0xff] %v3450
      %3467 = vst [vmem:[#allocation2 + $0x88] sm:$0xff] %v3451
      %3468 = vst [vmem:[#allocation2 + $0x90] sm:$0xff] %v3452
      %3469 = vst [vmem:[#allocation2 + $0xa8] sm:$0xff] %v3453
      %3470 = vst [vmem:[#allocation2 + $0xb0] sm:$0xff] %v3454
      %3471 = vst [vmem:[#allocation2 + $0xc8] sm:$0xff] %v3455
      %3472 = vst [vmem:[#allocation2 + $0xd0] sm:$0xff] %v3456
      %3473 = vst [vmem:[#allocation2 + $0xe8] sm:$0xff] %v3457
      %3474 = vst [vmem:[#allocation2 + $0xf0] sm:$0xff] %v3458
      %v3475 = vld [vmem:[#allocation2] sm:$0xff]
      %v3476 = vld [vmem:[#allocation2 + $0x8] sm:$0xff]
      %v3477 = vld [vmem:[#allocation2 + $0x10] sm:$0xff]
      %v3478 = vld [vmem:[#allocation2 + $0x20] sm:$0xff]
      %v3479 = vld [vmem:[#allocation2 + $0x28] sm:$0xff]
      %v3480 = vld [vmem:[#allocation2 + $0x30] sm:$0xff]
      %v3481 = vld [vmem:[#allocation2 + $0x40] sm:$0xff]
      %v3482 = vld [vmem:[#allocation2 + $0x48] sm:$0xff]
      %v3483 = vld [vmem:[#allocation2 + $0x50] sm:$0xff]
      %v3484 = vld [vmem:[#allocation2 + $0x60] sm:$0xff]
      %v3485 = vld [vmem:[#allocation2 + $0x68] sm:$0xff]
      %v3486 = vld [vmem:[#allocation2 + $0x70] sm:$0xff]
      %v3487 = vld [vmem:[#allocation2 + $0x80] sm:$0xff]
      %v3488 = vld [vmem:[#allocation2 + $0x88] sm:$0xff]
      %v3489 = vld [vmem:[#allocation2 + $0x90] sm:$0xff]
      %v3490 = vld [vmem:[#allocation2 + $0xa0] sm:$0xff]
      %v3491 = vld [vmem:[#allocation2 + $0xa8] sm:$0xff]
      %v3492 = vld [vmem:[#allocation2 + $0xb0] sm:$0xff]
      %v3493 = vld [vmem:[#allocation2 + $0xc0] sm:$0xff]
      %v3494 = vld [vmem:[#allocation2 + $0xc8] sm:$0xff]
      %v3495 = vld [vmem:[#allocation2 + $0xd0] sm:$0xff]
      %v3496 = vld [vmem:[#allocation2 + $0xe0] sm:$0xff]
      %v3497 = vld [vmem:[#allocation2 + $0xe8] sm:$0xff]
      %v3498 = vld [vmem:[#allocation2 + $0xf0] sm:$0xff]
      %v3499 = vmul.f32 %v3475, %v338
      %v3500 = vmul.f32 %v3476, %v342
      %v3501 = vmul.f32 %v3477, %v340
      %v3502 = vmul.f32 %v3478, %v338
      %v3503 = vmul.f32 %v3479, %v342
      %v3504 = vmul.f32 %v3480, %v340
      %v3505 = vmul.f32 %v3481, %v338
      %v3506 = vmul.f32 %v3482, %v342
      %v3507 = vmul.f32 %v3483, %v340
      %v3508 = vmul.f32 %v3484, %v338
      %v3509 = vmul.f32 %v3485, %v342
      %v3510 = vmul.f32 %v3486, %v340
      %v3511 = vmul.f32 %v3487, %v338
      %v3512 = vmul.f32 %v3488, %v342
      %v3513 = vmul.f32 %v3489, %v340
      %v3514 = vmul.f32 %v3490, %v338
      %v3515 = vmul.f32 %v3491, %v342
      %v3516 = vmul.f32 %v3492, %v340
      %v3517 = vmul.f32 %v3493, %v338
      %v3518 = vmul.f32 %v3494, %v342
      %v3519 = vmul.f32 %v3495, %v340
      %v3520 = vmul.f32 %v3496, %v338
      %v3521 = vmul.f32 %v3497, %v342
      %v3522 = vmul.f32 %v3498, %v340
      %v3523 = vpack.c.bf16 %v3502, %v3499
      %v3524 = vpack.c.bf16 %v3503, %v3500
      %v3525 = vpack.c.bf16 %v3504, %v3501
      %v3526 = vpack.c.bf16 %v3508, %v3505
      %v3527 = vpack.c.bf16 %v3509, %v3506
      %v3528 = vpack.c.bf16 %v3510, %v3507
      %v3529 = vpack.c.bf16 %v3514, %v3511
      %v3530 = vpack.c.bf16 %v3515, %v3512
      %v3531 = vpack.c.bf16 %v3516, %v3513
      %v3532 = vpack.c.bf16 %v3520, %v3517
      %v3533 = vpack.c.bf16 %v3521, %v3518
      %v3534 = vpack.c.bf16 %v3522, %v3519
      %3547 = vrot.lane.b32.xlu0 %v3523, 17
      %v3548 = vpop.permute.xlu0 %3547
      %3549 = vrot.lane.b32.xlu0 %v3524, 17
      %v3550 = vpop.permute.xlu0 %3549
      %3551 = vrot.lane.b32.xlu0 %v3525, 17
      %v3552 = vpop.permute.xlu0 %3551
      %3553 = vrot.lane.b32.xlu0 %v3526, 17
      %v3554 = vpop.permute.xlu0 %3553
      %3555 = vrot.lane.b32.xlu0 %v3527, 17
      %v3556 = vpop.permute.xlu0 %3555
      %3557 = vrot.lane.b32.xlu0 %v3528, 17
      %v3558 = vpop.permute.xlu0 %3557
      %3559 = vrot.lane.b32.xlu0 %v3529, 17
      %v3560 = vpop.permute.xlu0 %3559
      %3561 = vrot.lane.b32.xlu0 %v3530, 17
      %v3562 = vpop.permute.xlu0 %3561
      %3563 = vrot.lane.b32.xlu0 %v3531, 17
      %v3564 = vpop.permute.xlu0 %3563
      %3565 = vrot.lane.b32.xlu0 %v3532, 17
      %v3566 = vpop.permute.xlu0 %3565
      %3567 = vrot.lane.b32.xlu0 %v3533, 17
      %v3568 = vpop.permute.xlu0 %3567
      %3569 = vrot.lane.b32.xlu0 %v3534, 17
      %v3570 = vpop.permute.xlu0 %3569
      %v3571 = vsel %vm418, %v3548, %v3550
      %v3572 = vsel %vm418, %v3550, %v3552
      %v3573 = vsel %vm418, %v3554, %v3556
      %v3574 = vsel %vm418, %v3556, %v3558
      %v3575 = vsel %vm418, %v3560, %v3562
      %v3576 = vsel %vm418, %v3562, %v3564
      %v3577 = vsel %vm418, %v3566, %v3568
      %v3578 = vsel %vm418, %v3568, %v3570
      %3587 = vst [vmem:[#allocation3] sm:$0xff] %v3571
      %3588 = vst [vmem:[#allocation3 + $0x8] sm:$0xff] %v3572
      %3589 = vst [vmem:[#allocation3 + $0x10] sm:$0xff] %v3573
      %3590 = vst [vmem:[#allocation3 + $0x18] sm:$0xff] %v3574
      %3591 = vst [vmem:[#allocation3 + $0x20] sm:$0xff] %v3575
      %3592 = vst [vmem:[#allocation3 + $0x28] sm:$0xff] %v3576
      %3593 = vst [vmem:[#allocation3 + $0x30] sm:$0xff] %v3577
      %3594 = vst [vmem:[#allocation3 + $0x38] sm:$0xff] %v3578
      %v3595 = vld [vmem:[#allocation2] sm:$0xff]
      %v3596 = vld [vmem:[#allocation2 + $0x8] sm:$0xff]
      %v3597 = vld [vmem:[#allocation2 + $0x10] sm:$0xff]
      %v3598 = vld [vmem:[#allocation2 + $0x20] sm:$0xff]
      %v3599 = vld [vmem:[#allocation2 + $0x28] sm:$0xff]
      %v3600 = vld [vmem:[#allocation2 + $0x30] sm:$0xff]
      %v3601 = vld [vmem:[#allocation2 + $0x40] sm:$0xff]
      %v3602 = vld [vmem:[#allocation2 + $0x48] sm:$0xff]
      %v3603 = vld [vmem:[#allocation2 + $0x50] sm:$0xff]
      %v3604 = vld [vmem:[#allocation2 + $0x60] sm:$0xff]
      %v3605 = vld [vmem:[#allocation2 + $0x68] sm:$0xff]
      %v3606 = vld [vmem:[#allocation2 + $0x70] sm:$0xff]
      %v3607 = vld [vmem:[#allocation2 + $0x80] sm:$0xff]
      %v3608 = vld [vmem:[#allocation2 + $0x88] sm:$0xff]
      %v3609 = vld [vmem:[#allocation2 + $0x90] sm:$0xff]
      %v3610 = vld [vmem:[#allocation2 + $0xa0] sm:$0xff]
      %v3611 = vld [vmem:[#allocation2 + $0xa8] sm:$0xff]
      %v3612 = vld [vmem:[#allocation2 + $0xb0] sm:$0xff]
      %v3613 = vld [vmem:[#allocation2 + $0xc0] sm:$0xff]
      %v3614 = vld [vmem:[#allocation2 + $0xc8] sm:$0xff]
      %v3615 = vld [vmem:[#allocation2 + $0xd0] sm:$0xff]
      %v3616 = vld [vmem:[#allocation2 + $0xe0] sm:$0xff]
      %v3617 = vld [vmem:[#allocation2 + $0xe8] sm:$0xff]
      %v3618 = vld [vmem:[#allocation2 + $0xf0] sm:$0xff]
      %v3619 = vpack.c.bf16 %v3598, %v3595
      %v3620 = vpack.c.bf16 %v3599, %v3596
      %v3621 = vpack.c.bf16 %v3600, %v3597
      %v3622 = vpack.c.bf16 %v3604, %v3601
      %v3623 = vpack.c.bf16 %v3605, %v3602
      %v3624 = vpack.c.bf16 %v3606, %v3603
      %v3625 = vpack.c.bf16 %v3610, %v3607
      %v3626 = vpack.c.bf16 %v3611, %v3608
      %v3627 = vpack.c.bf16 %v3612, %v3609
      %v3628 = vpack.c.bf16 %v3616, %v3613
      %v3629 = vpack.c.bf16 %v3617, %v3614
      %v3630 = vpack.c.bf16 %v3618, %v3615
      %3643 = vrot.lane.b32.xlu0 %v3619, 16
      %v3644 = vpop.permute.xlu0 %3643
      %3645 = vrot.lane.b32.xlu0 %v3620, 16
      %v3646 = vpop.permute.xlu0 %3645
      %3647 = vrot.lane.b32.xlu0 %v3621, 16
      %v3648 = vpop.permute.xlu0 %3647
      %3649 = vrot.lane.b32.xlu0 %v3622, 16
      %v3650 = vpop.permute.xlu0 %3649
      %3651 = vrot.lane.b32.xlu0 %v3623, 16
      %v3652 = vpop.permute.xlu0 %3651
      %3653 = vrot.lane.b32.xlu0 %v3624, 16
      %v3654 = vpop.permute.xlu0 %3653
      %3655 = vrot.lane.b32.xlu0 %v3625, 16
      %v3656 = vpop.permute.xlu0 %3655
      %3657 = vrot.lane.b32.xlu0 %v3626, 16
      %v3658 = vpop.permute.xlu0 %3657
      %3659 = vrot.lane.b32.xlu0 %v3627, 16
      %v3660 = vpop.permute.xlu0 %3659
      %3661 = vrot.lane.b32.xlu0 %v3628, 16
      %v3662 = vpop.permute.xlu0 %3661
      %3663 = vrot.lane.b32.xlu0 %v3629, 16
      %v3664 = vpop.permute.xlu0 %3663
      %3665 = vrot.lane.b32.xlu0 %v3630, 16
      %v3666 = vpop.permute.xlu0 %3665
      %v3667 = vsel %vm515, %v3644, %v3646
      %v3668 = vsel %vm515, %v3646, %v3648
      %v3669 = vsel %vm515, %v3650, %v3652
      %v3670 = vsel %vm515, %v3652, %v3654
      %v3671 = vsel %vm515, %v3656, %v3658
      %v3672 = vsel %vm515, %v3658, %v3660
      %v3673 = vsel %vm515, %v3662, %v3664
      %v3674 = vsel %vm515, %v3664, %v3666
      %3683 = vst [vmem:[#allocation3 + $0x40] sm:$0xff] %v3667
      %3684 = vst [vmem:[#allocation3 + $0x48] sm:$0xff] %v3668
      %3685 = vst [vmem:[#allocation3 + $0x50] sm:$0xff] %v3669
      %3686 = vst [vmem:[#allocation3 + $0x58] sm:$0xff] %v3670
      %3687 = vst [vmem:[#allocation3 + $0x60] sm:$0xff] %v3671
      %3688 = vst [vmem:[#allocation3 + $0x68] sm:$0xff] %v3672
      %3689 = vst [vmem:[#allocation3 + $0x70] sm:$0xff] %v3673
      %3690 = vst [vmem:[#allocation3 + $0x78] sm:$0xff] %v3674
      %v3691 = vld [vmem:[#allocation2] sm:$0xff]
      %v3692 = vld [vmem:[#allocation2 + $0x8] sm:$0xff]
      %v3693 = vld [vmem:[#allocation2 + $0x10] sm:$0xff]
      %v3694 = vld [vmem:[#allocation2 + $0x20] sm:$0xff]
      %v3695 = vld [vmem:[#allocation2 + $0x28] sm:$0xff]
      %v3696 = vld [vmem:[#allocation2 + $0x30] sm:$0xff]
      %v3697 = vld [vmem:[#allocation2 + $0x40] sm:$0xff]
      %v3698 = vld [vmem:[#allocation2 + $0x48] sm:$0xff]
      %v3699 = vld [vmem:[#allocation2 + $0x50] sm:$0xff]
      %v3700 = vld [vmem:[#allocation2 + $0x60] sm:$0xff]
      %v3701 = vld [vmem:[#allocation2 + $0x68] sm:$0xff]
      %v3702 = vld [vmem:[#allocation2 + $0x70] sm:$0xff]
      %v3703 = vld [vmem:[#allocation2 + $0x80] sm:$0xff]
      %v3704 = vld [vmem:[#allocation2 + $0x88] sm:$0xff]
      %v3705 = vld [vmem:[#allocation2 + $0x90] sm:$0xff]
      %v3706 = vld [vmem:[#allocation2 + $0xa0] sm:$0xff]
      %v3707 = vld [vmem:[#allocation2 + $0xa8] sm:$0xff]
      %v3708 = vld [vmem:[#allocation2 + $0xb0] sm:$0xff]
      %v3709 = vld [vmem:[#allocation2 + $0xc0] sm:$0xff]
      %v3710 = vld [vmem:[#allocation2 + $0xc8] sm:$0xff]
      %v3711 = vld [vmem:[#allocation2 + $0xd0] sm:$0xff]
      %v3712 = vld [vmem:[#allocation2 + $0xe0] sm:$0xff]
      %v3713 = vld [vmem:[#allocation2 + $0xe8] sm:$0xff]
      %v3714 = vld [vmem:[#allocation2 + $0xf0] sm:$0xff]
      %v3715 = vmul.f32 %v3691, %v567
      %v3716 = vmul.f32 %v3692, %v571
      %v3717 = vmul.f32 %v3693, %v569
      %v3718 = vmul.f32 %v3694, %v567
      %v3719 = vmul.f32 %v3695, %v571
      %v3720 = vmul.f32 %v3696, %v569
      %v3721 = vmul.f32 %v3697, %v567
      %v3722 = vmul.f32 %v3698, %v571
      %v3723 = vmul.f32 %v3699, %v569
      %v3724 = vmul.f32 %v3700, %v567
      %v3725 = vmul.f32 %v3701, %v571
      %v3726 = vmul.f32 %v3702, %v569
      %v3727 = vmul.f32 %v3703, %v567
      %v3728 = vmul.f32 %v3704, %v571
      %v3729 = vmul.f32 %v3705, %v569
      %v3730 = vmul.f32 %v3706, %v567
      %v3731 = vmul.f32 %v3707, %v571
      %v3732 = vmul.f32 %v3708, %v569
      %v3733 = vmul.f32 %v3709, %v567
      %v3734 = vmul.f32 %v3710, %v571
      %v3735 = vmul.f32 %v3711, %v569
      %v3736 = vmul.f32 %v3712, %v567
      %v3737 = vmul.f32 %v3713, %v571
      %v3738 = vmul.f32 %v3714, %v569
      %v3739 = vpack.c.bf16 %v3718, %v3715
      %v3740 = vpack.c.bf16 %v3719, %v3716
      %v3741 = vpack.c.bf16 %v3720, %v3717
      %v3742 = vpack.c.bf16 %v3724, %v3721
      %v3743 = vpack.c.bf16 %v3725, %v3722
      %v3744 = vpack.c.bf16 %v3726, %v3723
      %v3745 = vpack.c.bf16 %v3730, %v3727
      %v3746 = vpack.c.bf16 %v3731, %v3728
      %v3747 = vpack.c.bf16 %v3732, %v3729
      %v3748 = vpack.c.bf16 %v3736, %v3733
      %v3749 = vpack.c.bf16 %v3737, %v3734
      %v3750 = vpack.c.bf16 %v3738, %v3735
      %3763 = vrot.lane.b32.xlu0 %v3739, 15
      %v3764 = vpop.permute.xlu0 %3763
      %3765 = vrot.lane.b32.xlu0 %v3740, 15
      %v3766 = vpop.permute.xlu0 %3765
      %3767 = vrot.lane.b32.xlu0 %v3741, 15
      %v3768 = vpop.permute.xlu0 %3767
      %3769 = vrot.lane.b32.xlu0 %v3742, 15
      %v3770 = vpop.permute.xlu0 %3769
      %3771 = vrot.lane.b32.xlu0 %v3743, 15
      %v3772 = vpop.permute.xlu0 %3771
      %3773 = vrot.lane.b32.xlu0 %v3744, 15
      %v3774 = vpop.permute.xlu0 %3773
      %3775 = vrot.lane.b32.xlu0 %v3745, 15
      %v3776 = vpop.permute.xlu0 %3775
      %3777 = vrot.lane.b32.xlu0 %v3746, 15
      %v3778 = vpop.permute.xlu0 %3777
      %3779 = vrot.lane.b32.xlu0 %v3747, 15
      %v3780 = vpop.permute.xlu0 %3779
      %3781 = vrot.lane.b32.xlu0 %v3748, 15
      %v3782 = vpop.permute.xlu0 %3781
      %3783 = vrot.lane.b32.xlu0 %v3749, 15
      %v3784 = vpop.permute.xlu0 %3783
      %3785 = vrot.lane.b32.xlu0 %v3750, 15
      %v3786 = vpop.permute.xlu0 %3785
      %v3787 = vsel %vm647, %v3764, %v3766
      %v3788 = vsel %vm647, %v3766, %v3768
      %v3789 = vsel %vm647, %v3770, %v3772
      %v3790 = vsel %vm647, %v3772, %v3774
      %v3791 = vsel %vm647, %v3776, %v3778
      %v3792 = vsel %vm647, %v3778, %v3780
      %v3793 = vsel %vm647, %v3782, %v3784
      %v3794 = vsel %vm647, %v3784, %v3786
      %3803 = vst [vmem:[#allocation3 + $0x80] sm:$0xff] %v3787
      %3804 = vst [vmem:[#allocation3 + $0x88] sm:$0xff] %v3788
      %3805 = vst [vmem:[#allocation3 + $0x90] sm:$0xff] %v3789
      %3806 = vst [vmem:[#allocation3 + $0x98] sm:$0xff] %v3790
      %3807 = vst [vmem:[#allocation3 + $0xa0] sm:$0xff] %v3791
      %3808 = vst [vmem:[#allocation3 + $0xa8] sm:$0xff] %v3792
      %3809 = vst [vmem:[#allocation3 + $0xb0] sm:$0xff] %v3793
      %3810 = vst [vmem:[#allocation3 + $0xb8] sm:$0xff] %v3794
      %v3811 = vld [vmem:[#allocation2] sm:$0xff]
      %v3812 = vld [vmem:[#allocation2 + $0x8] sm:$0xff]
      %v3813 = vld [vmem:[#allocation2 + $0x10] sm:$0xff]
      %v3814 = vld [vmem:[#allocation2 + $0x20] sm:$0xff]
      %v3815 = vld [vmem:[#allocation2 + $0x28] sm:$0xff]
      %v3816 = vld [vmem:[#allocation2 + $0x30] sm:$0xff]
      %v3817 = vld [vmem:[#allocation2 + $0x40] sm:$0xff]
      %v3818 = vld [vmem:[#allocation2 + $0x48] sm:$0xff]
      %v3819 = vld [vmem:[#allocation2 + $0x50] sm:$0xff]
      %v3820 = vld [vmem:[#allocation2 + $0x60] sm:$0xff]
      %v3821 = vld [vmem:[#allocation2 + $0x68] sm:$0xff]
      %v3822 = vld [vmem:[#allocation2 + $0x70] sm:$0xff]
      %v3823 = vld [vmem:[#allocation2 + $0x80] sm:$0xff]
      %v3824 = vld [vmem:[#allocation2 + $0x88] sm:$0xff]
      %v3825 = vld [vmem:[#allocation2 + $0x90] sm:$0xff]
      %v3826 = vld [vmem:[#allocation2 + $0xa0] sm:$0xff]
      %v3827 = vld [vmem:[#allocation2 + $0xa8] sm:$0xff]
      %v3828 = vld [vmem:[#allocation2 + $0xb0] sm:$0xff]
      %v3829 = vld [vmem:[#allocation2 + $0xc0] sm:$0xff]
      %v3830 = vld [vmem:[#allocation2 + $0xc8] sm:$0xff]
      %v3831 = vld [vmem:[#allocation2 + $0xd0] sm:$0xff]
      %v3832 = vld [vmem:[#allocation2 + $0xe0] sm:$0xff]
      %v3833 = vld [vmem:[#allocation2 + $0xe8] sm:$0xff]
      %v3834 = vld [vmem:[#allocation2 + $0xf0] sm:$0xff]
      %v3835 = vmul.f32 %v3811, %v697
      %v3836 = vmul.f32 %v3812, %v701
      %v3837 = vmul.f32 %v3813, %v699
      %v3838 = vmul.f32 %v3814, %v697
      %v3839 = vmul.f32 %v3815, %v701
      %v3840 = vmul.f32 %v3816, %v699
      %v3841 = vmul.f32 %v3817, %v697
      %v3842 = vmul.f32 %v3818, %v701
      %v3843 = vmul.f32 %v3819, %v699
      %v3844 = vmul.f32 %v3820, %v697
      %v3845 = vmul.f32 %v3821, %v701
      %v3846 = vmul.f32 %v3822, %v699
      %v3847 = vmul.f32 %v3823, %v697
      %v3848 = vmul.f32 %v3824, %v701
      %v3849 = vmul.f32 %v3825, %v699
      %v3850 = vmul.f32 %v3826, %v697
      %v3851 = vmul.f32 %v3827, %v701
      %v3852 = vmul.f32 %v3828, %v699
      %v3853 = vmul.f32 %v3829, %v697
      %v3854 = vmul.f32 %v3830, %v701
      %v3855 = vmul.f32 %v3831, %v699
      %v3856 = vmul.f32 %v3832, %v697
      %v3857 = vmul.f32 %v3833, %v701
      %v3858 = vmul.f32 %v3834, %v699
      %v3859 = vpack.c.bf16 %v3838, %v3835
      %v3860 = vpack.c.bf16 %v3839, %v3836
      %v3861 = vpack.c.bf16 %v3840, %v3837
      %v3862 = vpack.c.bf16 %v3844, %v3841
      %v3863 = vpack.c.bf16 %v3845, %v3842
      %v3864 = vpack.c.bf16 %v3846, %v3843
      %v3865 = vpack.c.bf16 %v3850, %v3847
      %v3866 = vpack.c.bf16 %v3851, %v3848
      %v3867 = vpack.c.bf16 %v3852, %v3849
      %v3868 = vpack.c.bf16 %v3856, %v3853
      %v3869 = vpack.c.bf16 %v3857, %v3854
      %v3870 = vpack.c.bf16 %v3858, %v3855
      %3883 = vrot.lane.b32.xlu0 %v3859, 1
      %v3884 = vpop.permute.xlu0 %3883
      %3885 = vrot.lane.b32.xlu0 %v3860, 1
      %v3886 = vpop.permute.xlu0 %3885
      %3887 = vrot.lane.b32.xlu0 %v3861, 1
      %v3888 = vpop.permute.xlu0 %3887
      %3889 = vrot.lane.b32.xlu0 %v3862, 1
      %v3890 = vpop.permute.xlu0 %3889
      %3891 = vrot.lane.b32.xlu0 %v3863, 1
      %v3892 = vpop.permute.xlu0 %3891
      %3893 = vrot.lane.b32.xlu0 %v3864, 1
      %v3894 = vpop.permute.xlu0 %3893
      %3895 = vrot.lane.b32.xlu0 %v3865, 1
      %v3896 = vpop.permute.xlu0 %3895
      %3897 = vrot.lane.b32.xlu0 %v3866, 1
      %v3898 = vpop.permute.xlu0 %3897
      %3899 = vrot.lane.b32.xlu0 %v3867, 1
      %v3900 = vpop.permute.xlu0 %3899
      %3901 = vrot.lane.b32.xlu0 %v3868, 1
      %v3902 = vpop.permute.xlu0 %3901
      %3903 = vrot.lane.b32.xlu0 %v3869, 1
      %v3904 = vpop.permute.xlu0 %3903
      %3905 = vrot.lane.b32.xlu0 %v3870, 1
      %v3906 = vpop.permute.xlu0 %3905
      %v3907 = vsel %vm777, %v3884, %v3886
      %v3908 = vsel %vm777, %v3886, %v3888
      %v3909 = vsel %vm777, %v3890, %v3892
      %v3910 = vsel %vm777, %v3892, %v3894
      %v3911 = vsel %vm777, %v3896, %v3898
      %v3912 = vsel %vm777, %v3898, %v3900
      %v3913 = vsel %vm777, %v3902, %v3904
      %v3914 = vsel %vm777, %v3904, %v3906
      %3923 = vst [vmem:[#allocation3 + $0xc0] sm:$0xff] %v3907
      %3924 = vst [vmem:[#allocation3 + $0xc8] sm:$0xff] %v3908
      %3925 = vst [vmem:[#allocation3 + $0xd0] sm:$0xff] %v3909
      %3926 = vst [vmem:[#allocation3 + $0xd8] sm:$0xff] %v3910
      %3927 = vst [vmem:[#allocation3 + $0xe0] sm:$0xff] %v3911
      %3928 = vst [vmem:[#allocation3 + $0xe8] sm:$0xff] %v3912
      %3929 = vst [vmem:[#allocation3 + $0xf0] sm:$0xff] %v3913
      %3930 = vst [vmem:[#allocation3 + $0xf8] sm:$0xff] %v3914
      %v3931 = vld [vmem:[#allocation2 + $0x8] sm:$0xff]
      %v3932 = vld [vmem:[#allocation2 + $0x10] sm:$0xff]
      %v3933 = vld [vmem:[#allocation2 + $0x28] sm:$0xff]
      %v3934 = vld [vmem:[#allocation2 + $0x30] sm:$0xff]
      %v3935 = vld [vmem:[#allocation2 + $0x48] sm:$0xff]
      %v3936 = vld [vmem:[#allocation2 + $0x50] sm:$0xff]
      %v3937 = vld [vmem:[#allocation2 + $0x68] sm:$0xff]
      %v3938 = vld [vmem:[#allocation2 + $0x70] sm:$0xff]
      %v3939 = vld [vmem:[#allocation2 + $0x88] sm:$0xff]
      %v3940 = vld [vmem:[#allocation2 + $0x90] sm:$0xff]
      %v3941 = vld [vmem:[#allocation2 + $0xa8] sm:$0xff]
      %v3942 = vld [vmem:[#allocation2 + $0xb0] sm:$0xff]
      %v3943 = vld [vmem:[#allocation2 + $0xc8] sm:$0xff]
      %v3944 = vld [vmem:[#allocation2 + $0xd0] sm:$0xff]
      %v3945 = vld [vmem:[#allocation2 + $0xe8] sm:$0xff]
      %v3946 = vld [vmem:[#allocation2 + $0xf0] sm:$0xff]
      %v3947 = vpack.c.bf16 %v3933, %v3931
      %v3948 = vpack.c.bf16 %v3934, %v3932
      %v3949 = vpack.c.bf16 %v3937, %v3935
      %v3950 = vpack.c.bf16 %v3938, %v3936
      %v3951 = vpack.c.bf16 %v3941, %v3939
      %v3952 = vpack.c.bf16 %v3942, %v3940
      %v3953 = vpack.c.bf16 %v3945, %v3943
      %v3954 = vpack.c.bf16 %v3946, %v3944
      %3955 = vst [vmem:[#allocation3 + $0x100] sm:$0xff] %v3947
      %3956 = vst [vmem:[#allocation3 + $0x108] sm:$0xff] %v3948
      %3957 = vst [vmem:[#allocation3 + $0x110] sm:$0xff] %v3949
      %3958 = vst [vmem:[#allocation3 + $0x118] sm:$0xff] %v3950
      %3959 = vst [vmem:[#allocation3 + $0x120] sm:$0xff] %v3951
      %3960 = vst [vmem:[#allocation3 + $0x128] sm:$0xff] %v3952
      %3961 = vst [vmem:[#allocation3 + $0x130] sm:$0xff] %v3953
      %3962 = vst [vmem:[#allocation3 + $0x138] sm:$0xff] %v3954
      %v3963 = vld [vmem:[#allocation2 + $0x8] sm:$0xff]
      %v3964 = vld [vmem:[#allocation2 + $0x10] sm:$0xff]
      %v3965 = vld [vmem:[#allocation2 + $0x18] sm:$0xff]
      %v3966 = vld [vmem:[#allocation2 + $0x28] sm:$0xff]
      %v3967 = vld [vmem:[#allocation2 + $0x30] sm:$0xff]
      %v3968 = vld [vmem:[#allocation2 + $0x38] sm:$0xff]
      %v3969 = vld [vmem:[#allocation2 + $0x48] sm:$0xff]
      %v3970 = vld [vmem:[#allocation2 + $0x50] sm:$0xff]
      %v3971 = vld [vmem:[#allocation2 + $0x58] sm:$0xff]
      %v3972 = vld [vmem:[#allocation2 + $0x68] sm:$0xff]
      %v3973 = vld [vmem:[#allocation2 + $0x70] sm:$0xff]
      %v3974 = vld [vmem:[#allocation2 + $0x78] sm:$0xff]
      %v3975 = vld [vmem:[#allocation2 + $0x88] sm:$0xff]
      %v3976 = vld [vmem:[#allocation2 + $0x90] sm:$0xff]
      %v3977 = vld [vmem:[#allocation2 + $0x98] sm:$0xff]
      %v3978 = vld [vmem:[#allocation2 + $0xa8] sm:$0xff]
      %v3979 = vld [vmem:[#allocation2 + $0xb0] sm:$0xff]
      %v3980 = vld [vmem:[#allocation2 + $0xb8] sm:$0xff]
      %v3981 = vld [vmem:[#allocation2 + $0xc8] sm:$0xff]
      %v3982 = vld [vmem:[#allocation2 + $0xd0] sm:$0xff]
      %v3983 = vld [vmem:[#allocation2 + $0xd8] sm:$0xff]
      %v3984 = vld [vmem:[#allocation2 + $0xe8] sm:$0xff]
      %v3985 = vld [vmem:[#allocation2 + $0xf0] sm:$0xff]
      %v3986 = vld [vmem:[#allocation2 + $0xf8] sm:$0xff]
      %v3987 = vmul.f32 %v3963, %v859
      %v3988 = vmul.f32 %v3964, %v863
      %v3989 = vmul.f32 %v3965, %v861
      %v3990 = vmul.f32 %v3966, %v859
      %v3991 = vmul.f32 %v3967, %v863
      %v3992 = vmul.f32 %v3968, %v861
      %v3993 = vmul.f32 %v3969, %v859
      %v3994 = vmul.f32 %v3970, %v863
      %v3995 = vmul.f32 %v3971, %v861
      %v3996 = vmul.f32 %v3972, %v859
      %v3997 = vmul.f32 %v3973, %v863
      %v3998 = vmul.f32 %v3974, %v861
      %v3999 = vmul.f32 %v3975, %v859
      %v4000 = vmul.f32 %v3976, %v863
      %v4001 = vmul.f32 %v3977, %v861
      %v4002 = vmul.f32 %v3978, %v859
      %v4003 = vmul.f32 %v3979, %v863
      %v4004 = vmul.f32 %v3980, %v861
      %v4005 = vmul.f32 %v3981, %v859
      %v4006 = vmul.f32 %v3982, %v863
      %v4007 = vmul.f32 %v3983, %v861
      %v4008 = vmul.f32 %v3984, %v859
      %v4009 = vmul.f32 %v3985, %v863
      %v4010 = vmul.f32 %v3986, %v861
      %v4011 = vpack.c.bf16 %v3990, %v3987
      %v4012 = vpack.c.bf16 %v3991, %v3988
      %v4013 = vpack.c.bf16 %v3992, %v3989
      %v4014 = vpack.c.bf16 %v3996, %v3993
      %v4015 = vpack.c.bf16 %v3997, %v3994
      %v4016 = vpack.c.bf16 %v3998, %v3995
      %v4017 = vpack.c.bf16 %v4002, %v3999
      %v4018 = vpack.c.bf16 %v4003, %v4000
      %v4019 = vpack.c.bf16 %v4004, %v4001
      %v4020 = vpack.c.bf16 %v4008, %v4005
      %v4021 = vpack.c.bf16 %v4009, %v4006
      %v4022 = vpack.c.bf16 %v4010, %v4007
      %4035 = vrot.lane.b32.xlu0 %v4011, 127
      %v4036 = vpop.permute.xlu0 %4035
      %4037 = vrot.lane.b32.xlu0 %v4012, 127
      %v4038 = vpop.permute.xlu0 %4037
      %4039 = vrot.lane.b32.xlu0 %v4013, 127
      %v4040 = vpop.permute.xlu0 %4039
      %4041 = vrot.lane.b32.xlu0 %v4014, 127
      %v4042 = vpop.permute.xlu0 %4041
      %4043 = vrot.lane.b32.xlu0 %v4015, 127
      %v4044 = vpop.permute.xlu0 %4043
      %4045 = vrot.lane.b32.xlu0 %v4016, 127
      %v4046 = vpop.permute.xlu0 %4045
      %4047 = vrot.lane.b32.xlu0 %v4017, 127
      %v4048 = vpop.permute.xlu0 %4047
      %4049 = vrot.lane.b32.xlu0 %v4018, 127
      %v4050 = vpop.permute.xlu0 %4049
      %4051 = vrot.lane.b32.xlu0 %v4019, 127
      %v4052 = vpop.permute.xlu0 %4051
      %4053 = vrot.lane.b32.xlu0 %v4020, 127
      %v4054 = vpop.permute.xlu0 %4053
      %4055 = vrot.lane.b32.xlu0 %v4021, 127
      %v4056 = vpop.permute.xlu0 %4055
      %4057 = vrot.lane.b32.xlu0 %v4022, 127
      %v4058 = vpop.permute.xlu0 %4057
      %v4059 = vsel %vm939, %v4036, %v4038
      %v4060 = vsel %vm939, %v4038, %v4040
      %v4061 = vsel %vm939, %v4042, %v4044
      %v4062 = vsel %vm939, %v4044, %v4046
      %v4063 = vsel %vm939, %v4048, %v4050
      %v4064 = vsel %vm939, %v4050, %v4052
      %v4065 = vsel %vm939, %v4054, %v4056
      %v4066 = vsel %vm939, %v4056, %v4058
      %4075 = vst [vmem:[#allocation3 + $0x140] sm:$0xff] %v4059
      %4076 = vst [vmem:[#allocation3 + $0x148] sm:$0xff] %v4060
      %4077 = vst [vmem:[#allocation3 + $0x150] sm:$0xff] %v4061
      %4078 = vst [vmem:[#allocation3 + $0x158] sm:$0xff] %v4062
      %4079 = vst [vmem:[#allocation3 + $0x160] sm:$0xff] %v4063
      %4080 = vst [vmem:[#allocation3 + $0x168] sm:$0xff] %v4064
      %4081 = vst [vmem:[#allocation3 + $0x170] sm:$0xff] %v4065
      %4082 = vst [vmem:[#allocation3 + $0x178] sm:$0xff] %v4066
      %v4083 = vld [vmem:[#allocation2 + $0x8] sm:$0xff]
      %v4084 = vld [vmem:[#allocation2 + $0x10] sm:$0xff]
      %v4085 = vld [vmem:[#allocation2 + $0x18] sm:$0xff]
      %v4086 = vld [vmem:[#allocation2 + $0x28] sm:$0xff]
      %v4087 = vld [vmem:[#allocation2 + $0x30] sm:$0xff]
      %v4088 = vld [vmem:[#allocation2 + $0x38] sm:$0xff]
      %v4089 = vld [vmem:[#allocation2 + $0x48] sm:$0xff]
      %v4090 = vld [vmem:[#allocation2 + $0x50] sm:$0xff]
      %v4091 = vld [vmem:[#allocation2 + $0x58] sm:$0xff]
      %v4092 = vld [vmem:[#allocation2 + $0x68] sm:$0xff]
      %v4093 = vld [vmem:[#allocation2 + $0x70] sm:$0xff]
      %v4094 = vld [vmem:[#allocation2 + $0x78] sm:$0xff]
      %v4095 = vld [vmem:[#allocation2 + $0x88] sm:$0xff]
      %v4096 = vld [vmem:[#allocation2 + $0x90] sm:$0xff]
      %v4097 = vld [vmem:[#allocation2 + $0x98] sm:$0xff]
      %v4098 = vld [vmem:[#allocation2 + $0xa8] sm:$0xff]
      %v4099 = vld [vmem:[#allocation2 + $0xb0] sm:$0xff]
      %v4100 = vld [vmem:[#allocation2 + $0xb8] sm:$0xff]
      %v4101 = vld [vmem:[#allocation2 + $0xc8] sm:$0xff]
      %v4102 = vld [vmem:[#allocation2 + $0xd0] sm:$0xff]
      %v4103 = vld [vmem:[#allocation2 + $0xd8] sm:$0xff]
      %v4104 = vld [vmem:[#allocation2 + $0xe8] sm:$0xff]
      %v4105 = vld [vmem:[#allocation2 + $0xf0] sm:$0xff]
      %v4106 = vld [vmem:[#allocation2 + $0xf8] sm:$0xff]
      %v4107 = vmul.f32 %v4083, %v989
      %v4108 = vmul.f32 %v4084, %v993
      %v4109 = vmul.f32 %v4085, %v991
      %v4110 = vmul.f32 %v4086, %v989
      %v4111 = vmul.f32 %v4087, %v993
      %v4112 = vmul.f32 %v4088, %v991
      %v4113 = vmul.f32 %v4089, %v989
      %v4114 = vmul.f32 %v4090, %v993
      %v4115 = vmul.f32 %v4091, %v991
      %v4116 = vmul.f32 %v4092, %v989
      %v4117 = vmul.f32 %v4093, %v993
      %v4118 = vmul.f32 %v4094, %v991
      %v4119 = vmul.f32 %v4095, %v989
      %v4120 = vmul.f32 %v4096, %v993
      %v4121 = vmul.f32 %v4097, %v991
      %v4122 = vmul.f32 %v4098, %v989
      %v4123 = vmul.f32 %v4099, %v993
      %v4124 = vmul.f32 %v4100, %v991
      %v4125 = vmul.f32 %v4101, %v989
      %v4126 = vmul.f32 %v4102, %v993
      %v4127 = vmul.f32 %v4103, %v991
      %v4128 = vmul.f32 %v4104, %v989
      %v4129 = vmul.f32 %v4105, %v993
      %v4130 = vmul.f32 %v4106, %v991
      %v4131 = vpack.c.bf16 %v4110, %v4107
      %v4132 = vpack.c.bf16 %v4111, %v4108
      %v4133 = vpack.c.bf16 %v4112, %v4109
      %v4134 = vpack.c.bf16 %v4116, %v4113
      %v4135 = vpack.c.bf16 %v4117, %v4114
      %v4136 = vpack.c.bf16 %v4118, %v4115
      %v4137 = vpack.c.bf16 %v4122, %v4119
      %v4138 = vpack.c.bf16 %v4123, %v4120
      %v4139 = vpack.c.bf16 %v4124, %v4121
      %v4140 = vpack.c.bf16 %v4128, %v4125
      %v4141 = vpack.c.bf16 %v4129, %v4126
      %v4142 = vpack.c.bf16 %v4130, %v4127
      %4155 = vrot.lane.b32.xlu0 %v4131, 113
      %v4156 = vpop.permute.xlu0 %4155
      %4157 = vrot.lane.b32.xlu0 %v4132, 113
      %v4158 = vpop.permute.xlu0 %4157
      %4159 = vrot.lane.b32.xlu0 %v4133, 113
      %v4160 = vpop.permute.xlu0 %4159
      %4161 = vrot.lane.b32.xlu0 %v4134, 113
      %v4162 = vpop.permute.xlu0 %4161
      %4163 = vrot.lane.b32.xlu0 %v4135, 113
      %v4164 = vpop.permute.xlu0 %4163
      %4165 = vrot.lane.b32.xlu0 %v4136, 113
      %v4166 = vpop.permute.xlu0 %4165
      %4167 = vrot.lane.b32.xlu0 %v4137, 113
      %v4168 = vpop.permute.xlu0 %4167
      %4169 = vrot.lane.b32.xlu0 %v4138, 113
      %v4170 = vpop.permute.xlu0 %4169
      %4171 = vrot.lane.b32.xlu0 %v4139, 113
      %v4172 = vpop.permute.xlu0 %4171
      %4173 = vrot.lane.b32.xlu0 %v4140, 113
      %v4174 = vpop.permute.xlu0 %4173
      %4175 = vrot.lane.b32.xlu0 %v4141, 113
      %v4176 = vpop.permute.xlu0 %4175
      %4177 = vrot.lane.b32.xlu0 %v4142, 113
      %v4178 = vpop.permute.xlu0 %4177
      %v4179 = vsel %vm1069, %v4156, %v4158
      %v4180 = vsel %vm1069, %v4158, %v4160
      %v4181 = vsel %vm1069, %v4162, %v4164
      %v4182 = vsel %vm1069, %v4164, %v4166
      %v4183 = vsel %vm1069, %v4168, %v4170
      %v4184 = vsel %vm1069, %v4170, %v4172
      %v4185 = vsel %vm1069, %v4174, %v4176
      %v4186 = vsel %vm1069, %v4176, %v4178
      %4195 = vst [vmem:[#allocation3 + $0x180] sm:$0xff] %v4179
      %4196 = vst [vmem:[#allocation3 + $0x188] sm:$0xff] %v4180
      %4197 = vst [vmem:[#allocation3 + $0x190] sm:$0xff] %v4181
      %4198 = vst [vmem:[#allocation3 + $0x198] sm:$0xff] %v4182
      %4199 = vst [vmem:[#allocation3 + $0x1a0] sm:$0xff] %v4183
      %4200 = vst [vmem:[#allocation3 + $0x1a8] sm:$0xff] %v4184
      %4201 = vst [vmem:[#allocation3 + $0x1b0] sm:$0xff] %v4185
      %4202 = vst [vmem:[#allocation3 + $0x1b8] sm:$0xff] %v4186
      %v4203 = vld [vmem:[#allocation2 + $0x8] sm:$0xff]
      %v4204 = vld [vmem:[#allocation2 + $0x10] sm:$0xff]
      %v4205 = vld [vmem:[#allocation2 + $0x18] sm:$0xff]
      %v4206 = vld [vmem:[#allocation2 + $0x28] sm:$0xff]
      %v4207 = vld [vmem:[#allocation2 + $0x30] sm:$0xff]
      %v4208 = vld [vmem:[#allocation2 + $0x38] sm:$0xff]
      %v4209 = vld [vmem:[#allocation2 + $0x48] sm:$0xff]
      %v4210 = vld [vmem:[#allocation2 + $0x50] sm:$0xff]
      %v4211 = vld [vmem:[#allocation2 + $0x58] sm:$0xff]
      %v4212 = vld [vmem:[#allocation2 + $0x68] sm:$0xff]
      %v4213 = vld [vmem:[#allocation2 + $0x70] sm:$0xff]
      %v4214 = vld [vmem:[#allocation2 + $0x78] sm:$0xff]
      %v4215 = vld [vmem:[#allocation2 + $0x88] sm:$0xff]
      %v4216 = vld [vmem:[#allocation2 + $0x90] sm:$0xff]
      %v4217 = vld [vmem:[#allocation2 + $0x98] sm:$0xff]
      %v4218 = vld [vmem:[#allocation2 + $0xa8] sm:$0xff]
      %v4219 = vld [vmem:[#allocation2 + $0xb0] sm:$0xff]
      %v4220 = vld [vmem:[#allocation2 + $0xb8] sm:$0xff]
      %v4221 = vld [vmem:[#allocation2 + $0xc8] sm:$0xff]
      %v4222 = vld [vmem:[#allocation2 + $0xd0] sm:$0xff]
      %v4223 = vld [vmem:[#allocation2 + $0xd8] sm:$0xff]
      %v4224 = vld [vmem:[#allocation2 + $0xe8] sm:$0xff]
      %v4225 = vld [vmem:[#allocation2 + $0xf0] sm:$0xff]
      %v4226 = vld [vmem:[#allocation2 + $0xf8] sm:$0xff]
      %v4227 = vpack.c.bf16 %v4206, %v4203
      %v4228 = vpack.c.bf16 %v4207, %v4204
      %v4229 = vpack.c.bf16 %v4208, %v4205
      %v4230 = vpack.c.bf16 %v4212, %v4209
      %v4231 = vpack.c.bf16 %v4213, %v4210
      %v4232 = vpack.c.bf16 %v4214, %v4211
      %v4233 = vpack.c.bf16 %v4218, %v4215
      %v4234 = vpack.c.bf16 %v4219, %v4216
      %v4235 = vpack.c.bf16 %v4220, %v4217
      %v4236 = vpack.c.bf16 %v4224, %v4221
      %v4237 = vpack.c.bf16 %v4225, %v4222
      %v4238 = vpack.c.bf16 %v4226, %v4223
      %4251 = vrot.lane.b32.xlu0 %v4227, 112
      %v4252 = vpop.permute.xlu0 %4251
      %4253 = vrot.lane.b32.xlu0 %v4228, 112
      %v4254 = vpop.permute.xlu0 %4253
      %4255 = vrot.lane.b32.xlu0 %v4229, 112
      %v4256 = vpop.permute.xlu0 %4255
      %4257 = vrot.lane.b32.xlu0 %v4230, 112
      %v4258 = vpop.permute.xlu0 %4257
      %4259 = vrot.lane.b32.xlu0 %v4231, 112
      %v4260 = vpop.permute.xlu0 %4259
      %4261 = vrot.lane.b32.xlu0 %v4232, 112
      %v4262 = vpop.permute.xlu0 %4261
      %4263 = vrot.lane.b32.xlu0 %v4233, 112
      %v4264 = vpop.permute.xlu0 %4263
      %4265 = vrot.lane.b32.xlu0 %v4234, 112
      %v4266 = vpop.permute.xlu0 %4265
      %4267 = vrot.lane.b32.xlu0 %v4235, 112
      %v4268 = vpop.permute.xlu0 %4267
      %4269 = vrot.lane.b32.xlu0 %v4236, 112
      %v4270 = vpop.permute.xlu0 %4269
      %4271 = vrot.lane.b32.xlu0 %v4237, 112
      %v4272 = vpop.permute.xlu0 %4271
      %4273 = vrot.lane.b32.xlu0 %v4238, 112
      %v4274 = vpop.permute.xlu0 %4273
      %v4275 = vsel %vm1166, %v4252, %v4254
      %v4276 = vsel %vm1166, %v4254, %v4256
      %v4277 = vsel %vm1166, %v4258, %v4260
      %v4278 = vsel %vm1166, %v4260, %v4262
      %v4279 = vsel %vm1166, %v4264, %v4266
      %v4280 = vsel %vm1166, %v4266, %v4268
      %v4281 = vsel %vm1166, %v4270, %v4272
      %v4282 = vsel %vm1166, %v4272, %v4274
      %4291 = vst [vmem:[#allocation3 + $0x1c0] sm:$0xff] %v4275
      %4292 = vst [vmem:[#allocation3 + $0x1c8] sm:$0xff] %v4276
      %4293 = vst [vmem:[#allocation3 + $0x1d0] sm:$0xff] %v4277
      %4294 = vst [vmem:[#allocation3 + $0x1d8] sm:$0xff] %v4278
      %4295 = vst [vmem:[#allocation3 + $0x1e0] sm:$0xff] %v4279
      %4296 = vst [vmem:[#allocation3 + $0x1e8] sm:$0xff] %v4280
      %4297 = vst [vmem:[#allocation3 + $0x1f0] sm:$0xff] %v4281
      %4298 = vst [vmem:[#allocation3 + $0x1f8] sm:$0xff] %v4282
      %v4299 = vld [vmem:[#allocation2 + $0x8] sm:$0xff]
      %v4300 = vld [vmem:[#allocation2 + $0x10] sm:$0xff]
      %v4301 = vld [vmem:[#allocation2 + $0x18] sm:$0xff]
      %v4302 = vld [vmem:[#allocation2 + $0x28] sm:$0xff]
      %v4303 = vld [vmem:[#allocation2 + $0x30] sm:$0xff]
      %v4304 = vld [vmem:[#allocation2 + $0x38] sm:$0xff]
      %v4305 = vld [vmem:[#allocation2 + $0x48] sm:$0xff]
      %v4306 = vld [vmem:[#allocation2 + $0x50] sm:$0xff]
      %v4307 = vld [vmem:[#allocation2 + $0x58] sm:$0xff]
      %v4308 = vld [vmem:[#allocation2 + $0x68] sm:$0xff]
      %v4309 = vld [vmem:[#allocation2 + $0x70] sm:$0xff]
      %v4310 = vld [vmem:[#allocation2 + $0x78] sm:$0xff]
      %v4311 = vld [vmem:[#allocation2 + $0x88] sm:$0xff]
      %v4312 = vld [vmem:[#allocation2 + $0x90] sm:$0xff]
      %v4313 = vld [vmem:[#allocation2 + $0x98] sm:$0xff]
      %v4314 = vld [vmem:[#allocation2 + $0xa8] sm:$0xff]
      %v4315 = vld [vmem:[#allocation2 + $0xb0] sm:$0xff]
      %v4316 = vld [vmem:[#allocation2 + $0xb8] sm:$0xff]
      %v4317 = vld [vmem:[#allocation2 + $0xc8] sm:$0xff]
      %v4318 = vld [vmem:[#allocation2 + $0xd0] sm:$0xff]
      %v4319 = vld [vmem:[#allocation2 + $0xd8] sm:$0xff]
      %v4320 = vld [vmem:[#allocation2 + $0xe8] sm:$0xff]
      %v4321 = vld [vmem:[#allocation2 + $0xf0] sm:$0xff]
      %v4322 = vld [vmem:[#allocation2 + $0xf8] sm:$0xff]
      %v4323 = vmul.f32 %v4299, %v1216
      %v4324 = vmul.f32 %v4300, %v1220
      %v4325 = vmul.f32 %v4301, %v1218
      %v4326 = vmul.f32 %v4302, %v1216
      %v4327 = vmul.f32 %v4303, %v1220
      %v4328 = vmul.f32 %v4304, %v1218
      %v4329 = vmul.f32 %v4305, %v1216
      %v4330 = vmul.f32 %v4306, %v1220
      %v4331 = vmul.f32 %v4307, %v1218
      %v4332 = vmul.f32 %v4308, %v1216
      %v4333 = vmul.f32 %v4309, %v1220
      %v4334 = vmul.f32 %v4310, %v1218
      %v4335 = vmul.f32 %v4311, %v1216
      %v4336 = vmul.f32 %v4312, %v1220
      %v4337 = vmul.f32 %v4313, %v1218
      %v4338 = vmul.f32 %v4314, %v1216
      %v4339 = vmul.f32 %v4315, %v1220
      %v4340 = vmul.f32 %v4316, %v1218
      %v4341 = vmul.f32 %v4317, %v1216
      %v4342 = vmul.f32 %v4318, %v1220
      %v4343 = vmul.f32 %v4319, %v1218
      %v4344 = vmul.f32 %v4320, %v1216
      %v4345 = vmul.f32 %v4321, %v1220
      %v4346 = vmul.f32 %v4322, %v1218
      %v4347 = vpack.c.bf16 %v4326, %v4323
      %v4348 = vpack.c.bf16 %v4327, %v4324
      %v4349 = vpack.c.bf16 %v4328, %v4325
      %v4350 = vpack.c.bf16 %v4332, %v4329
      %v4351 = vpack.c.bf16 %v4333, %v4330
      %v4352 = vpack.c.bf16 %v4334, %v4331
      %v4353 = vpack.c.bf16 %v4338, %v4335
      %v4354 = vpack.c.bf16 %v4339, %v4336
      %v4355 = vpack.c.bf16 %v4340, %v4337
      %v4356 = vpack.c.bf16 %v4344, %v4341
      %v4357 = vpack.c.bf16 %v4345, %v4342
      %v4358 = vpack.c.bf16 %v4346, %v4343
      %4371 = vrot.lane.b32.xlu0 %v4347, 111
      %v4372 = vpop.permute.xlu0 %4371
      %4373 = vrot.lane.b32.xlu0 %v4348, 111
      %v4374 = vpop.permute.xlu0 %4373
      %4375 = vrot.lane.b32.xlu0 %v4349, 111
      %v4376 = vpop.permute.xlu0 %4375
      %4377 = vrot.lane.b32.xlu0 %v4350, 111
      %v4378 = vpop.permute.xlu0 %4377
      %4379 = vrot.lane.b32.xlu0 %v4351, 111
      %v4380 = vpop.permute.xlu0 %4379
      %4381 = vrot.lane.b32.xlu0 %v4352, 111
      %v4382 = vpop.permute.xlu0 %4381
      %4383 = vrot.lane.b32.xlu0 %v4353, 111
      %v4384 = vpop.permute.xlu0 %4383
      %4385 = vrot.lane.b32.xlu0 %v4354, 111
      %v4386 = vpop.permute.xlu0 %4385
      %4387 = vrot.lane.b32.xlu0 %v4355, 111
      %v4388 = vpop.permute.xlu0 %4387
      %4389 = vrot.lane.b32.xlu0 %v4356, 111
      %v4390 = vpop.permute.xlu0 %4389
      %4391 = vrot.lane.b32.xlu0 %v4357, 111
      %v4392 = vpop.permute.xlu0 %4391
      %4393 = vrot.lane.b32.xlu0 %v4358, 111
      %v4394 = vpop.permute.xlu0 %4393
      %v4395 = vsel %vm1296, %v4372, %v4374
      %v4396 = vsel %vm1296, %v4374, %v4376
      %v4397 = vsel %vm1296, %v4378, %v4380
      %v4398 = vsel %vm1296, %v4380, %v4382
      %v4399 = vsel %vm1296, %v4384, %v4386
      %v4400 = vsel %vm1296, %v4386, %v4388
      %v4401 = vsel %vm1296, %v4390, %v4392
      %v4402 = vsel %vm1296, %v4392, %v4394
      %4411 = vst [vmem:[#allocation3 + $0x200] sm:$0xff] %v4395
      %4412 = vst [vmem:[#allocation3 + $0x208] sm:$0xff] %v4396
      %4413 = vst [vmem:[#allocation3 + $0x210] sm:$0xff] %v4397
      %4414 = vst [vmem:[#allocation3 + $0x218] sm:$0xff] %v4398
      %4415 = vst [vmem:[#allocation3 + $0x220] sm:$0xff] %v4399
      %4416 = vst [vmem:[#allocation3 + $0x228] sm:$0xff] %v4400
      %4417 = vst [vmem:[#allocation3 + $0x230] sm:$0xff] %v4401
      %4418 = vst [vmem:[#allocation3 + $0x238] sm:$0xff] %v4402
      %s4419 = scalar_lea.vmem %s2, 320
      %v4420 = vld [vmem:[%s4419] sm:$0xff]
      %v4421 = vld [vmem:[%s4419 + $0x8] sm:$0xff]
      %v4422 = vld [vmem:[%s4419 + $0x10] sm:$0xf]
      %v4423 = vld [vmem:[%s4419 + $0x14] sm:$0xff]
      %v4424 = vld [vmem:[%s4419 + $0x1c] sm:$0xff]
      %v4425 = vld [vmem:[%s4419 + $0x24] sm:$0xf]
      %v4426 = vld [vmem:[%s4419 + $0x28] sm:$0xff]
      %v4427 = vld [vmem:[%s4419 + $0x30] sm:$0xff]
      %v4428 = vld [vmem:[%s4419 + $0x38] sm:$0xf]
      %v4429 = vld [vmem:[%s4419 + $0x3c] sm:$0xff]
      %v4430 = vld [vmem:[%s4419 + $0x44] sm:$0xff]
      %v4431 = vld [vmem:[%s4419 + $0x4c] sm:$0xf]
      %v4432 = vld [vmem:[%s4419 + $0x50] sm:$0xff]
      %v4433 = vld [vmem:[%s4419 + $0x58] sm:$0xff]
      %v4434 = vld [vmem:[%s4419 + $0x60] sm:$0xf]
      %v4435 = vld [vmem:[%s4419 + $0x64] sm:$0xff]
      %v4436 = vld [vmem:[%s4419 + $0x6c] sm:$0xff]
      %v4437 = vld [vmem:[%s4419 + $0x74] sm:$0xf]
      %v4438 = vld [vmem:[%s4419 + $0x78] sm:$0xff]
      %v4439 = vld [vmem:[%s4419 + $0x80] sm:$0xff]
      %v4440 = vld [vmem:[%s4419 + $0x88] sm:$0xf]
      %v4441 = vld [vmem:[%s4419 + $0x8c] sm:$0xff]
      %v4442 = vld [vmem:[%s4419 + $0x94] sm:$0xff]
      %v4443 = vld [vmem:[%s4419 + $0x9c] sm:$0xf]
      %v4444 = vld [vmem:[#allocation3] sm:$0xff]
      %v4445 = vld [vmem:[#allocation3 + $0x8] sm:$0xff]
      %v4446 = vld [vmem:[#allocation3 + $0x10] sm:$0xff]
      %v4447 = vld [vmem:[#allocation3 + $0x18] sm:$0xff]
      %v4448 = vld [vmem:[#allocation3 + $0x20] sm:$0xff]
      %v4449 = vld [vmem:[#allocation3 + $0x28] sm:$0xff]
      %v4450 = vld [vmem:[#allocation3 + $0x30] sm:$0xff]
      %v4451 = vld [vmem:[#allocation3 + $0x38] sm:$0xff]
      %v4452 = vld [vmem:[#allocation3 + $0x40] sm:$0xff]
      %v4453 = vld [vmem:[#allocation3 + $0x48] sm:$0xff]
      %v4454 = vld [vmem:[#allocation3 + $0x50] sm:$0xff]
      %v4455 = vld [vmem:[#allocation3 + $0x58] sm:$0xff]
      %v4456 = vld [vmem:[#allocation3 + $0x60] sm:$0xff]
      %v4457 = vld [vmem:[#allocation3 + $0x68] sm:$0xff]
      %v4458 = vld [vmem:[#allocation3 + $0x70] sm:$0xff]
      %v4459 = vld [vmem:[#allocation3 + $0x78] sm:$0xff]
      %v4460 = vld [vmem:[#allocation3 + $0x80] sm:$0xff]
      %v4461 = vld [vmem:[#allocation3 + $0x88] sm:$0xff]
      %v4462 = vld [vmem:[#allocation3 + $0x90] sm:$0xff]
      %v4463 = vld [vmem:[#allocation3 + $0x98] sm:$0xff]
      %v4464 = vld [vmem:[#allocation3 + $0xa0] sm:$0xff]
      %v4465 = vld [vmem:[#allocation3 + $0xa8] sm:$0xff]
      %v4466 = vld [vmem:[#allocation3 + $0xb0] sm:$0xff]
      %v4467 = vld [vmem:[#allocation3 + $0xb8] sm:$0xff]
      %v4468 = vld [vmem:[#allocation3 + $0xc0] sm:$0xff]
      %v4469 = vld [vmem:[#allocation3 + $0xc8] sm:$0xff]
      %v4470 = vld [vmem:[#allocation3 + $0xd0] sm:$0xff]
      %v4471 = vld [vmem:[#allocation3 + $0xd8] sm:$0xff]
      %v4472 = vld [vmem:[#allocation3 + $0xe0] sm:$0xff]
      %v4473 = vld [vmem:[#allocation3 + $0xe8] sm:$0xff]
      %v4474 = vld [vmem:[#allocation3 + $0xf0] sm:$0xff]
      %v4475 = vld [vmem:[#allocation3 + $0xf8] sm:$0xff]
      %v4476 = vld [vmem:[#allocation3 + $0x100] sm:$0xff]
      %v4477 = vld [vmem:[#allocation3 + $0x108] sm:$0xff]
      %v4478 = vld [vmem:[#allocation3 + $0x110] sm:$0xff]
      %v4479 = vld [vmem:[#allocation3 + $0x118] sm:$0xff]
      %v4480 = vld [vmem:[#allocation3 + $0x120] sm:$0xff]
      %v4481 = vld [vmem:[#allocation3 + $0x128] sm:$0xff]
      %v4482 = vld [vmem:[#allocation3 + $0x130] sm:$0xff]
      %v4483 = vld [vmem:[#allocation3 + $0x138] sm:$0xff]
      %v4484 = vld [vmem:[#allocation3 + $0x140] sm:$0xff]
      %v4485 = vld [vmem:[#allocation3 + $0x148] sm:$0xff]
      %v4486 = vld [vmem:[#allocation3 + $0x150] sm:$0xff]
      %v4487 = vld [vmem:[#allocation3 + $0x158] sm:$0xff]
      %v4488 = vld [vmem:[#allocation3 + $0x160] sm:$0xff]
      %v4489 = vld [vmem:[#allocation3 + $0x168] sm:$0xff]
      %v4490 = vld [vmem:[#allocation3 + $0x170] sm:$0xff]
      %v4491 = vld [vmem:[#allocation3 + $0x178] sm:$0xff]
      %v4492 = vld [vmem:[#allocation3 + $0x180] sm:$0xff]
      %v4493 = vld [vmem:[#allocation3 + $0x188] sm:$0xff]
      %v4494 = vld [vmem:[#allocation3 + $0x190] sm:$0xff]
      %v4495 = vld [vmem:[#allocation3 + $0x198] sm:$0xff]
      %v4496 = vld [vmem:[#allocation3 + $0x1a0] sm:$0xff]
      %v4497 = vld [vmem:[#allocation3 + $0x1a8] sm:$0xff]
      %v4498 = vld [vmem:[#allocation3 + $0x1b0] sm:$0xff]
      %v4499 = vld [vmem:[#allocation3 + $0x1b8] sm:$0xff]
      %v4500 = vld [vmem:[#allocation3 + $0x1c0] sm:$0xff]
      %v4501 = vld [vmem:[#allocation3 + $0x1c8] sm:$0xff]
      %v4502 = vld [vmem:[#allocation3 + $0x1d0] sm:$0xff]
      %v4503 = vld [vmem:[#allocation3 + $0x1d8] sm:$0xff]
      %v4504 = vld [vmem:[#allocation3 + $0x1e0] sm:$0xff]
      %v4505 = vld [vmem:[#allocation3 + $0x1e8] sm:$0xff]
      %v4506 = vld [vmem:[#allocation3 + $0x1f0] sm:$0xff]
      %v4507 = vld [vmem:[#allocation3 + $0x1f8] sm:$0xff]
      %v4508 = vld [vmem:[#allocation3 + $0x200] sm:$0xff]
      %v4509 = vld [vmem:[#allocation3 + $0x208] sm:$0xff]
      %v4510 = vld [vmem:[#allocation3 + $0x210] sm:$0xff]
      %v4511 = vld [vmem:[#allocation3 + $0x218] sm:$0xff]
      %v4512 = vld [vmem:[#allocation3 + $0x220] sm:$0xff]
      %v4513 = vld [vmem:[#allocation3 + $0x228] sm:$0xff]
      %v4514 = vld [vmem:[#allocation3 + $0x230] sm:$0xff]
      %v4515 = vld [vmem:[#allocation3 + $0x238] sm:$0xff]
      %v4540 = vunpack.c.l.b16 %v4420
      %v4541 = vunpack.c.h.b16 %v4420
      %v4542 = vunpack.c.l.b16 %v4421
      %v4543 = vunpack.c.h.b16 %v4421
      %v4544 = vunpack.c.l.b16 %v4422
      %v4545 = vunpack.c.l.b16 %v4423
      %v4546 = vunpack.c.h.b16 %v4423
      %v4547 = vunpack.c.l.b16 %v4424
      %v4548 = vunpack.c.h.b16 %v4424
      %v4549 = vunpack.c.l.b16 %v4425
      %v4550 = vunpack.c.l.b16 %v4426
      %v4551 = vunpack.c.h.b16 %v4426
      %v4552 = vunpack.c.l.b16 %v4427
      %v4553 = vunpack.c.h.b16 %v4427
      %v4554 = vunpack.c.l.b16 %v4428
      %v4555 = vunpack.c.l.b16 %v4429
      %v4556 = vunpack.c.h.b16 %v4429
      %v4557 = vunpack.c.l.b16 %v4430
      %v4558 = vunpack.c.h.b16 %v4430
      %v4559 = vunpack.c.l.b16 %v4431
      %v4560 = vunpack.c.l.b16 %v4432
      %v4561 = vunpack.c.h.b16 %v4432
      %v4562 = vunpack.c.l.b16 %v4433
      %v4563 = vunpack.c.h.b16 %v4433
      %v4564 = vunpack.c.l.b16 %v4434
      %v4565 = vunpack.c.l.b16 %v4435
      %v4566 = vunpack.c.h.b16 %v4435
      %v4567 = vunpack.c.l.b16 %v4436
      %v4568 = vunpack.c.h.b16 %v4436
      %v4569 = vunpack.c.l.b16 %v4437
      %v4570 = vunpack.c.l.b16 %v4438
      %v4571 = vunpack.c.h.b16 %v4438
      %v4572 = vunpack.c.l.b16 %v4439
      %v4573 = vunpack.c.h.b16 %v4439
      %v4574 = vunpack.c.l.b16 %v4440
      %v4575 = vunpack.c.l.b16 %v4441
      %v4576 = vunpack.c.h.b16 %v4441
      %v4577 = vunpack.c.l.b16 %v4442
      %v4578 = vunpack.c.h.b16 %v4442
      %v4579 = vunpack.c.l.b16 %v4443
      %v4580 = vpack.c.b16 %v4545, %v4540
      %v4581 = vpack.c.b16 %v4546, %v4541
      %v4582 = vpack.c.b16 %v4547, %v4542
      %v4583 = vpack.c.b16 %v4548, %v4543
      %v4584 = vpack.c.b16 %v4549, %v4544
      %v4585 = vpack.c.b16 %v4555, %v4550
      %v4586 = vpack.c.b16 %v4556, %v4551
      %v4587 = vpack.c.b16 %v4557, %v4552
      %v4588 = vpack.c.b16 %v4558, %v4553
      %v4589 = vpack.c.b16 %v4559, %v4554
      %v4590 = vpack.c.b16 %v4565, %v4560
      %v4591 = vpack.c.b16 %v4566, %v4561
      %v4592 = vpack.c.b16 %v4567, %v4562
      %v4593 = vpack.c.b16 %v4568, %v4563
      %v4594 = vpack.c.b16 %v4569, %v4564
      %v4595 = vpack.c.b16 %v4575, %v4570
      %v4596 = vpack.c.b16 %v4576, %v4571
      %v4597 = vpack.c.b16 %v4577, %v4572
      %v4598 = vpack.c.b16 %v4578, %v4573
      %v4599 = vpack.c.b16 %v4579, %v4574
      %v4617 = vsel %vm1517, %v4584, 0
      %v4620 = vsel %vm1517, %v4589, 0
      %v4623 = vsel %vm1517, %v4594, 0
      %v4626 = vsel %vm1517, %v4599, 0
      %4628 = vmatprep.subr.bf16.mxu0 %v4445
      %4629 = vmatpush1.bf16.msra.mxu0 %v4444
      %4630 = vmatprep.subr.bf16.mxu0 %v4447
      %4631 = vmatpush1.bf16.msra.mxu0 %v4446
      %4632 = vmatprep.subr.bf16.mxu0 %v4449
      %4633 = vmatpush1.bf16.msra.mxu0 %v4448
      %4634 = vmatprep.subr.bf16.mxu0 %v4451
      %4635 = vmatpush1.bf16.msra.mxu0 %v4450
      %4636 = vmatprep.subr.bf16.mxu0 %v4453
      %4637 = vmatpush1.bf16.msra.mxu0 %v4452
      %4638 = vmatprep.subr.bf16.mxu0 %v4455
      %4639 = vmatpush1.bf16.msra.mxu0 %v4454
      %4640 = vmatprep.subr.bf16.mxu0 %v4457
      %4641 = vmatpush1.bf16.msra.mxu0 %v4456
      %4642 = vmatprep.subr.bf16.mxu0 %v4459
      %4643 = vmatpush1.bf16.msra.mxu0 %v4458
      %4644 = vmatprep.subr.bf16.mxu0 %v4461
      %4645 = vmatpush1.bf16.msra.mxu0 %v4460
      %4646 = vmatprep.subr.bf16.mxu0 %v4463
      %4647 = vmatpush1.bf16.msra.mxu0 %v4462
      %4648 = vmatprep.subr.bf16.mxu0 %v4465
      %4649 = vmatpush1.bf16.msra.mxu0 %v4464
      %4650 = vmatprep.subr.bf16.mxu0 %v4467
      %4651 = vmatpush1.bf16.msra.mxu0 %v4466
      %4652 = vmatprep.subr.bf16.mxu0 %v4469
      %4653 = vmatpush1.bf16.msra.mxu0 %v4468
      %4654 = vmatprep.subr.bf16.mxu0 %v4471
      %4655 = vmatpush1.bf16.msra.mxu0 %v4470
      %4656 = vmatprep.subr.bf16.mxu0 %v4473
      %4657 = vmatpush1.bf16.msra.mxu0 %v4472
      %4658 = vmatprep.subr.bf16.mxu0 %v4475
      %4659 = vmatpush1.bf16.msra.mxu0 %v4474
      %4660 = vmatprep.mubr.bf16.mxu0 %v4581
      %4661 = vmatmul.mubr.bf16.gmra.mrb[0].mxu0 %v4580
      %v4662 = vpop.f32.mrb[0].mxu0
      %v4663 = vadd.f32 0.0, %v4662
      %v4664 = vpop.f32.mrb[0].mxu0
      %v4665 = vadd.f32 0.0, %v4664
      %v4666 = vpop.f32.mrb[0].mxu0
      %v4667 = vadd.f32 0.0, %v4666
      %v4668 = vpop.f32.mrb[0].mxu0
      %v4669 = vadd.f32 0.0, %v4668
      %4670 = vmatprep.mubr.bf16.mxu0 %v4586
      %4671 = vmatmul.mubr.bf16.gmra.mrb[0].mxu0 %v4585
      %v4672 = vpop.f32.mrb[0].mxu0
      %v4673 = vadd.f32 0.0, %v4672
      %v4674 = vpop.f32.mrb[0].mxu0
      %v4675 = vadd.f32 0.0, %v4674
      %v4676 = vpop.f32.mrb[0].mxu0
      %v4677 = vadd.f32 0.0, %v4676
      %v4678 = vpop.f32.mrb[0].mxu0
      %v4679 = vadd.f32 0.0, %v4678
      %4680 = vmatprep.mubr.bf16.mxu0 %v4591
      %4681 = vmatmul.mubr.bf16.gmra.mrb[0].mxu0 %v4590
      %v4682 = vpop.f32.mrb[0].mxu0
      %v4683 = vadd.f32 0.0, %v4682
      %v4684 = vpop.f32.mrb[0].mxu0
      %v4685 = vadd.f32 0.0, %v4684
      %v4686 = vpop.f32.mrb[0].mxu0
      %v4687 = vadd.f32 0.0, %v4686
      %v4688 = vpop.f32.mrb[0].mxu0
      %v4689 = vadd.f32 0.0, %v4688
      %4690 = vmatprep.mubr.bf16.mxu0 %v4596
      %4691 = vmatmul.mubr.bf16.gmra.mrb[0].mxu0 %v4595
      %v4692 = vpop.f32.mrb[0].mxu0
      %v4693 = vadd.f32 0.0, %v4692
      %v4694 = vpop.f32.mrb[0].mxu0
      %v4695 = vadd.f32 0.0, %v4694
      %v4696 = vpop.f32.mrb[0].mxu0
      %v4697 = vadd.f32 0.0, %v4696
      %v4698 = vpop.f32.mrb[0].mxu0
      %v4699 = vadd.f32 0.0, %v4698
      %4700 = vdwg.mxu0
      %4701 = vmatprep.subr.bf16.mxu0 %v4477
      %4702 = vmatpush1.bf16.msra.mxu0 %v4476
      %4703 = vmatprep.subr.bf16.mxu0 %v4479
      %4704 = vmatpush1.bf16.msra.mxu0 %v4478
      %4705 = vmatprep.subr.bf16.mxu0 %v4481
      %4706 = vmatpush1.bf16.msra.mxu0 %v4480
      %4707 = vmatprep.subr.bf16.mxu0 %v4483
      %4708 = vmatpush1.bf16.msra.mxu0 %v4482
      %4709 = vmatprep.subr.bf16.mxu0 %v4485
      %4710 = vmatpush1.bf16.msra.mxu0 %v4484
      %4711 = vmatprep.subr.bf16.mxu0 %v4487
      %4712 = vmatpush1.bf16.msra.mxu0 %v4486
      %4713 = vmatprep.subr.bf16.mxu0 %v4489
      %4714 = vmatpush1.bf16.msra.mxu0 %v4488
      %4715 = vmatprep.subr.bf16.mxu0 %v4491
      %4716 = vmatpush1.bf16.msra.mxu0 %v4490
      %4717 = vmatprep.subr.bf16.mxu0 %v4493
      %4718 = vmatpush1.bf16.msra.mxu0 %v4492
      %4719 = vmatprep.subr.bf16.mxu0 %v4495
      %4720 = vmatpush1.bf16.msra.mxu0 %v4494
      %4721 = vmatprep.subr.bf16.mxu0 %v4497
      %4722 = vmatpush1.bf16.msra.mxu0 %v4496
      %4723 = vmatprep.subr.bf16.mxu0 %v4499
      %4724 = vmatpush1.bf16.msra.mxu0 %v4498
      %4725 = vmatprep.subr.bf16.mxu0 %v4501
      %4726 = vmatpush1.bf16.msra.mxu0 %v4500
      %4727 = vmatprep.subr.bf16.mxu0 %v4503
      %4728 = vmatpush1.bf16.msra.mxu0 %v4502
      %4729 = vmatprep.subr.bf16.mxu0 %v4505
      %4730 = vmatpush1.bf16.msra.mxu0 %v4504
      %4731 = vmatprep.subr.bf16.mxu0 %v4507
      %4732 = vmatpush1.bf16.msra.mxu0 %v4506
      %4733 = vmatprep.mubr.bf16.mxu0 %v4583
      %4734 = vmatmul.mubr.bf16.gmra.mrb[0].mxu0 %v4582
      %v4735 = vpop.f32.mrb[0].mxu0
      %v4736 = vadd.f32 %v4663, %v4735
      %v4737 = vpop.f32.mrb[0].mxu0
      %v4738 = vadd.f32 %v4665, %v4737
      %v4739 = vpop.f32.mrb[0].mxu0
      %v4740 = vadd.f32 %v4667, %v4739
      %v4741 = vpop.f32.mrb[0].mxu0
      %v4742 = vadd.f32 %v4669, %v4741
      %4743 = vmatprep.mubr.bf16.mxu0 %v4588
      %4744 = vmatmul.mubr.bf16.gmra.mrb[0].mxu0 %v4587
      %v4745 = vpop.f32.mrb[0].mxu0
      %v4746 = vadd.f32 %v4673, %v4745
      %v4747 = vpop.f32.mrb[0].mxu0
      %v4748 = vadd.f32 %v4675, %v4747
      %v4749 = vpop.f32.mrb[0].mxu0
      %v4750 = vadd.f32 %v4677, %v4749
      %v4751 = vpop.f32.mrb[0].mxu0
      %v4752 = vadd.f32 %v4679, %v4751
      %4753 = vmatprep.mubr.bf16.mxu0 %v4593
      %4754 = vmatmul.mubr.bf16.gmra.mrb[0].mxu0 %v4592
      %v4755 = vpop.f32.mrb[0].mxu0
      %v4756 = vadd.f32 %v4683, %v4755
      %v4757 = vpop.f32.mrb[0].mxu0
      %v4758 = vadd.f32 %v4685, %v4757
      %v4759 = vpop.f32.mrb[0].mxu0
      %v4760 = vadd.f32 %v4687, %v4759
      %v4761 = vpop.f32.mrb[0].mxu0
      %v4762 = vadd.f32 %v4689, %v4761
      %4763 = vmatprep.mubr.bf16.mxu0 %v4598
      %4764 = vmatmul.mubr.bf16.gmra.mrb[0].mxu0 %v4597
      %v4765 = vpop.f32.mrb[0].mxu0
      %v4766 = vadd.f32 %v4693, %v4765
      %v4767 = vpop.f32.mrb[0].mxu0
      %v4768 = vadd.f32 %v4695, %v4767
      %v4769 = vpop.f32.mrb[0].mxu0
      %v4770 = vadd.f32 %v4697, %v4769
      %v4771 = vpop.f32.mrb[0].mxu0
      %v4772 = vadd.f32 %v4699, %v4771
      %4773 = vdwg.mxu0
      %4774 = vmatprep.subr.bf16.mxu0 %v4509
      %4775 = vmatpush1.bf16.msra.mxu0 %v4508
      %4776 = vmatprep.subr.bf16.mxu0 %v4511
      %4777 = vmatpush1.bf16.msra.mxu0 %v4510
      %4778 = vmatprep.subr.bf16.mxu0 %v4513
      %4779 = vmatpush1.bf16.msra.mxu0 %v4512
      %4780 = vmatprep.subr.bf16.mxu0 %v4515
      %4781 = vmatpush1.bf16.msra.mxu0 %v4514
      %4782 = vmatprep.subr.bf16.mxu0 0
      %4783 = vmatpush1.bf16.msra.mxu0 0
      %4784 = vmatprep.subr.bf16.mxu0 0
      %4785 = vmatpush1.bf16.msra.mxu0 0
      %4786 = vmatprep.subr.bf16.mxu0 0
      %4787 = vmatpush1.bf16.msra.mxu0 0
      %4788 = vmatprep.subr.bf16.mxu0 0
      %4789 = vmatpush1.bf16.msra.mxu0 0
      %4790 = vmatprep.subr.bf16.mxu0 0
      %4791 = vmatpush1.bf16.msra.mxu0 0
      %4792 = vmatprep.subr.bf16.mxu0 0
      %4793 = vmatpush1.bf16.msra.mxu0 0
      %4794 = vmatprep.subr.bf16.mxu0 0
      %4795 = vmatpush1.bf16.msra.mxu0 0
      %4796 = vmatprep.subr.bf16.mxu0 0
      %4797 = vmatpush1.bf16.msra.mxu0 0
      %4798 = vmatprep.subr.bf16.mxu0 0
      %4799 = vmatpush1.bf16.msra.mxu0 0
      %4800 = vmatprep.subr.bf16.mxu0 0
      %4801 = vmatpush1.bf16.msra.mxu0 0
      %4802 = vmatprep.subr.bf16.mxu0 0
      %4803 = vmatpush1.bf16.msra.mxu0 0
      %4804 = vmatprep.subr.bf16.mxu0 0
      %4805 = vmatpush1.bf16.msra.mxu0 0
      %4806 = vmatprep.mubr.bf16.mxu0 0
      %4807 = vmatmul.mubr.bf16.gmra.mrb[0].mxu0 %v4617
      %v4808 = vpop.f32.mrb[0].mxu0
      %v4809 = vadd.f32 %v4736, %v4808
      %v4810 = vpop.f32.mrb[0].mxu0
      %v4811 = vadd.f32 %v4738, %v4810
      %v4812 = vpop.f32.mrb[0].mxu0
      %v4813 = vadd.f32 %v4740, %v4812
      %v4814 = vpop.f32.mrb[0].mxu0
      %v4815 = vadd.f32 %v4742, %v4814
      %4816 = vmatprep.mubr.bf16.mxu0 0
      %4817 = vmatmul.mubr.bf16.gmra.mrb[0].mxu0 %v4620
      %v4818 = vpop.f32.mrb[0].mxu0
      %v4819 = vadd.f32 %v4746, %v4818
      %v4820 = vpop.f32.mrb[0].mxu0
      %v4821 = vadd.f32 %v4748, %v4820
      %v4822 = vpop.f32.mrb[0].mxu0
      %v4823 = vadd.f32 %v4750, %v4822
      %v4824 = vpop.f32.mrb[0].mxu0
      %v4825 = vadd.f32 %v4752, %v4824
      %4826 = vmatprep.mubr.bf16.mxu0 0
      %4827 = vmatmul.mubr.bf16.gmra.mrb[0].mxu0 %v4623
      %v4828 = vpop.f32.mrb[0].mxu0
      %v4829 = vadd.f32 %v4756, %v4828
      %v4830 = vpop.f32.mrb[0].mxu0
      %v4831 = vadd.f32 %v4758, %v4830
      %v4832 = vpop.f32.mrb[0].mxu0
      %v4833 = vadd.f32 %v4760, %v4832
      %v4834 = vpop.f32.mrb[0].mxu0
      %v4835 = vadd.f32 %v4762, %v4834
      %4836 = vmatprep.mubr.bf16.mxu0 0
      %4837 = vmatmul.mubr.bf16.gmra.mrb[0].mxu0 %v4626
      %v4838 = vpop.f32.mrb[0].mxu0
      %v4839 = vadd.f32 %v4766, %v4838
      %v4840 = vpop.f32.mrb[0].mxu0
      %v4841 = vadd.f32 %v4768, %v4840
      %v4842 = vpop.f32.mrb[0].mxu0
      %v4843 = vadd.f32 %v4770, %v4842
      %v4844 = vpop.f32.mrb[0].mxu0
      %v4845 = vadd.f32 %v4772, %v4844
      %4846 = vdwg.mxu0
      %s4847 = scalar_lea.vmem %s3, 128
      %v4848 = vld [vmem:[%s4847] sm:$0xff]
      %v4849 = vld [vmem:[%s4847 + $0x8] sm:$0xff]
      %v4850 = vld [vmem:[%s4847 + $0x10] sm:$0xff]
      %v4851 = vld [vmem:[%s4847 + $0x18] sm:$0xff]
      %v4852 = vld [vmem:[%s4847 + $0x20] sm:$0xff]
      %v4853 = vld [vmem:[%s4847 + $0x28] sm:$0xff]
      %v4854 = vld [vmem:[%s4847 + $0x30] sm:$0xff]
      %v4855 = vld [vmem:[%s4847 + $0x38] sm:$0xff]
      %4857 = vset.pattern.permute.xlu0 0
      %4858 = vperm.xlu0 %4857, %v4848
      %v4859 = vpop.permute.xlu0 %4858
      %4862 = vset.pattern.permute.xlu0 0
      %4863 = vperm.xlu0 %4862, %v4849
      %v4864 = vpop.permute.xlu0 %4863
      %4867 = vset.pattern.permute.xlu0 0
      %4868 = vperm.xlu0 %4867, %v4850
      %v4869 = vpop.permute.xlu0 %4868
      %4872 = vset.pattern.permute.xlu0 0
      %4873 = vperm.xlu0 %4872, %v4851
      %v4874 = vpop.permute.xlu0 %4873
      %4877 = vset.pattern.permute.xlu0 0
      %4878 = vperm.xlu0 %4877, %v4852
      %v4879 = vpop.permute.xlu0 %4878
      %4882 = vset.pattern.permute.xlu0 0
      %4883 = vperm.xlu0 %4882, %v4853
      %v4884 = vpop.permute.xlu0 %4883
      %4887 = vset.pattern.permute.xlu0 0
      %4888 = vperm.xlu0 %4887, %v4854
      %v4889 = vpop.permute.xlu0 %4888
      %4892 = vset.pattern.permute.xlu0 0
      %4893 = vperm.xlu0 %4892, %v4855
      %v4894 = vpop.permute.xlu0 %4893
      %v4896 = vmul.f32 %v4809, %v4859
      %v4897 = vmul.f32 %v4811, %v4859
      %v4898 = vmul.f32 %v4813, %v4864
      %v4899 = vmul.f32 %v4815, %v4864
      %v4900 = vmul.f32 %v4819, %v4869
      %v4901 = vmul.f32 %v4821, %v4869
      %v4902 = vmul.f32 %v4823, %v4874
      %v4903 = vmul.f32 %v4825, %v4874
      %v4904 = vmul.f32 %v4829, %v4879
      %v4905 = vmul.f32 %v4831, %v4879
      %v4906 = vmul.f32 %v4833, %v4884
      %v4907 = vmul.f32 %v4835, %v4884
      %v4908 = vmul.f32 %v4839, %v4889
      %v4909 = vmul.f32 %v4841, %v4889
      %v4910 = vmul.f32 %v4843, %v4894
      %v4911 = vmul.f32 %v4845, %v4894
      %s4912 = scalar_lea.vmem %s4, 128
      %v4913 = vld [vmem:[%s4912] sm:$0xff]
      %v4914 = vld [vmem:[%s4912 + $0x8] sm:$0xff]
      %v4915 = vld [vmem:[%s4912 + $0x10] sm:$0xff]
      %v4916 = vld [vmem:[%s4912 + $0x18] sm:$0xff]
      %v4917 = vld [vmem:[%s4912 + $0x20] sm:$0xff]
      %v4918 = vld [vmem:[%s4912 + $0x28] sm:$0xff]
      %v4919 = vld [vmem:[%s4912 + $0x30] sm:$0xff]
      %v4920 = vld [vmem:[%s4912 + $0x38] sm:$0xff]
      %4922 = vset.pattern.permute.xlu0 0
      %4923 = vperm.xlu0 %4922, %v4913
      %v4924 = vpop.permute.xlu0 %4923
      %4927 = vset.pattern.permute.xlu0 0
      %4928 = vperm.xlu0 %4927, %v4914
      %v4929 = vpop.permute.xlu0 %4928
      %4932 = vset.pattern.permute.xlu0 0
      %4933 = vperm.xlu0 %4932, %v4915
      %v4934 = vpop.permute.xlu0 %4933
      %4937 = vset.pattern.permute.xlu0 0
      %4938 = vperm.xlu0 %4937, %v4916
      %v4939 = vpop.permute.xlu0 %4938
      %4942 = vset.pattern.permute.xlu0 0
      %4943 = vperm.xlu0 %4942, %v4917
      %v4944 = vpop.permute.xlu0 %4943
      %4947 = vset.pattern.permute.xlu0 0
      %4948 = vperm.xlu0 %4947, %v4918
      %v4949 = vpop.permute.xlu0 %4948
      %4952 = vset.pattern.permute.xlu0 0
      %4953 = vperm.xlu0 %4952, %v4919
      %v4954 = vpop.permute.xlu0 %4953
      %4957 = vset.pattern.permute.xlu0 0
      %4958 = vperm.xlu0 %4957, %v4920
      %v4959 = vpop.permute.xlu0 %4958
      %v4961 = vadd.f32 %v4896, %v4924
      %v4962 = vadd.f32 %v4897, %v4924
      %v4963 = vadd.f32 %v4898, %v4929
      %v4964 = vadd.f32 %v4899, %v4929
      %v4965 = vadd.f32 %v4900, %v4934
      %v4966 = vadd.f32 %v4901, %v4934
      %v4967 = vadd.f32 %v4902, %v4939
      %v4968 = vadd.f32 %v4903, %v4939
      %v4969 = vadd.f32 %v4904, %v4944
      %v4970 = vadd.f32 %v4905, %v4944
      %v4971 = vadd.f32 %v4906, %v4949
      %v4972 = vadd.f32 %v4907, %v4949
      %v4973 = vadd.f32 %v4908, %v4954
      %v4974 = vadd.f32 %v4909, %v4954
      %v4975 = vadd.f32 %v4910, %v4959
      %v4976 = vadd.f32 %v4911, %v4959
      %v4977 = vmax.f32 %v4961, 0.0
      %v4978 = vmax.f32 %v4962, 0.0
      %v4979 = vmax.f32 %v4963, 0.0
      %v4980 = vmax.f32 %v4964, 0.0
      %v4981 = vmax.f32 %v4965, 0.0
      %v4982 = vmax.f32 %v4966, 0.0
      %v4983 = vmax.f32 %v4967, 0.0
      %v4984 = vmax.f32 %v4968, 0.0
      %v4985 = vmax.f32 %v4969, 0.0
      %v4986 = vmax.f32 %v4970, 0.0
      %v4987 = vmax.f32 %v4971, 0.0
      %v4988 = vmax.f32 %v4972, 0.0
      %v4989 = vmax.f32 %v4973, 0.0
      %v4990 = vmax.f32 %v4974, 0.0
      %v4991 = vmax.f32 %v4975, 0.0
      %v4992 = vmax.f32 %v4976, 0.0
      %4993 = vst [vmem:[#allocation2 + $0x8] sm:$0xff] %v4977
      %4994 = vst [vmem:[#allocation2 + $0x10] sm:$0xff] %v4978
      %4995 = vst [vmem:[#allocation2 + $0x28] sm:$0xff] %v4979
      %4996 = vst [vmem:[#allocation2 + $0x30] sm:$0xff] %v4980
      %4997 = vst [vmem:[#allocation2 + $0x48] sm:$0xff] %v4981
      %4998 = vst [vmem:[#allocation2 + $0x50] sm:$0xff] %v4982
      %4999 = vst [vmem:[#allocation2 + $0x68] sm:$0xff] %v4983
      %5000 = vst [vmem:[#allocation2 + $0x70] sm:$0xff] %v4984
      %5001 = vst [vmem:[#allocation2 + $0x88] sm:$0xff] %v4985
      %5002 = vst [vmem:[#allocation2 + $0x90] sm:$0xff] %v4986
      %5003 = vst [vmem:[#allocation2 + $0xa8] sm:$0xff] %v4987
      %5004 = vst [vmem:[#allocation2 + $0xb0] sm:$0xff] %v4988
      %5005 = vst [vmem:[#allocation2 + $0xc8] sm:$0xff] %v4989
      %5006 = vst [vmem:[#allocation2 + $0xd0] sm:$0xff] %v4990
      %5007 = vst [vmem:[#allocation2 + $0xe8] sm:$0xff] %v4991
      %5008 = vst [vmem:[#allocation2 + $0xf0] sm:$0xff] %v4992
      %v5009 = vld [vmem:[#allocation2] sm:$0xff]
      %v5010 = vld [vmem:[#allocation2 + $0x8] sm:$0xff]
      %v5011 = vld [vmem:[#allocation2 + $0x10] sm:$0xff]
      %v5012 = vld [vmem:[#allocation2 + $0x20] sm:$0xff]
      %v5013 = vld [vmem:[#allocation2 + $0x28] sm:$0xff]
      %v5014 = vld [vmem:[#allocation2 + $0x30] sm:$0xff]
      %v5015 = vld [vmem:[#allocation2 + $0x40] sm:$0xff]
      %v5016 = vld [vmem:[#allocation2 + $0x48] sm:$0xff]
      %v5017 = vld [vmem:[#allocation2 + $0x50] sm:$0xff]
      %v5018 = vld [vmem:[#allocation2 + $0x60] sm:$0xff]
      %v5019 = vld [vmem:[#allocation2 + $0x68] sm:$0xff]
      %v5020 = vld [vmem:[#allocation2 + $0x70] sm:$0xff]
      %v5021 = vld [vmem:[#allocation2 + $0x80] sm:$0xff]
      %v5022 = vld [vmem:[#allocation2 + $0x88] sm:$0xff]
      %v5023 = vld [vmem:[#allocation2 + $0x90] sm:$0xff]
      %v5024 = vld [vmem:[#allocation2 + $0xa0] sm:$0xff]
      %v5025 = vld [vmem:[#allocation2 + $0xa8] sm:$0xff]
      %v5026 = vld [vmem:[#allocation2 + $0xb0] sm:$0xff]
      %v5027 = vld [vmem:[#allocation2 + $0xc0] sm:$0xff]
      %v5028 = vld [vmem:[#allocation2 + $0xc8] sm:$0xff]
      %v5029 = vld [vmem:[#allocation2 + $0xd0] sm:$0xff]
      %v5030 = vld [vmem:[#allocation2 + $0xe0] sm:$0xff]
      %v5031 = vld [vmem:[#allocation2 + $0xe8] sm:$0xff]
      %v5032 = vld [vmem:[#allocation2 + $0xf0] sm:$0xff]
      %v5033 = vmul.f32 %v5009, %v338
      %v5034 = vmul.f32 %v5010, %v342
      %v5035 = vmul.f32 %v5011, %v340
      %v5036 = vmul.f32 %v5012, %v338
      %v5037 = vmul.f32 %v5013, %v342
      %v5038 = vmul.f32 %v5014, %v340
      %v5039 = vmul.f32 %v5015, %v338
      %v5040 = vmul.f32 %v5016, %v342
      %v5041 = vmul.f32 %v5017, %v340
      %v5042 = vmul.f32 %v5018, %v338
      %v5043 = vmul.f32 %v5019, %v342
      %v5044 = vmul.f32 %v5020, %v340
      %v5045 = vmul.f32 %v5021, %v338
      %v5046 = vmul.f32 %v5022, %v342
      %v5047 = vmul.f32 %v5023, %v340
      %v5048 = vmul.f32 %v5024, %v338
      %v5049 = vmul.f32 %v5025, %v342
      %v5050 = vmul.f32 %v5026, %v340
      %v5051 = vmul.f32 %v5027, %v338
      %v5052 = vmul.f32 %v5028, %v342
      %v5053 = vmul.f32 %v5029, %v340
      %v5054 = vmul.f32 %v5030, %v338
      %v5055 = vmul.f32 %v5031, %v342
      %v5056 = vmul.f32 %v5032, %v340
      %v5057 = vpack.c.bf16 %v5036, %v5033
      %v5058 = vpack.c.bf16 %v5037, %v5034
      %v5059 = vpack.c.bf16 %v5038, %v5035
      %v5060 = vpack.c.bf16 %v5042, %v5039
      %v5061 = vpack.c.bf16 %v5043, %v5040
      %v5062 = vpack.c.bf16 %v5044, %v5041
      %v5063 = vpack.c.bf16 %v5048, %v5045
      %v5064 = vpack.c.bf16 %v5049, %v5046
      %v5065 = vpack.c.bf16 %v5050, %v5047
      %v5066 = vpack.c.bf16 %v5054, %v5051
      %v5067 = vpack.c.bf16 %v5055, %v5052
      %v5068 = vpack.c.bf16 %v5056, %v5053
      %5081 = vrot.lane.b32.xlu0 %v5057, 17
      %v5082 = vpop.permute.xlu0 %5081
      %5083 = vrot.lane.b32.xlu0 %v5058, 17
      %v5084 = vpop.permute.xlu0 %5083
      %5085 = vrot.lane.b32.xlu0 %v5059, 17
      %v5086 = vpop.permute.xlu0 %5085
      %5087 = vrot.lane.b32.xlu0 %v5060, 17
      %v5088 = vpop.permute.xlu0 %5087
      %5089 = vrot.lane.b32.xlu0 %v5061, 17
      %v5090 = vpop.permute.xlu0 %5089
      %5091 = vrot.lane.b32.xlu0 %v5062, 17
      %v5092 = vpop.permute.xlu0 %5091
      %5093 = vrot.lane.b32.xlu0 %v5063, 17
      %v5094 = vpop.permute.xlu0 %5093
      %5095 = vrot.lane.b32.xlu0 %v5064, 17
      %v5096 = vpop.permute.xlu0 %5095
      %5097 = vrot.lane.b32.xlu0 %v5065, 17
      %v5098 = vpop.permute.xlu0 %5097
      %5099 = vrot.lane.b32.xlu0 %v5066, 17
      %v5100 = vpop.permute.xlu0 %5099
      %5101 = vrot.lane.b32.xlu0 %v5067, 17
      %v5102 = vpop.permute.xlu0 %5101
      %5103 = vrot.lane.b32.xlu0 %v5068, 17
      %v5104 = vpop.permute.xlu0 %5103
      %v5105 = vsel %vm418, %v5082, %v5084
      %v5106 = vsel %vm418, %v5084, %v5086
      %v5107 = vsel %vm418, %v5088, %v5090
      %v5108 = vsel %vm418, %v5090, %v5092
      %v5109 = vsel %vm418, %v5094, %v5096
      %v5110 = vsel %vm418, %v5096, %v5098
      %v5111 = vsel %vm418, %v5100, %v5102
      %v5112 = vsel %vm418, %v5102, %v5104
      %5121 = vst [vmem:[#allocation3] sm:$0xff] %v5105
      %5122 = vst [vmem:[#allocation3 + $0x8] sm:$0xff] %v5106
      %5123 = vst [vmem:[#allocation3 + $0x10] sm:$0xff] %v5107
      %5124 = vst [vmem:[#allocation3 + $0x18] sm:$0xff] %v5108
      %5125 = vst [vmem:[#allocation3 + $0x20] sm:$0xff] %v5109
      %5126 = vst [vmem:[#allocation3 + $0x28] sm:$0xff] %v5110
      %5127 = vst [vmem:[#allocation3 + $0x30] sm:$0xff] %v5111
      %5128 = vst [vmem:[#allocation3 + $0x38] sm:$0xff] %v5112
      %v5129 = vld [vmem:[#allocation2] sm:$0xff]
      %v5130 = vld [vmem:[#allocation2 + $0x8] sm:$0xff]
      %v5131 = vld [vmem:[#allocation2 + $0x10] sm:$0xff]
      %v5132 = vld [vmem:[#allocation2 + $0x20] sm:$0xff]
      %v5133 = vld [vmem:[#allocation2 + $0x28] sm:$0xff]
      %v5134 = vld [vmem:[#allocation2 + $0x30] sm:$0xff]
      %v5135 = vld [vmem:[#allocation2 + $0x40] sm:$0xff]
      %v5136 = vld [vmem:[#allocation2 + $0x48] sm:$0xff]
      %v5137 = vld [vmem:[#allocation2 + $0x50] sm:$0xff]
      %v5138 = vld [vmem:[#allocation2 + $0x60] sm:$0xff]
      %v5139 = vld [vmem:[#allocation2 + $0x68] sm:$0xff]
      %v5140 = vld [vmem:[#allocation2 + $0x70] sm:$0xff]
      %v5141 = vld [vmem:[#allocation2 + $0x80] sm:$0xff]
      %v5142 = vld [vmem:[#allocation2 + $0x88] sm:$0xff]
      %v5143 = vld [vmem:[#allocation2 + $0x90] sm:$0xff]
      %v5144 = vld [vmem:[#allocation2 + $0xa0] sm:$0xff]
      %v5145 = vld [vmem:[#allocation2 + $0xa8] sm:$0xff]
      %v5146 = vld [vmem:[#allocation2 + $0xb0] sm:$0xff]
      %v5147 = vld [vmem:[#allocation2 + $0xc0] sm:$0xff]
      %v5148 = vld [vmem:[#allocation2 + $0xc8] sm:$0xff]
      %v5149 = vld [vmem:[#allocation2 + $0xd0] sm:$0xff]
      %v5150 = vld [vmem:[#allocation2 + $0xe0] sm:$0xff]
      %v5151 = vld [vmem:[#allocation2 + $0xe8] sm:$0xff]
      %v5152 = vld [vmem:[#allocation2 + $0xf0] sm:$0xff]
      %v5153 = vpack.c.bf16 %v5132, %v5129
      %v5154 = vpack.c.bf16 %v5133, %v5130
      %v5155 = vpack.c.bf16 %v5134, %v5131
      %v5156 = vpack.c.bf16 %v5138, %v5135
      %v5157 = vpack.c.bf16 %v5139, %v5136
      %v5158 = vpack.c.bf16 %v5140, %v5137
      %v5159 = vpack.c.bf16 %v5144, %v5141
      %v5160 = vpack.c.bf16 %v5145, %v5142
      %v5161 = vpack.c.bf16 %v5146, %v5143
      %v5162 = vpack.c.bf16 %v5150, %v5147
      %v5163 = vpack.c.bf16 %v5151, %v5148
      %v5164 = vpack.c.bf16 %v5152, %v5149
      %5177 = vrot.lane.b32.xlu0 %v5153, 16
      %v5178 = vpop.permute.xlu0 %5177
      %5179 = vrot.lane.b32.xlu0 %v5154, 16
      %v5180 = vpop.permute.xlu0 %5179
      %5181 = vrot.lane.b32.xlu0 %v5155, 16
      %v5182 = vpop.permute.xlu0 %5181
      %5183 = vrot.lane.b32.xlu0 %v5156, 16
      %v5184 = vpop.permute.xlu0 %5183
      %5185 = vrot.lane.b32.xlu0 %v5157, 16
      %v5186 = vpop.permute.xlu0 %5185
      %5187 = vrot.lane.b32.xlu0 %v5158, 16
      %v5188 = vpop.permute.xlu0 %5187
      %5189 = vrot.lane.b32.xlu0 %v5159, 16
      %v5190 = vpop.permute.xlu0 %5189
      %5191 = vrot.lane.b32.xlu0 %v5160, 16
      %v5192 = vpop.permute.xlu0 %5191
      %5193 = vrot.lane.b32.xlu0 %v5161, 16
      %v5194 = vpop.permute.xlu0 %5193
      %5195 = vrot.lane.b32.xlu0 %v5162, 16
      %v5196 = vpop.permute.xlu0 %5195
      %5197 = vrot.lane.b32.xlu0 %v5163, 16
      %v5198 = vpop.permute.xlu0 %5197
      %5199 = vrot.lane.b32.xlu0 %v5164, 16
      %v5200 = vpop.permute.xlu0 %5199
      %v5201 = vsel %vm515, %v5178, %v5180
      %v5202 = vsel %vm515, %v5180, %v5182
      %v5203 = vsel %vm515, %v5184, %v5186
      %v5204 = vsel %vm515, %v5186, %v5188
      %v5205 = vsel %vm515, %v5190, %v5192
      %v5206 = vsel %vm515, %v5192, %v5194
      %v5207 = vsel %vm515, %v5196, %v5198
      %v5208 = vsel %vm515, %v5198, %v5200
      %5217 = vst [vmem:[#allocation3 + $0x40] sm:$0xff] %v5201
      %5218 = vst [vmem:[#allocation3 + $0x48] sm:$0xff] %v5202
      %5219 = vst [vmem:[#allocation3 + $0x50] sm:$0xff] %v5203
      %5220 = vst [vmem:[#allocation3 + $0x58] sm:$0xff] %v5204
      %5221 = vst [vmem:[#allocation3 + $0x60] sm:$0xff] %v5205
      %5222 = vst [vmem:[#allocation3 + $0x68] sm:$0xff] %v5206
      %5223 = vst [vmem:[#allocation3 + $0x70] sm:$0xff] %v5207
      %5224 = vst [vmem:[#allocation3 + $0x78] sm:$0xff] %v5208
      %v5225 = vld [vmem:[#allocation2] sm:$0xff]
      %v5226 = vld [vmem:[#allocation2 + $0x8] sm:$0xff]
      %v5227 = vld [vmem:[#allocation2 + $0x10] sm:$0xff]
      %v5228 = vld [vmem:[#allocation2 + $0x20] sm:$0xff]
      %v5229 = vld [vmem:[#allocation2 + $0x28] sm:$0xff]
      %v5230 = vld [vmem:[#allocation2 + $0x30] sm:$0xff]
      %v5231 = vld [vmem:[#allocation2 + $0x40] sm:$0xff]
      %v5232 = vld [vmem:[#allocation2 + $0x48] sm:$0xff]
      %v5233 = vld [vmem:[#allocation2 + $0x50] sm:$0xff]
      %v5234 = vld [vmem:[#allocation2 + $0x60] sm:$0xff]
      %v5235 = vld [vmem:[#allocation2 + $0x68] sm:$0xff]
      %v5236 = vld [vmem:[#allocation2 + $0x70] sm:$0xff]
      %v5237 = vld [vmem:[#allocation2 + $0x80] sm:$0xff]
      %v5238 = vld [vmem:[#allocation2 + $0x88] sm:$0xff]
      %v5239 = vld [vmem:[#allocation2 + $0x90] sm:$0xff]
      %v5240 = vld [vmem:[#allocation2 + $0xa0] sm:$0xff]
      %v5241 = vld [vmem:[#allocation2 + $0xa8] sm:$0xff]
      %v5242 = vld [vmem:[#allocation2 + $0xb0] sm:$0xff]
      %v5243 = vld [vmem:[#allocation2 + $0xc0] sm:$0xff]
      %v5244 = vld [vmem:[#allocation2 + $0xc8] sm:$0xff]
      %v5245 = vld [vmem:[#allocation2 + $0xd0] sm:$0xff]
      %v5246 = vld [vmem:[#allocation2 + $0xe0] sm:$0xff]
      %v5247 = vld [vmem:[#allocation2 + $0xe8] sm:$0xff]
      %v5248 = vld [vmem:[#allocation2 + $0xf0] sm:$0xff]
      %v5249 = vmul.f32 %v5225, %v567
      %v5250 = vmul.f32 %v5226, %v571
      %v5251 = vmul.f32 %v5227, %v569
      %v5252 = vmul.f32 %v5228, %v567
      %v5253 = vmul.f32 %v5229, %v571
      %v5254 = vmul.f32 %v5230, %v569
      %v5255 = vmul.f32 %v5231, %v567
      %v5256 = vmul.f32 %v5232, %v571
      %v5257 = vmul.f32 %v5233, %v569
      %v5258 = vmul.f32 %v5234, %v567
      %v5259 = vmul.f32 %v5235, %v571
      %v5260 = vmul.f32 %v5236, %v569
      %v5261 = vmul.f32 %v5237, %v567
      %v5262 = vmul.f32 %v5238, %v571
      %v5263 = vmul.f32 %v5239, %v569
      %v5264 = vmul.f32 %v5240, %v567
      %v5265 = vmul.f32 %v5241, %v571
      %v5266 = vmul.f32 %v5242, %v569
      %v5267 = vmul.f32 %v5243, %v567
      %v5268 = vmul.f32 %v5244, %v571
      %v5269 = vmul.f32 %v5245, %v569
      %v5270 = vmul.f32 %v5246, %v567
      %v5271 = vmul.f32 %v5247, %v571
      %v5272 = vmul.f32 %v5248, %v569
      %v5273 = vpack.c.bf16 %v5252, %v5249
      %v5274 = vpack.c.bf16 %v5253, %v5250
      %v5275 = vpack.c.bf16 %v5254, %v5251
      %v5276 = vpack.c.bf16 %v5258, %v5255
      %v5277 = vpack.c.bf16 %v5259, %v5256
      %v5278 = vpack.c.bf16 %v5260, %v5257
      %v5279 = vpack.c.bf16 %v5264, %v5261
      %v5280 = vpack.c.bf16 %v5265, %v5262
      %v5281 = vpack.c.bf16 %v5266, %v5263
      %v5282 = vpack.c.bf16 %v5270, %v5267
      %v5283 = vpack.c.bf16 %v5271, %v5268
      %v5284 = vpack.c.bf16 %v5272, %v5269
      %5297 = vrot.lane.b32.xlu0 %v5273, 15
      %v5298 = vpop.permute.xlu0 %5297
      %5299 = vrot.lane.b32.xlu0 %v5274, 15
      %v5300 = vpop.permute.xlu0 %5299
      %5301 = vrot.lane.b32.xlu0 %v5275, 15
      %v5302 = vpop.permute.xlu0 %5301
      %5303 = vrot.lane.b32.xlu0 %v5276, 15
      %v5304 = vpop.permute.xlu0 %5303
      %5305 = vrot.lane.b32.xlu0 %v5277, 15
      %v5306 = vpop.permute.xlu0 %5305
      %5307 = vrot.lane.b32.xlu0 %v5278, 15
      %v5308 = vpop.permute.xlu0 %5307
      %5309 = vrot.lane.b32.xlu0 %v5279, 15
      %v5310 = vpop.permute.xlu0 %5309
      %5311 = vrot.lane.b32.xlu0 %v5280, 15
      %v5312 = vpop.permute.xlu0 %5311
      %5313 = vrot.lane.b32.xlu0 %v5281, 15
      %v5314 = vpop.permute.xlu0 %5313
      %5315 = vrot.lane.b32.xlu0 %v5282, 15
      %v5316 = vpop.permute.xlu0 %5315
      %5317 = vrot.lane.b32.xlu0 %v5283, 15
      %v5318 = vpop.permute.xlu0 %5317
      %5319 = vrot.lane.b32.xlu0 %v5284, 15
      %v5320 = vpop.permute.xlu0 %5319
      %v5321 = vsel %vm647, %v5298, %v5300
      %v5322 = vsel %vm647, %v5300, %v5302
      %v5323 = vsel %vm647, %v5304, %v5306
      %v5324 = vsel %vm647, %v5306, %v5308
      %v5325 = vsel %vm647, %v5310, %v5312
      %v5326 = vsel %vm647, %v5312, %v5314
      %v5327 = vsel %vm647, %v5316, %v5318
      %v5328 = vsel %vm647, %v5318, %v5320
      %5337 = vst [vmem:[#allocation3 + $0x80] sm:$0xff] %v5321
      %5338 = vst [vmem:[#allocation3 + $0x88] sm:$0xff] %v5322
      %5339 = vst [vmem:[#allocation3 + $0x90] sm:$0xff] %v5323
      %5340 = vst [vmem:[#allocation3 + $0x98] sm:$0xff] %v5324
      %5341 = vst [vmem:[#allocation3 + $0xa0] sm:$0xff] %v5325
      %5342 = vst [vmem:[#allocation3 + $0xa8] sm:$0xff] %v5326
      %5343 = vst [vmem:[#allocation3 + $0xb0] sm:$0xff] %v5327
      %5344 = vst [vmem:[#allocation3 + $0xb8] sm:$0xff] %v5328
      %v5345 = vld [vmem:[#allocation2] sm:$0xff]
      %v5346 = vld [vmem:[#allocation2 + $0x8] sm:$0xff]
      %v5347 = vld [vmem:[#allocation2 + $0x10] sm:$0xff]
      %v5348 = vld [vmem:[#allocation2 + $0x20] sm:$0xff]
      %v5349 = vld [vmem:[#allocation2 + $0x28] sm:$0xff]
      %v5350 = vld [vmem:[#allocation2 + $0x30] sm:$0xff]
      %v5351 = vld [vmem:[#allocation2 + $0x40] sm:$0xff]
      %v5352 = vld [vmem:[#allocation2 + $0x48] sm:$0xff]
      %v5353 = vld [vmem:[#allocation2 + $0x50] sm:$0xff]
      %v5354 = vld [vmem:[#allocation2 + $0x60] sm:$0xff]
      %v5355 = vld [vmem:[#allocation2 + $0x68] sm:$0xff]
      %v5356 = vld [vmem:[#allocation2 + $0x70] sm:$0xff]
      %v5357 = vld [vmem:[#allocation2 + $0x80] sm:$0xff]
      %v5358 = vld [vmem:[#allocation2 + $0x88] sm:$0xff]
      %v5359 = vld [vmem:[#allocation2 + $0x90] sm:$0xff]
      %v5360 = vld [vmem:[#allocation2 + $0xa0] sm:$0xff]
      %v5361 = vld [vmem:[#allocation2 + $0xa8] sm:$0xff]
      %v5362 = vld [vmem:[#allocation2 + $0xb0] sm:$0xff]
      %v5363 = vld [vmem:[#allocation2 + $0xc0] sm:$0xff]
      %v5364 = vld [vmem:[#allocation2 + $0xc8] sm:$0xff]
      %v5365 = vld [vmem:[#allocation2 + $0xd0] sm:$0xff]
      %v5366 = vld [vmem:[#allocation2 + $0xe0] sm:$0xff]
      %v5367 = vld [vmem:[#allocation2 + $0xe8] sm:$0xff]
      %v5368 = vld [vmem:[#allocation2 + $0xf0] sm:$0xff]
      %v5369 = vmul.f32 %v5345, %v697
      %v5370 = vmul.f32 %v5346, %v701
      %v5371 = vmul.f32 %v5347, %v699
      %v5372 = vmul.f32 %v5348, %v697
      %v5373 = vmul.f32 %v5349, %v701
      %v5374 = vmul.f32 %v5350, %v699
      %v5375 = vmul.f32 %v5351, %v697
      %v5376 = vmul.f32 %v5352, %v701
      %v5377 = vmul.f32 %v5353, %v699
      %v5378 = vmul.f32 %v5354, %v697
      %v5379 = vmul.f32 %v5355, %v701
      %v5380 = vmul.f32 %v5356, %v699
      %v5381 = vmul.f32 %v5357, %v697
      %v5382 = vmul.f32 %v5358, %v701
      %v5383 = vmul.f32 %v5359, %v699
      %v5384 = vmul.f32 %v5360, %v697
      %v5385 = vmul.f32 %v5361, %v701
      %v5386 = vmul.f32 %v5362, %v699
      %v5387 = vmul.f32 %v5363, %v697
      %v5388 = vmul.f32 %v5364, %v701
      %v5389 = vmul.f32 %v5365, %v699
      %v5390 = vmul.f32 %v5366, %v697
      %v5391 = vmul.f32 %v5367, %v701
      %v5392 = vmul.f32 %v5368, %v699
      %v5393 = vpack.c.bf16 %v5372, %v5369
      %v5394 = vpack.c.bf16 %v5373, %v5370
      %v5395 = vpack.c.bf16 %v5374, %v5371
      %v5396 = vpack.c.bf16 %v5378, %v5375
      %v5397 = vpack.c.bf16 %v5379, %v5376
      %v5398 = vpack.c.bf16 %v5380, %v5377
      %v5399 = vpack.c.bf16 %v5384, %v5381
      %v5400 = vpack.c.bf16 %v5385, %v5382
      %v5401 = vpack.c.bf16 %v5386, %v5383
      %v5402 = vpack.c.bf16 %v5390, %v5387
      %v5403 = vpack.c.bf16 %v5391, %v5388
      %v5404 = vpack.c.bf16 %v5392, %v5389
      %5417 = vrot.lane.b32.xlu0 %v5393, 1
      %v5418 = vpop.permute.xlu0 %5417
      %5419 = vrot.lane.b32.xlu0 %v5394, 1
      %v5420 = vpop.permute.xlu0 %5419
      %5421 = vrot.lane.b32.xlu0 %v5395, 1
      %v5422 = vpop.permute.xlu0 %5421
      %5423 = vrot.lane.b32.xlu0 %v5396, 1
      %v5424 = vpop.permute.xlu0 %5423
      %5425 = vrot.lane.b32.xlu0 %v5397, 1
      %v5426 = vpop.permute.xlu0 %5425
      %5427 = vrot.lane.b32.xlu0 %v5398, 1
      %v5428 = vpop.permute.xlu0 %5427
      %5429 = vrot.lane.b32.xlu0 %v5399, 1
      %v5430 = vpop.permute.xlu0 %5429
      %5431 = vrot.lane.b32.xlu0 %v5400, 1
      %v5432 = vpop.permute.xlu0 %5431
      %5433 = vrot.lane.b32.xlu0 %v5401, 1
      %v5434 = vpop.permute.xlu0 %5433
      %5435 = vrot.lane.b32.xlu0 %v5402, 1
      %v5436 = vpop.permute.xlu0 %5435
      %5437 = vrot.lane.b32.xlu0 %v5403, 1
      %v5438 = vpop.permute.xlu0 %5437
      %5439 = vrot.lane.b32.xlu0 %v5404, 1
      %v5440 = vpop.permute.xlu0 %5439
      %v5441 = vsel %vm777, %v5418, %v5420
      %v5442 = vsel %vm777, %v5420, %v5422
      %v5443 = vsel %vm777, %v5424, %v5426
      %v5444 = vsel %vm777, %v5426, %v5428
      %v5445 = vsel %vm777, %v5430, %v5432
      %v5446 = vsel %vm777, %v5432, %v5434
      %v5447 = vsel %vm777, %v5436, %v5438
      %v5448 = vsel %vm777, %v5438, %v5440
      %5457 = vst [vmem:[#allocation3 + $0xc0] sm:$0xff] %v5441
      %5458 = vst [vmem:[#allocation3 + $0xc8] sm:$0xff] %v5442
      %5459 = vst [vmem:[#allocation3 + $0xd0] sm:$0xff] %v5443
      %5460 = vst [vmem:[#allocation3 + $0xd8] sm:$0xff] %v5444
      %5461 = vst [vmem:[#allocation3 + $0xe0] sm:$0xff] %v5445
      %5462 = vst [vmem:[#allocation3 + $0xe8] sm:$0xff] %v5446
      %5463 = vst [vmem:[#allocation3 + $0xf0] sm:$0xff] %v5447
      %5464 = vst [vmem:[#allocation3 + $0xf8] sm:$0xff] %v5448
      %v5465 = vld [vmem:[#allocation2 + $0x8] sm:$0xff]
      %v5466 = vld [vmem:[#allocation2 + $0x10] sm:$0xff]
      %v5467 = vld [vmem:[#allocation2 + $0x28] sm:$0xff]
      %v5468 = vld [vmem:[#allocation2 + $0x30] sm:$0xff]
      %v5469 = vld [vmem:[#allocation2 + $0x48] sm:$0xff]
      %v5470 = vld [vmem:[#allocation2 + $0x50] sm:$0xff]
      %v5471 = vld [vmem:[#allocation2 + $0x68] sm:$0xff]
      %v5472 = vld [vmem:[#allocation2 + $0x70] sm:$0xff]
      %v5473 = vld [vmem:[#allocation2 + $0x88] sm:$0xff]
      %v5474 = vld [vmem:[#allocation2 + $0x90] sm:$0xff]
      %v5475 = vld [vmem:[#allocation2 + $0xa8] sm:$0xff]
      %v5476 = vld [vmem:[#allocation2 + $0xb0] sm:$0xff]
      %v5477 = vld [vmem:[#allocation2 + $0xc8] sm:$0xff]
      %v5478 = vld [vmem:[#allocation2 + $0xd0] sm:$0xff]
      %v5479 = vld [vmem:[#allocation2 + $0xe8] sm:$0xff]
      %v5480 = vld [vmem:[#allocation2 + $0xf0] sm:$0xff]
      %v5481 = vpack.c.bf16 %v5467, %v5465
      %v5482 = vpack.c.bf16 %v5468, %v5466
      %v5483 = vpack.c.bf16 %v5471, %v5469
      %v5484 = vpack.c.bf16 %v5472, %v5470
      %v5485 = vpack.c.bf16 %v5475, %v5473
      %v5486 = vpack.c.bf16 %v5476, %v5474
      %v5487 = vpack.c.bf16 %v5479, %v5477
      %v5488 = vpack.c.bf16 %v5480, %v5478
      %5489 = vst [vmem:[#allocation3 + $0x100] sm:$0xff] %v5481
      %5490 = vst [vmem:[#allocation3 + $0x108] sm:$0xff] %v5482
      %5491 = vst [vmem:[#allocation3 + $0x110] sm:$0xff] %v5483
      %5492 = vst [vmem:[#allocation3 + $0x118] sm:$0xff] %v5484
      %5493 = vst [vmem:[#allocation3 + $0x120] sm:$0xff] %v5485
      %5494 = vst [vmem:[#allocation3 + $0x128] sm:$0xff] %v5486
      %5495 = vst [vmem:[#allocation3 + $0x130] sm:$0xff] %v5487
      %5496 = vst [vmem:[#allocation3 + $0x138] sm:$0xff] %v5488
      %v5497 = vld [vmem:[#allocation2 + $0x8] sm:$0xff]
      %v5498 = vld [vmem:[#allocation2 + $0x10] sm:$0xff]
      %v5499 = vld [vmem:[#allocation2 + $0x18] sm:$0xff]
      %v5500 = vld [vmem:[#allocation2 + $0x28] sm:$0xff]
      %v5501 = vld [vmem:[#allocation2 + $0x30] sm:$0xff]
      %v5502 = vld [vmem:[#allocation2 + $0x38] sm:$0xff]
      %v5503 = vld [vmem:[#allocation2 + $0x48] sm:$0xff]
      %v5504 = vld [vmem:[#allocation2 + $0x50] sm:$0xff]
      %v5505 = vld [vmem:[#allocation2 + $0x58] sm:$0xff]
      %v5506 = vld [vmem:[#allocation2 + $0x68] sm:$0xff]
      %v5507 = vld [vmem:[#allocation2 + $0x70] sm:$0xff]
      %v5508 = vld [vmem:[#allocation2 + $0x78] sm:$0xff]
      %v5509 = vld [vmem:[#allocation2 + $0x88] sm:$0xff]
      %v5510 = vld [vmem:[#allocation2 + $0x90] sm:$0xff]
      %v5511 = vld [vmem:[#allocation2 + $0x98] sm:$0xff]
      %v5512 = vld [vmem:[#allocation2 + $0xa8] sm:$0xff]
      %v5513 = vld [vmem:[#allocation2 + $0xb0] sm:$0xff]
      %v5514 = vld [vmem:[#allocation2 + $0xb8] sm:$0xff]
      %v5515 = vld [vmem:[#allocation2 + $0xc8] sm:$0xff]
      %v5516 = vld [vmem:[#allocation2 + $0xd0] sm:$0xff]
      %v5517 = vld [vmem:[#allocation2 + $0xd8] sm:$0xff]
      %v5518 = vld [vmem:[#allocation2 + $0xe8] sm:$0xff]
      %v5519 = vld [vmem:[#allocation2 + $0xf0] sm:$0xff]
      %v5520 = vld [vmem:[#allocation2 + $0xf8] sm:$0xff]
      %v5521 = vmul.f32 %v5497, %v859
      %v5522 = vmul.f32 %v5498, %v863
      %v5523 = vmul.f32 %v5499, %v861
      %v5524 = vmul.f32 %v5500, %v859
      %v5525 = vmul.f32 %v5501, %v863
      %v5526 = vmul.f32 %v5502, %v861
      %v5527 = vmul.f32 %v5503, %v859
      %v5528 = vmul.f32 %v5504, %v863
      %v5529 = vmul.f32 %v5505, %v861
      %v5530 = vmul.f32 %v5506, %v859
      %v5531 = vmul.f32 %v5507, %v863
      %v5532 = vmul.f32 %v5508, %v861
      %v5533 = vmul.f32 %v5509, %v859
      %v5534 = vmul.f32 %v5510, %v863
      %v5535 = vmul.f32 %v5511, %v861
      %v5536 = vmul.f32 %v5512, %v859
      %v5537 = vmul.f32 %v5513, %v863
      %v5538 = vmul.f32 %v5514, %v861
      %v5539 = vmul.f32 %v5515, %v859
      %v5540 = vmul.f32 %v5516, %v863
      %v5541 = vmul.f32 %v5517, %v861
      %v5542 = vmul.f32 %v5518, %v859
      %v5543 = vmul.f32 %v5519, %v863
      %v5544 = vmul.f32 %v5520, %v861
      %v5545 = vpack.c.bf16 %v5524, %v5521
      %v5546 = vpack.c.bf16 %v5525, %v5522
      %v5547 = vpack.c.bf16 %v5526, %v5523
      %v5548 = vpack.c.bf16 %v5530, %v5527
      %v5549 = vpack.c.bf16 %v5531, %v5528
      %v5550 = vpack.c.bf16 %v5532, %v5529
      %v5551 = vpack.c.bf16 %v5536, %v5533
      %v5552 = vpack.c.bf16 %v5537, %v5534
      %v5553 = vpack.c.bf16 %v5538, %v5535
      %v5554 = vpack.c.bf16 %v5542, %v5539
      %v5555 = vpack.c.bf16 %v5543, %v5540
      %v5556 = vpack.c.bf16 %v5544, %v5541
      %5569 = vrot.lane.b32.xlu0 %v5545, 127
      %v5570 = vpop.permute.xlu0 %5569
      %5571 = vrot.lane.b32.xlu0 %v5546, 127
      %v5572 = vpop.permute.xlu0 %5571
      %5573 = vrot.lane.b32.xlu0 %v5547, 127
      %v5574 = vpop.permute.xlu0 %5573
      %5575 = vrot.lane.b32.xlu0 %v5548, 127
      %v5576 = vpop.permute.xlu0 %5575
      %5577 = vrot.lane.b32.xlu0 %v5549, 127
      %v5578 = vpop.permute.xlu0 %5577
      %5579 = vrot.lane.b32.xlu0 %v5550, 127
      %v5580 = vpop.permute.xlu0 %5579
      %5581 = vrot.lane.b32.xlu0 %v5551, 127
      %v5582 = vpop.permute.xlu0 %5581
      %5583 = vrot.lane.b32.xlu0 %v5552, 127
      %v5584 = vpop.permute.xlu0 %5583
      %5585 = vrot.lane.b32.xlu0 %v5553, 127
      %v5586 = vpop.permute.xlu0 %5585
      %5587 = vrot.lane.b32.xlu0 %v5554, 127
      %v5588 = vpop.permute.xlu0 %5587
      %5589 = vrot.lane.b32.xlu0 %v5555, 127
      %v5590 = vpop.permute.xlu0 %5589
      %5591 = vrot.lane.b32.xlu0 %v5556, 127
      %v5592 = vpop.permute.xlu0 %5591
      %v5593 = vsel %vm939, %v5570, %v5572
      %v5594 = vsel %vm939, %v5572, %v5574
      %v5595 = vsel %vm939, %v5576, %v5578
      %v5596 = vsel %vm939, %v5578, %v5580
      %v5597 = vsel %vm939, %v5582, %v5584
      %v5598 = vsel %vm939, %v5584, %v5586
      %v5599 = vsel %vm939, %v5588, %v5590
      %v5600 = vsel %vm939, %v5590, %v5592
      %5609 = vst [vmem:[#allocation3 + $0x140] sm:$0xff] %v5593
      %5610 = vst [vmem:[#allocation3 + $0x148] sm:$0xff] %v5594
      %5611 = vst [vmem:[#allocation3 + $0x150] sm:$0xff] %v5595
      %5612 = vst [vmem:[#allocation3 + $0x158] sm:$0xff] %v5596
      %5613 = vst [vmem:[#allocation3 + $0x160] sm:$0xff] %v5597
      %5614 = vst [vmem:[#allocation3 + $0x168] sm:$0xff] %v5598
      %5615 = vst [vmem:[#allocation3 + $0x170] sm:$0xff] %v5599
      %5616 = vst [vmem:[#allocation3 + $0x178] sm:$0xff] %v5600
      %v5617 = vld [vmem:[#allocation2 + $0x8] sm:$0xff]
      %v5618 = vld [vmem:[#allocation2 + $0x10] sm:$0xff]
      %v5619 = vld [vmem:[#allocation2 + $0x18] sm:$0xff]
      %v5620 = vld [vmem:[#allocation2 + $0x28] sm:$0xff]
      %v5621 = vld [vmem:[#allocation2 + $0x30] sm:$0xff]
      %v5622 = vld [vmem:[#allocation2 + $0x38] sm:$0xff]
      %v5623 = vld [vmem:[#allocation2 + $0x48] sm:$0xff]
      %v5624 = vld [vmem:[#allocation2 + $0x50] sm:$0xff]
      %v5625 = vld [vmem:[#allocation2 + $0x58] sm:$0xff]
      %v5626 = vld [vmem:[#allocation2 + $0x68] sm:$0xff]
      %v5627 = vld [vmem:[#allocation2 + $0x70] sm:$0xff]
      %v5628 = vld [vmem:[#allocation2 + $0x78] sm:$0xff]
      %v5629 = vld [vmem:[#allocation2 + $0x88] sm:$0xff]
      %v5630 = vld [vmem:[#allocation2 + $0x90] sm:$0xff]
      %v5631 = vld [vmem:[#allocation2 + $0x98] sm:$0xff]
      %v5632 = vld [vmem:[#allocation2 + $0xa8] sm:$0xff]
      %v5633 = vld [vmem:[#allocation2 + $0xb0] sm:$0xff]
      %v5634 = vld [vmem:[#allocation2 + $0xb8] sm:$0xff]
      %v5635 = vld [vmem:[#allocation2 + $0xc8] sm:$0xff]
      %v5636 = vld [vmem:[#allocation2 + $0xd0] sm:$0xff]
      %v5637 = vld [vmem:[#allocation2 + $0xd8] sm:$0xff]
      %v5638 = vld [vmem:[#allocation2 + $0xe8] sm:$0xff]
      %v5639 = vld [vmem:[#allocation2 + $0xf0] sm:$0xff]
      %v5640 = vld [vmem:[#allocation2 + $0xf8] sm:$0xff]
      %v5641 = vmul.f32 %v5617, %v989
      %v5642 = vmul.f32 %v5618, %v993
      %v5643 = vmul.f32 %v5619, %v991
      %v5644 = vmul.f32 %v5620, %v989
      %v5645 = vmul.f32 %v5621, %v993
      %v5646 = vmul.f32 %v5622, %v991
      %v5647 = vmul.f32 %v5623, %v989
      %v5648 = vmul.f32 %v5624, %v993
      %v5649 = vmul.f32 %v5625, %v991
      %v5650 = vmul.f32 %v5626, %v989
      %v5651 = vmul.f32 %v5627, %v993
      %v5652 = vmul.f32 %v5628, %v991
      %v5653 = vmul.f32 %v5629, %v989
      %v5654 = vmul.f32 %v5630, %v993
      %v5655 = vmul.f32 %v5631, %v991
      %v5656 = vmul.f32 %v5632, %v989
      %v5657 = vmul.f32 %v5633, %v993
      %v5658 = vmul.f32 %v5634, %v991
      %v5659 = vmul.f32 %v5635, %v989
      %v5660 = vmul.f32 %v5636, %v993
      %v5661 = vmul.f32 %v5637, %v991
      %v5662 = vmul.f32 %v5638, %v989
      %v5663 = vmul.f32 %v5639, %v993
      %v5664 = vmul.f32 %v5640, %v991
      %v5665 = vpack.c.bf16 %v5644, %v5641
      %v5666 = vpack.c.bf16 %v5645, %v5642
      %v5667 = vpack.c.bf16 %v5646, %v5643
      %v5668 = vpack.c.bf16 %v5650, %v5647
      %v5669 = vpack.c.bf16 %v5651, %v5648
      %v5670 = vpack.c.bf16 %v5652, %v5649
      %v5671 = vpack.c.bf16 %v5656, %v5653
      %v5672 = vpack.c.bf16 %v5657, %v5654
      %v5673 = vpack.c.bf16 %v5658, %v5655
      %v5674 = vpack.c.bf16 %v5662, %v5659
      %v5675 = vpack.c.bf16 %v5663, %v5660
      %v5676 = vpack.c.bf16 %v5664, %v5661
      %5689 = vrot.lane.b32.xlu0 %v5665, 113
      %v5690 = vpop.permute.xlu0 %5689
      %5691 = vrot.lane.b32.xlu0 %v5666, 113
      %v5692 = vpop.permute.xlu0 %5691
      %5693 = vrot.lane.b32.xlu0 %v5667, 113
      %v5694 = vpop.permute.xlu0 %5693
      %5695 = vrot.lane.b32.xlu0 %v5668, 113
      %v5696 = vpop.permute.xlu0 %5695
      %5697 = vrot.lane.b32.xlu0 %v5669, 113
      %v5698 = vpop.permute.xlu0 %5697
      %5699 = vrot.lane.b32.xlu0 %v5670, 113
      %v5700 = vpop.permute.xlu0 %5699
      %5701 = vrot.lane.b32.xlu0 %v5671, 113
      %v5702 = vpop.permute.xlu0 %5701
      %5703 = vrot.lane.b32.xlu0 %v5672, 113
      %v5704 = vpop.permute.xlu0 %5703
      %5705 = vrot.lane.b32.xlu0 %v5673, 113
      %v5706 = vpop.permute.xlu0 %5705
      %5707 = vrot.lane.b32.xlu0 %v5674, 113
      %v5708 = vpop.permute.xlu0 %5707
      %5709 = vrot.lane.b32.xlu0 %v5675, 113
      %v5710 = vpop.permute.xlu0 %5709
      %5711 = vrot.lane.b32.xlu0 %v5676, 113
      %v5712 = vpop.permute.xlu0 %5711
      %v5713 = vsel %vm1069, %v5690, %v5692
      %v5714 = vsel %vm1069, %v5692, %v5694
      %v5715 = vsel %vm1069, %v5696, %v5698
      %v5716 = vsel %vm1069, %v5698, %v5700
      %v5717 = vsel %vm1069, %v5702, %v5704
      %v5718 = vsel %vm1069, %v5704, %v5706
      %v5719 = vsel %vm1069, %v5708, %v5710
      %v5720 = vsel %vm1069, %v5710, %v5712
      %5729 = vst [vmem:[#allocation3 + $0x180] sm:$0xff] %v5713
      %5730 = vst [vmem:[#allocation3 + $0x188] sm:$0xff] %v5714
      %5731 = vst [vmem:[#allocation3 + $0x190] sm:$0xff] %v5715
      %5732 = vst [vmem:[#allocation3 + $0x198] sm:$0xff] %v5716
      %5733 = vst [vmem:[#allocation3 + $0x1a0] sm:$0xff] %v5717
      %5734 = vst [vmem:[#allocation3 + $0x1a8] sm:$0xff] %v5718
      %5735 = vst [vmem:[#allocation3 + $0x1b0] sm:$0xff] %v5719
      %5736 = vst [vmem:[#allocation3 + $0x1b8] sm:$0xff] %v5720
      %v5737 = vld [vmem:[#allocation2 + $0x8] sm:$0xff]
      %v5738 = vld [vmem:[#allocation2 + $0x10] sm:$0xff]
      %v5739 = vld [vmem:[#allocation2 + $0x18] sm:$0xff]
      %v5740 = vld [vmem:[#allocation2 + $0x28] sm:$0xff]
      %v5741 = vld [vmem:[#allocation2 + $0x30] sm:$0xff]
      %v5742 = vld [vmem:[#allocation2 + $0x38] sm:$0xff]
      %v5743 = vld [vmem:[#allocation2 + $0x48] sm:$0xff]
      %v5744 = vld [vmem:[#allocation2 + $0x50] sm:$0xff]
      %v5745 = vld [vmem:[#allocation2 + $0x58] sm:$0xff]
      %v5746 = vld [vmem:[#allocation2 + $0x68] sm:$0xff]
      %v5747 = vld [vmem:[#allocation2 + $0x70] sm:$0xff]
      %v5748 = vld [vmem:[#allocation2 + $0x78] sm:$0xff]
      %v5749 = vld [vmem:[#allocation2 + $0x88] sm:$0xff]
      %v5750 = vld [vmem:[#allocation2 + $0x90] sm:$0xff]
      %v5751 = vld [vmem:[#allocation2 + $0x98] sm:$0xff]
      %v5752 = vld [vmem:[#allocation2 + $0xa8] sm:$0xff]
      %v5753 = vld [vmem:[#allocation2 + $0xb0] sm:$0xff]
      %v5754 = vld [vmem:[#allocation2 + $0xb8] sm:$0xff]
      %v5755 = vld [vmem:[#allocation2 + $0xc8] sm:$0xff]
      %v5756 = vld [vmem:[#allocation2 + $0xd0] sm:$0xff]
      %v5757 = vld [vmem:[#allocation2 + $0xd8] sm:$0xff]
      %v5758 = vld [vmem:[#allocation2 + $0xe8] sm:$0xff]
      %v5759 = vld [vmem:[#allocation2 + $0xf0] sm:$0xff]
      %v5760 = vld [vmem:[#allocation2 + $0xf8] sm:$0xff]
      %v5761 = vpack.c.bf16 %v5740, %v5737
      %v5762 = vpack.c.bf16 %v5741, %v5738
      %v5763 = vpack.c.bf16 %v5742, %v5739
      %v5764 = vpack.c.bf16 %v5746, %v5743
      %v5765 = vpack.c.bf16 %v5747, %v5744
      %v5766 = vpack.c.bf16 %v5748, %v5745
      %v5767 = vpack.c.bf16 %v5752, %v5749
      %v5768 = vpack.c.bf16 %v5753, %v5750
      %v5769 = vpack.c.bf16 %v5754, %v5751
      %v5770 = vpack.c.bf16 %v5758, %v5755
      %v5771 = vpack.c.bf16 %v5759, %v5756
      %v5772 = vpack.c.bf16 %v5760, %v5757
      %5785 = vrot.lane.b32.xlu0 %v5761, 112
      %v5786 = vpop.permute.xlu0 %5785
      %5787 = vrot.lane.b32.xlu0 %v5762, 112
      %v5788 = vpop.permute.xlu0 %5787
      %5789 = vrot.lane.b32.xlu0 %v5763, 112
      %v5790 = vpop.permute.xlu0 %5789
      %5791 = vrot.lane.b32.xlu0 %v5764, 112
      %v5792 = vpop.permute.xlu0 %5791
      %5793 = vrot.lane.b32.xlu0 %v5765, 112
      %v5794 = vpop.permute.xlu0 %5793
      %5795 = vrot.lane.b32.xlu0 %v5766, 112
      %v5796 = vpop.permute.xlu0 %5795
      %5797 = vrot.lane.b32.xlu0 %v5767, 112
      %v5798 = vpop.permute.xlu0 %5797
      %5799 = vrot.lane.b32.xlu0 %v5768, 112
      %v5800 = vpop.permute.xlu0 %5799
      %5801 = vrot.lane.b32.xlu0 %v5769, 112
      %v5802 = vpop.permute.xlu0 %5801
      %5803 = vrot.lane.b32.xlu0 %v5770, 112
      %v5804 = vpop.permute.xlu0 %5803
      %5805 = vrot.lane.b32.xlu0 %v5771, 112
      %v5806 = vpop.permute.xlu0 %5805
      %5807 = vrot.lane.b32.xlu0 %v5772, 112
      %v5808 = vpop.permute.xlu0 %5807
      %v5809 = vsel %vm1166, %v5786, %v5788
      %v5810 = vsel %vm1166, %v5788, %v5790
      %v5811 = vsel %vm1166, %v5792, %v5794
      %v5812 = vsel %vm1166, %v5794, %v5796
      %v5813 = vsel %vm1166, %v5798, %v5800
      %v5814 = vsel %vm1166, %v5800, %v5802
      %v5815 = vsel %vm1166, %v5804, %v5806
      %v5816 = vsel %vm1166, %v5806, %v5808
      %5825 = vst [vmem:[#allocation3 + $0x1c0] sm:$0xff] %v5809
      %5826 = vst [vmem:[#allocation3 + $0x1c8] sm:$0xff] %v5810
      %5827 = vst [vmem:[#allocation3 + $0x1d0] sm:$0xff] %v5811
      %5828 = vst [vmem:[#allocation3 + $0x1d8] sm:$0xff] %v5812
      %5829 = vst [vmem:[#allocation3 + $0x1e0] sm:$0xff] %v5813
      %5830 = vst [vmem:[#allocation3 + $0x1e8] sm:$0xff] %v5814
      %5831 = vst [vmem:[#allocation3 + $0x1f0] sm:$0xff] %v5815
      %5832 = vst [vmem:[#allocation3 + $0x1f8] sm:$0xff] %v5816
      %v5833 = vld [vmem:[#allocation2 + $0x8] sm:$0xff]
      %v5834 = vld [vmem:[#allocation2 + $0x10] sm:$0xff]
      %v5835 = vld [vmem:[#allocation2 + $0x18] sm:$0xff]
      %v5836 = vld [vmem:[#allocation2 + $0x28] sm:$0xff]
      %v5837 = vld [vmem:[#allocation2 + $0x30] sm:$0xff]
      %v5838 = vld [vmem:[#allocation2 + $0x38] sm:$0xff]
      %v5839 = vld [vmem:[#allocation2 + $0x48] sm:$0xff]
      %v5840 = vld [vmem:[#allocation2 + $0x50] sm:$0xff]
      %v5841 = vld [vmem:[#allocation2 + $0x58] sm:$0xff]
      %v5842 = vld [vmem:[#allocation2 + $0x68] sm:$0xff]
      %v5843 = vld [vmem:[#allocation2 + $0x70] sm:$0xff]
      %v5844 = vld [vmem:[#allocation2 + $0x78] sm:$0xff]
      %v5845 = vld [vmem:[#allocation2 + $0x88] sm:$0xff]
      %v5846 = vld [vmem:[#allocation2 + $0x90] sm:$0xff]
      %v5847 = vld [vmem:[#allocation2 + $0x98] sm:$0xff]
      %v5848 = vld [vmem:[#allocation2 + $0xa8] sm:$0xff]
      %v5849 = vld [vmem:[#allocation2 + $0xb0] sm:$0xff]
      %v5850 = vld [vmem:[#allocation2 + $0xb8] sm:$0xff]
      %v5851 = vld [vmem:[#allocation2 + $0xc8] sm:$0xff]
      %v5852 = vld [vmem:[#allocation2 + $0xd0] sm:$0xff]
      %v5853 = vld [vmem:[#allocation2 + $0xd8] sm:$0xff]
      %v5854 = vld [vmem:[#allocation2 + $0xe8] sm:$0xff]
      %v5855 = vld [vmem:[#allocation2 + $0xf0] sm:$0xff]
      %v5856 = vld [vmem:[#allocation2 + $0xf8] sm:$0xff]
      %v5857 = vmul.f32 %v5833, %v1216
      %v5858 = vmul.f32 %v5834, %v1220
      %v5859 = vmul.f32 %v5835, %v1218
      %v5860 = vmul.f32 %v5836, %v1216
      %v5861 = vmul.f32 %v5837, %v1220
      %v5862 = vmul.f32 %v5838, %v1218
      %v5863 = vmul.f32 %v5839, %v1216
      %v5864 = vmul.f32 %v5840, %v1220
      %v5865 = vmul.f32 %v5841, %v1218
      %v5866 = vmul.f32 %v5842, %v1216
      %v5867 = vmul.f32 %v5843, %v1220
      %v5868 = vmul.f32 %v5844, %v1218
      %v5869 = vmul.f32 %v5845, %v1216
      %v5870 = vmul.f32 %v5846, %v1220
      %v5871 = vmul.f32 %v5847, %v1218
      %v5872 = vmul.f32 %v5848, %v1216
      %v5873 = vmul.f32 %v5849, %v1220
      %v5874 = vmul.f32 %v5850, %v1218
      %v5875 = vmul.f32 %v5851, %v1216
      %v5876 = vmul.f32 %v5852, %v1220
      %v5877 = vmul.f32 %v5853, %v1218
      %v5878 = vmul.f32 %v5854, %v1216
      %v5879 = vmul.f32 %v5855, %v1220
      %v5880 = vmul.f32 %v5856, %v1218
      %v5881 = vpack.c.bf16 %v5860, %v5857
      %v5882 = vpack.c.bf16 %v5861, %v5858
      %v5883 = vpack.c.bf16 %v5862, %v5859
      %v5884 = vpack.c.bf16 %v5866, %v5863
      %v5885 = vpack.c.bf16 %v5867, %v5864
      %v5886 = vpack.c.bf16 %v5868, %v5865
      %v5887 = vpack.c.bf16 %v5872, %v5869
      %v5888 = vpack.c.bf16 %v5873, %v5870
      %v5889 = vpack.c.bf16 %v5874, %v5871
      %v5890 = vpack.c.bf16 %v5878, %v5875
      %v5891 = vpack.c.bf16 %v5879, %v5876
      %v5892 = vpack.c.bf16 %v5880, %v5877
      %5905 = vrot.lane.b32.xlu0 %v5881, 111
      %v5906 = vpop.permute.xlu0 %5905
      %5907 = vrot.lane.b32.xlu0 %v5882, 111
      %v5908 = vpop.permute.xlu0 %5907
      %5909 = vrot.lane.b32.xlu0 %v5883, 111
      %v5910 = vpop.permute.xlu0 %5909
      %5911 = vrot.lane.b32.xlu0 %v5884, 111
      %v5912 = vpop.permute.xlu0 %5911
      %5913 = vrot.lane.b32.xlu0 %v5885, 111
      %v5914 = vpop.permute.xlu0 %5913
      %5915 = vrot.lane.b32.xlu0 %v5886, 111
      %v5916 = vpop.permute.xlu0 %5915
      %5917 = vrot.lane.b32.xlu0 %v5887, 111
      %v5918 = vpop.permute.xlu0 %5917
      %5919 = vrot.lane.b32.xlu0 %v5888, 111
      %v5920 = vpop.permute.xlu0 %5919
      %5921 = vrot.lane.b32.xlu0 %v5889, 111
      %v5922 = vpop.permute.xlu0 %5921
      %5923 = vrot.lane.b32.xlu0 %v5890, 111
      %v5924 = vpop.permute.xlu0 %5923
      %5925 = vrot.lane.b32.xlu0 %v5891, 111
      %v5926 = vpop.permute.xlu0 %5925
      %5927 = vrot.lane.b32.xlu0 %v5892, 111
      %v5928 = vpop.permute.xlu0 %5927
      %v5929 = vsel %vm1296, %v5906, %v5908
      %v5930 = vsel %vm1296, %v5908, %v5910
      %v5931 = vsel %vm1296, %v5912, %v5914
      %v5932 = vsel %vm1296, %v5914, %v5916
      %v5933 = vsel %vm1296, %v5918, %v5920
      %v5934 = vsel %vm1296, %v5920, %v5922
      %v5935 = vsel %vm1296, %v5924, %v5926
      %v5936 = vsel %vm1296, %v5926, %v5928
      %5945 = vst [vmem:[#allocation3 + $0x200] sm:$0xff] %v5929
      %5946 = vst [vmem:[#allocation3 + $0x208] sm:$0xff] %v5930
      %5947 = vst [vmem:[#allocation3 + $0x210] sm:$0xff] %v5931
      %5948 = vst [vmem:[#allocation3 + $0x218] sm:$0xff] %v5932
      %5949 = vst [vmem:[#allocation3 + $0x220] sm:$0xff] %v5933
      %5950 = vst [vmem:[#allocation3 + $0x228] sm:$0xff] %v5934
      %5951 = vst [vmem:[#allocation3 + $0x230] sm:$0xff] %v5935
      %5952 = vst [vmem:[#allocation3 + $0x238] sm:$0xff] %v5936
      %s5953 = scalar_lea.vmem %s2, 480
      %v5954 = vld [vmem:[%s5953] sm:$0xff]
      %v5955 = vld [vmem:[%s5953 + $0x8] sm:$0xff]
      %v5956 = vld [vmem:[%s5953 + $0x10] sm:$0xf]
      %v5957 = vld [vmem:[%s5953 + $0x14] sm:$0xff]
      %v5958 = vld [vmem:[%s5953 + $0x1c] sm:$0xff]
      %v5959 = vld [vmem:[%s5953 + $0x24] sm:$0xf]
      %v5960 = vld [vmem:[%s5953 + $0x28] sm:$0xff]
      %v5961 = vld [vmem:[%s5953 + $0x30] sm:$0xff]
      %v5962 = vld [vmem:[%s5953 + $0x38] sm:$0xf]
      %v5963 = vld [vmem:[%s5953 + $0x3c] sm:$0xff]
      %v5964 = vld [vmem:[%s5953 + $0x44] sm:$0xff]
      %v5965 = vld [vmem:[%s5953 + $0x4c] sm:$0xf]
      %v5966 = vld [vmem:[%s5953 + $0x50] sm:$0xff]
      %v5967 = vld [vmem:[%s5953 + $0x58] sm:$0xff]
      %v5968 = vld [vmem:[%s5953 + $0x60] sm:$0xf]
      %v5969 = vld [vmem:[%s5953 + $0x64] sm:$0xff]
      %v5970 = vld [vmem:[%s5953 + $0x6c] sm:$0xff]
      %v5971 = vld [vmem:[%s5953 + $0x74] sm:$0xf]
      %v5972 = vld [vmem:[%s5953 + $0x78] sm:$0xff]
      %v5973 = vld [vmem:[%s5953 + $0x80] sm:$0xff]
      %v5974 = vld [vmem:[%s5953 + $0x88] sm:$0xf]
      %v5975 = vld [vmem:[%s5953 + $0x8c] sm:$0xff]
      %v5976 = vld [vmem:[%s5953 + $0x94] sm:$0xff]
      %v5977 = vld [vmem:[%s5953 + $0x9c] sm:$0xf]
      %v5978 = vld [vmem:[#allocation3] sm:$0xff]
      %v5979 = vld [vmem:[#allocation3 + $0x8] sm:$0xff]
      %v5980 = vld [vmem:[#allocation3 + $0x10] sm:$0xff]
      %v5981 = vld [vmem:[#allocation3 + $0x18] sm:$0xff]
      %v5982 = vld [vmem:[#allocation3 + $0x20] sm:$0xff]
      %v5983 = vld [vmem:[#allocation3 + $0x28] sm:$0xff]
      %v5984 = vld [vmem:[#allocation3 + $0x30] sm:$0xff]
      %v5985 = vld [vmem:[#allocation3 + $0x38] sm:$0xff]
      %v5986 = vld [vmem:[#allocation3 + $0x40] sm:$0xff]
      %v5987 = vld [vmem:[#allocation3 + $0x48] sm:$0xff]
      %v5988 = vld [vmem:[#allocation3 + $0x50] sm:$0xff]
      %v5989 = vld [vmem:[#allocation3 + $0x58] sm:$0xff]
      %v5990 = vld [vmem:[#allocation3 + $0x60] sm:$0xff]
      %v5991 = vld [vmem:[#allocation3 + $0x68] sm:$0xff]
      %v5992 = vld [vmem:[#allocation3 + $0x70] sm:$0xff]
      %v5993 = vld [vmem:[#allocation3 + $0x78] sm:$0xff]
      %v5994 = vld [vmem:[#allocation3 + $0x80] sm:$0xff]
      %v5995 = vld [vmem:[#allocation3 + $0x88] sm:$0xff]
      %v5996 = vld [vmem:[#allocation3 + $0x90] sm:$0xff]
      %v5997 = vld [vmem:[#allocation3 + $0x98] sm:$0xff]
      %v5998 = vld [vmem:[#allocation3 + $0xa0] sm:$0xff]
      %v5999 = vld [vmem:[#allocation3 + $0xa8] sm:$0xff]
      %v6000 = vld [vmem:[#allocation3 + $0xb0] sm:$0xff]
      %v6001 = vld [vmem:[#allocation3 + $0xb8] sm:$0xff]
      %v6002 = vld [vmem:[#allocation3 + $0xc0] sm:$0xff]
      %v6003 = vld [vmem:[#allocation3 + $0xc8] sm:$0xff]
      %v6004 = vld [vmem:[#allocation3 + $0xd0] sm:$0xff]
      %v6005 = vld [vmem:[#allocation3 + $0xd8] sm:$0xff]
      %v6006 = vld [vmem:[#allocation3 + $0xe0] sm:$0xff]
      %v6007 = vld [vmem:[#allocation3 + $0xe8] sm:$0xff]
      %v6008 = vld [vmem:[#allocation3 + $0xf0] sm:$0xff]
      %v6009 = vld [vmem:[#allocation3 + $0xf8] sm:$0xff]
      %v6010 = vld [vmem:[#allocation3 + $0x100] sm:$0xff]
      %v6011 = vld [vmem:[#allocation3 + $0x108] sm:$0xff]
      %v6012 = vld [vmem:[#allocation3 + $0x110] sm:$0xff]
      %v6013 = vld [vmem:[#allocation3 + $0x118] sm:$0xff]
      %v6014 = vld [vmem:[#allocation3 + $0x120] sm:$0xff]
      %v6015 = vld [vmem:[#allocation3 + $0x128] sm:$0xff]
      %v6016 = vld [vmem:[#allocation3 + $0x130] sm:$0xff]
      %v6017 = vld [vmem:[#allocation3 + $0x138] sm:$0xff]
      %v6018 = vld [vmem:[#allocation3 + $0x140] sm:$0xff]
      %v6019 = vld [vmem:[#allocation3 + $0x148] sm:$0xff]
      %v6020 = vld [vmem:[#allocation3 + $0x150] sm:$0xff]
      %v6021 = vld [vmem:[#allocation3 + $0x158] sm:$0xff]
      %v6022 = vld [vmem:[#allocation3 + $0x160] sm:$0xff]
      %v6023 = vld [vmem:[#allocation3 + $0x168] sm:$0xff]
      %v6024 = vld [vmem:[#allocation3 + $0x170] sm:$0xff]
      %v6025 = vld [vmem:[#allocation3 + $0x178] sm:$0xff]
      %v6026 = vld [vmem:[#allocation3 + $0x180] sm:$0xff]
      %v6027 = vld [vmem:[#allocation3 + $0x188] sm:$0xff]
      %v6028 = vld [vmem:[#allocation3 + $0x190] sm:$0xff]
      %v6029 = vld [vmem:[#allocation3 + $0x198] sm:$0xff]
      %v6030 = vld [vmem:[#allocation3 + $0x1a0] sm:$0xff]
      %v6031 = vld [vmem:[#allocation3 + $0x1a8] sm:$0xff]
      %v6032 = vld [vmem:[#allocation3 + $0x1b0] sm:$0xff]
      %v6033 = vld [vmem:[#allocation3 + $0x1b8] sm:$0xff]
      %v6034 = vld [vmem:[#allocation3 + $0x1c0] sm:$0xff]
      %v6035 = vld [vmem:[#allocation3 + $0x1c8] sm:$0xff]
      %v6036 = vld [vmem:[#allocation3 + $0x1d0] sm:$0xff]
      %v6037 = vld [vmem:[#allocation3 + $0x1d8] sm:$0xff]
      %v6038 = vld [vmem:[#allocation3 + $0x1e0] sm:$0xff]
      %v6039 = vld [vmem:[#allocation3 + $0x1e8] sm:$0xff]
      %v6040 = vld [vmem:[#allocation3 + $0x1f0] sm:$0xff]
      %v6041 = vld [vmem:[#allocation3 + $0x1f8] sm:$0xff]
      %v6042 = vld [vmem:[#allocation3 + $0x200] sm:$0xff]
      %v6043 = vld [vmem:[#allocation3 + $0x208] sm:$0xff]
      %v6044 = vld [vmem:[#allocation3 + $0x210] sm:$0xff]
      %v6045 = vld [vmem:[#allocation3 + $0x218] sm:$0xff]
      %v6046 = vld [vmem:[#allocation3 + $0x220] sm:$0xff]
      %v6047 = vld [vmem:[#allocation3 + $0x228] sm:$0xff]
      %v6048 = vld [vmem:[#allocation3 + $0x230] sm:$0xff]
      %v6049 = vld [vmem:[#allocation3 + $0x238] sm:$0xff]
      %v6074 = vunpack.c.l.b16 %v5954
      %v6075 = vunpack.c.h.b16 %v5954
      %v6076 = vunpack.c.l.b16 %v5955
      %v6077 = vunpack.c.h.b16 %v5955
      %v6078 = vunpack.c.l.b16 %v5956
      %v6079 = vunpack.c.l.b16 %v5957
      %v6080 = vunpack.c.h.b16 %v5957
      %v6081 = vunpack.c.l.b16 %v5958
      %v6082 = vunpack.c.h.b16 %v5958
      %v6083 = vunpack.c.l.b16 %v5959
      %v6084 = vunpack.c.l.b16 %v5960
      %v6085 = vunpack.c.h.b16 %v5960
      %v6086 = vunpack.c.l.b16 %v5961
      %v6087 = vunpack.c.h.b16 %v5961
      %v6088 = vunpack.c.l.b16 %v5962
      %v6089 = vunpack.c.l.b16 %v5963
      %v6090 = vunpack.c.h.b16 %v5963
      %v6091 = vunpack.c.l.b16 %v5964
      %v6092 = vunpack.c.h.b16 %v5964
      %v6093 = vunpack.c.l.b16 %v5965
      %v6094 = vunpack.c.l.b16 %v5966
      %v6095 = vunpack.c.h.b16 %v5966
      %v6096 = vunpack.c.l.b16 %v5967
      %v6097 = vunpack.c.h.b16 %v5967
      %v6098 = vunpack.c.l.b16 %v5968
      %v6099 = vunpack.c.l.b16 %v5969
      %v6100 = vunpack.c.h.b16 %v5969
      %v6101 = vunpack.c.l.b16 %v5970
      %v6102 = vunpack.c.h.b16 %v5970
      %v6103 = vunpack.c.l.b16 %v5971
      %v6104 = vunpack.c.l.b16 %v5972
      %v6105 = vunpack.c.h.b16 %v5972
      %v6106 = vunpack.c.l.b16 %v5973
      %v6107 = vunpack.c.h.b16 %v5973
      %v6108 = vunpack.c.l.b16 %v5974
      %v6109 = vunpack.c.l.b16 %v5975
      %v6110 = vunpack.c.h.b16 %v5975
      %v6111 = vunpack.c.l.b16 %v5976
      %v6112 = vunpack.c.h.b16 %v5976
      %v6113 = vunpack.c.l.b16 %v5977
      %v6114 = vpack.c.b16 %v6079, %v6074
      %v6115 = vpack.c.b16 %v6080, %v6075
      %v6116 = vpack.c.b16 %v6081, %v6076
      %v6117 = vpack.c.b16 %v6082, %v6077
      %v6118 = vpack.c.b16 %v6083, %v6078
      %v6119 = vpack.c.b16 %v6089, %v6084
      %v6120 = vpack.c.b16 %v6090, %v6085
      %v6121 = vpack.c.b16 %v6091, %v6086
      %v6122 = vpack.c.b16 %v6092, %v6087
      %v6123 = vpack.c.b16 %v6093, %v6088
      %v6124 = vpack.c.b16 %v6099, %v6094
      %v6125 = vpack.c.b16 %v6100, %v6095
      %v6126 = vpack.c.b16 %v6101, %v6096
      %v6127 = vpack.c.b16 %v6102, %v6097
      %v6128 = vpack.c.b16 %v6103, %v6098
      %v6129 = vpack.c.b16 %v6109, %v6104
      %v6130 = vpack.c.b16 %v6110, %v6105
      %v6131 = vpack.c.b16 %v6111, %v6106
      %v6132 = vpack.c.b16 %v6112, %v6107
      %v6133 = vpack.c.b16 %v6113, %v6108
      %v6151 = vsel %vm1517, %v6118, 0
      %v6154 = vsel %vm1517, %v6123, 0
      %v6157 = vsel %vm1517, %v6128, 0
      %v6160 = vsel %vm1517, %v6133, 0
      %6162 = vmatprep.subr.bf16.mxu0 %v5979
      %6163 = vmatpush1.bf16.msra.mxu0 %v5978
      %6164 = vmatprep.subr.bf16.mxu0 %v5981
      %6165 = vmatpush1.bf16.msra.mxu0 %v5980
      %6166 = vmatprep.subr.bf16.mxu0 %v5983
      %6167 = vmatpush1.bf16.msra.mxu0 %v5982
      %6168 = vmatprep.subr.bf16.mxu0 %v5985
      %6169 = vmatpush1.bf16.msra.mxu0 %v5984
      %6170 = vmatprep.subr.bf16.mxu0 %v5987
      %6171 = vmatpush1.bf16.msra.mxu0 %v5986
      %6172 = vmatprep.subr.bf16.mxu0 %v5989
      %6173 = vmatpush1.bf16.msra.mxu0 %v5988
      %6174 = vmatprep.subr.bf16.mxu0 %v5991
      %6175 = vmatpush1.bf16.msra.mxu0 %v5990
      %6176 = vmatprep.subr.bf16.mxu0 %v5993
      %6177 = vmatpush1.bf16.msra.mxu0 %v5992
      %6178 = vmatprep.subr.bf16.mxu0 %v5995
      %6179 = vmatpush1.bf16.msra.mxu0 %v5994
      %6180 = vmatprep.subr.bf16.mxu0 %v5997
      %6181 = vmatpush1.bf16.msra.mxu0 %v5996
      %6182 = vmatprep.subr.bf16.mxu0 %v5999
      %6183 = vmatpush1.bf16.msra.mxu0 %v5998
      %6184 = vmatprep.subr.bf16.mxu0 %v6001
      %6185 = vmatpush1.bf16.msra.mxu0 %v6000
      %6186 = vmatprep.subr.bf16.mxu0 %v6003
      %6187 = vmatpush1.bf16.msra.mxu0 %v6002
      %6188 = vmatprep.subr.bf16.mxu0 %v6005
      %6189 = vmatpush1.bf16.msra.mxu0 %v6004
      %6190 = vmatprep.subr.bf16.mxu0 %v6007
      %6191 = vmatpush1.bf16.msra.mxu0 %v6006
      %6192 = vmatprep.subr.bf16.mxu0 %v6009
      %6193 = vmatpush1.bf16.msra.mxu0 %v6008
      %6194 = vmatprep.mubr.bf16.mxu0 %v6115
      %6195 = vmatmul.mubr.bf16.gmra.mrb[0].mxu0 %v6114
      %v6196 = vpop.f32.mrb[0].mxu0
      %v6197 = vadd.f32 0.0, %v6196
      %v6198 = vpop.f32.mrb[0].mxu0
      %v6199 = vadd.f32 0.0, %v6198
      %v6200 = vpop.f32.mrb[0].mxu0
      %v6201 = vadd.f32 0.0, %v6200
      %v6202 = vpop.f32.mrb[0].mxu0
      %v6203 = vadd.f32 0.0, %v6202
      %6204 = vmatprep.mubr.bf16.mxu0 %v6120
      %6205 = vmatmul.mubr.bf16.gmra.mrb[0].mxu0 %v6119
      %v6206 = vpop.f32.mrb[0].mxu0
      %v6207 = vadd.f32 0.0, %v6206
      %v6208 = vpop.f32.mrb[0].mxu0
      %v6209 = vadd.f32 0.0, %v6208
      %v6210 = vpop.f32.mrb[0].mxu0
      %v6211 = vadd.f32 0.0, %v6210
      %v6212 = vpop.f32.mrb[0].mxu0
      %v6213 = vadd.f32 0.0, %v6212
      %6214 = vmatprep.mubr.bf16.mxu0 %v6125
      %6215 = vmatmul.mubr.bf16.gmra.mrb[0].mxu0 %v6124
      %v6216 = vpop.f32.mrb[0].mxu0
      %v6217 = vadd.f32 0.0, %v6216
      %v6218 = vpop.f32.mrb[0].mxu0
      %v6219 = vadd.f32 0.0, %v6218
      %v6220 = vpop.f32.mrb[0].mxu0
      %v6221 = vadd.f32 0.0, %v6220
      %v6222 = vpop.f32.mrb[0].mxu0
      %v6223 = vadd.f32 0.0, %v6222
      %6224 = vmatprep.mubr.bf16.mxu0 %v6130
      %6225 = vmatmul.mubr.bf16.gmra.mrb[0].mxu0 %v6129
      %v6226 = vpop.f32.mrb[0].mxu0
      %v6227 = vadd.f32 0.0, %v6226
      %v6228 = vpop.f32.mrb[0].mxu0
      %v6229 = vadd.f32 0.0, %v6228
      %v6230 = vpop.f32.mrb[0].mxu0
      %v6231 = vadd.f32 0.0, %v6230
      %v6232 = vpop.f32.mrb[0].mxu0
      %v6233 = vadd.f32 0.0, %v6232
      %6234 = vdwg.mxu0
      %6235 = vmatprep.subr.bf16.mxu0 %v6011
      %6236 = vmatpush1.bf16.msra.mxu0 %v6010
      %6237 = vmatprep.subr.bf16.mxu0 %v6013
      %6238 = vmatpush1.bf16.msra.mxu0 %v6012
      %6239 = vmatprep.subr.bf16.mxu0 %v6015
      %6240 = vmatpush1.bf16.msra.mxu0 %v6014
      %6241 = vmatprep.subr.bf16.mxu0 %v6017
      %6242 = vmatpush1.bf16.msra.mxu0 %v6016
      %6243 = vmatprep.subr.bf16.mxu0 %v6019
      %6244 = vmatpush1.bf16.msra.mxu0 %v6018
      %6245 = vmatprep.subr.bf16.mxu0 %v6021
      %6246 = vmatpush1.bf16.msra.mxu0 %v6020
      %6247 = vmatprep.subr.bf16.mxu0 %v6023
      %6248 = vmatpush1.bf16.msra.mxu0 %v6022
      %6249 = vmatprep.subr.bf16.mxu0 %v6025
      %6250 = vmatpush1.bf16.msra.mxu0 %v6024
      %6251 = vmatprep.subr.bf16.mxu0 %v6027
      %6252 = vmatpush1.bf16.msra.mxu0 %v6026
      %6253 = vmatprep.subr.bf16.mxu0 %v6029
      %6254 = vmatpush1.bf16.msra.mxu0 %v6028
      %6255 = vmatprep.subr.bf16.mxu0 %v6031
      %6256 = vmatpush1.bf16.msra.mxu0 %v6030
      %6257 = vmatprep.subr.bf16.mxu0 %v6033
      %6258 = vmatpush1.bf16.msra.mxu0 %v6032
      %6259 = vmatprep.subr.bf16.mxu0 %v6035
      %6260 = vmatpush1.bf16.msra.mxu0 %v6034
      %6261 = vmatprep.subr.bf16.mxu0 %v6037
      %6262 = vmatpush1.bf16.msra.mxu0 %v6036
      %6263 = vmatprep.subr.bf16.mxu0 %v6039
      %6264 = vmatpush1.bf16.msra.mxu0 %v6038
      %6265 = vmatprep.subr.bf16.mxu0 %v6041
      %6266 = vmatpush1.bf16.msra.mxu0 %v6040
      %6267 = vmatprep.mubr.bf16.mxu0 %v6117
      %6268 = vmatmul.mubr.bf16.gmra.mrb[0].mxu0 %v6116
      %v6269 = vpop.f32.mrb[0].mxu0
      %v6270 = vadd.f32 %v6197, %v6269
      %v6271 = vpop.f32.mrb[0].mxu0
      %v6272 = vadd.f32 %v6199, %v6271
      %v6273 = vpop.f32.mrb[0].mxu0
      %v6274 = vadd.f32 %v6201, %v6273
      %v6275 = vpop.f32.mrb[0].mxu0
      %v6276 = vadd.f32 %v6203, %v6275
      %6277 = vmatprep.mubr.bf16.mxu0 %v6122
      %6278 = vmatmul.mubr.bf16.gmra.mrb[0].mxu0 %v6121
      %v6279 = vpop.f32.mrb[0].mxu0
      %v6280 = vadd.f32 %v6207, %v6279
      %v6281 = vpop.f32.mrb[0].mxu0
      %v6282 = vadd.f32 %v6209, %v6281
      %v6283 = vpop.f32.mrb[0].mxu0
      %v6284 = vadd.f32 %v6211, %v6283
      %v6285 = vpop.f32.mrb[0].mxu0
      %v6286 = vadd.f32 %v6213, %v6285
      %6287 = vmatprep.mubr.bf16.mxu0 %v6127
      %6288 = vmatmul.mubr.bf16.gmra.mrb[0].mxu0 %v6126
      %v6289 = vpop.f32.mrb[0].mxu0
      %v6290 = vadd.f32 %v6217, %v6289
      %v6291 = vpop.f32.mrb[0].mxu0
      %v6292 = vadd.f32 %v6219, %v6291
      %v6293 = vpop.f32.mrb[0].mxu0
      %v6294 = vadd.f32 %v6221, %v6293
      %v6295 = vpop.f32.mrb[0].mxu0
      %v6296 = vadd.f32 %v6223, %v6295
      %6297 = vmatprep.mubr.bf16.mxu0 %v6132
      %6298 = vmatmul.mubr.bf16.gmra.mrb[0].mxu0 %v6131
      %v6299 = vpop.f32.mrb[0].mxu0
      %v6300 = vadd.f32 %v6227, %v6299
      %v6301 = vpop.f32.mrb[0].mxu0
      %v6302 = vadd.f32 %v6229, %v6301
      %v6303 = vpop.f32.mrb[0].mxu0
      %v6304 = vadd.f32 %v6231, %v6303
      %v6305 = vpop.f32.mrb[0].mxu0
      %v6306 = vadd.f32 %v6233, %v6305
      %6307 = vdwg.mxu0
      %6308 = vmatprep.subr.bf16.mxu0 %v6043
      %6309 = vmatpush1.bf16.msra.mxu0 %v6042
      %6310 = vmatprep.subr.bf16.mxu0 %v6045
      %6311 = vmatpush1.bf16.msra.mxu0 %v6044
      %6312 = vmatprep.subr.bf16.mxu0 %v6047
      %6313 = vmatpush1.bf16.msra.mxu0 %v6046
      %6314 = vmatprep.subr.bf16.mxu0 %v6049
      %6315 = vmatpush1.bf16.msra.mxu0 %v6048
      %6316 = vmatprep.subr.bf16.mxu0 0
      %6317 = vmatpush1.bf16.msra.mxu0 0
      %6318 = vmatprep.subr.bf16.mxu0 0
      %6319 = vmatpush1.bf16.msra.mxu0 0
      %6320 = vmatprep.subr.bf16.mxu0 0
      %6321 = vmatpush1.bf16.msra.mxu0 0
      %6322 = vmatprep.subr.bf16.mxu0 0
      %6323 = vmatpush1.bf16.msra.mxu0 0
      %6324 = vmatprep.subr.bf16.mxu0 0
      %6325 = vmatpush1.bf16.msra.mxu0 0
      %6326 = vmatprep.subr.bf16.mxu0 0
      %6327 = vmatpush1.bf16.msra.mxu0 0
      %6328 = vmatprep.subr.bf16.mxu0 0
      %6329 = vmatpush1.bf16.msra.mxu0 0
      %6330 = vmatprep.subr.bf16.mxu0 0
      %6331 = vmatpush1.bf16.msra.mxu0 0
      %6332 = vmatprep.subr.bf16.mxu0 0
      %6333 = vmatpush1.bf16.msra.mxu0 0
      %6334 = vmatprep.subr.bf16.mxu0 0
      %6335 = vmatpush1.bf16.msra.mxu0 0
      %6336 = vmatprep.subr.bf16.mxu0 0
      %6337 = vmatpush1.bf16.msra.mxu0 0
      %6338 = vmatprep.subr.bf16.mxu0 0
      %6339 = vmatpush1.bf16.msra.mxu0 0
      %6340 = vmatprep.mubr.bf16.mxu0 0
      %6341 = vmatmul.mubr.bf16.gmra.mrb[0].mxu0 %v6151
      %v6342 = vpop.f32.mrb[0].mxu0
      %v6343 = vadd.f32 %v6270, %v6342
      %v6344 = vpop.f32.mrb[0].mxu0
      %v6345 = vadd.f32 %v6272, %v6344
      %v6346 = vpop.f32.mrb[0].mxu0
      %v6347 = vadd.f32 %v6274, %v6346
      %v6348 = vpop.f32.mrb[0].mxu0
      %v6349 = vadd.f32 %v6276, %v6348
      %6350 = vmatprep.mubr.bf16.mxu0 0
      %6351 = vmatmul.mubr.bf16.gmra.mrb[0].mxu0 %v6154
      %v6352 = vpop.f32.mrb[0].mxu0
      %v6353 = vadd.f32 %v6280, %v6352
      %v6354 = vpop.f32.mrb[0].mxu0
      %v6355 = vadd.f32 %v6282, %v6354
      %v6356 = vpop.f32.mrb[0].mxu0
      %v6357 = vadd.f32 %v6284, %v6356
      %v6358 = vpop.f32.mrb[0].mxu0
      %v6359 = vadd.f32 %v6286, %v6358
      %6360 = vmatprep.mubr.bf16.mxu0 0
      %6361 = vmatmul.mubr.bf16.gmra.mrb[0].mxu0 %v6157
      %v6362 = vpop.f32.mrb[0].mxu0
      %v6363 = vadd.f32 %v6290, %v6362
      %v6364 = vpop.f32.mrb[0].mxu0
      %v6365 = vadd.f32 %v6292, %v6364
      %v6366 = vpop.f32.mrb[0].mxu0
      %v6367 = vadd.f32 %v6294, %v6366
      %v6368 = vpop.f32.mrb[0].mxu0
      %v6369 = vadd.f32 %v6296, %v6368
      %6370 = vmatprep.mubr.bf16.mxu0 0
      %6371 = vmatmul.mubr.bf16.gmra.mrb[0].mxu0 %v6160
      %v6372 = vpop.f32.mrb[0].mxu0
      %v6373 = vadd.f32 %v6300, %v6372
      %v6374 = vpop.f32.mrb[0].mxu0
      %v6375 = vadd.f32 %v6302, %v6374
      %v6376 = vpop.f32.mrb[0].mxu0
      %v6377 = vadd.f32 %v6304, %v6376
      %v6378 = vpop.f32.mrb[0].mxu0
      %v6379 = vadd.f32 %v6306, %v6378
      %6380 = vdwg.mxu0
      %s6381 = scalar_lea.vmem %s3, 192
      %v6382 = vld [vmem:[%s6381] sm:$0xff]
      %v6383 = vld [vmem:[%s6381 + $0x8] sm:$0xff]
      %v6384 = vld [vmem:[%s6381 + $0x10] sm:$0xff]
      %v6385 = vld [vmem:[%s6381 + $0x18] sm:$0xff]
      %v6386 = vld [vmem:[%s6381 + $0x20] sm:$0xff]
      %v6387 = vld [vmem:[%s6381 + $0x28] sm:$0xff]
      %v6388 = vld [vmem:[%s6381 + $0x30] sm:$0xff]
      %v6389 = vld [vmem:[%s6381 + $0x38] sm:$0xff]
      %6391 = vset.pattern.permute.xlu0 0
      %6392 = vperm.xlu0 %6391, %v6382
      %v6393 = vpop.permute.xlu0 %6392
      %6396 = vset.pattern.permute.xlu0 0
      %6397 = vperm.xlu0 %6396, %v6383
      %v6398 = vpop.permute.xlu0 %6397
      %6401 = vset.pattern.permute.xlu0 0
      %6402 = vperm.xlu0 %6401, %v6384
      %v6403 = vpop.permute.xlu0 %6402
      %6406 = vset.pattern.permute.xlu0 0
      %6407 = vperm.xlu0 %6406, %v6385
      %v6408 = vpop.permute.xlu0 %6407
      %6411 = vset.pattern.permute.xlu0 0
      %6412 = vperm.xlu0 %6411, %v6386
      %v6413 = vpop.permute.xlu0 %6412
      %6416 = vset.pattern.permute.xlu0 0
      %6417 = vperm.xlu0 %6416, %v6387
      %v6418 = vpop.permute.xlu0 %6417
      %6421 = vset.pattern.permute.xlu0 0
      %6422 = vperm.xlu0 %6421, %v6388
      %v6423 = vpop.permute.xlu0 %6422
      %6426 = vset.pattern.permute.xlu0 0
      %6427 = vperm.xlu0 %6426, %v6389
      %v6428 = vpop.permute.xlu0 %6427
      %v6430 = vmul.f32 %v6343, %v6393
      %v6431 = vmul.f32 %v6345, %v6393
      %v6432 = vmul.f32 %v6347, %v6398
      %v6433 = vmul.f32 %v6349, %v6398
      %v6434 = vmul.f32 %v6353, %v6403
      %v6435 = vmul.f32 %v6355, %v6403
      %v6436 = vmul.f32 %v6357, %v6408
      %v6437 = vmul.f32 %v6359, %v6408
      %v6438 = vmul.f32 %v6363, %v6413
      %v6439 = vmul.f32 %v6365, %v6413
      %v6440 = vmul.f32 %v6367, %v6418
      %v6441 = vmul.f32 %v6369, %v6418
      %v6442 = vmul.f32 %v6373, %v6423
      %v6443 = vmul.f32 %v6375, %v6423
      %v6444 = vmul.f32 %v6377, %v6428
      %v6445 = vmul.f32 %v6379, %v6428
      %s6446 = scalar_lea.vmem %s4, 192
      %v6447 = vld [vmem:[%s6446] sm:$0xff]
      %v6448 = vld [vmem:[%s6446 + $0x8] sm:$0xff]
      %v6449 = vld [vmem:[%s6446 + $0x10] sm:$0xff]
      %v6450 = vld [vmem:[%s6446 + $0x18] sm:$0xff]
      %v6451 = vld [vmem:[%s6446 + $0x20] sm:$0xff]
      %v6452 = vld [vmem:[%s6446 + $0x28] sm:$0xff]
      %v6453 = vld [vmem:[%s6446 + $0x30] sm:$0xff]
      %v6454 = vld [vmem:[%s6446 + $0x38] sm:$0xff]
      %6456 = vset.pattern.permute.xlu0 0
      %6457 = vperm.xlu0 %6456, %v6447
      %v6458 = vpop.permute.xlu0 %6457
      %6461 = vset.pattern.permute.xlu0 0
      %6462 = vperm.xlu0 %6461, %v6448
      %v6463 = vpop.permute.xlu0 %6462
      %6466 = vset.pattern.permute.xlu0 0
      %6467 = vperm.xlu0 %6466, %v6449
      %v6468 = vpop.permute.xlu0 %6467
      %6471 = vset.pattern.permute.xlu0 0
      %6472 = vperm.xlu0 %6471, %v6450
      %v6473 = vpop.permute.xlu0 %6472
      %6476 = vset.pattern.permute.xlu0 0
      %6477 = vperm.xlu0 %6476, %v6451
      %v6478 = vpop.permute.xlu0 %6477
      %6481 = vset.pattern.permute.xlu0 0
      %6482 = vperm.xlu0 %6481, %v6452
      %v6483 = vpop.permute.xlu0 %6482
      %6486 = vset.pattern.permute.xlu0 0
      %6487 = vperm.xlu0 %6486, %v6453
      %v6488 = vpop.permute.xlu0 %6487
      %6491 = vset.pattern.permute.xlu0 0
      %6492 = vperm.xlu0 %6491, %v6454
      %v6493 = vpop.permute.xlu0 %6492
      %v6495 = vadd.f32 %v6430, %v6458
      %v6496 = vadd.f32 %v6431, %v6458
      %v6497 = vadd.f32 %v6432, %v6463
      %v6498 = vadd.f32 %v6433, %v6463
      %v6499 = vadd.f32 %v6434, %v6468
      %v6500 = vadd.f32 %v6435, %v6468
      %v6501 = vadd.f32 %v6436, %v6473
      %v6502 = vadd.f32 %v6437, %v6473
      %v6503 = vadd.f32 %v6438, %v6478
      %v6504 = vadd.f32 %v6439, %v6478
      %v6505 = vadd.f32 %v6440, %v6483
      %v6506 = vadd.f32 %v6441, %v6483
      %v6507 = vadd.f32 %v6442, %v6488
      %v6508 = vadd.f32 %v6443, %v6488
      %v6509 = vadd.f32 %v6444, %v6493
      %v6510 = vadd.f32 %v6445, %v6493
      %v6511 = vmax.f32 %v6495, 0.0
      %v6512 = vmax.f32 %v6496, 0.0
      %v6513 = vmax.f32 %v6497, 0.0
      %v6514 = vmax.f32 %v6498, 0.0
      %v6515 = vmax.f32 %v6499, 0.0
      %v6516 = vmax.f32 %v6500, 0.0
      %v6517 = vmax.f32 %v6501, 0.0
      %v6518 = vmax.f32 %v6502, 0.0
      %v6519 = vmax.f32 %v6503, 0.0
      %v6520 = vmax.f32 %v6504, 0.0
      %v6521 = vmax.f32 %v6505, 0.0
      %v6522 = vmax.f32 %v6506, 0.0
      %v6523 = vmax.f32 %v6507, 0.0
      %v6524 = vmax.f32 %v6508, 0.0
      %v6525 = vmax.f32 %v6509, 0.0
      %v6526 = vmax.f32 %v6510, 0.0
      %v6527 = vadd.f32 %v6511, %v3443
      %v6528 = vadd.f32 %v6512, %v3444
      %v6529 = vadd.f32 %v6513, %v3445
      %v6530 = vadd.f32 %v6514, %v3446
      %v6531 = vadd.f32 %v6515, %v3447
      %v6532 = vadd.f32 %v6516, %v3448
      %v6533 = vadd.f32 %v6517, %v3449
      %v6534 = vadd.f32 %v6518, %v3450
      %v6535 = vadd.f32 %v6519, %v3451
      %v6536 = vadd.f32 %v6520, %v3452
      %v6537 = vadd.f32 %v6521, %v3453
      %v6538 = vadd.f32 %v6522, %v3454
      %v6539 = vadd.f32 %v6523, %v3455
      %v6540 = vadd.f32 %v6524, %v3456
      %v6541 = vadd.f32 %v6525, %v3457
      %v6542 = vadd.f32 %v6526, %v3458
      %v6543 = vmax.f32 %v6527, %v6528
      %6544 = vmax.xlane.f32.xlu0 %v6543
      %v6545 = vpop.xlane.xlu0 %6544
      %v6546 = vmax.f32 %v6529, %v6530
      %6547 = vmax.xlane.f32.xlu0 %v6546
      %v6548 = vpop.xlane.xlu0 %6547
      %v6549 = vmax.f32 %v6531, %v6532
      %6550 = vmax.xlane.f32.xlu0 %v6549
      %v6551 = vpop.xlane.xlu0 %6550
      %v6552 = vmax.f32 %v6533, %v6534
      %6553 = vmax.xlane.f32.xlu0 %v6552
      %v6554 = vpop.xlane.xlu0 %6553
      %v6555 = vmax.f32 %v6535, %v6536
      %6556 = vmax.xlane.f32.xlu0 %v6555
      %v6557 = vpop.xlane.xlu0 %6556
      %v6558 = vmax.f32 %v6537, %v6538
      %6559 = vmax.xlane.f32.xlu0 %v6558
      %v6560 = vpop.xlane.xlu0 %6559
      %v6561 = vmax.f32 %v6539, %v6540
      %6562 = vmax.xlane.f32.xlu0 %v6561
      %v6563 = vpop.xlane.xlu0 %6562
      %v6564 = vmax.f32 %v6541, %v6542
      %6565 = vmax.xlane.f32.xlu0 %v6564
      %v6566 = vpop.xlane.xlu0 %6565
      %v6567 = vsub.f32 0.0, %v6545
      %v6568 = vsub.f32 0.0, %v6548
      %v6569 = vsub.f32 0.0, %v6551
      %v6570 = vsub.f32 0.0, %v6554
      %v6571 = vsub.f32 0.0, %v6557
      %v6572 = vsub.f32 0.0, %v6560
      %v6573 = vsub.f32 0.0, %v6563
      %v6574 = vsub.f32 0.0, %v6566
      %v6575 = vmul.f32 %v6567, 1.442695
      %v6576 = vpow.pop %v6575
      %v6577 = vmul.f32 %v6568, 1.442695
      %v6578 = vpow.pop %v6577
      %v6579 = vmul.f32 %v6569, 1.442695
      %v6580 = vpow.pop %v6579
      %v6581 = vmul.f32 %v6570, 1.442695
      %v6582 = vpow.pop %v6581
      %v6583 = vmul.f32 %v6571, 1.442695
      %v6584 = vpow.pop %v6583
      %v6585 = vmul.f32 %v6572, 1.442695
      %v6586 = vpow.pop %v6585
      %v6587 = vmul.f32 %v6573, 1.442695
      %v6588 = vpow.pop %v6587
      %v6589 = vmul.f32 %v6574, 1.442695
      %v6590 = vpow.pop %v6589
      %v6591 = vadd.f32 %v6576, 1.0
      %v6592 = vadd.f32 %v6578, 1.0
      %v6593 = vadd.f32 %v6580, 1.0
      %v6594 = vadd.f32 %v6582, 1.0
      %v6595 = vadd.f32 %v6584, 1.0
      %v6596 = vadd.f32 %v6586, 1.0
      %v6597 = vadd.f32 %v6588, 1.0
      %v6598 = vadd.f32 %v6590, 1.0
      %v6599 = vrcp.pop %v6591
      %v6600 = vmul.f32 1.0, %v6599
      %v6601 = vrcp.pop %v6592
      %v6602 = vmul.f32 1.0, %v6601
      %v6603 = vrcp.pop %v6593
      %v6604 = vmul.f32 1.0, %v6603
      %v6605 = vrcp.pop %v6594
      %v6606 = vmul.f32 1.0, %v6605
      %v6607 = vrcp.pop %v6595
      %v6608 = vmul.f32 1.0, %v6607
      %v6609 = vrcp.pop %v6596
      %v6610 = vmul.f32 1.0, %v6609
      %v6611 = vrcp.pop %v6597
      %v6612 = vmul.f32 1.0, %v6611
      %v6613 = vrcp.pop %v6598
      %v6614 = vmul.f32 1.0, %v6613
      %v6615 = vmul.f32 %v3427, %v6600
      %v6616 = vmul.f32 %v3428, %v6600
      %v6617 = vmul.f32 %v3429, %v6602
      %v6618 = vmul.f32 %v3430, %v6602
      %v6619 = vmul.f32 %v3431, %v6604
      %v6620 = vmul.f32 %v3432, %v6604
      %v6621 = vmul.f32 %v3433, %v6606
      %v6622 = vmul.f32 %v3434, %v6606
      %v6623 = vmul.f32 %v3435, %v6608
      %v6624 = vmul.f32 %v3436, %v6608
      %v6625 = vmul.f32 %v3437, %v6610
      %v6626 = vmul.f32 %v3438, %v6610
      %v6627 = vmul.f32 %v3439, %v6612
      %v6628 = vmul.f32 %v3440, %v6612
      %v6629 = vmul.f32 %v3441, %v6614
      %v6630 = vmul.f32 %v3442, %v6614
      %6631 = vst [vmem:[#allocation2 + $0x8] sm:$0xff] %v6615
      %6632 = vst [vmem:[#allocation2 + $0x10] sm:$0xff] %v6616
      %6633 = vst [vmem:[#allocation2 + $0x28] sm:$0xff] %v6617
      %6634 = vst [vmem:[#allocation2 + $0x30] sm:$0xff] %v6618
      %6635 = vst [vmem:[#allocation2 + $0x48] sm:$0xff] %v6619
      %6636 = vst [vmem:[#allocation2 + $0x50] sm:$0xff] %v6620
      %6637 = vst [vmem:[#allocation2 + $0x68] sm:$0xff] %v6621
      %6638 = vst [vmem:[#allocation2 + $0x70] sm:$0xff] %v6622
      %6639 = vst [vmem:[#allocation2 + $0x88] sm:$0xff] %v6623
      %6640 = vst [vmem:[#allocation2 + $0x90] sm:$0xff] %v6624
      %6641 = vst [vmem:[#allocation2 + $0xa8] sm:$0xff] %v6625
      %6642 = vst [vmem:[#allocation2 + $0xb0] sm:$0xff] %v6626
      %6643 = vst [vmem:[#allocation2 + $0xc8] sm:$0xff] %v6627
      %6644 = vst [vmem:[#allocation2 + $0xd0] sm:$0xff] %v6628
      %6645 = vst [vmem:[#allocation2 + $0xe8] sm:$0xff] %v6629
      %6646 = vst [vmem:[#allocation2 + $0xf0] sm:$0xff] %v6630
      %v6647 = vld [vmem:[#allocation2] sm:$0xff]
      %v6648 = vld [vmem:[#allocation2 + $0x8] sm:$0xff]
      %v6649 = vld [vmem:[#allocation2 + $0x10] sm:$0xff]
      %v6650 = vld [vmem:[#allocation2 + $0x20] sm:$0xff]
      %v6651 = vld [vmem:[#allocation2 + $0x28] sm:$0xff]
      %v6652 = vld [vmem:[#allocation2 + $0x30] sm:$0xff]
      %v6653 = vld [vmem:[#allocation2 + $0x40] sm:$0xff]
      %v6654 = vld [vmem:[#allocation2 + $0x48] sm:$0xff]
      %v6655 = vld [vmem:[#allocation2 + $0x50] sm:$0xff]
      %v6656 = vld [vmem:[#allocation2 + $0x60] sm:$0xff]
      %v6657 = vld [vmem:[#allocation2 + $0x68] sm:$0xff]
      %v6658 = vld [vmem:[#allocation2 + $0x70] sm:$0xff]
      %v6659 = vld [vmem:[#allocation2 + $0x80] sm:$0xff]
      %v6660 = vld [vmem:[#allocation2 + $0x88] sm:$0xff]
      %v6661 = vld [vmem:[#allocation2 + $0x90] sm:$0xff]
      %v6662 = vld [vmem:[#allocation2 + $0xa0] sm:$0xff]
      %v6663 = vld [vmem:[#allocation2 + $0xa8] sm:$0xff]
      %v6664 = vld [vmem:[#allocation2 + $0xb0] sm:$0xff]
      %v6665 = vld [vmem:[#allocation2 + $0xc0] sm:$0xff]
      %v6666 = vld [vmem:[#allocation2 + $0xc8] sm:$0xff]
      %v6667 = vld [vmem:[#allocation2 + $0xd0] sm:$0xff]
      %v6668 = vld [vmem:[#allocation2 + $0xe0] sm:$0xff]
      %v6669 = vld [vmem:[#allocation2 + $0xe8] sm:$0xff]
      %v6670 = vld [vmem:[#allocation2 + $0xf0] sm:$0xff]
      %v6671 = vmul.f32 %v6647, %v338
      %v6672 = vmul.f32 %v6648, %v342
      %v6673 = vmul.f32 %v6649, %v340
      %v6674 = vmul.f32 %v6650, %v338
      %v6675 = vmul.f32 %v6651, %v342
      %v6676 = vmul.f32 %v6652, %v340
      %v6677 = vmul.f32 %v6653, %v338
      %v6678 = vmul.f32 %v6654, %v342
      %v6679 = vmul.f32 %v6655, %v340
      %v6680 = vmul.f32 %v6656, %v338
      %v6681 = vmul.f32 %v6657, %v342
      %v6682 = vmul.f32 %v6658, %v340
      %v6683 = vmul.f32 %v6659, %v338
      %v6684 = vmul.f32 %v6660, %v342
      %v6685 = vmul.f32 %v6661, %v340
      %v6686 = vmul.f32 %v6662, %v338
      %v6687 = vmul.f32 %v6663, %v342
      %v6688 = vmul.f32 %v6664, %v340
      %v6689 = vmul.f32 %v6665, %v338
      %v6690 = vmul.f32 %v6666, %v342
      %v6691 = vmul.f32 %v6667, %v340
      %v6692 = vmul.f32 %v6668, %v338
      %v6693 = vmul.f32 %v6669, %v342
      %v6694 = vmul.f32 %v6670, %v340
      %v6695 = vpack.c.bf16 %v6674, %v6671
      %v6696 = vpack.c.bf16 %v6675, %v6672
      %v6697 = vpack.c.bf16 %v6676, %v6673
      %v6698 = vpack.c.bf16 %v6680, %v6677
      %v6699 = vpack.c.bf16 %v6681, %v6678
      %v6700 = vpack.c.bf16 %v6682, %v6679
      %v6701 = vpack.c.bf16 %v6686, %v6683
      %v6702 = vpack.c.bf16 %v6687, %v6684
      %v6703 = vpack.c.bf16 %v6688, %v6685
      %v6704 = vpack.c.bf16 %v6692, %v6689
      %v6705 = vpack.c.bf16 %v6693, %v6690
      %v6706 = vpack.c.bf16 %v6694, %v6691
      %6719 = vrot.lane.b32.xlu0 %v6695, 17
      %v6720 = vpop.permute.xlu0 %6719
      %6721 = vrot.lane.b32.xlu0 %v6696, 17
      %v6722 = vpop.permute.xlu0 %6721
      %6723 = vrot.lane.b32.xlu0 %v6697, 17
      %v6724 = vpop.permute.xlu0 %6723
      %6725 = vrot.lane.b32.xlu0 %v6698, 17
      %v6726 = vpop.permute.xlu0 %6725
      %6727 = vrot.lane.b32.xlu0 %v6699, 17
      %v6728 = vpop.permute.xlu0 %6727
      %6729 = vrot.lane.b32.xlu0 %v6700, 17
      %v6730 = vpop.permute.xlu0 %6729
      %6731 = vrot.lane.b32.xlu0 %v6701, 17
      %v6732 = vpop.permute.xlu0 %6731
      %6733 = vrot.lane.b32.xlu0 %v6702, 17
      %v6734 = vpop.permute.xlu0 %6733
      %6735 = vrot.lane.b32.xlu0 %v6703, 17
      %v6736 = vpop.permute.xlu0 %6735
      %6737 = vrot.lane.b32.xlu0 %v6704, 17
      %v6738 = vpop.permute.xlu0 %6737
      %6739 = vrot.lane.b32.xlu0 %v6705, 17
      %v6740 = vpop.permute.xlu0 %6739
      %6741 = vrot.lane.b32.xlu0 %v6706, 17
      %v6742 = vpop.permute.xlu0 %6741
      %v6743 = vsel %vm418, %v6720, %v6722
      %v6744 = vsel %vm418, %v6722, %v6724
      %v6745 = vsel %vm418, %v6726, %v6728
      %v6746 = vsel %vm418, %v6728, %v6730
      %v6747 = vsel %vm418, %v6732, %v6734
      %v6748 = vsel %vm418, %v6734, %v6736
      %v6749 = vsel %vm418, %v6738, %v6740
      %v6750 = vsel %vm418, %v6740, %v6742
      %6759 = vst [vmem:[#allocation3] sm:$0xff] %v6743
      %6760 = vst [vmem:[#allocation3 + $0x8] sm:$0xff] %v6744
      %6761 = vst [vmem:[#allocation3 + $0x10] sm:$0xff] %v6745
      %6762 = vst [vmem:[#allocation3 + $0x18] sm:$0xff] %v6746
      %6763 = vst [vmem:[#allocation3 + $0x20] sm:$0xff] %v6747
      %6764 = vst [vmem:[#allocation3 + $0x28] sm:$0xff] %v6748
      %6765 = vst [vmem:[#allocation3 + $0x30] sm:$0xff] %v6749
      %6766 = vst [vmem:[#allocation3 + $0x38] sm:$0xff] %v6750
      %v6767 = vld [vmem:[#allocation2] sm:$0xff]
      %v6768 = vld [vmem:[#allocation2 + $0x8] sm:$0xff]
      %v6769 = vld [vmem:[#allocation2 + $0x10] sm:$0xff]
      %v6770 = vld [vmem:[#allocation2 + $0x20] sm:$0xff]
      %v6771 = vld [vmem:[#allocation2 + $0x28] sm:$0xff]
      %v6772 = vld [vmem:[#allocation2 + $0x30] sm:$0xff]
      %v6773 = vld [vmem:[#allocation2 + $0x40] sm:$0xff]
      %v6774 = vld [vmem:[#allocation2 + $0x48] sm:$0xff]
      %v6775 = vld [vmem:[#allocation2 + $0x50] sm:$0xff]
      %v6776 = vld [vmem:[#allocation2 + $0x60] sm:$0xff]
      %v6777 = vld [vmem:[#allocation2 + $0x68] sm:$0xff]
      %v6778 = vld [vmem:[#allocation2 + $0x70] sm:$0xff]
      %v6779 = vld [vmem:[#allocation2 + $0x80] sm:$0xff]
      %v6780 = vld [vmem:[#allocation2 + $0x88] sm:$0xff]
      %v6781 = vld [vmem:[#allocation2 + $0x90] sm:$0xff]
      %v6782 = vld [vmem:[#allocation2 + $0xa0] sm:$0xff]
      %v6783 = vld [vmem:[#allocation2 + $0xa8] sm:$0xff]
      %v6784 = vld [vmem:[#allocation2 + $0xb0] sm:$0xff]
      %v6785 = vld [vmem:[#allocation2 + $0xc0] sm:$0xff]
      %v6786 = vld [vmem:[#allocation2 + $0xc8] sm:$0xff]
      %v6787 = vld [vmem:[#allocation2 + $0xd0] sm:$0xff]
      %v6788 = vld [vmem:[#allocation2 + $0xe0] sm:$0xff]
      %v6789 = vld [vmem:[#allocation2 + $0xe8] sm:$0xff]
      %v6790 = vld [vmem:[#allocation2 + $0xf0] sm:$0xff]
      %v6791 = vpack.c.bf16 %v6770, %v6767
      %v6792 = vpack.c.bf16 %v6771, %v6768
      %v6793 = vpack.c.bf16 %v6772, %v6769
      %v6794 = vpack.c.bf16 %v6776, %v6773
      %v6795 = vpack.c.bf16 %v6777, %v6774
      %v6796 = vpack.c.bf16 %v6778, %v6775
      %v6797 = vpack.c.bf16 %v6782, %v6779
      %v6798 = vpack.c.bf16 %v6783, %v6780
      %v6799 = vpack.c.bf16 %v6784, %v6781
      %v6800 = vpack.c.bf16 %v6788, %v6785
      %v6801 = vpack.c.bf16 %v6789, %v6786
      %v6802 = vpack.c.bf16 %v6790, %v6787
      %6815 = vrot.lane.b32.xlu0 %v6791, 16
      %v6816 = vpop.permute.xlu0 %6815
      %6817 = vrot.lane.b32.xlu0 %v6792, 16
      %v6818 = vpop.permute.xlu0 %6817
      %6819 = vrot.lane.b32.xlu0 %v6793, 16
      %v6820 = vpop.permute.xlu0 %6819
      %6821 = vrot.lane.b32.xlu0 %v6794, 16
      %v6822 = vpop.permute.xlu0 %6821
      %6823 = vrot.lane.b32.xlu0 %v6795, 16
      %v6824 = vpop.permute.xlu0 %6823
      %6825 = vrot.lane.b32.xlu0 %v6796, 16
      %v6826 = vpop.permute.xlu0 %6825
      %6827 = vrot.lane.b32.xlu0 %v6797, 16
      %v6828 = vpop.permute.xlu0 %6827
      %6829 = vrot.lane.b32.xlu0 %v6798, 16
      %v6830 = vpop.permute.xlu0 %6829
      %6831 = vrot.lane.b32.xlu0 %v6799, 16
      %v6832 = vpop.permute.xlu0 %6831
      %6833 = vrot.lane.b32.xlu0 %v6800, 16
      %v6834 = vpop.permute.xlu0 %6833
      %6835 = vrot.lane.b32.xlu0 %v6801, 16
      %v6836 = vpop.permute.xlu0 %6835
      %6837 = vrot.lane.b32.xlu0 %v6802, 16
      %v6838 = vpop.permute.xlu0 %6837
      %v6839 = vsel %vm515, %v6816, %v6818
      %v6840 = vsel %vm515, %v6818, %v6820
      %v6841 = vsel %vm515, %v6822, %v6824
      %v6842 = vsel %vm515, %v6824, %v6826
      %v6843 = vsel %vm515, %v6828, %v6830
      %v6844 = vsel %vm515, %v6830, %v6832
      %v6845 = vsel %vm515, %v6834, %v6836
      %v6846 = vsel %vm515, %v6836, %v6838
      %6855 = vst [vmem:[#allocation3 + $0x40] sm:$0xff] %v6839
      %6856 = vst [vmem:[#allocation3 + $0x48] sm:$0xff] %v6840
      %6857 = vst [vmem:[#allocation3 + $0x50] sm:$0xff] %v6841
      %6858 = vst [vmem:[#allocation3 + $0x58] sm:$0xff] %v6842
      %6859 = vst [vmem:[#allocation3 + $0x60] sm:$0xff] %v6843
      %6860 = vst [vmem:[#allocation3 + $0x68] sm:$0xff] %v6844
      %6861 = vst [vmem:[#allocation3 + $0x70] sm:$0xff] %v6845
      %6862 = vst [vmem:[#allocation3 + $0x78] sm:$0xff] %v6846
      %v6863 = vld [vmem:[#allocation2] sm:$0xff]
      %v6864 = vld [vmem:[#allocation2 + $0x8] sm:$0xff]
      %v6865 = vld [vmem:[#allocation2 + $0x10] sm:$0xff]
      %v6866 = vld [vmem:[#allocation2 + $0x20] sm:$0xff]
      %v6867 = vld [vmem:[#allocation2 + $0x28] sm:$0xff]
      %v6868 = vld [vmem:[#allocation2 + $0x30] sm:$0xff]
      %v6869 = vld [vmem:[#allocation2 + $0x40] sm:$0xff]
      %v6870 = vld [vmem:[#allocation2 + $0x48] sm:$0xff]
      %v6871 = vld [vmem:[#allocation2 + $0x50] sm:$0xff]
      %v6872 = vld [vmem:[#allocation2 + $0x60] sm:$0xff]
      %v6873 = vld [vmem:[#allocation2 + $0x68] sm:$0xff]
      %v6874 = vld [vmem:[#allocation2 + $0x70] sm:$0xff]
      %v6875 = vld [vmem:[#allocation2 + $0x80] sm:$0xff]
      %v6876 = vld [vmem:[#allocation2 + $0x88] sm:$0xff]
      %v6877 = vld [vmem:[#allocation2 + $0x90] sm:$0xff]
      %v6878 = vld [vmem:[#allocation2 + $0xa0] sm:$0xff]
      %v6879 = vld [vmem:[#allocation2 + $0xa8] sm:$0xff]
      %v6880 = vld [vmem:[#allocation2 + $0xb0] sm:$0xff]
      %v6881 = vld [vmem:[#allocation2 + $0xc0] sm:$0xff]
      %v6882 = vld [vmem:[#allocation2 + $0xc8] sm:$0xff]
      %v6883 = vld [vmem:[#allocation2 + $0xd0] sm:$0xff]
      %v6884 = vld [vmem:[#allocation2 + $0xe0] sm:$0xff]
      %v6885 = vld [vmem:[#allocation2 + $0xe8] sm:$0xff]
      %v6886 = vld [vmem:[#allocation2 + $0xf0] sm:$0xff]
      %v6887 = vmul.f32 %v6863, %v567
      %v6888 = vmul.f32 %v6864, %v571
      %v6889 = vmul.f32 %v6865, %v569
      %v6890 = vmul.f32 %v6866, %v567
      %v6891 = vmul.f32 %v6867, %v571
      %v6892 = vmul.f32 %v6868, %v569
      %v6893 = vmul.f32 %v6869, %v567
      %v6894 = vmul.f32 %v6870, %v571
      %v6895 = vmul.f32 %v6871, %v569
      %v6896 = vmul.f32 %v6872, %v567
      %v6897 = vmul.f32 %v6873, %v571
      %v6898 = vmul.f32 %v6874, %v569
      %v6899 = vmul.f32 %v6875, %v567
      %v6900 = vmul.f32 %v6876, %v571
      %v6901 = vmul.f32 %v6877, %v569
      %v6902 = vmul.f32 %v6878, %v567
      %v6903 = vmul.f32 %v6879, %v571
      %v6904 = vmul.f32 %v6880, %v569
      %v6905 = vmul.f32 %v6881, %v567
      %v6906 = vmul.f32 %v6882, %v571
      %v6907 = vmul.f32 %v6883, %v569
      %v6908 = vmul.f32 %v6884, %v567
      %v6909 = vmul.f32 %v6885, %v571
      %v6910 = vmul.f32 %v6886, %v569
      %v6911 = vpack.c.bf16 %v6890, %v6887
      %v6912 = vpack.c.bf16 %v6891, %v6888
      %v6913 = vpack.c.bf16 %v6892, %v6889
      %v6914 = vpack.c.bf16 %v6896, %v6893
      %v6915 = vpack.c.bf16 %v6897, %v6894
      %v6916 = vpack.c.bf16 %v6898, %v6895
      %v6917 = vpack.c.bf16 %v6902, %v6899
      %v6918 = vpack.c.bf16 %v6903, %v6900
      %v6919 = vpack.c.bf16 %v6904, %v6901
      %v6920 = vpack.c.bf16 %v6908, %v6905
      %v6921 = vpack.c.bf16 %v6909, %v6906
      %v6922 = vpack.c.bf16 %v6910, %v6907
      %6935 = vrot.lane.b32.xlu0 %v6911, 15
      %v6936 = vpop.permute.xlu0 %6935
      %6937 = vrot.lane.b32.xlu0 %v6912, 15
      %v6938 = vpop.permute.xlu0 %6937
      %6939 = vrot.lane.b32.xlu0 %v6913, 15
      %v6940 = vpop.permute.xlu0 %6939
      %6941 = vrot.lane.b32.xlu0 %v6914, 15
      %v6942 = vpop.permute.xlu0 %6941
      %6943 = vrot.lane.b32.xlu0 %v6915, 15
      %v6944 = vpop.permute.xlu0 %6943
      %6945 = vrot.lane.b32.xlu0 %v6916, 15
      %v6946 = vpop.permute.xlu0 %6945
      %6947 = vrot.lane.b32.xlu0 %v6917, 15
      %v6948 = vpop.permute.xlu0 %6947
      %6949 = vrot.lane.b32.xlu0 %v6918, 15
      %v6950 = vpop.permute.xlu0 %6949
      %6951 = vrot.lane.b32.xlu0 %v6919, 15
      %v6952 = vpop.permute.xlu0 %6951
      %6953 = vrot.lane.b32.xlu0 %v6920, 15
      %v6954 = vpop.permute.xlu0 %6953
      %6955 = vrot.lane.b32.xlu0 %v6921, 15
      %v6956 = vpop.permute.xlu0 %6955
      %6957 = vrot.lane.b32.xlu0 %v6922, 15
      %v6958 = vpop.permute.xlu0 %6957
      %v6959 = vsel %vm647, %v6936, %v6938
      %v6960 = vsel %vm647, %v6938, %v6940
      %v6961 = vsel %vm647, %v6942, %v6944
      %v6962 = vsel %vm647, %v6944, %v6946
      %v6963 = vsel %vm647, %v6948, %v6950
      %v6964 = vsel %vm647, %v6950, %v6952
      %v6965 = vsel %vm647, %v6954, %v6956
      %v6966 = vsel %vm647, %v6956, %v6958
      %6975 = vst [vmem:[#allocation3 + $0x80] sm:$0xff] %v6959
      %6976 = vst [vmem:[#allocation3 + $0x88] sm:$0xff] %v6960
      %6977 = vst [vmem:[#allocation3 + $0x90] sm:$0xff] %v6961
      %6978 = vst [vmem:[#allocation3 + $0x98] sm:$0xff] %v6962
      %6979 = vst [vmem:[#allocation3 + $0xa0] sm:$0xff] %v6963
      %6980 = vst [vmem:[#allocation3 + $0xa8] sm:$0xff] %v6964
      %6981 = vst [vmem:[#allocation3 + $0xb0] sm:$0xff] %v6965
      %6982 = vst [vmem:[#allocation3 + $0xb8] sm:$0xff] %v6966
      %v6983 = vld [vmem:[#allocation2] sm:$0xff]
      %v6984 = vld [vmem:[#allocation2 + $0x8] sm:$0xff]
      %v6985 = vld [vmem:[#allocation2 + $0x10] sm:$0xff]
      %v6986 = vld [vmem:[#allocation2 + $0x20] sm:$0xff]
      %v6987 = vld [vmem:[#allocation2 + $0x28] sm:$0xff]
      %v6988 = vld [vmem:[#allocation2 + $0x30] sm:$0xff]
      %v6989 = vld [vmem:[#allocation2 + $0x40] sm:$0xff]
      %v6990 = vld [vmem:[#allocation2 + $0x48] sm:$0xff]
      %v6991 = vld [vmem:[#allocation2 + $0x50] sm:$0xff]
      %v6992 = vld [vmem:[#allocation2 + $0x60] sm:$0xff]
      %v6993 = vld [vmem:[#allocation2 + $0x68] sm:$0xff]
      %v6994 = vld [vmem:[#allocation2 + $0x70] sm:$0xff]
      %v6995 = vld [vmem:[#allocation2 + $0x80] sm:$0xff]
      %v6996 = vld [vmem:[#allocation2 + $0x88] sm:$0xff]
      %v6997 = vld [vmem:[#allocation2 + $0x90] sm:$0xff]
      %v6998 = vld [vmem:[#allocation2 + $0xa0] sm:$0xff]
      %v6999 = vld [vmem:[#allocation2 + $0xa8] sm:$0xff]
      %v7000 = vld [vmem:[#allocation2 + $0xb0] sm:$0xff]
      %v7001 = vld [vmem:[#allocation2 + $0xc0] sm:$0xff]
      %v7002 = vld [vmem:[#allocation2 + $0xc8] sm:$0xff]
      %v7003 = vld [vmem:[#allocation2 + $0xd0] sm:$0xff]
      %v7004 = vld [vmem:[#allocation2 + $0xe0] sm:$0xff]
      %v7005 = vld [vmem:[#allocation2 + $0xe8] sm:$0xff]
      %v7006 = vld [vmem:[#allocation2 + $0xf0] sm:$0xff]
      %v7007 = vmul.f32 %v6983, %v697
      %v7008 = vmul.f32 %v6984, %v701
      %v7009 = vmul.f32 %v6985, %v699
      %v7010 = vmul.f32 %v6986, %v697
      %v7011 = vmul.f32 %v6987, %v701
      %v7012 = vmul.f32 %v6988, %v699
      %v7013 = vmul.f32 %v6989, %v697
      %v7014 = vmul.f32 %v6990, %v701
      %v7015 = vmul.f32 %v6991, %v699
      %v7016 = vmul.f32 %v6992, %v697
      %v7017 = vmul.f32 %v6993, %v701
      %v7018 = vmul.f32 %v6994, %v699
      %v7019 = vmul.f32 %v6995, %v697
      %v7020 = vmul.f32 %v6996, %v701
      %v7021 = vmul.f32 %v6997, %v699
      %v7022 = vmul.f32 %v6998, %v697
      %v7023 = vmul.f32 %v6999, %v701
      %v7024 = vmul.f32 %v7000, %v699
      %v7025 = vmul.f32 %v7001, %v697
      %v7026 = vmul.f32 %v7002, %v701
      %v7027 = vmul.f32 %v7003, %v699
      %v7028 = vmul.f32 %v7004, %v697
      %v7029 = vmul.f32 %v7005, %v701
      %v7030 = vmul.f32 %v7006, %v699
      %v7031 = vpack.c.bf16 %v7010, %v7007
      %v7032 = vpack.c.bf16 %v7011, %v7008
      %v7033 = vpack.c.bf16 %v7012, %v7009
      %v7034 = vpack.c.bf16 %v7016, %v7013
      %v7035 = vpack.c.bf16 %v7017, %v7014
      %v7036 = vpack.c.bf16 %v7018, %v7015
      %v7037 = vpack.c.bf16 %v7022, %v7019
      %v7038 = vpack.c.bf16 %v7023, %v7020
      %v7039 = vpack.c.bf16 %v7024, %v7021
      %v7040 = vpack.c.bf16 %v7028, %v7025
      %v7041 = vpack.c.bf16 %v7029, %v7026
      %v7042 = vpack.c.bf16 %v7030, %v7027
      %7055 = vrot.lane.b32.xlu0 %v7031, 1
      %v7056 = vpop.permute.xlu0 %7055
      %7057 = vrot.lane.b32.xlu0 %v7032, 1
      %v7058 = vpop.permute.xlu0 %7057
      %7059 = vrot.lane.b32.xlu0 %v7033, 1
      %v7060 = vpop.permute.xlu0 %7059
      %7061 = vrot.lane.b32.xlu0 %v7034, 1
      %v7062 = vpop.permute.xlu0 %7061
      %7063 = vrot.lane.b32.xlu0 %v7035, 1
      %v7064 = vpop.permute.xlu0 %7063
      %7065 = vrot.lane.b32.xlu0 %v7036, 1
      %v7066 = vpop.permute.xlu0 %7065
      %7067 = vrot.lane.b32.xlu0 %v7037, 1
      %v7068 = vpop.permute.xlu0 %7067
      %7069 = vrot.lane.b32.xlu0 %v7038, 1
      %v7070 = vpop.permute.xlu0 %7069
      %7071 = vrot.lane.b32.xlu0 %v7039, 1
      %v7072 = vpop.permute.xlu0 %7071
      %7073 = vrot.lane.b32.xlu0 %v7040, 1
      %v7074 = vpop.permute.xlu0 %7073
      %7075 = vrot.lane.b32.xlu0 %v7041, 1
      %v7076 = vpop.permute.xlu0 %7075
      %7077 = vrot.lane.b32.xlu0 %v7042, 1
      %v7078 = vpop.permute.xlu0 %7077
      %v7079 = vsel %vm777, %v7056, %v7058
      %v7080 = vsel %vm777, %v7058, %v7060
      %v7081 = vsel %vm777, %v7062, %v7064
      %v7082 = vsel %vm777, %v7064, %v7066
      %v7083 = vsel %vm777, %v7068, %v7070
      %v7084 = vsel %vm777, %v7070, %v7072
      %v7085 = vsel %vm777, %v7074, %v7076
      %v7086 = vsel %vm777, %v7076, %v7078
      %7095 = vst [vmem:[#allocation3 + $0xc0] sm:$0xff] %v7079
      %7096 = vst [vmem:[#allocation3 + $0xc8] sm:$0xff] %v7080
      %7097 = vst [vmem:[#allocation3 + $0xd0] sm:$0xff] %v7081
      %7098 = vst [vmem:[#allocation3 + $0xd8] sm:$0xff] %v7082
      %7099 = vst [vmem:[#allocation3 + $0xe0] sm:$0xff] %v7083
      %7100 = vst [vmem:[#allocation3 + $0xe8] sm:$0xff] %v7084
      %7101 = vst [vmem:[#allocation3 + $0xf0] sm:$0xff] %v7085
      %7102 = vst [vmem:[#allocation3 + $0xf8] sm:$0xff] %v7086
      %v7103 = vld [vmem:[#allocation2 + $0x8] sm:$0xff]
      %v7104 = vld [vmem:[#allocation2 + $0x10] sm:$0xff]
      %v7105 = vld [vmem:[#allocation2 + $0x28] sm:$0xff]
      %v7106 = vld [vmem:[#allocation2 + $0x30] sm:$0xff]
      %v7107 = vld [vmem:[#allocation2 + $0x48] sm:$0xff]
      %v7108 = vld [vmem:[#allocation2 + $0x50] sm:$0xff]
      %v7109 = vld [vmem:[#allocation2 + $0x68] sm:$0xff]
      %v7110 = vld [vmem:[#allocation2 + $0x70] sm:$0xff]
      %v7111 = vld [vmem:[#allocation2 + $0x88] sm:$0xff]
      %v7112 = vld [vmem:[#allocation2 + $0x90] sm:$0xff]
      %v7113 = vld [vmem:[#allocation2 + $0xa8] sm:$0xff]
      %v7114 = vld [vmem:[#allocation2 + $0xb0] sm:$0xff]
      %v7115 = vld [vmem:[#allocation2 + $0xc8] sm:$0xff]
      %v7116 = vld [vmem:[#allocation2 + $0xd0] sm:$0xff]
      %v7117 = vld [vmem:[#allocation2 + $0xe8] sm:$0xff]
      %v7118 = vld [vmem:[#allocation2 + $0xf0] sm:$0xff]
      %v7119 = vpack.c.bf16 %v7105, %v7103
      %v7120 = vpack.c.bf16 %v7106, %v7104
      %v7121 = vpack.c.bf16 %v7109, %v7107
      %v7122 = vpack.c.bf16 %v7110, %v7108
      %v7123 = vpack.c.bf16 %v7113, %v7111
      %v7124 = vpack.c.bf16 %v7114, %v7112
      %v7125 = vpack.c.bf16 %v7117, %v7115
      %v7126 = vpack.c.bf16 %v7118, %v7116
      %7127 = vst [vmem:[#allocation3 + $0x100] sm:$0xff] %v7119
      %7128 = vst [vmem:[#allocation3 + $0x108] sm:$0xff] %v7120
      %7129 = vst [vmem:[#allocation3 + $0x110] sm:$0xff] %v7121
      %7130 = vst [vmem:[#allocation3 + $0x118] sm:$0xff] %v7122
      %7131 = vst [vmem:[#allocation3 + $0x120] sm:$0xff] %v7123
      %7132 = vst [vmem:[#allocation3 + $0x128] sm:$0xff] %v7124
      %7133 = vst [vmem:[#allocation3 + $0x130] sm:$0xff] %v7125
      %7134 = vst [vmem:[#allocation3 + $0x138] sm:$0xff] %v7126
      %v7135 = vld [vmem:[#allocation2 + $0x8] sm:$0xff]
      %v7136 = vld [vmem:[#allocation2 + $0x10] sm:$0xff]
      %v7137 = vld [vmem:[#allocation2 + $0x18] sm:$0xff]
      %v7138 = vld [vmem:[#allocation2 + $0x28] sm:$0xff]
      %v7139 = vld [vmem:[#allocation2 + $0x30] sm:$0xff]
      %v7140 = vld [vmem:[#allocation2 + $0x38] sm:$0xff]
      %v7141 = vld [vmem:[#allocation2 + $0x48] sm:$0xff]
      %v7142 = vld [vmem:[#allocation2 + $0x50] sm:$0xff]
      %v7143 = vld [vmem:[#allocation2 + $0x58] sm:$0xff]
      %v7144 = vld [vmem:[#allocation2 + $0x68] sm:$0xff]
      %v7145 = vld [vmem:[#allocation2 + $0x70] sm:$0xff]
      %v7146 = vld [vmem:[#allocation2 + $0x78] sm:$0xff]
      %v7147 = vld [vmem:[#allocation2 + $0x88] sm:$0xff]
      %v7148 = vld [vmem:[#allocation2 + $0x90] sm:$0xff]
      %v7149 = vld [vmem:[#allocation2 + $0x98] sm:$0xff]
      %v7150 = vld [vmem:[#allocation2 + $0xa8] sm:$0xff]
      %v7151 = vld [vmem:[#allocation2 + $0xb0] sm:$0xff]
      %v7152 = vld [vmem:[#allocation2 + $0xb8] sm:$0xff]
      %v7153 = vld [vmem:[#allocation2 + $0xc8] sm:$0xff]
      %v7154 = vld [vmem:[#allocation2 + $0xd0] sm:$0xff]
      %v7155 = vld [vmem:[#allocation2 + $0xd8] sm:$0xff]
      %v7156 = vld [vmem:[#allocation2 + $0xe8] sm:$0xff]
      %v7157 = vld [vmem:[#allocation2 + $0xf0] sm:$0xff]
      %v7158 = vld [vmem:[#allocation2 + $0xf8] sm:$0xff]
      %v7159 = vmul.f32 %v7135, %v859
      %v7160 = vmul.f32 %v7136, %v863
      %v7161 = vmul.f32 %v7137, %v861
      %v7162 = vmul.f32 %v7138, %v859
      %v7163 = vmul.f32 %v7139, %v863
      %v7164 = vmul.f32 %v7140, %v861
      %v7165 = vmul.f32 %v7141, %v859
      %v7166 = vmul.f32 %v7142, %v863
      %v7167 = vmul.f32 %v7143, %v861
      %v7168 = vmul.f32 %v7144, %v859
      %v7169 = vmul.f32 %v7145, %v863
      %v7170 = vmul.f32 %v7146, %v861
      %v7171 = vmul.f32 %v7147, %v859
      %v7172 = vmul.f32 %v7148, %v863
      %v7173 = vmul.f32 %v7149, %v861
      %v7174 = vmul.f32 %v7150, %v859
      %v7175 = vmul.f32 %v7151, %v863
      %v7176 = vmul.f32 %v7152, %v861
      %v7177 = vmul.f32 %v7153, %v859
      %v7178 = vmul.f32 %v7154, %v863
      %v7179 = vmul.f32 %v7155, %v861
      %v7180 = vmul.f32 %v7156, %v859
      %v7181 = vmul.f32 %v7157, %v863
      %v7182 = vmul.f32 %v7158, %v861
      %v7183 = vpack.c.bf16 %v7162, %v7159
      %v7184 = vpack.c.bf16 %v7163, %v7160
      %v7185 = vpack.c.bf16 %v7164, %v7161
      %v7186 = vpack.c.bf16 %v7168, %v7165
      %v7187 = vpack.c.bf16 %v7169, %v7166
      %v7188 = vpack.c.bf16 %v7170, %v7167
      %v7189 = vpack.c.bf16 %v7174, %v7171
      %v7190 = vpack.c.bf16 %v7175, %v7172
      %v7191 = vpack.c.bf16 %v7176, %v7173
      %v7192 = vpack.c.bf16 %v7180, %v7177
      %v7193 = vpack.c.bf16 %v7181, %v7178
      %v7194 = vpack.c.bf16 %v7182, %v7179
      %7207 = vrot.lane.b32.xlu0 %v7183, 127
      %v7208 = vpop.permute.xlu0 %7207
      %7209 = vrot.lane.b32.xlu0 %v7184, 127
      %v7210 = vpop.permute.xlu0 %7209
      %7211 = vrot.lane.b32.xlu0 %v7185, 127
      %v7212 = vpop.permute.xlu0 %7211
      %7213 = vrot.lane.b32.xlu0 %v7186, 127
      %v7214 = vpop.permute.xlu0 %7213
      %7215 = vrot.lane.b32.xlu0 %v7187, 127
      %v7216 = vpop.permute.xlu0 %7215
      %7217 = vrot.lane.b32.xlu0 %v7188, 127
      %v7218 = vpop.permute.xlu0 %7217
      %7219 = vrot.lane.b32.xlu0 %v7189, 127
      %v7220 = vpop.permute.xlu0 %7219
      %7221 = vrot.lane.b32.xlu0 %v7190, 127
      %v7222 = vpop.permute.xlu0 %7221
      %7223 = vrot.lane.b32.xlu0 %v7191, 127
      %v7224 = vpop.permute.xlu0 %7223
      %7225 = vrot.lane.b32.xlu0 %v7192, 127
      %v7226 = vpop.permute.xlu0 %7225
      %7227 = vrot.lane.b32.xlu0 %v7193, 127
      %v7228 = vpop.permute.xlu0 %7227
      %7229 = vrot.lane.b32.xlu0 %v7194, 127
      %v7230 = vpop.permute.xlu0 %7229
      %v7231 = vsel %vm939, %v7208, %v7210
      %v7232 = vsel %vm939, %v7210, %v7212
      %v7233 = vsel %vm939, %v7214, %v7216
      %v7234 = vsel %vm939, %v7216, %v7218
      %v7235 = vsel %vm939, %v7220, %v7222
      %v7236 = vsel %vm939, %v7222, %v7224
      %v7237 = vsel %vm939, %v7226, %v7228
      %v7238 = vsel %vm939, %v7228, %v7230
      %7247 = vst [vmem:[#allocation3 + $0x140] sm:$0xff] %v7231
      %7248 = vst [vmem:[#allocation3 + $0x148] sm:$0xff] %v7232
      %7249 = vst [vmem:[#allocation3 + $0x150] sm:$0xff] %v7233
      %7250 = vst [vmem:[#allocation3 + $0x158] sm:$0xff] %v7234
      %7251 = vst [vmem:[#allocation3 + $0x160] sm:$0xff] %v7235
      %7252 = vst [vmem:[#allocation3 + $0x168] sm:$0xff] %v7236
      %7253 = vst [vmem:[#allocation3 + $0x170] sm:$0xff] %v7237
      %7254 = vst [vmem:[#allocation3 + $0x178] sm:$0xff] %v7238
      %v7255 = vld [vmem:[#allocation2 + $0x8] sm:$0xff]
      %v7256 = vld [vmem:[#allocation2 + $0x10] sm:$0xff]
      %v7257 = vld [vmem:[#allocation2 + $0x18] sm:$0xff]
      %v7258 = vld [vmem:[#allocation2 + $0x28] sm:$0xff]
      %v7259 = vld [vmem:[#allocation2 + $0x30] sm:$0xff]
      %v7260 = vld [vmem:[#allocation2 + $0x38] sm:$0xff]
      %v7261 = vld [vmem:[#allocation2 + $0x48] sm:$0xff]
      %v7262 = vld [vmem:[#allocation2 + $0x50] sm:$0xff]
      %v7263 = vld [vmem:[#allocation2 + $0x58] sm:$0xff]
      %v7264 = vld [vmem:[#allocation2 + $0x68] sm:$0xff]
      %v7265 = vld [vmem:[#allocation2 + $0x70] sm:$0xff]
      %v7266 = vld [vmem:[#allocation2 + $0x78] sm:$0xff]
      %v7267 = vld [vmem:[#allocation2 + $0x88] sm:$0xff]
      %v7268 = vld [vmem:[#allocation2 + $0x90] sm:$0xff]
      %v7269 = vld [vmem:[#allocation2 + $0x98] sm:$0xff]
      %v7270 = vld [vmem:[#allocation2 + $0xa8] sm:$0xff]
      %v7271 = vld [vmem:[#allocation2 + $0xb0] sm:$0xff]
      %v7272 = vld [vmem:[#allocation2 + $0xb8] sm:$0xff]
      %v7273 = vld [vmem:[#allocation2 + $0xc8] sm:$0xff]
      %v7274 = vld [vmem:[#allocation2 + $0xd0] sm:$0xff]
      %v7275 = vld [vmem:[#allocation2 + $0xd8] sm:$0xff]
      %v7276 = vld [vmem:[#allocation2 + $0xe8] sm:$0xff]
      %v7277 = vld [vmem:[#allocation2 + $0xf0] sm:$0xff]
      %v7278 = vld [vmem:[#allocation2 + $0xf8] sm:$0xff]
      %v7279 = vmul.f32 %v7255, %v989
      %v7280 = vmul.f32 %v7256, %v993
      %v7281 = vmul.f32 %v7257, %v991
      %v7282 = vmul.f32 %v7258, %v989
      %v7283 = vmul.f32 %v7259, %v993
      %v7284 = vmul.f32 %v7260, %v991
      %v7285 = vmul.f32 %v7261, %v989
      %v7286 = vmul.f32 %v7262, %v993
      %v7287 = vmul.f32 %v7263, %v991
      %v7288 = vmul.f32 %v7264, %v989
      %v7289 = vmul.f32 %v7265, %v993
      %v7290 = vmul.f32 %v7266, %v991
      %v7291 = vmul.f32 %v7267, %v989
      %v7292 = vmul.f32 %v7268, %v993
      %v7293 = vmul.f32 %v7269, %v991
      %v7294 = vmul.f32 %v7270, %v989
      %v7295 = vmul.f32 %v7271, %v993
      %v7296 = vmul.f32 %v7272, %v991
      %v7297 = vmul.f32 %v7273, %v989
      %v7298 = vmul.f32 %v7274, %v993
      %v7299 = vmul.f32 %v7275, %v991
      %v7300 = vmul.f32 %v7276, %v989
      %v7301 = vmul.f32 %v7277, %v993
      %v7302 = vmul.f32 %v7278, %v991
      %v7303 = vpack.c.bf16 %v7282, %v7279
      %v7304 = vpack.c.bf16 %v7283, %v7280
      %v7305 = vpack.c.bf16 %v7284, %v7281
      %v7306 = vpack.c.bf16 %v7288, %v7285
      %v7307 = vpack.c.bf16 %v7289, %v7286
      %v7308 = vpack.c.bf16 %v7290, %v7287
      %v7309 = vpack.c.bf16 %v7294, %v7291
      %v7310 = vpack.c.bf16 %v7295, %v7292
      %v7311 = vpack.c.bf16 %v7296, %v7293
      %v7312 = vpack.c.bf16 %v7300, %v7297
      %v7313 = vpack.c.bf16 %v7301, %v7298
      %v7314 = vpack.c.bf16 %v7302, %v7299
      %7327 = vrot.lane.b32.xlu0 %v7303, 113
      %v7328 = vpop.permute.xlu0 %7327
      %7329 = vrot.lane.b32.xlu0 %v7304, 113
      %v7330 = vpop.permute.xlu0 %7329
      %7331 = vrot.lane.b32.xlu0 %v7305, 113
      %v7332 = vpop.permute.xlu0 %7331
      %7333 = vrot.lane.b32.xlu0 %v7306, 113
      %v7334 = vpop.permute.xlu0 %7333
      %7335 = vrot.lane.b32.xlu0 %v7307, 113
      %v7336 = vpop.permute.xlu0 %7335
      %7337 = vrot.lane.b32.xlu0 %v7308, 113
      %v7338 = vpop.permute.xlu0 %7337
      %7339 = vrot.lane.b32.xlu0 %v7309, 113
      %v7340 = vpop.permute.xlu0 %7339
      %7341 = vrot.lane.b32.xlu0 %v7310, 113
      %v7342 = vpop.permute.xlu0 %7341
      %7343 = vrot.lane.b32.xlu0 %v7311, 113
      %v7344 = vpop.permute.xlu0 %7343
      %7345 = vrot.lane.b32.xlu0 %v7312, 113
      %v7346 = vpop.permute.xlu0 %7345
      %7347 = vrot.lane.b32.xlu0 %v7313, 113
      %v7348 = vpop.permute.xlu0 %7347
      %7349 = vrot.lane.b32.xlu0 %v7314, 113
      %v7350 = vpop.permute.xlu0 %7349
      %v7351 = vsel %vm1069, %v7328, %v7330
      %v7352 = vsel %vm1069, %v7330, %v7332
      %v7353 = vsel %vm1069, %v7334, %v7336
      %v7354 = vsel %vm1069, %v7336, %v7338
      %v7355 = vsel %vm1069, %v7340, %v7342
      %v7356 = vsel %vm1069, %v7342, %v7344
      %v7357 = vsel %vm1069, %v7346, %v7348
      %v7358 = vsel %vm1069, %v7348, %v7350
      %7367 = vst [vmem:[#allocation3 + $0x180] sm:$0xff] %v7351
      %7368 = vst [vmem:[#allocation3 + $0x188] sm:$0xff] %v7352
      %7369 = vst [vmem:[#allocation3 + $0x190] sm:$0xff] %v7353
      %7370 = vst [vmem:[#allocation3 + $0x198] sm:$0xff] %v7354
      %7371 = vst [vmem:[#allocation3 + $0x1a0] sm:$0xff] %v7355
      %7372 = vst [vmem:[#allocation3 + $0x1a8] sm:$0xff] %v7356
      %7373 = vst [vmem:[#allocation3 + $0x1b0] sm:$0xff] %v7357
      %7374 = vst [vmem:[#allocation3 + $0x1b8] sm:$0xff] %v7358
      %v7375 = vld [vmem:[#allocation2 + $0x8] sm:$0xff]
      %v7376 = vld [vmem:[#allocation2 + $0x10] sm:$0xff]
      %v7377 = vld [vmem:[#allocation2 + $0x18] sm:$0xff]
      %v7378 = vld [vmem:[#allocation2 + $0x28] sm:$0xff]
      %v7379 = vld [vmem:[#allocation2 + $0x30] sm:$0xff]
      %v7380 = vld [vmem:[#allocation2 + $0x38] sm:$0xff]
      %v7381 = vld [vmem:[#allocation2 + $0x48] sm:$0xff]
      %v7382 = vld [vmem:[#allocation2 + $0x50] sm:$0xff]
      %v7383 = vld [vmem:[#allocation2 + $0x58] sm:$0xff]
      %v7384 = vld [vmem:[#allocation2 + $0x68] sm:$0xff]
      %v7385 = vld [vmem:[#allocation2 + $0x70] sm:$0xff]
      %v7386 = vld [vmem:[#allocation2 + $0x78] sm:$0xff]
      %v7387 = vld [vmem:[#allocation2 + $0x88] sm:$0xff]
      %v7388 = vld [vmem:[#allocation2 + $0x90] sm:$0xff]
      %v7389 = vld [vmem:[#allocation2 + $0x98] sm:$0xff]
      %v7390 = vld [vmem:[#allocation2 + $0xa8] sm:$0xff]
      %v7391 = vld [vmem:[#allocation2 + $0xb0] sm:$0xff]
      %v7392 = vld [vmem:[#allocation2 + $0xb8] sm:$0xff]
      %v7393 = vld [vmem:[#allocation2 + $0xc8] sm:$0xff]
      %v7394 = vld [vmem:[#allocation2 + $0xd0] sm:$0xff]
      %v7395 = vld [vmem:[#allocation2 + $0xd8] sm:$0xff]
      %v7396 = vld [vmem:[#allocation2 + $0xe8] sm:$0xff]
      %v7397 = vld [vmem:[#allocation2 + $0xf0] sm:$0xff]
      %v7398 = vld [vmem:[#allocation2 + $0xf8] sm:$0xff]
      %v7399 = vpack.c.bf16 %v7378, %v7375
      %v7400 = vpack.c.bf16 %v7379, %v7376
      %v7401 = vpack.c.bf16 %v7380, %v7377
      %v7402 = vpack.c.bf16 %v7384, %v7381
      %v7403 = vpack.c.bf16 %v7385, %v7382
      %v7404 = vpack.c.bf16 %v7386, %v7383
      %v7405 = vpack.c.bf16 %v7390, %v7387
      %v7406 = vpack.c.bf16 %v7391, %v7388
      %v7407 = vpack.c.bf16 %v7392, %v7389
      %v7408 = vpack.c.bf16 %v7396, %v7393
      %v7409 = vpack.c.bf16 %v7397, %v7394
      %v7410 = vpack.c.bf16 %v7398, %v7395
      %7423 = vrot.lane.b32.xlu0 %v7399, 112
      %v7424 = vpop.permute.xlu0 %7423
      %7425 = vrot.lane.b32.xlu0 %v7400, 112
      %v7426 = vpop.permute.xlu0 %7425
      %7427 = vrot.lane.b32.xlu0 %v7401, 112
      %v7428 = vpop.permute.xlu0 %7427
      %7429 = vrot.lane.b32.xlu0 %v7402, 112
      %v7430 = vpop.permute.xlu0 %7429
      %7431 = vrot.lane.b32.xlu0 %v7403, 112
      %v7432 = vpop.permute.xlu0 %7431
      %7433 = vrot.lane.b32.xlu0 %v7404, 112
      %v7434 = vpop.permute.xlu0 %7433
      %7435 = vrot.lane.b32.xlu0 %v7405, 112
      %v7436 = vpop.permute.xlu0 %7435
      %7437 = vrot.lane.b32.xlu0 %v7406, 112
      %v7438 = vpop.permute.xlu0 %7437
      %7439 = vrot.lane.b32.xlu0 %v7407, 112
      %v7440 = vpop.permute.xlu0 %7439
      %7441 = vrot.lane.b32.xlu0 %v7408, 112
      %v7442 = vpop.permute.xlu0 %7441
      %7443 = vrot.lane.b32.xlu0 %v7409, 112
      %v7444 = vpop.permute.xlu0 %7443
      %7445 = vrot.lane.b32.xlu0 %v7410, 112
      %v7446 = vpop.permute.xlu0 %7445
      %v7447 = vsel %vm1166, %v7424, %v7426
      %v7448 = vsel %vm1166, %v7426, %v7428
      %v7449 = vsel %vm1166, %v7430, %v7432
      %v7450 = vsel %vm1166, %v7432, %v7434
      %v7451 = vsel %vm1166, %v7436, %v7438
      %v7452 = vsel %vm1166, %v7438, %v7440
      %v7453 = vsel %vm1166, %v7442, %v7444
      %v7454 = vsel %vm1166, %v7444, %v7446
      %7463 = vst [vmem:[#allocation3 + $0x1c0] sm:$0xff] %v7447
      %7464 = vst [vmem:[#allocation3 + $0x1c8] sm:$0xff] %v7448
      %7465 = vst [vmem:[#allocation3 + $0x1d0] sm:$0xff] %v7449
      %7466 = vst [vmem:[#allocation3 + $0x1d8] sm:$0xff] %v7450
      %7467 = vst [vmem:[#allocation3 + $0x1e0] sm:$0xff] %v7451
      %7468 = vst [vmem:[#allocation3 + $0x1e8] sm:$0xff] %v7452
      %7469 = vst [vmem:[#allocation3 + $0x1f0] sm:$0xff] %v7453
      %7470 = vst [vmem:[#allocation3 + $0x1f8] sm:$0xff] %v7454
      %v7471 = vld [vmem:[#allocation2 + $0x8] sm:$0xff]
      %v7472 = vld [vmem:[#allocation2 + $0x10] sm:$0xff]
      %v7473 = vld [vmem:[#allocation2 + $0x18] sm:$0xff]
      %v7474 = vld [vmem:[#allocation2 + $0x28] sm:$0xff]
      %v7475 = vld [vmem:[#allocation2 + $0x30] sm:$0xff]
      %v7476 = vld [vmem:[#allocation2 + $0x38] sm:$0xff]
      %v7477 = vld [vmem:[#allocation2 + $0x48] sm:$0xff]
      %v7478 = vld [vmem:[#allocation2 + $0x50] sm:$0xff]
      %v7479 = vld [vmem:[#allocation2 + $0x58] sm:$0xff]
      %v7480 = vld [vmem:[#allocation2 + $0x68] sm:$0xff]
      %v7481 = vld [vmem:[#allocation2 + $0x70] sm:$0xff]
      %v7482 = vld [vmem:[#allocation2 + $0x78] sm:$0xff]
      %v7483 = vld [vmem:[#allocation2 + $0x88] sm:$0xff]
      %v7484 = vld [vmem:[#allocation2 + $0x90] sm:$0xff]
      %v7485 = vld [vmem:[#allocation2 + $0x98] sm:$0xff]
      %v7486 = vld [vmem:[#allocation2 + $0xa8] sm:$0xff]
      %v7487 = vld [vmem:[#allocation2 + $0xb0] sm:$0xff]
      %v7488 = vld [vmem:[#allocation2 + $0xb8] sm:$0xff]
      %v7489 = vld [vmem:[#allocation2 + $0xc8] sm:$0xff]
      %v7490 = vld [vmem:[#allocation2 + $0xd0] sm:$0xff]
      %v7491 = vld [vmem:[#allocation2 + $0xd8] sm:$0xff]
      %v7492 = vld [vmem:[#allocation2 + $0xe8] sm:$0xff]
      %v7493 = vld [vmem:[#allocation2 + $0xf0] sm:$0xff]
      %v7494 = vld [vmem:[#allocation2 + $0xf8] sm:$0xff]
      %v7495 = vmul.f32 %v7471, %v1216
      %v7496 = vmul.f32 %v7472, %v1220
      %v7497 = vmul.f32 %v7473, %v1218
      %v7498 = vmul.f32 %v7474, %v1216
      %v7499 = vmul.f32 %v7475, %v1220
      %v7500 = vmul.f32 %v7476, %v1218
      %v7501 = vmul.f32 %v7477, %v1216
      %v7502 = vmul.f32 %v7478, %v1220
      %v7503 = vmul.f32 %v7479, %v1218
      %v7504 = vmul.f32 %v7480, %v1216
      %v7505 = vmul.f32 %v7481, %v1220
      %v7506 = vmul.f32 %v7482, %v1218
      %v7507 = vmul.f32 %v7483, %v1216
      %v7508 = vmul.f32 %v7484, %v1220
      %v7509 = vmul.f32 %v7485, %v1218
      %v7510 = vmul.f32 %v7486, %v1216
      %v7511 = vmul.f32 %v7487, %v1220
      %v7512 = vmul.f32 %v7488, %v1218
      %v7513 = vmul.f32 %v7489, %v1216
      %v7514 = vmul.f32 %v7490, %v1220
      %v7515 = vmul.f32 %v7491, %v1218
      %v7516 = vmul.f32 %v7492, %v1216
      %v7517 = vmul.f32 %v7493, %v1220
      %v7518 = vmul.f32 %v7494, %v1218
      %v7519 = vpack.c.bf16 %v7498, %v7495
      %v7520 = vpack.c.bf16 %v7499, %v7496
      %v7521 = vpack.c.bf16 %v7500, %v7497
      %v7522 = vpack.c.bf16 %v7504, %v7501
      %v7523 = vpack.c.bf16 %v7505, %v7502
      %v7524 = vpack.c.bf16 %v7506, %v7503
      %v7525 = vpack.c.bf16 %v7510, %v7507
      %v7526 = vpack.c.bf16 %v7511, %v7508
      %v7527 = vpack.c.bf16 %v7512, %v7509
      %v7528 = vpack.c.bf16 %v7516, %v7513
      %v7529 = vpack.c.bf16 %v7517, %v7514
      %v7530 = vpack.c.bf16 %v7518, %v7515
      %7543 = vrot.lane.b32.xlu0 %v7519, 111
      %v7544 = vpop.permute.xlu0 %7543
      %7545 = vrot.lane.b32.xlu0 %v7520, 111
      %v7546 = vpop.permute.xlu0 %7545
      %7547 = vrot.lane.b32.xlu0 %v7521, 111
      %v7548 = vpop.permute.xlu0 %7547
      %7549 = vrot.lane.b32.xlu0 %v7522, 111
      %v7550 = vpop.permute.xlu0 %7549
      %7551 = vrot.lane.b32.xlu0 %v7523, 111
      %v7552 = vpop.permute.xlu0 %7551
      %7553 = vrot.lane.b32.xlu0 %v7524, 111
      %v7554 = vpop.permute.xlu0 %7553
      %7555 = vrot.lane.b32.xlu0 %v7525, 111
      %v7556 = vpop.permute.xlu0 %7555
      %7557 = vrot.lane.b32.xlu0 %v7526, 111
      %v7558 = vpop.permute.xlu0 %7557
      %7559 = vrot.lane.b32.xlu0 %v7527, 111
      %v7560 = vpop.permute.xlu0 %7559
      %7561 = vrot.lane.b32.xlu0 %v7528, 111
      %v7562 = vpop.permute.xlu0 %7561
      %7563 = vrot.lane.b32.xlu0 %v7529, 111
      %v7564 = vpop.permute.xlu0 %7563
      %7565 = vrot.lane.b32.xlu0 %v7530, 111
      %v7566 = vpop.permute.xlu0 %7565
      %v7567 = vsel %vm1296, %v7544, %v7546
      %v7568 = vsel %vm1296, %v7546, %v7548
      %v7569 = vsel %vm1296, %v7550, %v7552
      %v7570 = vsel %vm1296, %v7552, %v7554
      %v7571 = vsel %vm1296, %v7556, %v7558
      %v7572 = vsel %vm1296, %v7558, %v7560
      %v7573 = vsel %vm1296, %v7562, %v7564
      %v7574 = vsel %vm1296, %v7564, %v7566
      %7583 = vst [vmem:[#allocation3 + $0x200] sm:$0xff] %v7567
      %7584 = vst [vmem:[#allocation3 + $0x208] sm:$0xff] %v7568
      %7585 = vst [vmem:[#allocation3 + $0x210] sm:$0xff] %v7569
      %7586 = vst [vmem:[#allocation3 + $0x218] sm:$0xff] %v7570
      %7587 = vst [vmem:[#allocation3 + $0x220] sm:$0xff] %v7571
      %7588 = vst [vmem:[#allocation3 + $0x228] sm:$0xff] %v7572
      %7589 = vst [vmem:[#allocation3 + $0x230] sm:$0xff] %v7573
      %7590 = vst [vmem:[#allocation3 + $0x238] sm:$0xff] %v7574
      %s7591 = scalar_lea.vmem %s2, 640
      %v7592 = vld [vmem:[%s7591] sm:$0xff]
      %v7593 = vld [vmem:[%s7591 + $0x8] sm:$0xff]
      %v7594 = vld [vmem:[%s7591 + $0x10] sm:$0xf]
      %v7595 = vld [vmem:[%s7591 + $0x14] sm:$0xff]
      %v7596 = vld [vmem:[%s7591 + $0x1c] sm:$0xff]
      %v7597 = vld [vmem:[%s7591 + $0x24] sm:$0xf]
      %v7598 = vld [vmem:[%s7591 + $0x28] sm:$0xff]
      %v7599 = vld [vmem:[%s7591 + $0x30] sm:$0xff]
      %v7600 = vld [vmem:[%s7591 + $0x38] sm:$0xf]
      %v7601 = vld [vmem:[%s7591 + $0x3c] sm:$0xff]
      %v7602 = vld [vmem:[%s7591 + $0x44] sm:$0xff]
      %v7603 = vld [vmem:[%s7591 + $0x4c] sm:$0xf]
      %v7604 = vld [vmem:[%s7591 + $0x50] sm:$0xff]
      %v7605 = vld [vmem:[%s7591 + $0x58] sm:$0xff]
      %v7606 = vld [vmem:[%s7591 + $0x60] sm:$0xf]
      %v7607 = vld [vmem:[%s7591 + $0x64] sm:$0xff]
      %v7608 = vld [vmem:[%s7591 + $0x6c] sm:$0xff]
      %v7609 = vld [vmem:[%s7591 + $0x74] sm:$0xf]
      %v7610 = vld [vmem:[%s7591 + $0x78] sm:$0xff]
      %v7611 = vld [vmem:[%s7591 + $0x80] sm:$0xff]
      %v7612 = vld [vmem:[%s7591 + $0x88] sm:$0xf]
      %v7613 = vld [vmem:[%s7591 + $0x8c] sm:$0xff]
      %v7614 = vld [vmem:[%s7591 + $0x94] sm:$0xff]
      %v7615 = vld [vmem:[%s7591 + $0x9c] sm:$0xf]
      %v7616 = vld [vmem:[#allocation3] sm:$0xff]
      %v7617 = vld [vmem:[#allocation3 + $0x8] sm:$0xff]
      %v7618 = vld [vmem:[#allocation3 + $0x10] sm:$0xff]
      %v7619 = vld [vmem:[#allocation3 + $0x18] sm:$0xff]
      %v7620 = vld [vmem:[#allocation3 + $0x20] sm:$0xff]
      %v7621 = vld [vmem:[#allocation3 + $0x28] sm:$0xff]
      %v7622 = vld [vmem:[#allocation3 + $0x30] sm:$0xff]
      %v7623 = vld [vmem:[#allocation3 + $0x38] sm:$0xff]
      %v7624 = vld [vmem:[#allocation3 + $0x40] sm:$0xff]
      %v7625 = vld [vmem:[#allocation3 + $0x48] sm:$0xff]
      %v7626 = vld [vmem:[#allocation3 + $0x50] sm:$0xff]
      %v7627 = vld [vmem:[#allocation3 + $0x58] sm:$0xff]
      %v7628 = vld [vmem:[#allocation3 + $0x60] sm:$0xff]
      %v7629 = vld [vmem:[#allocation3 + $0x68] sm:$0xff]
      %v7630 = vld [vmem:[#allocation3 + $0x70] sm:$0xff]
      %v7631 = vld [vmem:[#allocation3 + $0x78] sm:$0xff]
      %v7632 = vld [vmem:[#allocation3 + $0x80] sm:$0xff]
      %v7633 = vld [vmem:[#allocation3 + $0x88] sm:$0xff]
      %v7634 = vld [vmem:[#allocation3 + $0x90] sm:$0xff]
      %v7635 = vld [vmem:[#allocation3 + $0x98] sm:$0xff]
      %v7636 = vld [vmem:[#allocation3 + $0xa0] sm:$0xff]
      %v7637 = vld [vmem:[#allocation3 + $0xa8] sm:$0xff]
      %v7638 = vld [vmem:[#allocation3 + $0xb0] sm:$0xff]
      %v7639 = vld [vmem:[#allocation3 + $0xb8] sm:$0xff]
      %v7640 = vld [vmem:[#allocation3 + $0xc0] sm:$0xff]
      %v7641 = vld [vmem:[#allocation3 + $0xc8] sm:$0xff]
      %v7642 = vld [vmem:[#allocation3 + $0xd0] sm:$0xff]
      %v7643 = vld [vmem:[#allocation3 + $0xd8] sm:$0xff]
      %v7644 = vld [vmem:[#allocation3 + $0xe0] sm:$0xff]
      %v7645 = vld [vmem:[#allocation3 + $0xe8] sm:$0xff]
      %v7646 = vld [vmem:[#allocation3 + $0xf0] sm:$0xff]
      %v7647 = vld [vmem:[#allocation3 + $0xf8] sm:$0xff]
      %v7648 = vld [vmem:[#allocation3 + $0x100] sm:$0xff]
      %v7649 = vld [vmem:[#allocation3 + $0x108] sm:$0xff]
      %v7650 = vld [vmem:[#allocation3 + $0x110] sm:$0xff]
      %v7651 = vld [vmem:[#allocation3 + $0x118] sm:$0xff]
      %v7652 = vld [vmem:[#allocation3 + $0x120] sm:$0xff]
      %v7653 = vld [vmem:[#allocation3 + $0x128] sm:$0xff]
      %v7654 = vld [vmem:[#allocation3 + $0x130] sm:$0xff]
      %v7655 = vld [vmem:[#allocation3 + $0x138] sm:$0xff]
      %v7656 = vld [vmem:[#allocation3 + $0x140] sm:$0xff]
      %v7657 = vld [vmem:[#allocation3 + $0x148] sm:$0xff]
      %v7658 = vld [vmem:[#allocation3 + $0x150] sm:$0xff]
      %v7659 = vld [vmem:[#allocation3 + $0x158] sm:$0xff]
      %v7660 = vld [vmem:[#allocation3 + $0x160] sm:$0xff]
      %v7661 = vld [vmem:[#allocation3 + $0x168] sm:$0xff]
      %v7662 = vld [vmem:[#allocation3 + $0x170] sm:$0xff]
      %v7663 = vld [vmem:[#allocation3 + $0x178] sm:$0xff]
      %v7664 = vld [vmem:[#allocation3 + $0x180] sm:$0xff]
      %v7665 = vld [vmem:[#allocation3 + $0x188] sm:$0xff]
      %v7666 = vld [vmem:[#allocation3 + $0x190] sm:$0xff]
      %v7667 = vld [vmem:[#allocation3 + $0x198] sm:$0xff]
      %v7668 = vld [vmem:[#allocation3 + $0x1a0] sm:$0xff]
      %v7669 = vld [vmem:[#allocation3 + $0x1a8] sm:$0xff]
      %v7670 = vld [vmem:[#allocation3 + $0x1b0] sm:$0xff]
      %v7671 = vld [vmem:[#allocation3 + $0x1b8] sm:$0xff]
      %v7672 = vld [vmem:[#allocation3 + $0x1c0] sm:$0xff]
      %v7673 = vld [vmem:[#allocation3 + $0x1c8] sm:$0xff]
      %v7674 = vld [vmem:[#allocation3 + $0x1d0] sm:$0xff]
      %v7675 = vld [vmem:[#allocation3 + $0x1d8] sm:$0xff]
      %v7676 = vld [vmem:[#allocation3 + $0x1e0] sm:$0xff]
      %v7677 = vld [vmem:[#allocation3 + $0x1e8] sm:$0xff]
      %v7678 = vld [vmem:[#allocation3 + $0x1f0] sm:$0xff]
      %v7679 = vld [vmem:[#allocation3 + $0x1f8] sm:$0xff]
      %v7680 = vld [vmem:[#allocation3 + $0x200] sm:$0xff]
      %v7681 = vld [vmem:[#allocation3 + $0x208] sm:$0xff]
      %v7682 = vld [vmem:[#allocation3 + $0x210] sm:$0xff]
      %v7683 = vld [vmem:[#allocation3 + $0x218] sm:$0xff]
      %v7684 = vld [vmem:[#allocation3 + $0x220] sm:$0xff]
      %v7685 = vld [vmem:[#allocation3 + $0x228] sm:$0xff]
      %v7686 = vld [vmem:[#allocation3 + $0x230] sm:$0xff]
      %v7687 = vld [vmem:[#allocation3 + $0x238] sm:$0xff]
      %v7712 = vunpack.c.l.b16 %v7592
      %v7713 = vunpack.c.h.b16 %v7592
      %v7714 = vunpack.c.l.b16 %v7593
      %v7715 = vunpack.c.h.b16 %v7593
      %v7716 = vunpack.c.l.b16 %v7594
      %v7717 = vunpack.c.l.b16 %v7595
      %v7718 = vunpack.c.h.b16 %v7595
      %v7719 = vunpack.c.l.b16 %v7596
      %v7720 = vunpack.c.h.b16 %v7596
      %v7721 = vunpack.c.l.b16 %v7597
      %v7722 = vunpack.c.l.b16 %v7598
      %v7723 = vunpack.c.h.b16 %v7598
      %v7724 = vunpack.c.l.b16 %v7599
      %v7725 = vunpack.c.h.b16 %v7599
      %v7726 = vunpack.c.l.b16 %v7600
      %v7727 = vunpack.c.l.b16 %v7601
      %v7728 = vunpack.c.h.b16 %v7601
      %v7729 = vunpack.c.l.b16 %v7602
      %v7730 = vunpack.c.h.b16 %v7602
      %v7731 = vunpack.c.l.b16 %v7603
      %v7732 = vunpack.c.l.b16 %v7604
      %v7733 = vunpack.c.h.b16 %v7604
      %v7734 = vunpack.c.l.b16 %v7605
      %v7735 = vunpack.c.h.b16 %v7605
      %v7736 = vunpack.c.l.b16 %v7606
      %v7737 = vunpack.c.l.b16 %v7607
      %v7738 = vunpack.c.h.b16 %v7607
      %v7739 = vunpack.c.l.b16 %v7608
      %v7740 = vunpack.c.h.b16 %v7608
      %v7741 = vunpack.c.l.b16 %v7609
      %v7742 = vunpack.c.l.b16 %v7610
      %v7743 = vunpack.c.h.b16 %v7610
      %v7744 = vunpack.c.l.b16 %v7611
      %v7745 = vunpack.c.h.b16 %v7611
      %v7746 = vunpack.c.l.b16 %v7612
      %v7747 = vunpack.c.l.b16 %v7613
      %v7748 = vunpack.c.h.b16 %v7613
      %v7749 = vunpack.c.l.b16 %v7614
      %v7750 = vunpack.c.h.b16 %v7614
      %v7751 = vunpack.c.l.b16 %v7615
      %v7752 = vpack.c.b16 %v7717, %v7712
      %v7753 = vpack.c.b16 %v7718, %v7713
      %v7754 = vpack.c.b16 %v7719, %v7714
      %v7755 = vpack.c.b16 %v7720, %v7715
      %v7756 = vpack.c.b16 %v7721, %v7716
      %v7757 = vpack.c.b16 %v7727, %v7722
      %v7758 = vpack.c.b16 %v7728, %v7723
      %v7759 = vpack.c.b16 %v7729, %v7724
      %v7760 = vpack.c.b16 %v7730, %v7725
      %v7761 = vpack.c.b16 %v7731, %v7726
      %v7762 = vpack.c.b16 %v7737, %v7732
      %v7763 = vpack.c.b16 %v7738, %v7733
      %v7764 = vpack.c.b16 %v7739, %v7734
      %v7765 = vpack.c.b16 %v7740, %v7735
      %v7766 = vpack.c.b16 %v7741, %v7736
      %v7767 = vpack.c.b16 %v7747, %v7742
      %v7768 = vpack.c.b16 %v7748, %v7743
      %v7769 = vpack.c.b16 %v7749, %v7744
      %v7770 = vpack.c.b16 %v7750, %v7745
      %v7771 = vpack.c.b16 %v7751, %v7746
      %v7789 = vsel %vm1517, %v7756, 0
      %v7792 = vsel %vm1517, %v7761, 0
      %v7795 = vsel %vm1517, %v7766, 0
      %v7798 = vsel %vm1517, %v7771, 0
      %7800 = vmatprep.subr.bf16.mxu0 %v7617
      %7801 = vmatpush1.bf16.msra.mxu0 %v7616
      %7802 = vmatprep.subr.bf16.mxu0 %v7619
      %7803 = vmatpush1.bf16.msra.mxu0 %v7618
      %7804 = vmatprep.subr.bf16.mxu0 %v7621
      %7805 = vmatpush1.bf16.msra.mxu0 %v7620
      %7806 = vmatprep.subr.bf16.mxu0 %v7623
      %7807 = vmatpush1.bf16.msra.mxu0 %v7622
      %7808 = vmatprep.subr.bf16.mxu0 %v7625
      %7809 = vmatpush1.bf16.msra.mxu0 %v7624
      %7810 = vmatprep.subr.bf16.mxu0 %v7627
      %7811 = vmatpush1.bf16.msra.mxu0 %v7626
      %7812 = vmatprep.subr.bf16.mxu0 %v7629
      %7813 = vmatpush1.bf16.msra.mxu0 %v7628
      %7814 = vmatprep.subr.bf16.mxu0 %v7631
      %7815 = vmatpush1.bf16.msra.mxu0 %v7630
      %7816 = vmatprep.subr.bf16.mxu0 %v7633
      %7817 = vmatpush1.bf16.msra.mxu0 %v7632
      %7818 = vmatprep.subr.bf16.mxu0 %v7635
      %7819 = vmatpush1.bf16.msra.mxu0 %v7634
      %7820 = vmatprep.subr.bf16.mxu0 %v7637
      %7821 = vmatpush1.bf16.msra.mxu0 %v7636
      %7822 = vmatprep.subr.bf16.mxu0 %v7639
      %7823 = vmatpush1.bf16.msra.mxu0 %v7638
      %7824 = vmatprep.subr.bf16.mxu0 %v7641
      %7825 = vmatpush1.bf16.msra.mxu0 %v7640
      %7826 = vmatprep.subr.bf16.mxu0 %v7643
      %7827 = vmatpush1.bf16.msra.mxu0 %v7642
      %7828 = vmatprep.subr.bf16.mxu0 %v7645
      %7829 = vmatpush1.bf16.msra.mxu0 %v7644
      %7830 = vmatprep.subr.bf16.mxu0 %v7647
      %7831 = vmatpush1.bf16.msra.mxu0 %v7646
      %7832 = vmatprep.mubr.bf16.mxu0 %v7753
      %7833 = vmatmul.mubr.bf16.gmra.mrb[0].mxu0 %v7752
      %v7834 = vpop.f32.mrb[0].mxu0
      %v7835 = vadd.f32 0.0, %v7834
      %v7836 = vpop.f32.mrb[0].mxu0
      %v7837 = vadd.f32 0.0, %v7836
      %v7838 = vpop.f32.mrb[0].mxu0
      %v7839 = vadd.f32 0.0, %v7838
      %v7840 = vpop.f32.mrb[0].mxu0
      %v7841 = vadd.f32 0.0, %v7840
      %7842 = vmatprep.mubr.bf16.mxu0 %v7758
      %7843 = vmatmul.mubr.bf16.gmra.mrb[0].mxu0 %v7757
      %v7844 = vpop.f32.mrb[0].mxu0
      %v7845 = vadd.f32 0.0, %v7844
      %v7846 = vpop.f32.mrb[0].mxu0
      %v7847 = vadd.f32 0.0, %v7846
      %v7848 = vpop.f32.mrb[0].mxu0
      %v7849 = vadd.f32 0.0, %v7848
      %v7850 = vpop.f32.mrb[0].mxu0
      %v7851 = vadd.f32 0.0, %v7850
      %7852 = vmatprep.mubr.bf16.mxu0 %v7763
      %7853 = vmatmul.mubr.bf16.gmra.mrb[0].mxu0 %v7762
      %v7854 = vpop.f32.mrb[0].mxu0
      %v7855 = vadd.f32 0.0, %v7854
      %v7856 = vpop.f32.mrb[0].mxu0
      %v7857 = vadd.f32 0.0, %v7856
      %v7858 = vpop.f32.mrb[0].mxu0
      %v7859 = vadd.f32 0.0, %v7858
      %v7860 = vpop.f32.mrb[0].mxu0
      %v7861 = vadd.f32 0.0, %v7860
      %7862 = vmatprep.mubr.bf16.mxu0 %v7768
      %7863 = vmatmul.mubr.bf16.gmra.mrb[0].mxu0 %v7767
      %v7864 = vpop.f32.mrb[0].mxu0
      %v7865 = vadd.f32 0.0, %v7864
      %v7866 = vpop.f32.mrb[0].mxu0
      %v7867 = vadd.f32 0.0, %v7866
      %v7868 = vpop.f32.mrb[0].mxu0
      %v7869 = vadd.f32 0.0, %v7868
      %v7870 = vpop.f32.mrb[0].mxu0
      %v7871 = vadd.f32 0.0, %v7870
      %7872 = vdwg.mxu0
      %7873 = vmatprep.subr.bf16.mxu0 %v7649
      %7874 = vmatpush1.bf16.msra.mxu0 %v7648
      %7875 = vmatprep.subr.bf16.mxu0 %v7651
      %7876 = vmatpush1.bf16.msra.mxu0 %v7650
      %7877 = vmatprep.subr.bf16.mxu0 %v7653
      %7878 = vmatpush1.bf16.msra.mxu0 %v7652
      %7879 = vmatprep.subr.bf16.mxu0 %v7655
      %7880 = vmatpush1.bf16.msra.mxu0 %v7654
      %7881 = vmatprep.subr.bf16.mxu0 %v7657
      %7882 = vmatpush1.bf16.msra.mxu0 %v7656
      %7883 = vmatprep.subr.bf16.mxu0 %v7659
      %7884 = vmatpush1.bf16.msra.mxu0 %v7658
      %7885 = vmatprep.subr.bf16.mxu0 %v7661
      %7886 = vmatpush1.bf16.msra.mxu0 %v7660
      %7887 = vmatprep.subr.bf16.mxu0 %v7663
      %7888 = vmatpush1.bf16.msra.mxu0 %v7662
      %7889 = vmatprep.subr.bf16.mxu0 %v7665
      %7890 = vmatpush1.bf16.msra.mxu0 %v7664
      %7891 = vmatprep.subr.bf16.mxu0 %v7667
      %7892 = vmatpush1.bf16.msra.mxu0 %v7666
      %7893 = vmatprep.subr.bf16.mxu0 %v7669
      %7894 = vmatpush1.bf16.msra.mxu0 %v7668
      %7895 = vmatprep.subr.bf16.mxu0 %v7671
      %7896 = vmatpush1.bf16.msra.mxu0 %v7670
      %7897 = vmatprep.subr.bf16.mxu0 %v7673
      %7898 = vmatpush1.bf16.msra.mxu0 %v7672
      %7899 = vmatprep.subr.bf16.mxu0 %v7675
      %7900 = vmatpush1.bf16.msra.mxu0 %v7674
      %7901 = vmatprep.subr.bf16.mxu0 %v7677
      %7902 = vmatpush1.bf16.msra.mxu0 %v7676
      %7903 = vmatprep.subr.bf16.mxu0 %v7679
      %7904 = vmatpush1.bf16.msra.mxu0 %v7678
      %7905 = vmatprep.mubr.bf16.mxu0 %v7755
      %7906 = vmatmul.mubr.bf16.gmra.mrb[0].mxu0 %v7754
      %v7907 = vpop.f32.mrb[0].mxu0
      %v7908 = vadd.f32 %v7835, %v7907
      %v7909 = vpop.f32.mrb[0].mxu0
      %v7910 = vadd.f32 %v7837, %v7909
      %v7911 = vpop.f32.mrb[0].mxu0
      %v7912 = vadd.f32 %v7839, %v7911
      %v7913 = vpop.f32.mrb[0].mxu0
      %v7914 = vadd.f32 %v7841, %v7913
      %7915 = vmatprep.mubr.bf16.mxu0 %v7760
      %7916 = vmatmul.mubr.bf16.gmra.mrb[0].mxu0 %v7759
      %v7917 = vpop.f32.mrb[0].mxu0
      %v7918 = vadd.f32 %v7845, %v7917
      %v7919 = vpop.f32.mrb[0].mxu0
      %v7920 = vadd.f32 %v7847, %v7919
      %v7921 = vpop.f32.mrb[0].mxu0
      %v7922 = vadd.f32 %v7849, %v7921
      %v7923 = vpop.f32.mrb[0].mxu0
      %v7924 = vadd.f32 %v7851, %v7923
      %7925 = vmatprep.mubr.bf16.mxu0 %v7765
      %7926 = vmatmul.mubr.bf16.gmra.mrb[0].mxu0 %v7764
      %v7927 = vpop.f32.mrb[0].mxu0
      %v7928 = vadd.f32 %v7855, %v7927
      %v7929 = vpop.f32.mrb[0].mxu0
      %v7930 = vadd.f32 %v7857, %v7929
      %v7931 = vpop.f32.mrb[0].mxu0
      %v7932 = vadd.f32 %v7859, %v7931
      %v7933 = vpop.f32.mrb[0].mxu0
      %v7934 = vadd.f32 %v7861, %v7933
      %7935 = vmatprep.mubr.bf16.mxu0 %v7770
      %7936 = vmatmul.mubr.bf16.gmra.mrb[0].mxu0 %v7769
      %v7937 = vpop.f32.mrb[0].mxu0
      %v7938 = vadd.f32 %v7865, %v7937
      %v7939 = vpop.f32.mrb[0].mxu0
      %v7940 = vadd.f32 %v7867, %v7939
      %v7941 = vpop.f32.mrb[0].mxu0
      %v7942 = vadd.f32 %v7869, %v7941
      %v7943 = vpop.f32.mrb[0].mxu0
      %v7944 = vadd.f32 %v7871, %v7943
      %7945 = vdwg.mxu0
      %7946 = vmatprep.subr.bf16.mxu0 %v7681
      %7947 = vmatpush1.bf16.msra.mxu0 %v7680
      %7948 = vmatprep.subr.bf16.mxu0 %v7683
      %7949 = vmatpush1.bf16.msra.mxu0 %v7682
      %7950 = vmatprep.subr.bf16.mxu0 %v7685
      %7951 = vmatpush1.bf16.msra.mxu0 %v7684
      %7952 = vmatprep.subr.bf16.mxu0 %v7687
      %7953 = vmatpush1.bf16.msra.mxu0 %v7686
      %7954 = vmatprep.subr.bf16.mxu0 0
      %7955 = vmatpush1.bf16.msra.mxu0 0
      %7956 = vmatprep.subr.bf16.mxu0 0
      %7957 = vmatpush1.bf16.msra.mxu0 0
      %7958 = vmatprep.subr.bf16.mxu0 0
      %7959 = vmatpush1.bf16.msra.mxu0 0
      %7960 = vmatprep.subr.bf16.mxu0 0
      %7961 = vmatpush1.bf16.msra.mxu0 0
      %7962 = vmatprep.subr.bf16.mxu0 0
      %7963 = vmatpush1.bf16.msra.mxu0 0
      %7964 = vmatprep.subr.bf16.mxu0 0
      %7965 = vmatpush1.bf16.msra.mxu0 0
      %7966 = vmatprep.subr.bf16.mxu0 0
      %7967 = vmatpush1.bf16.msra.mxu0 0
      %7968 = vmatprep.subr.bf16.mxu0 0
      %7969 = vmatpush1.bf16.msra.mxu0 0
      %7970 = vmatprep.subr.bf16.mxu0 0
      %7971 = vmatpush1.bf16.msra.mxu0 0
      %7972 = vmatprep.subr.bf16.mxu0 0
      %7973 = vmatpush1.bf16.msra.mxu0 0
      %7974 = vmatprep.subr.bf16.mxu0 0
      %7975 = vmatpush1.bf16.msra.mxu0 0
      %7976 = vmatprep.subr.bf16.mxu0 0
      %7977 = vmatpush1.bf16.msra.mxu0 0
      %7978 = vmatprep.mubr.bf16.mxu0 0
      %7979 = vmatmul.mubr.bf16.gmra.mrb[0].mxu0 %v7789
      %v7980 = vpop.f32.mrb[0].mxu0
      %v7981 = vadd.f32 %v7908, %v7980
      %v7982 = vpop.f32.mrb[0].mxu0
      %v7983 = vadd.f32 %v7910, %v7982
      %v7984 = vpop.f32.mrb[0].mxu0
      %v7985 = vadd.f32 %v7912, %v7984
      %v7986 = vpop.f32.mrb[0].mxu0
      %v7987 = vadd.f32 %v7914, %v7986
      %7988 = vmatprep.mubr.bf16.mxu0 0
      %7989 = vmatmul.mubr.bf16.gmra.mrb[0].mxu0 %v7792
      %v7990 = vpop.f32.mrb[0].mxu0
      %v7991 = vadd.f32 %v7918, %v7990
      %v7992 = vpop.f32.mrb[0].mxu0
      %v7993 = vadd.f32 %v7920, %v7992
      %v7994 = vpop.f32.mrb[0].mxu0
      %v7995 = vadd.f32 %v7922, %v7994
      %v7996 = vpop.f32.mrb[0].mxu0
      %v7997 = vadd.f32 %v7924, %v7996
      %7998 = vmatprep.mubr.bf16.mxu0 0
      %7999 = vmatmul.mubr.bf16.gmra.mrb[0].mxu0 %v7795
      %v8000 = vpop.f32.mrb[0].mxu0
      %v8001 = vadd.f32 %v7928, %v8000
      %v8002 = vpop.f32.mrb[0].mxu0
      %v8003 = vadd.f32 %v7930, %v8002
      %v8004 = vpop.f32.mrb[0].mxu0
      %v8005 = vadd.f32 %v7932, %v8004
      %v8006 = vpop.f32.mrb[0].mxu0
      %v8007 = vadd.f32 %v7934, %v8006
      %8008 = vmatprep.mubr.bf16.mxu0 0
      %8009 = vmatmul.mubr.bf16.gmra.mrb[0].mxu0 %v7798
      %v8010 = vpop.f32.mrb[0].mxu0
      %v8011 = vadd.f32 %v7938, %v8010
      %v8012 = vpop.f32.mrb[0].mxu0
      %v8013 = vadd.f32 %v7940, %v8012
      %v8014 = vpop.f32.mrb[0].mxu0
      %v8015 = vadd.f32 %v7942, %v8014
      %v8016 = vpop.f32.mrb[0].mxu0
      %v8017 = vadd.f32 %v7944, %v8016
      %8018 = vdwg.mxu0
      %s8019 = scalar_lea.vmem %s3, 256
      %v8020 = vld [vmem:[%s8019] sm:$0xff]
      %v8021 = vld [vmem:[%s8019 + $0x8] sm:$0xff]
      %v8022 = vld [vmem:[%s8019 + $0x10] sm:$0xff]
      %v8023 = vld [vmem:[%s8019 + $0x18] sm:$0xff]
      %v8024 = vld [vmem:[%s8019 + $0x20] sm:$0xff]
      %v8025 = vld [vmem:[%s8019 + $0x28] sm:$0xff]
      %v8026 = vld [vmem:[%s8019 + $0x30] sm:$0xff]
      %v8027 = vld [vmem:[%s8019 + $0x38] sm:$0xff]
      %8029 = vset.pattern.permute.xlu0 0
      %8030 = vperm.xlu0 %8029, %v8020
      %v8031 = vpop.permute.xlu0 %8030
      %8034 = vset.pattern.permute.xlu0 0
      %8035 = vperm.xlu0 %8034, %v8021
      %v8036 = vpop.permute.xlu0 %8035
      %8039 = vset.pattern.permute.xlu0 0
      %8040 = vperm.xlu0 %8039, %v8022
      %v8041 = vpop.permute.xlu0 %8040
      %8044 = vset.pattern.permute.xlu0 0
      %8045 = vperm.xlu0 %8044, %v8023
      %v8046 = vpop.permute.xlu0 %8045
      %8049 = vset.pattern.permute.xlu0 0
      %8050 = vperm.xlu0 %8049, %v8024
      %v8051 = vpop.permute.xlu0 %8050
      %8054 = vset.pattern.permute.xlu0 0
      %8055 = vperm.xlu0 %8054, %v8025
      %v8056 = vpop.permute.xlu0 %8055
      %8059 = vset.pattern.permute.xlu0 0
      %8060 = vperm.xlu0 %8059, %v8026
      %v8061 = vpop.permute.xlu0 %8060
      %8064 = vset.pattern.permute.xlu0 0
      %8065 = vperm.xlu0 %8064, %v8027
      %v8066 = vpop.permute.xlu0 %8065
      %v8068 = vmul.f32 %v7981, %v8031
      %v8069 = vmul.f32 %v7983, %v8031
      %v8070 = vmul.f32 %v7985, %v8036
      %v8071 = vmul.f32 %v7987, %v8036
      %v8072 = vmul.f32 %v7991, %v8041
      %v8073 = vmul.f32 %v7993, %v8041
      %v8074 = vmul.f32 %v7995, %v8046
      %v8075 = vmul.f32 %v7997, %v8046
      %v8076 = vmul.f32 %v8001, %v8051
      %v8077 = vmul.f32 %v8003, %v8051
      %v8078 = vmul.f32 %v8005, %v8056
      %v8079 = vmul.f32 %v8007, %v8056
      %v8080 = vmul.f32 %v8011, %v8061
      %v8081 = vmul.f32 %v8013, %v8061
      %v8082 = vmul.f32 %v8015, %v8066
      %v8083 = vmul.f32 %v8017, %v8066
      %s8084 = scalar_lea.vmem %s4, 256
      %v8085 = vld [vmem:[%s8084] sm:$0xff]
      %v8086 = vld [vmem:[%s8084 + $0x8] sm:$0xff]
      %v8087 = vld [vmem:[%s8084 + $0x10] sm:$0xff]
      %v8088 = vld [vmem:[%s8084 + $0x18] sm:$0xff]
      %v8089 = vld [vmem:[%s8084 + $0x20] sm:$0xff]
      %v8090 = vld [vmem:[%s8084 + $0x28] sm:$0xff]
      %v8091 = vld [vmem:[%s8084 + $0x30] sm:$0xff]
      %v8092 = vld [vmem:[%s8084 + $0x38] sm:$0xff]
      %8094 = vset.pattern.permute.xlu0 0
      %8095 = vperm.xlu0 %8094, %v8085
      %v8096 = vpop.permute.xlu0 %8095
      %8099 = vset.pattern.permute.xlu0 0
      %8100 = vperm.xlu0 %8099, %v8086
      %v8101 = vpop.permute.xlu0 %8100
      %8104 = vset.pattern.permute.xlu0 0
      %8105 = vperm.xlu0 %8104, %v8087
      %v8106 = vpop.permute.xlu0 %8105
      %8109 = vset.pattern.permute.xlu0 0
      %8110 = vperm.xlu0 %8109, %v8088
      %v8111 = vpop.permute.xlu0 %8110
      %8114 = vset.pattern.permute.xlu0 0
      %8115 = vperm.xlu0 %8114, %v8089
      %v8116 = vpop.permute.xlu0 %8115
      %8119 = vset.pattern.permute.xlu0 0
      %8120 = vperm.xlu0 %8119, %v8090
      %v8121 = vpop.permute.xlu0 %8120
      %8124 = vset.pattern.permute.xlu0 0
      %8125 = vperm.xlu0 %8124, %v8091
      %v8126 = vpop.permute.xlu0 %8125
      %8129 = vset.pattern.permute.xlu0 0
      %8130 = vperm.xlu0 %8129, %v8092
      %v8131 = vpop.permute.xlu0 %8130
      %v8133 = vadd.f32 %v8068, %v8096
      %v8134 = vadd.f32 %v8069, %v8096
      %v8135 = vadd.f32 %v8070, %v8101
      %v8136 = vadd.f32 %v8071, %v8101
      %v8137 = vadd.f32 %v8072, %v8106
      %v8138 = vadd.f32 %v8073, %v8106
      %v8139 = vadd.f32 %v8074, %v8111
      %v8140 = vadd.f32 %v8075, %v8111
      %v8141 = vadd.f32 %v8076, %v8116
      %v8142 = vadd.f32 %v8077, %v8116
      %v8143 = vadd.f32 %v8078, %v8121
      %v8144 = vadd.f32 %v8079, %v8121
      %v8145 = vadd.f32 %v8080, %v8126
      %v8146 = vadd.f32 %v8081, %v8126
      %v8147 = vadd.f32 %v8082, %v8131
      %v8148 = vadd.f32 %v8083, %v8131
      %v8149 = vmax.f32 %v8133, 0.0
      %v8150 = vmax.f32 %v8134, 0.0
      %v8151 = vmax.f32 %v8135, 0.0
      %v8152 = vmax.f32 %v8136, 0.0
      %v8153 = vmax.f32 %v8137, 0.0
      %v8154 = vmax.f32 %v8138, 0.0
      %v8155 = vmax.f32 %v8139, 0.0
      %v8156 = vmax.f32 %v8140, 0.0
      %v8157 = vmax.f32 %v8141, 0.0
      %v8158 = vmax.f32 %v8142, 0.0
      %v8159 = vmax.f32 %v8143, 0.0
      %v8160 = vmax.f32 %v8144, 0.0
      %v8161 = vmax.f32 %v8145, 0.0
      %v8162 = vmax.f32 %v8146, 0.0
      %v8163 = vmax.f32 %v8147, 0.0
      %v8164 = vmax.f32 %v8148, 0.0
      %8165 = vst [vmem:[#allocation2 + $0x8] sm:$0xff] %v8149
      %8166 = vst [vmem:[#allocation2 + $0x10] sm:$0xff] %v8150
      %8167 = vst [vmem:[#allocation2 + $0x28] sm:$0xff] %v8151
      %8168 = vst [vmem:[#allocation2 + $0x30] sm:$0xff] %v8152
      %8169 = vst [vmem:[#allocation2 + $0x48] sm:$0xff] %v8153
      %8170 = vst [vmem:[#allocation2 + $0x50] sm:$0xff] %v8154
      %8171 = vst [vmem:[#allocation2 + $0x68] sm:$0xff] %v8155
      %8172 = vst [vmem:[#allocation2 + $0x70] sm:$0xff] %v8156
      %8173 = vst [vmem:[#allocation2 + $0x88] sm:$0xff] %v8157
      %8174 = vst [vmem:[#allocation2 + $0x90] sm:$0xff] %v8158
      %8175 = vst [vmem:[#allocation2 + $0xa8] sm:$0xff] %v8159
      %8176 = vst [vmem:[#allocation2 + $0xb0] sm:$0xff] %v8160
      %8177 = vst [vmem:[#allocation2 + $0xc8] sm:$0xff] %v8161
      %8178 = vst [vmem:[#allocation2 + $0xd0] sm:$0xff] %v8162
      %8179 = vst [vmem:[#allocation2 + $0xe8] sm:$0xff] %v8163
      %8180 = vst [vmem:[#allocation2 + $0xf0] sm:$0xff] %v8164
      %v8181 = vld [vmem:[#allocation2] sm:$0xff]
      %v8182 = vld [vmem:[#allocation2 + $0x8] sm:$0xff]
      %v8183 = vld [vmem:[#allocation2 + $0x10] sm:$0xff]
      %v8184 = vld [vmem:[#allocation2 + $0x20] sm:$0xff]
      %v8185 = vld [vmem:[#allocation2 + $0x28] sm:$0xff]
      %v8186 = vld [vmem:[#allocation2 + $0x30] sm:$0xff]
      %v8187 = vld [vmem:[#allocation2 + $0x40] sm:$0xff]
      %v8188 = vld [vmem:[#allocation2 + $0x48] sm:$0xff]
      %v8189 = vld [vmem:[#allocation2 + $0x50] sm:$0xff]
      %v8190 = vld [vmem:[#allocation2 + $0x60] sm:$0xff]
      %v8191 = vld [vmem:[#allocation2 + $0x68] sm:$0xff]
      %v8192 = vld [vmem:[#allocation2 + $0x70] sm:$0xff]
      %v8193 = vld [vmem:[#allocation2 + $0x80] sm:$0xff]
      %v8194 = vld [vmem:[#allocation2 + $0x88] sm:$0xff]
      %v8195 = vld [vmem:[#allocation2 + $0x90] sm:$0xff]
      %v8196 = vld [vmem:[#allocation2 + $0xa0] sm:$0xff]
      %v8197 = vld [vmem:[#allocation2 + $0xa8] sm:$0xff]
      %v8198 = vld [vmem:[#allocation2 + $0xb0] sm:$0xff]
      %v8199 = vld [vmem:[#allocation2 + $0xc0] sm:$0xff]
      %v8200 = vld [vmem:[#allocation2 + $0xc8] sm:$0xff]
      %v8201 = vld [vmem:[#allocation2 + $0xd0] sm:$0xff]
      %v8202 = vld [vmem:[#allocation2 + $0xe0] sm:$0xff]
      %v8203 = vld [vmem:[#allocation2 + $0xe8] sm:$0xff]
      %v8204 = vld [vmem:[#allocation2 + $0xf0] sm:$0xff]
      %v8205 = vmul.f32 %v8181, %v338
      %v8206 = vmul.f32 %v8182, %v342
      %v8207 = vmul.f32 %v8183, %v340
      %v8208 = vmul.f32 %v8184, %v338
      %v8209 = vmul.f32 %v8185, %v342
      %v8210 = vmul.f32 %v8186, %v340
      %v8211 = vmul.f32 %v8187, %v338
      %v8212 = vmul.f32 %v8188, %v342
      %v8213 = vmul.f32 %v8189, %v340
      %v8214 = vmul.f32 %v8190, %v338
      %v8215 = vmul.f32 %v8191, %v342
      %v8216 = vmul.f32 %v8192, %v340
      %v8217 = vmul.f32 %v8193, %v338
      %v8218 = vmul.f32 %v8194, %v342
      %v8219 = vmul.f32 %v8195, %v340
      %v8220 = vmul.f32 %v8196, %v338
      %v8221 = vmul.f32 %v8197, %v342
      %v8222 = vmul.f32 %v8198, %v340
      %v8223 = vmul.f32 %v8199, %v338
      %v8224 = vmul.f32 %v8200, %v342
      %v8225 = vmul.f32 %v8201, %v340
      %v8226 = vmul.f32 %v8202, %v338
      %v8227 = vmul.f32 %v8203, %v342
      %v8228 = vmul.f32 %v8204, %v340
      %v8229 = vpack.c.bf16 %v8208, %v8205
      %v8230 = vpack.c.bf16 %v8209, %v8206
      %v8231 = vpack.c.bf16 %v8210, %v8207
      %v8232 = vpack.c.bf16 %v8214, %v8211
      %v8233 = vpack.c.bf16 %v8215, %v8212
      %v8234 = vpack.c.bf16 %v8216, %v8213
      %v8235 = vpack.c.bf16 %v8220, %v8217
      %v8236 = vpack.c.bf16 %v8221, %v8218
      %v8237 = vpack.c.bf16 %v8222, %v8219
      %v8238 = vpack.c.bf16 %v8226, %v8223
      %v8239 = vpack.c.bf16 %v8227, %v8224
      %v8240 = vpack.c.bf16 %v8228, %v8225
      %8253 = vrot.lane.b32.xlu0 %v8229, 17
      %v8254 = vpop.permute.xlu0 %8253
      %8255 = vrot.lane.b32.xlu0 %v8230, 17
      %v8256 = vpop.permute.xlu0 %8255
      %8257 = vrot.lane.b32.xlu0 %v8231, 17
      %v8258 = vpop.permute.xlu0 %8257
      %8259 = vrot.lane.b32.xlu0 %v8232, 17
      %v8260 = vpop.permute.xlu0 %8259
      %8261 = vrot.lane.b32.xlu0 %v8233, 17
      %v8262 = vpop.permute.xlu0 %8261
      %8263 = vrot.lane.b32.xlu0 %v8234, 17
      %v8264 = vpop.permute.xlu0 %8263
      %8265 = vrot.lane.b32.xlu0 %v8235, 17
      %v8266 = vpop.permute.xlu0 %8265
      %8267 = vrot.lane.b32.xlu0 %v8236, 17
      %v8268 = vpop.permute.xlu0 %8267
      %8269 = vrot.lane.b32.xlu0 %v8237, 17
      %v8270 = vpop.permute.xlu0 %8269
      %8271 = vrot.lane.b32.xlu0 %v8238, 17
      %v8272 = vpop.permute.xlu0 %8271
      %8273 = vrot.lane.b32.xlu0 %v8239, 17
      %v8274 = vpop.permute.xlu0 %8273
      %8275 = vrot.lane.b32.xlu0 %v8240, 17
      %v8276 = vpop.permute.xlu0 %8275
      %v8277 = vsel %vm418, %v8254, %v8256
      %v8278 = vsel %vm418, %v8256, %v8258
      %v8279 = vsel %vm418, %v8260, %v8262
      %v8280 = vsel %vm418, %v8262, %v8264
      %v8281 = vsel %vm418, %v8266, %v8268
      %v8282 = vsel %vm418, %v8268, %v8270
      %v8283 = vsel %vm418, %v8272, %v8274
      %v8284 = vsel %vm418, %v8274, %v8276
      %8293 = vst [vmem:[#allocation3] sm:$0xff] %v8277
      %8294 = vst [vmem:[#allocation3 + $0x8] sm:$0xff] %v8278
      %8295 = vst [vmem:[#allocation3 + $0x10] sm:$0xff] %v8279
      %8296 = vst [vmem:[#allocation3 + $0x18] sm:$0xff] %v8280
      %8297 = vst [vmem:[#allocation3 + $0x20] sm:$0xff] %v8281
      %8298 = vst [vmem:[#allocation3 + $0x28] sm:$0xff] %v8282
      %8299 = vst [vmem:[#allocation3 + $0x30] sm:$0xff] %v8283
      %8300 = vst [vmem:[#allocation3 + $0x38] sm:$0xff] %v8284
      %v8301 = vld [vmem:[#allocation2] sm:$0xff]
      %v8302 = vld [vmem:[#allocation2 + $0x8] sm:$0xff]
      %v8303 = vld [vmem:[#allocation2 + $0x10] sm:$0xff]
      %v8304 = vld [vmem:[#allocation2 + $0x20] sm:$0xff]
      %v8305 = vld [vmem:[#allocation2 + $0x28] sm:$0xff]
      %v8306 = vld [vmem:[#allocation2 + $0x30] sm:$0xff]
      %v8307 = vld [vmem:[#allocation2 + $0x40] sm:$0xff]
      %v8308 = vld [vmem:[#allocation2 + $0x48] sm:$0xff]
      %v8309 = vld [vmem:[#allocation2 + $0x50] sm:$0xff]
      %v8310 = vld [vmem:[#allocation2 + $0x60] sm:$0xff]
      %v8311 = vld [vmem:[#allocation2 + $0x68] sm:$0xff]
      %v8312 = vld [vmem:[#allocation2 + $0x70] sm:$0xff]
      %v8313 = vld [vmem:[#allocation2 + $0x80] sm:$0xff]
      %v8314 = vld [vmem:[#allocation2 + $0x88] sm:$0xff]
      %v8315 = vld [vmem:[#allocation2 + $0x90] sm:$0xff]
      %v8316 = vld [vmem:[#allocation2 + $0xa0] sm:$0xff]
      %v8317 = vld [vmem:[#allocation2 + $0xa8] sm:$0xff]
      %v8318 = vld [vmem:[#allocation2 + $0xb0] sm:$0xff]
      %v8319 = vld [vmem:[#allocation2 + $0xc0] sm:$0xff]
      %v8320 = vld [vmem:[#allocation2 + $0xc8] sm:$0xff]
      %v8321 = vld [vmem:[#allocation2 + $0xd0] sm:$0xff]
      %v8322 = vld [vmem:[#allocation2 + $0xe0] sm:$0xff]
      %v8323 = vld [vmem:[#allocation2 + $0xe8] sm:$0xff]
      %v8324 = vld [vmem:[#allocation2 + $0xf0] sm:$0xff]
      %v8325 = vpack.c.bf16 %v8304, %v8301
      %v8326 = vpack.c.bf16 %v8305, %v8302
      %v8327 = vpack.c.bf16 %v8306, %v8303
      %v8328 = vpack.c.bf16 %v8310, %v8307
      %v8329 = vpack.c.bf16 %v8311, %v8308
      %v8330 = vpack.c.bf16 %v8312, %v8309
      %v8331 = vpack.c.bf16 %v8316, %v8313
      %v8332 = vpack.c.bf16 %v8317, %v8314
      %v8333 = vpack.c.bf16 %v8318, %v8315
      %v8334 = vpack.c.bf16 %v8322, %v8319
      %v8335 = vpack.c.bf16 %v8323, %v8320
      %v8336 = vpack.c.bf16 %v8324, %v8321
      %8349 = vrot.lane.b32.xlu0 %v8325, 16
      %v8350 = vpop.permute.xlu0 %8349
      %8351 = vrot.lane.b32.xlu0 %v8326, 16
      %v8352 = vpop.permute.xlu0 %8351
      %8353 = vrot.lane.b32.xlu0 %v8327, 16
      %v8354 = vpop.permute.xlu0 %8353
      %8355 = vrot.lane.b32.xlu0 %v8328, 16
      %v8356 = vpop.permute.xlu0 %8355
      %8357 = vrot.lane.b32.xlu0 %v8329, 16
      %v8358 = vpop.permute.xlu0 %8357
      %8359 = vrot.lane.b32.xlu0 %v8330, 16
      %v8360 = vpop.permute.xlu0 %8359
      %8361 = vrot.lane.b32.xlu0 %v8331, 16
      %v8362 = vpop.permute.xlu0 %8361
      %8363 = vrot.lane.b32.xlu0 %v8332, 16
      %v8364 = vpop.permute.xlu0 %8363
      %8365 = vrot.lane.b32.xlu0 %v8333, 16
      %v8366 = vpop.permute.xlu0 %8365
      %8367 = vrot.lane.b32.xlu0 %v8334, 16
      %v8368 = vpop.permute.xlu0 %8367
      %8369 = vrot.lane.b32.xlu0 %v8335, 16
      %v8370 = vpop.permute.xlu0 %8369
      %8371 = vrot.lane.b32.xlu0 %v8336, 16
      %v8372 = vpop.permute.xlu0 %8371
      %v8373 = vsel %vm515, %v8350, %v8352
      %v8374 = vsel %vm515, %v8352, %v8354
      %v8375 = vsel %vm515, %v8356, %v8358
      %v8376 = vsel %vm515, %v8358, %v8360
      %v8377 = vsel %vm515, %v8362, %v8364
      %v8378 = vsel %vm515, %v8364, %v8366
      %v8379 = vsel %vm515, %v8368, %v8370
      %v8380 = vsel %vm515, %v8370, %v8372
      %8389 = vst [vmem:[#allocation3 + $0x40] sm:$0xff] %v8373
      %8390 = vst [vmem:[#allocation3 + $0x48] sm:$0xff] %v8374
      %8391 = vst [vmem:[#allocation3 + $0x50] sm:$0xff] %v8375
      %8392 = vst [vmem:[#allocation3 + $0x58] sm:$0xff] %v8376
      %8393 = vst [vmem:[#allocation3 + $0x60] sm:$0xff] %v8377
      %8394 = vst [vmem:[#allocation3 + $0x68] sm:$0xff] %v8378
      %8395 = vst [vmem:[#allocation3 + $0x70] sm:$0xff] %v8379
      %8396 = vst [vmem:[#allocation3 + $0x78] sm:$0xff] %v8380
      %v8397 = vld [vmem:[#allocation2] sm:$0xff]
      %v8398 = vld [vmem:[#allocation2 + $0x8] sm:$0xff]
      %v8399 = vld [vmem:[#allocation2 + $0x10] sm:$0xff]
      %v8400 = vld [vmem:[#allocation2 + $0x20] sm:$0xff]
      %v8401 = vld [vmem:[#allocation2 + $0x28] sm:$0xff]
      %v8402 = vld [vmem:[#allocation2 + $0x30] sm:$0xff]
      %v8403 = vld [vmem:[#allocation2 + $0x40] sm:$0xff]
      %v8404 = vld [vmem:[#allocation2 + $0x48] sm:$0xff]
      %v8405 = vld [vmem:[#allocation2 + $0x50] sm:$0xff]
      %v8406 = vld [vmem:[#allocation2 + $0x60] sm:$0xff]
      %v8407 = vld [vmem:[#allocation2 + $0x68] sm:$0xff]
      %v8408 = vld [vmem:[#allocation2 + $0x70] sm:$0xff]
      %v8409 = vld [vmem:[#allocation2 + $0x80] sm:$0xff]
      %v8410 = vld [vmem:[#allocation2 + $0x88] sm:$0xff]
      %v8411 = vld [vmem:[#allocation2 + $0x90] sm:$0xff]
      %v8412 = vld [vmem:[#allocation2 + $0xa0] sm:$0xff]
      %v8413 = vld [vmem:[#allocation2 + $0xa8] sm:$0xff]
      %v8414 = vld [vmem:[#allocation2 + $0xb0] sm:$0xff]
      %v8415 = vld [vmem:[#allocation2 + $0xc0] sm:$0xff]
      %v8416 = vld [vmem:[#allocation2 + $0xc8] sm:$0xff]
      %v8417 = vld [vmem:[#allocation2 + $0xd0] sm:$0xff]
      %v8418 = vld [vmem:[#allocation2 + $0xe0] sm:$0xff]
      %v8419 = vld [vmem:[#allocation2 + $0xe8] sm:$0xff]
      %v8420 = vld [vmem:[#allocation2 + $0xf0] sm:$0xff]
      %v8421 = vmul.f32 %v8397, %v567
      %v8422 = vmul.f32 %v8398, %v571
      %v8423 = vmul.f32 %v8399, %v569
      %v8424 = vmul.f32 %v8400, %v567
      %v8425 = vmul.f32 %v8401, %v571
      %v8426 = vmul.f32 %v8402, %v569
      %v8427 = vmul.f32 %v8403, %v567
      %v8428 = vmul.f32 %v8404, %v571
      %v8429 = vmul.f32 %v8405, %v569
      %v8430 = vmul.f32 %v8406, %v567
      %v8431 = vmul.f32 %v8407, %v571
      %v8432 = vmul.f32 %v8408, %v569
      %v8433 = vmul.f32 %v8409, %v567
      %v8434 = vmul.f32 %v8410, %v571
      %v8435 = vmul.f32 %v8411, %v569
      %v8436 = vmul.f32 %v8412, %v567
      %v8437 = vmul.f32 %v8413, %v571
      %v8438 = vmul.f32 %v8414, %v569
      %v8439 = vmul.f32 %v8415, %v567
      %v8440 = vmul.f32 %v8416, %v571
      %v8441 = vmul.f32 %v8417, %v569
      %v8442 = vmul.f32 %v8418, %v567
      %v8443 = vmul.f32 %v8419, %v571
      %v8444 = vmul.f32 %v8420, %v569
      %v8445 = vpack.c.bf16 %v8424, %v8421
      %v8446 = vpack.c.bf16 %v8425, %v8422
      %v8447 = vpack.c.bf16 %v8426, %v8423
      %v8448 = vpack.c.bf16 %v8430, %v8427
      %v8449 = vpack.c.bf16 %v8431, %v8428
      %v8450 = vpack.c.bf16 %v8432, %v8429
      %v8451 = vpack.c.bf16 %v8436, %v8433
      %v8452 = vpack.c.bf16 %v8437, %v8434
      %v8453 = vpack.c.bf16 %v8438, %v8435
      %v8454 = vpack.c.bf16 %v8442, %v8439
      %v8455 = vpack.c.bf16 %v8443, %v8440
      %v8456 = vpack.c.bf16 %v8444, %v8441
      %8469 = vrot.lane.b32.xlu0 %v8445, 15
      %v8470 = vpop.permute.xlu0 %8469
      %8471 = vrot.lane.b32.xlu0 %v8446, 15
      %v8472 = vpop.permute.xlu0 %8471
      %8473 = vrot.lane.b32.xlu0 %v8447, 15
      %v8474 = vpop.permute.xlu0 %8473
      %8475 = vrot.lane.b32.xlu0 %v8448, 15
      %v8476 = vpop.permute.xlu0 %8475
      %8477 = vrot.lane.b32.xlu0 %v8449, 15
      %v8478 = vpop.permute.xlu0 %8477
      %8479 = vrot.lane.b32.xlu0 %v8450, 15
      %v8480 = vpop.permute.xlu0 %8479
      %8481 = vrot.lane.b32.xlu0 %v8451, 15
      %v8482 = vpop.permute.xlu0 %8481
      %8483 = vrot.lane.b32.xlu0 %v8452, 15
      %v8484 = vpop.permute.xlu0 %8483
      %8485 = vrot.lane.b32.xlu0 %v8453, 15
      %v8486 = vpop.permute.xlu0 %8485
      %8487 = vrot.lane.b32.xlu0 %v8454, 15
      %v8488 = vpop.permute.xlu0 %8487
      %8489 = vrot.lane.b32.xlu0 %v8455, 15
      %v8490 = vpop.permute.xlu0 %8489
      %8491 = vrot.lane.b32.xlu0 %v8456, 15
      %v8492 = vpop.permute.xlu0 %8491
      %v8493 = vsel %vm647, %v8470, %v8472
      %v8494 = vsel %vm647, %v8472, %v8474
      %v8495 = vsel %vm647, %v8476, %v8478
      %v8496 = vsel %vm647, %v8478, %v8480
      %v8497 = vsel %vm647, %v8482, %v8484
      %v8498 = vsel %vm647, %v8484, %v8486
      %v8499 = vsel %vm647, %v8488, %v8490
      %v8500 = vsel %vm647, %v8490, %v8492
      %8509 = vst [vmem:[#allocation3 + $0x80] sm:$0xff] %v8493
      %8510 = vst [vmem:[#allocation3 + $0x88] sm:$0xff] %v8494
      %8511 = vst [vmem:[#allocation3 + $0x90] sm:$0xff] %v8495
      %8512 = vst [vmem:[#allocation3 + $0x98] sm:$0xff] %v8496
      %8513 = vst [vmem:[#allocation3 + $0xa0] sm:$0xff] %v8497
      %8514 = vst [vmem:[#allocation3 + $0xa8] sm:$0xff] %v8498
      %8515 = vst [vmem:[#allocation3 + $0xb0] sm:$0xff] %v8499
      %8516 = vst [vmem:[#allocation3 + $0xb8] sm:$0xff] %v8500
      %v8517 = vld [vmem:[#allocation2] sm:$0xff]
      %v8518 = vld [vmem:[#allocation2 + $0x8] sm:$0xff]
      %v8519 = vld [vmem:[#allocation2 + $0x10] sm:$0xff]
      %v8520 = vld [vmem:[#allocation2 + $0x20] sm:$0xff]
      %v8521 = vld [vmem:[#allocation2 + $0x28] sm:$0xff]
      %v8522 = vld [vmem:[#allocation2 + $0x30] sm:$0xff]
      %v8523 = vld [vmem:[#allocation2 + $0x40] sm:$0xff]
      %v8524 = vld [vmem:[#allocation2 + $0x48] sm:$0xff]
      %v8525 = vld [vmem:[#allocation2 + $0x50] sm:$0xff]
      %v8526 = vld [vmem:[#allocation2 + $0x60] sm:$0xff]
      %v8527 = vld [vmem:[#allocation2 + $0x68] sm:$0xff]
      %v8528 = vld [vmem:[#allocation2 + $0x70] sm:$0xff]
      %v8529 = vld [vmem:[#allocation2 + $0x80] sm:$0xff]
      %v8530 = vld [vmem:[#allocation2 + $0x88] sm:$0xff]
      %v8531 = vld [vmem:[#allocation2 + $0x90] sm:$0xff]
      %v8532 = vld [vmem:[#allocation2 + $0xa0] sm:$0xff]
      %v8533 = vld [vmem:[#allocation2 + $0xa8] sm:$0xff]
      %v8534 = vld [vmem:[#allocation2 + $0xb0] sm:$0xff]
      %v8535 = vld [vmem:[#allocation2 + $0xc0] sm:$0xff]
      %v8536 = vld [vmem:[#allocation2 + $0xc8] sm:$0xff]
      %v8537 = vld [vmem:[#allocation2 + $0xd0] sm:$0xff]
      %v8538 = vld [vmem:[#allocation2 + $0xe0] sm:$0xff]
      %v8539 = vld [vmem:[#allocation2 + $0xe8] sm:$0xff]
      %v8540 = vld [vmem:[#allocation2 + $0xf0] sm:$0xff]
      %v8541 = vmul.f32 %v8517, %v697
      %v8542 = vmul.f32 %v8518, %v701
      %v8543 = vmul.f32 %v8519, %v699
      %v8544 = vmul.f32 %v8520, %v697
      %v8545 = vmul.f32 %v8521, %v701
      %v8546 = vmul.f32 %v8522, %v699
      %v8547 = vmul.f32 %v8523, %v697
      %v8548 = vmul.f32 %v8524, %v701
      %v8549 = vmul.f32 %v8525, %v699
      %v8550 = vmul.f32 %v8526, %v697
      %v8551 = vmul.f32 %v8527, %v701
      %v8552 = vmul.f32 %v8528, %v699
      %v8553 = vmul.f32 %v8529, %v697
      %v8554 = vmul.f32 %v8530, %v701
      %v8555 = vmul.f32 %v8531, %v699
      %v8556 = vmul.f32 %v8532, %v697
      %v8557 = vmul.f32 %v8533, %v701
      %v8558 = vmul.f32 %v8534, %v699
      %v8559 = vmul.f32 %v8535, %v697
      %v8560 = vmul.f32 %v8536, %v701
      %v8561 = vmul.f32 %v8537, %v699
      %v8562 = vmul.f32 %v8538, %v697
      %v8563 = vmul.f32 %v8539, %v701
      %v8564 = vmul.f32 %v8540, %v699
      %v8565 = vpack.c.bf16 %v8544, %v8541
      %v8566 = vpack.c.bf16 %v8545, %v8542
      %v8567 = vpack.c.bf16 %v8546, %v8543
      %v8568 = vpack.c.bf16 %v8550, %v8547
      %v8569 = vpack.c.bf16 %v8551, %v8548
      %v8570 = vpack.c.bf16 %v8552, %v8549
      %v8571 = vpack.c.bf16 %v8556, %v8553
      %v8572 = vpack.c.bf16 %v8557, %v8554
      %v8573 = vpack.c.bf16 %v8558, %v8555
      %v8574 = vpack.c.bf16 %v8562, %v8559
      %v8575 = vpack.c.bf16 %v8563, %v8560
      %v8576 = vpack.c.bf16 %v8564, %v8561
      %8589 = vrot.lane.b32.xlu0 %v8565, 1
      %v8590 = vpop.permute.xlu0 %8589
      %8591 = vrot.lane.b32.xlu0 %v8566, 1
      %v8592 = vpop.permute.xlu0 %8591
      %8593 = vrot.lane.b32.xlu0 %v8567, 1
      %v8594 = vpop.permute.xlu0 %8593
      %8595 = vrot.lane.b32.xlu0 %v8568, 1
      %v8596 = vpop.permute.xlu0 %8595
      %8597 = vrot.lane.b32.xlu0 %v8569, 1
      %v8598 = vpop.permute.xlu0 %8597
      %8599 = vrot.lane.b32.xlu0 %v8570, 1
      %v8600 = vpop.permute.xlu0 %8599
      %8601 = vrot.lane.b32.xlu0 %v8571, 1
      %v8602 = vpop.permute.xlu0 %8601
      %8603 = vrot.lane.b32.xlu0 %v8572, 1
      %v8604 = vpop.permute.xlu0 %8603
      %8605 = vrot.lane.b32.xlu0 %v8573, 1
      %v8606 = vpop.permute.xlu0 %8605
      %8607 = vrot.lane.b32.xlu0 %v8574, 1
      %v8608 = vpop.permute.xlu0 %8607
      %8609 = vrot.lane.b32.xlu0 %v8575, 1
      %v8610 = vpop.permute.xlu0 %8609
      %8611 = vrot.lane.b32.xlu0 %v8576, 1
      %v8612 = vpop.permute.xlu0 %8611
      %v8613 = vsel %vm777, %v8590, %v8592
      %v8614 = vsel %vm777, %v8592, %v8594
      %v8615 = vsel %vm777, %v8596, %v8598
      %v8616 = vsel %vm777, %v8598, %v8600
      %v8617 = vsel %vm777, %v8602, %v8604
      %v8618 = vsel %vm777, %v8604, %v8606
      %v8619 = vsel %vm777, %v8608, %v8610
      %v8620 = vsel %vm777, %v8610, %v8612
      %8629 = vst [vmem:[#allocation3 + $0xc0] sm:$0xff] %v8613
      %8630 = vst [vmem:[#allocation3 + $0xc8] sm:$0xff] %v8614
      %8631 = vst [vmem:[#allocation3 + $0xd0] sm:$0xff] %v8615
      %8632 = vst [vmem:[#allocation3 + $0xd8] sm:$0xff] %v8616
      %8633 = vst [vmem:[#allocation3 + $0xe0] sm:$0xff] %v8617
      %8634 = vst [vmem:[#allocation3 + $0xe8] sm:$0xff] %v8618
      %8635 = vst [vmem:[#allocation3 + $0xf0] sm:$0xff] %v8619
      %8636 = vst [vmem:[#allocation3 + $0xf8] sm:$0xff] %v8620
      %v8637 = vld [vmem:[#allocation2 + $0x8] sm:$0xff]
      %v8638 = vld [vmem:[#allocation2 + $0x10] sm:$0xff]
      %v8639 = vld [vmem:[#allocation2 + $0x28] sm:$0xff]
      %v8640 = vld [vmem:[#allocation2 + $0x30] sm:$0xff]
      %v8641 = vld [vmem:[#allocation2 + $0x48] sm:$0xff]
      %v8642 = vld [vmem:[#allocation2 + $0x50] sm:$0xff]
      %v8643 = vld [vmem:[#allocation2 + $0x68] sm:$0xff]
      %v8644 = vld [vmem:[#allocation2 + $0x70] sm:$0xff]
      %v8645 = vld [vmem:[#allocation2 + $0x88] sm:$0xff]
      %v8646 = vld [vmem:[#allocation2 + $0x90] sm:$0xff]
      %v8647 = vld [vmem:[#allocation2 + $0xa8] sm:$0xff]
      %v8648 = vld [vmem:[#allocation2 + $0xb0] sm:$0xff]
      %v8649 = vld [vmem:[#allocation2 + $0xc8] sm:$0xff]
      %v8650 = vld [vmem:[#allocation2 + $0xd0] sm:$0xff]
      %v8651 = vld [vmem:[#allocation2 + $0xe8] sm:$0xff]
      %v8652 = vld [vmem:[#allocation2 + $0xf0] sm:$0xff]
      %v8653 = vpack.c.bf16 %v8639, %v8637
      %v8654 = vpack.c.bf16 %v8640, %v8638
      %v8655 = vpack.c.bf16 %v8643, %v8641
      %v8656 = vpack.c.bf16 %v8644, %v8642
      %v8657 = vpack.c.bf16 %v8647, %v8645
      %v8658 = vpack.c.bf16 %v8648, %v8646
      %v8659 = vpack.c.bf16 %v8651, %v8649
      %v8660 = vpack.c.bf16 %v8652, %v8650
      %8661 = vst [vmem:[#allocation3 + $0x100] sm:$0xff] %v8653
      %8662 = vst [vmem:[#allocation3 + $0x108] sm:$0xff] %v8654
      %8663 = vst [vmem:[#allocation3 + $0x110] sm:$0xff] %v8655
      %8664 = vst [vmem:[#allocation3 + $0x118] sm:$0xff] %v8656
      %8665 = vst [vmem:[#allocation3 + $0x120] sm:$0xff] %v8657
      %8666 = vst [vmem:[#allocation3 + $0x128] sm:$0xff] %v8658
      %8667 = vst [vmem:[#allocation3 + $0x130] sm:$0xff] %v8659
      %8668 = vst [vmem:[#allocation3 + $0x138] sm:$0xff] %v8660
      %v8669 = vld [vmem:[#allocation2 + $0x8] sm:$0xff]
      %v8670 = vld [vmem:[#allocation2 + $0x10] sm:$0xff]
      %v8671 = vld [vmem:[#allocation2 + $0x18] sm:$0xff]
      %v8672 = vld [vmem:[#allocation2 + $0x28] sm:$0xff]
      %v8673 = vld [vmem:[#allocation2 + $0x30] sm:$0xff]
      %v8674 = vld [vmem:[#allocation2 + $0x38] sm:$0xff]
      %v8675 = vld [vmem:[#allocation2 + $0x48] sm:$0xff]
      %v8676 = vld [vmem:[#allocation2 + $0x50] sm:$0xff]
      %v8677 = vld [vmem:[#allocation2 + $0x58] sm:$0xff]
      %v8678 = vld [vmem:[#allocation2 + $0x68] sm:$0xff]
      %v8679 = vld [vmem:[#allocation2 + $0x70] sm:$0xff]
      %v8680 = vld [vmem:[#allocation2 + $0x78] sm:$0xff]
      %v8681 = vld [vmem:[#allocation2 + $0x88] sm:$0xff]
      %v8682 = vld [vmem:[#allocation2 + $0x90] sm:$0xff]
      %v8683 = vld [vmem:[#allocation2 + $0x98] sm:$0xff]
      %v8684 = vld [vmem:[#allocation2 + $0xa8] sm:$0xff]
      %v8685 = vld [vmem:[#allocation2 + $0xb0] sm:$0xff]
      %v8686 = vld [vmem:[#allocation2 + $0xb8] sm:$0xff]
      %v8687 = vld [vmem:[#allocation2 + $0xc8] sm:$0xff]
      %v8688 = vld [vmem:[#allocation2 + $0xd0] sm:$0xff]
      %v8689 = vld [vmem:[#allocation2 + $0xd8] sm:$0xff]
      %v8690 = vld [vmem:[#allocation2 + $0xe8] sm:$0xff]
      %v8691 = vld [vmem:[#allocation2 + $0xf0] sm:$0xff]
      %v8692 = vld [vmem:[#allocation2 + $0xf8] sm:$0xff]
      %v8693 = vmul.f32 %v8669, %v859
      %v8694 = vmul.f32 %v8670, %v863
      %v8695 = vmul.f32 %v8671, %v861
      %v8696 = vmul.f32 %v8672, %v859
      %v8697 = vmul.f32 %v8673, %v863
      %v8698 = vmul.f32 %v8674, %v861
      %v8699 = vmul.f32 %v8675, %v859
      %v8700 = vmul.f32 %v8676, %v863
      %v8701 = vmul.f32 %v8677, %v861
      %v8702 = vmul.f32 %v8678, %v859
      %v8703 = vmul.f32 %v8679, %v863
      %v8704 = vmul.f32 %v8680, %v861
      %v8705 = vmul.f32 %v8681, %v859
      %v8706 = vmul.f32 %v8682, %v863
      %v8707 = vmul.f32 %v8683, %v861
      %v8708 = vmul.f32 %v8684, %v859
      %v8709 = vmul.f32 %v8685, %v863
      %v8710 = vmul.f32 %v8686, %v861
      %v8711 = vmul.f32 %v8687, %v859
      %v8712 = vmul.f32 %v8688, %v863
      %v8713 = vmul.f32 %v8689, %v861
      %v8714 = vmul.f32 %v8690, %v859
      %v8715 = vmul.f32 %v8691, %v863
      %v8716 = vmul.f32 %v8692, %v861
      %v8717 = vpack.c.bf16 %v8696, %v8693
      %v8718 = vpack.c.bf16 %v8697, %v8694
      %v8719 = vpack.c.bf16 %v8698, %v8695
      %v8720 = vpack.c.bf16 %v8702, %v8699
      %v8721 = vpack.c.bf16 %v8703, %v8700
      %v8722 = vpack.c.bf16 %v8704, %v8701
      %v8723 = vpack.c.bf16 %v8708, %v8705
      %v8724 = vpack.c.bf16 %v8709, %v8706
      %v8725 = vpack.c.bf16 %v8710, %v8707
      %v8726 = vpack.c.bf16 %v8714, %v8711
      %v8727 = vpack.c.bf16 %v8715, %v8712
      %v8728 = vpack.c.bf16 %v8716, %v8713
      %8741 = vrot.lane.b32.xlu0 %v8717, 127
      %v8742 = vpop.permute.xlu0 %8741
      %8743 = vrot.lane.b32.xlu0 %v8718, 127
      %v8744 = vpop.permute.xlu0 %8743
      %8745 = vrot.lane.b32.xlu0 %v8719, 127
      %v8746 = vpop.permute.xlu0 %8745
      %8747 = vrot.lane.b32.xlu0 %v8720, 127
      %v8748 = vpop.permute.xlu0 %8747
      %8749 = vrot.lane.b32.xlu0 %v8721, 127
      %v8750 = vpop.permute.xlu0 %8749
      %8751 = vrot.lane.b32.xlu0 %v8722, 127
      %v8752 = vpop.permute.xlu0 %8751
      %8753 = vrot.lane.b32.xlu0 %v8723, 127
      %v8754 = vpop.permute.xlu0 %8753
      %8755 = vrot.lane.b32.xlu0 %v8724, 127
      %v8756 = vpop.permute.xlu0 %8755
      %8757 = vrot.lane.b32.xlu0 %v8725, 127
      %v8758 = vpop.permute.xlu0 %8757
      %8759 = vrot.lane.b32.xlu0 %v8726, 127
      %v8760 = vpop.permute.xlu0 %8759
      %8761 = vrot.lane.b32.xlu0 %v8727, 127
      %v8762 = vpop.permute.xlu0 %8761
      %8763 = vrot.lane.b32.xlu0 %v8728, 127
      %v8764 = vpop.permute.xlu0 %8763
      %v8765 = vsel %vm939, %v8742, %v8744
      %v8766 = vsel %vm939, %v8744, %v8746
      %v8767 = vsel %vm939, %v8748, %v8750
      %v8768 = vsel %vm939, %v8750, %v8752
      %v8769 = vsel %vm939, %v8754, %v8756
      %v8770 = vsel %vm939, %v8756, %v8758
      %v8771 = vsel %vm939, %v8760, %v8762
      %v8772 = vsel %vm939, %v8762, %v8764
      %8781 = vst [vmem:[#allocation3 + $0x140] sm:$0xff] %v8765
      %8782 = vst [vmem:[#allocation3 + $0x148] sm:$0xff] %v8766
      %8783 = vst [vmem:[#allocation3 + $0x150] sm:$0xff] %v8767
      %8784 = vst [vmem:[#allocation3 + $0x158] sm:$0xff] %v8768
      %8785 = vst [vmem:[#allocation3 + $0x160] sm:$0xff] %v8769
      %8786 = vst [vmem:[#allocation3 + $0x168] sm:$0xff] %v8770
      %8787 = vst [vmem:[#allocation3 + $0x170] sm:$0xff] %v8771
      %8788 = vst [vmem:[#allocation3 + $0x178] sm:$0xff] %v8772
      %v8789 = vld [vmem:[#allocation2 + $0x8] sm:$0xff]
      %v8790 = vld [vmem:[#allocation2 + $0x10] sm:$0xff]
      %v8791 = vld [vmem:[#allocation2 + $0x18] sm:$0xff]
      %v8792 = vld [vmem:[#allocation2 + $0x28] sm:$0xff]
      %v8793 = vld [vmem:[#allocation2 + $0x30] sm:$0xff]
      %v8794 = vld [vmem:[#allocation2 + $0x38] sm:$0xff]
      %v8795 = vld [vmem:[#allocation2 + $0x48] sm:$0xff]
      %v8796 = vld [vmem:[#allocation2 + $0x50] sm:$0xff]
      %v8797 = vld [vmem:[#allocation2 + $0x58] sm:$0xff]
      %v8798 = vld [vmem:[#allocation2 + $0x68] sm:$0xff]
      %v8799 = vld [vmem:[#allocation2 + $0x70] sm:$0xff]
      %v8800 = vld [vmem:[#allocation2 + $0x78] sm:$0xff]
      %v8801 = vld [vmem:[#allocation2 + $0x88] sm:$0xff]
      %v8802 = vld [vmem:[#allocation2 + $0x90] sm:$0xff]
      %v8803 = vld [vmem:[#allocation2 + $0x98] sm:$0xff]
      %v8804 = vld [vmem:[#allocation2 + $0xa8] sm:$0xff]
      %v8805 = vld [vmem:[#allocation2 + $0xb0] sm:$0xff]
      %v8806 = vld [vmem:[#allocation2 + $0xb8] sm:$0xff]
      %v8807 = vld [vmem:[#allocation2 + $0xc8] sm:$0xff]
      %v8808 = vld [vmem:[#allocation2 + $0xd0] sm:$0xff]
      %v8809 = vld [vmem:[#allocation2 + $0xd8] sm:$0xff]
      %v8810 = vld [vmem:[#allocation2 + $0xe8] sm:$0xff]
      %v8811 = vld [vmem:[#allocation2 + $0xf0] sm:$0xff]
      %v8812 = vld [vmem:[#allocation2 + $0xf8] sm:$0xff]
      %v8813 = vmul.f32 %v8789, %v989
      %v8814 = vmul.f32 %v8790, %v993
      %v8815 = vmul.f32 %v8791, %v991
      %v8816 = vmul.f32 %v8792, %v989
      %v8817 = vmul.f32 %v8793, %v993
      %v8818 = vmul.f32 %v8794, %v991
      %v8819 = vmul.f32 %v8795, %v989
      %v8820 = vmul.f32 %v8796, %v993
      %v8821 = vmul.f32 %v8797, %v991
      %v8822 = vmul.f32 %v8798, %v989
      %v8823 = vmul.f32 %v8799, %v993
      %v8824 = vmul.f32 %v8800, %v991
      %v8825 = vmul.f32 %v8801, %v989
      %v8826 = vmul.f32 %v8802, %v993
      %v8827 = vmul.f32 %v8803, %v991
      %v8828 = vmul.f32 %v8804, %v989
      %v8829 = vmul.f32 %v8805, %v993
      %v8830 = vmul.f32 %v8806, %v991
      %v8831 = vmul.f32 %v8807, %v989
      %v8832 = vmul.f32 %v8808, %v993
      %v8833 = vmul.f32 %v8809, %v991
      %v8834 = vmul.f32 %v8810, %v989
      %v8835 = vmul.f32 %v8811, %v993
      %v8836 = vmul.f32 %v8812, %v991
      %v8837 = vpack.c.bf16 %v8816, %v8813
      %v8838 = vpack.c.bf16 %v8817, %v8814
      %v8839 = vpack.c.bf16 %v8818, %v8815
      %v8840 = vpack.c.bf16 %v8822, %v8819
      %v8841 = vpack.c.bf16 %v8823, %v8820
      %v8842 = vpack.c.bf16 %v8824, %v8821
      %v8843 = vpack.c.bf16 %v8828, %v8825
      %v8844 = vpack.c.bf16 %v8829, %v8826
      %v8845 = vpack.c.bf16 %v8830, %v8827
      %v8846 = vpack.c.bf16 %v8834, %v8831
      %v8847 = vpack.c.bf16 %v8835, %v8832
      %v8848 = vpack.c.bf16 %v8836, %v8833
      %8861 = vrot.lane.b32.xlu0 %v8837, 113
      %v8862 = vpop.permute.xlu0 %8861
      %8863 = vrot.lane.b32.xlu0 %v8838, 113
      %v8864 = vpop.permute.xlu0 %8863
      %8865 = vrot.lane.b32.xlu0 %v8839, 113
      %v8866 = vpop.permute.xlu0 %8865
      %8867 = vrot.lane.b32.xlu0 %v8840, 113
      %v8868 = vpop.permute.xlu0 %8867
      %8869 = vrot.lane.b32.xlu0 %v8841, 113
      %v8870 = vpop.permute.xlu0 %8869
      %8871 = vrot.lane.b32.xlu0 %v8842, 113
      %v8872 = vpop.permute.xlu0 %8871
      %8873 = vrot.lane.b32.xlu0 %v8843, 113
      %v8874 = vpop.permute.xlu0 %8873
      %8875 = vrot.lane.b32.xlu0 %v8844, 113
      %v8876 = vpop.permute.xlu0 %8875
      %8877 = vrot.lane.b32.xlu0 %v8845, 113
      %v8878 = vpop.permute.xlu0 %8877
      %8879 = vrot.lane.b32.xlu0 %v8846, 113
      %v8880 = vpop.permute.xlu0 %8879
      %8881 = vrot.lane.b32.xlu0 %v8847, 113
      %v8882 = vpop.permute.xlu0 %8881
      %8883 = vrot.lane.b32.xlu0 %v8848, 113
      %v8884 = vpop.permute.xlu0 %8883
      %v8885 = vsel %vm1069, %v8862, %v8864
      %v8886 = vsel %vm1069, %v8864, %v8866
      %v8887 = vsel %vm1069, %v8868, %v8870
      %v8888 = vsel %vm1069, %v8870, %v8872
      %v8889 = vsel %vm1069, %v8874, %v8876
      %v8890 = vsel %vm1069, %v8876, %v8878
      %v8891 = vsel %vm1069, %v8880, %v8882
      %v8892 = vsel %vm1069, %v8882, %v8884
      %8901 = vst [vmem:[#allocation3 + $0x180] sm:$0xff] %v8885
      %8902 = vst [vmem:[#allocation3 + $0x188] sm:$0xff] %v8886
      %8903 = vst [vmem:[#allocation3 + $0x190] sm:$0xff] %v8887
      %8904 = vst [vmem:[#allocation3 + $0x198] sm:$0xff] %v8888
      %8905 = vst [vmem:[#allocation3 + $0x1a0] sm:$0xff] %v8889
      %8906 = vst [vmem:[#allocation3 + $0x1a8] sm:$0xff] %v8890
      %8907 = vst [vmem:[#allocation3 + $0x1b0] sm:$0xff] %v8891
      %8908 = vst [vmem:[#allocation3 + $0x1b8] sm:$0xff] %v8892
      %v8909 = vld [vmem:[#allocation2 + $0x8] sm:$0xff]
      %v8910 = vld [vmem:[#allocation2 + $0x10] sm:$0xff]
      %v8911 = vld [vmem:[#allocation2 + $0x18] sm:$0xff]
      %v8912 = vld [vmem:[#allocation2 + $0x28] sm:$0xff]
      %v8913 = vld [vmem:[#allocation2 + $0x30] sm:$0xff]
      %v8914 = vld [vmem:[#allocation2 + $0x38] sm:$0xff]
      %v8915 = vld [vmem:[#allocation2 + $0x48] sm:$0xff]
      %v8916 = vld [vmem:[#allocation2 + $0x50] sm:$0xff]
      %v8917 = vld [vmem:[#allocation2 + $0x58] sm:$0xff]
      %v8918 = vld [vmem:[#allocation2 + $0x68] sm:$0xff]
      %v8919 = vld [vmem:[#allocation2 + $0x70] sm:$0xff]
      %v8920 = vld [vmem:[#allocation2 + $0x78] sm:$0xff]
      %v8921 = vld [vmem:[#allocation2 + $0x88] sm:$0xff]
      %v8922 = vld [vmem:[#allocation2 + $0x90] sm:$0xff]
      %v8923 = vld [vmem:[#allocation2 + $0x98] sm:$0xff]
      %v8924 = vld [vmem:[#allocation2 + $0xa8] sm:$0xff]
      %v8925 = vld [vmem:[#allocation2 + $0xb0] sm:$0xff]
      %v8926 = vld [vmem:[#allocation2 + $0xb8] sm:$0xff]
      %v8927 = vld [vmem:[#allocation2 + $0xc8] sm:$0xff]
      %v8928 = vld [vmem:[#allocation2 + $0xd0] sm:$0xff]
      %v8929 = vld [vmem:[#allocation2 + $0xd8] sm:$0xff]
      %v8930 = vld [vmem:[#allocation2 + $0xe8] sm:$0xff]
      %v8931 = vld [vmem:[#allocation2 + $0xf0] sm:$0xff]
      %v8932 = vld [vmem:[#allocation2 + $0xf8] sm:$0xff]
      %v8933 = vpack.c.bf16 %v8912, %v8909
      %v8934 = vpack.c.bf16 %v8913, %v8910
      %v8935 = vpack.c.bf16 %v8914, %v8911
      %v8936 = vpack.c.bf16 %v8918, %v8915
      %v8937 = vpack.c.bf16 %v8919, %v8916
      %v8938 = vpack.c.bf16 %v8920, %v8917
      %v8939 = vpack.c.bf16 %v8924, %v8921
      %v8940 = vpack.c.bf16 %v8925, %v8922
      %v8941 = vpack.c.bf16 %v8926, %v8923
      %v8942 = vpack.c.bf16 %v8930, %v8927
      %v8943 = vpack.c.bf16 %v8931, %v8928
      %v8944 = vpack.c.bf16 %v8932, %v8929
      %8957 = vrot.lane.b32.xlu0 %v8933, 112
      %v8958 = vpop.permute.xlu0 %8957
      %8959 = vrot.lane.b32.xlu0 %v8934, 112
      %v8960 = vpop.permute.xlu0 %8959
      %8961 = vrot.lane.b32.xlu0 %v8935, 112
      %v8962 = vpop.permute.xlu0 %8961
      %8963 = vrot.lane.b32.xlu0 %v8936, 112
      %v8964 = vpop.permute.xlu0 %8963
      %8965 = vrot.lane.b32.xlu0 %v8937, 112
      %v8966 = vpop.permute.xlu0 %8965
      %8967 = vrot.lane.b32.xlu0 %v8938, 112
      %v8968 = vpop.permute.xlu0 %8967
      %8969 = vrot.lane.b32.xlu0 %v8939, 112
      %v8970 = vpop.permute.xlu0 %8969
      %8971 = vrot.lane.b32.xlu0 %v8940, 112
      %v8972 = vpop.permute.xlu0 %8971
      %8973 = vrot.lane.b32.xlu0 %v8941, 112
      %v8974 = vpop.permute.xlu0 %8973
      %8975 = vrot.lane.b32.xlu0 %v8942, 112
      %v8976 = vpop.permute.xlu0 %8975
      %8977 = vrot.lane.b32.xlu0 %v8943, 112
      %v8978 = vpop.permute.xlu0 %8977
      %8979 = vrot.lane.b32.xlu0 %v8944, 112
      %v8980 = vpop.permute.xlu0 %8979
      %v8981 = vsel %vm1166, %v8958, %v8960
      %v8982 = vsel %vm1166, %v8960, %v8962
      %v8983 = vsel %vm1166, %v8964, %v8966
      %v8984 = vsel %vm1166, %v8966, %v8968
      %v8985 = vsel %vm1166, %v8970, %v8972
      %v8986 = vsel %vm1166, %v8972, %v8974
      %v8987 = vsel %vm1166, %v8976, %v8978
      %v8988 = vsel %vm1166, %v8978, %v8980
      %8997 = vst [vmem:[#allocation3 + $0x1c0] sm:$0xff] %v8981
      %8998 = vst [vmem:[#allocation3 + $0x1c8] sm:$0xff] %v8982
      %8999 = vst [vmem:[#allocation3 + $0x1d0] sm:$0xff] %v8983
      %9000 = vst [vmem:[#allocation3 + $0x1d8] sm:$0xff] %v8984
      %9001 = vst [vmem:[#allocation3 + $0x1e0] sm:$0xff] %v8985
      %9002 = vst [vmem:[#allocation3 + $0x1e8] sm:$0xff] %v8986
      %9003 = vst [vmem:[#allocation3 + $0x1f0] sm:$0xff] %v8987
      %9004 = vst [vmem:[#allocation3 + $0x1f8] sm:$0xff] %v8988
      %v9005 = vld [vmem:[#allocation2 + $0x8] sm:$0xff]
      %v9006 = vld [vmem:[#allocation2 + $0x10] sm:$0xff]
      %v9007 = vld [vmem:[#allocation2 + $0x18] sm:$0xff]
      %v9008 = vld [vmem:[#allocation2 + $0x28] sm:$0xff]
      %v9009 = vld [vmem:[#allocation2 + $0x30] sm:$0xff]
      %v9010 = vld [vmem:[#allocation2 + $0x38] sm:$0xff]
      %v9011 = vld [vmem:[#allocation2 + $0x48] sm:$0xff]
      %v9012 = vld [vmem:[#allocation2 + $0x50] sm:$0xff]
      %v9013 = vld [vmem:[#allocation2 + $0x58] sm:$0xff]
      %v9014 = vld [vmem:[#allocation2 + $0x68] sm:$0xff]
      %v9015 = vld [vmem:[#allocation2 + $0x70] sm:$0xff]
      %v9016 = vld [vmem:[#allocation2 + $0x78] sm:$0xff]
      %v9017 = vld [vmem:[#allocation2 + $0x88] sm:$0xff]
      %v9018 = vld [vmem:[#allocation2 + $0x90] sm:$0xff]
      %v9019 = vld [vmem:[#allocation2 + $0x98] sm:$0xff]
      %v9020 = vld [vmem:[#allocation2 + $0xa8] sm:$0xff]
      %v9021 = vld [vmem:[#allocation2 + $0xb0] sm:$0xff]
      %v9022 = vld [vmem:[#allocation2 + $0xb8] sm:$0xff]
      %v9023 = vld [vmem:[#allocation2 + $0xc8] sm:$0xff]
      %v9024 = vld [vmem:[#allocation2 + $0xd0] sm:$0xff]
      %v9025 = vld [vmem:[#allocation2 + $0xd8] sm:$0xff]
      %v9026 = vld [vmem:[#allocation2 + $0xe8] sm:$0xff]
      %v9027 = vld [vmem:[#allocation2 + $0xf0] sm:$0xff]
      %v9028 = vld [vmem:[#allocation2 + $0xf8] sm:$0xff]
      %v9029 = vmul.f32 %v9005, %v1216
      %v9030 = vmul.f32 %v9006, %v1220
      %v9031 = vmul.f32 %v9007, %v1218
      %v9032 = vmul.f32 %v9008, %v1216
      %v9033 = vmul.f32 %v9009, %v1220
      %v9034 = vmul.f32 %v9010, %v1218
      %v9035 = vmul.f32 %v9011, %v1216
      %v9036 = vmul.f32 %v9012, %v1220
      %v9037 = vmul.f32 %v9013, %v1218
      %v9038 = vmul.f32 %v9014, %v1216
      %v9039 = vmul.f32 %v9015, %v1220
      %v9040 = vmul.f32 %v9016, %v1218
      %v9041 = vmul.f32 %v9017, %v1216
      %v9042 = vmul.f32 %v9018, %v1220
      %v9043 = vmul.f32 %v9019, %v1218
      %v9044 = vmul.f32 %v9020, %v1216
      %v9045 = vmul.f32 %v9021, %v1220
      %v9046 = vmul.f32 %v9022, %v1218
      %v9047 = vmul.f32 %v9023, %v1216
      %v9048 = vmul.f32 %v9024, %v1220
      %v9049 = vmul.f32 %v9025, %v1218
      %v9050 = vmul.f32 %v9026, %v1216
      %v9051 = vmul.f32 %v9027, %v1220
      %v9052 = vmul.f32 %v9028, %v1218
      %v9053 = vpack.c.bf16 %v9032, %v9029
      %v9054 = vpack.c.bf16 %v9033, %v9030
      %v9055 = vpack.c.bf16 %v9034, %v9031
      %v9056 = vpack.c.bf16 %v9038, %v9035
      %v9057 = vpack.c.bf16 %v9039, %v9036
      %v9058 = vpack.c.bf16 %v9040, %v9037
      %v9059 = vpack.c.bf16 %v9044, %v9041
      %v9060 = vpack.c.bf16 %v9045, %v9042
      %v9061 = vpack.c.bf16 %v9046, %v9043
      %v9062 = vpack.c.bf16 %v9050, %v9047
      %v9063 = vpack.c.bf16 %v9051, %v9048
      %v9064 = vpack.c.bf16 %v9052, %v9049
      %9077 = vrot.lane.b32.xlu0 %v9053, 111
      %v9078 = vpop.permute.xlu0 %9077
      %9079 = vrot.lane.b32.xlu0 %v9054, 111
      %v9080 = vpop.permute.xlu0 %9079
      %9081 = vrot.lane.b32.xlu0 %v9055, 111
      %v9082 = vpop.permute.xlu0 %9081
      %9083 = vrot.lane.b32.xlu0 %v9056, 111
      %v9084 = vpop.permute.xlu0 %9083
      %9085 = vrot.lane.b32.xlu0 %v9057, 111
      %v9086 = vpop.permute.xlu0 %9085
      %9087 = vrot.lane.b32.xlu0 %v9058, 111
      %v9088 = vpop.permute.xlu0 %9087
      %9089 = vrot.lane.b32.xlu0 %v9059, 111
      %v9090 = vpop.permute.xlu0 %9089
      %9091 = vrot.lane.b32.xlu0 %v9060, 111
      %v9092 = vpop.permute.xlu0 %9091
      %9093 = vrot.lane.b32.xlu0 %v9061, 111
      %v9094 = vpop.permute.xlu0 %9093
      %9095 = vrot.lane.b32.xlu0 %v9062, 111
      %v9096 = vpop.permute.xlu0 %9095
      %9097 = vrot.lane.b32.xlu0 %v9063, 111
      %v9098 = vpop.permute.xlu0 %9097
      %9099 = vrot.lane.b32.xlu0 %v9064, 111
      %v9100 = vpop.permute.xlu0 %9099
      %v9101 = vsel %vm1296, %v9078, %v9080
      %v9102 = vsel %vm1296, %v9080, %v9082
      %v9103 = vsel %vm1296, %v9084, %v9086
      %v9104 = vsel %vm1296, %v9086, %v9088
      %v9105 = vsel %vm1296, %v9090, %v9092
      %v9106 = vsel %vm1296, %v9092, %v9094
      %v9107 = vsel %vm1296, %v9096, %v9098
      %v9108 = vsel %vm1296, %v9098, %v9100
      %9117 = vst [vmem:[#allocation3 + $0x200] sm:$0xff] %v9101
      %9118 = vst [vmem:[#allocation3 + $0x208] sm:$0xff] %v9102
      %9119 = vst [vmem:[#allocation3 + $0x210] sm:$0xff] %v9103
      %9120 = vst [vmem:[#allocation3 + $0x218] sm:$0xff] %v9104
      %9121 = vst [vmem:[#allocation3 + $0x220] sm:$0xff] %v9105
      %9122 = vst [vmem:[#allocation3 + $0x228] sm:$0xff] %v9106
      %9123 = vst [vmem:[#allocation3 + $0x230] sm:$0xff] %v9107
      %9124 = vst [vmem:[#allocation3 + $0x238] sm:$0xff] %v9108
      %s9125 = scalar_lea.vmem %s2, 800
      %v9126 = vld [vmem:[%s9125] sm:$0xff]
      %v9127 = vld [vmem:[%s9125 + $0x8] sm:$0xff]
      %v9128 = vld [vmem:[%s9125 + $0x10] sm:$0xf]
      %v9129 = vld [vmem:[%s9125 + $0x14] sm:$0xff]
      %v9130 = vld [vmem:[%s9125 + $0x1c] sm:$0xff]
      %v9131 = vld [vmem:[%s9125 + $0x24] sm:$0xf]
      %v9132 = vld [vmem:[%s9125 + $0x28] sm:$0xff]
      %v9133 = vld [vmem:[%s9125 + $0x30] sm:$0xff]
      %v9134 = vld [vmem:[%s9125 + $0x38] sm:$0xf]
      %v9135 = vld [vmem:[%s9125 + $0x3c] sm:$0xff]
      %v9136 = vld [vmem:[%s9125 + $0x44] sm:$0xff]
      %v9137 = vld [vmem:[%s9125 + $0x4c] sm:$0xf]
      %v9138 = vld [vmem:[%s9125 + $0x50] sm:$0xff]
      %v9139 = vld [vmem:[%s9125 + $0x58] sm:$0xff]
      %v9140 = vld [vmem:[%s9125 + $0x60] sm:$0xf]
      %v9141 = vld [vmem:[%s9125 + $0x64] sm:$0xff]
      %v9142 = vld [vmem:[%s9125 + $0x6c] sm:$0xff]
      %v9143 = vld [vmem:[%s9125 + $0x74] sm:$0xf]
      %v9144 = vld [vmem:[%s9125 + $0x78] sm:$0xff]
      %v9145 = vld [vmem:[%s9125 + $0x80] sm:$0xff]
      %v9146 = vld [vmem:[%s9125 + $0x88] sm:$0xf]
      %v9147 = vld [vmem:[%s9125 + $0x8c] sm:$0xff]
      %v9148 = vld [vmem:[%s9125 + $0x94] sm:$0xff]
      %v9149 = vld [vmem:[%s9125 + $0x9c] sm:$0xf]
      %v9150 = vld [vmem:[#allocation3] sm:$0xff]
      %v9151 = vld [vmem:[#allocation3 + $0x8] sm:$0xff]
      %v9152 = vld [vmem:[#allocation3 + $0x10] sm:$0xff]
      %v9153 = vld [vmem:[#allocation3 + $0x18] sm:$0xff]
      %v9154 = vld [vmem:[#allocation3 + $0x20] sm:$0xff]
      %v9155 = vld [vmem:[#allocation3 + $0x28] sm:$0xff]
      %v9156 = vld [vmem:[#allocation3 + $0x30] sm:$0xff]
      %v9157 = vld [vmem:[#allocation3 + $0x38] sm:$0xff]
      %v9158 = vld [vmem:[#allocation3 + $0x40] sm:$0xff]
      %v9159 = vld [vmem:[#allocation3 + $0x48] sm:$0xff]
      %v9160 = vld [vmem:[#allocation3 + $0x50] sm:$0xff]
      %v9161 = vld [vmem:[#allocation3 + $0x58] sm:$0xff]
      %v9162 = vld [vmem:[#allocation3 + $0x60] sm:$0xff]
      %v9163 = vld [vmem:[#allocation3 + $0x68] sm:$0xff]
      %v9164 = vld [vmem:[#allocation3 + $0x70] sm:$0xff]
      %v9165 = vld [vmem:[#allocation3 + $0x78] sm:$0xff]
      %v9166 = vld [vmem:[#allocation3 + $0x80] sm:$0xff]
      %v9167 = vld [vmem:[#allocation3 + $0x88] sm:$0xff]
      %v9168 = vld [vmem:[#allocation3 + $0x90] sm:$0xff]
      %v9169 = vld [vmem:[#allocation3 + $0x98] sm:$0xff]
      %v9170 = vld [vmem:[#allocation3 + $0xa0] sm:$0xff]
      %v9171 = vld [vmem:[#allocation3 + $0xa8] sm:$0xff]
      %v9172 = vld [vmem:[#allocation3 + $0xb0] sm:$0xff]
      %v9173 = vld [vmem:[#allocation3 + $0xb8] sm:$0xff]
      %v9174 = vld [vmem:[#allocation3 + $0xc0] sm:$0xff]
      %v9175 = vld [vmem:[#allocation3 + $0xc8] sm:$0xff]
      %v9176 = vld [vmem:[#allocation3 + $0xd0] sm:$0xff]
      %v9177 = vld [vmem:[#allocation3 + $0xd8] sm:$0xff]
      %v9178 = vld [vmem:[#allocation3 + $0xe0] sm:$0xff]
      %v9179 = vld [vmem:[#allocation3 + $0xe8] sm:$0xff]
      %v9180 = vld [vmem:[#allocation3 + $0xf0] sm:$0xff]
      %v9181 = vld [vmem:[#allocation3 + $0xf8] sm:$0xff]
      %v9182 = vld [vmem:[#allocation3 + $0x100] sm:$0xff]
      %v9183 = vld [vmem:[#allocation3 + $0x108] sm:$0xff]
      %v9184 = vld [vmem:[#allocation3 + $0x110] sm:$0xff]
      %v9185 = vld [vmem:[#allocation3 + $0x118] sm:$0xff]
      %v9186 = vld [vmem:[#allocation3 + $0x120] sm:$0xff]
      %v9187 = vld [vmem:[#allocation3 + $0x128] sm:$0xff]
      %v9188 = vld [vmem:[#allocation3 + $0x130] sm:$0xff]
      %v9189 = vld [vmem:[#allocation3 + $0x138] sm:$0xff]
      %v9190 = vld [vmem:[#allocation3 + $0x140] sm:$0xff]
      %v9191 = vld [vmem:[#allocation3 + $0x148] sm:$0xff]
      %v9192 = vld [vmem:[#allocation3 + $0x150] sm:$0xff]
      %v9193 = vld [vmem:[#allocation3 + $0x158] sm:$0xff]
      %v9194 = vld [vmem:[#allocation3 + $0x160] sm:$0xff]
      %v9195 = vld [vmem:[#allocation3 + $0x168] sm:$0xff]
      %v9196 = vld [vmem:[#allocation3 + $0x170] sm:$0xff]
      %v9197 = vld [vmem:[#allocation3 + $0x178] sm:$0xff]
      %v9198 = vld [vmem:[#allocation3 + $0x180] sm:$0xff]
      %v9199 = vld [vmem:[#allocation3 + $0x188] sm:$0xff]
      %v9200 = vld [vmem:[#allocation3 + $0x190] sm:$0xff]
      %v9201 = vld [vmem:[#allocation3 + $0x198] sm:$0xff]
      %v9202 = vld [vmem:[#allocation3 + $0x1a0] sm:$0xff]
      %v9203 = vld [vmem:[#allocation3 + $0x1a8] sm:$0xff]
      %v9204 = vld [vmem:[#allocation3 + $0x1b0] sm:$0xff]
      %v9205 = vld [vmem:[#allocation3 + $0x1b8] sm:$0xff]
      %v9206 = vld [vmem:[#allocation3 + $0x1c0] sm:$0xff]
      %v9207 = vld [vmem:[#allocation3 + $0x1c8] sm:$0xff]
      %v9208 = vld [vmem:[#allocation3 + $0x1d0] sm:$0xff]
      %v9209 = vld [vmem:[#allocation3 + $0x1d8] sm:$0xff]
      %v9210 = vld [vmem:[#allocation3 + $0x1e0] sm:$0xff]
      %v9211 = vld [vmem:[#allocation3 + $0x1e8] sm:$0xff]
      %v9212 = vld [vmem:[#allocation3 + $0x1f0] sm:$0xff]
      %v9213 = vld [vmem:[#allocation3 + $0x1f8] sm:$0xff]
      %v9214 = vld [vmem:[#allocation3 + $0x200] sm:$0xff]
      %v9215 = vld [vmem:[#allocation3 + $0x208] sm:$0xff]
      %v9216 = vld [vmem:[#allocation3 + $0x210] sm:$0xff]
      %v9217 = vld [vmem:[#allocation3 + $0x218] sm:$0xff]
      %v9218 = vld [vmem:[#allocation3 + $0x220] sm:$0xff]
      %v9219 = vld [vmem:[#allocation3 + $0x228] sm:$0xff]
      %v9220 = vld [vmem:[#allocation3 + $0x230] sm:$0xff]
      %v9221 = vld [vmem:[#allocation3 + $0x238] sm:$0xff]
      %v9246 = vunpack.c.l.b16 %v9126
      %v9247 = vunpack.c.h.b16 %v9126
      %v9248 = vunpack.c.l.b16 %v9127
      %v9249 = vunpack.c.h.b16 %v9127
      %v9250 = vunpack.c.l.b16 %v9128
      %v9251 = vunpack.c.l.b16 %v9129
      %v9252 = vunpack.c.h.b16 %v9129
      %v9253 = vunpack.c.l.b16 %v9130
      %v9254 = vunpack.c.h.b16 %v9130
      %v9255 = vunpack.c.l.b16 %v9131
      %v9256 = vunpack.c.l.b16 %v9132
      %v9257 = vunpack.c.h.b16 %v9132
      %v9258 = vunpack.c.l.b16 %v9133
      %v9259 = vunpack.c.h.b16 %v9133
      %v9260 = vunpack.c.l.b16 %v9134
      %v9261 = vunpack.c.l.b16 %v9135
      %v9262 = vunpack.c.h.b16 %v9135
      %v9263 = vunpack.c.l.b16 %v9136
      %v9264 = vunpack.c.h.b16 %v9136
      %v9265 = vunpack.c.l.b16 %v9137
      %v9266 = vunpack.c.l.b16 %v9138
      %v9267 = vunpack.c.h.b16 %v9138
      %v9268 = vunpack.c.l.b16 %v9139
      %v9269 = vunpack.c.h.b16 %v9139
      %v9270 = vunpack.c.l.b16 %v9140
      %v9271 = vunpack.c.l.b16 %v9141
      %v9272 = vunpack.c.h.b16 %v9141
      %v9273 = vunpack.c.l.b16 %v9142
      %v9274 = vunpack.c.h.b16 %v9142
      %v9275 = vunpack.c.l.b16 %v9143
      %v9276 = vunpack.c.l.b16 %v9144
      %v9277 = vunpack.c.h.b16 %v9144
      %v9278 = vunpack.c.l.b16 %v9145
      %v9279 = vunpack.c.h.b16 %v9145
      %v9280 = vunpack.c.l.b16 %v9146
      %v9281 = vunpack.c.l.b16 %v9147
      %v9282 = vunpack.c.h.b16 %v9147
      %v9283 = vunpack.c.l.b16 %v9148
      %v9284 = vunpack.c.h.b16 %v9148
      %v9285 = vunpack.c.l.b16 %v9149
      %v9286 = vpack.c.b16 %v9251, %v9246
      %v9287 = vpack.c.b16 %v9252, %v9247
      %v9288 = vpack.c.b16 %v9253, %v9248
      %v9289 = vpack.c.b16 %v9254, %v9249
      %v9290 = vpack.c.b16 %v9255, %v9250
      %v9291 = vpack.c.b16 %v9261, %v9256
      %v9292 = vpack.c.b16 %v9262, %v9257
      %v9293 = vpack.c.b16 %v9263, %v9258
      %v9294 = vpack.c.b16 %v9264, %v9259
      %v9295 = vpack.c.b16 %v9265, %v9260
      %v9296 = vpack.c.b16 %v9271, %v9266
      %v9297 = vpack.c.b16 %v9272, %v9267
      %v9298 = vpack.c.b16 %v9273, %v9268
      %v9299 = vpack.c.b16 %v9274, %v9269
      %v9300 = vpack.c.b16 %v9275, %v9270
      %v9301 = vpack.c.b16 %v9281, %v9276
      %v9302 = vpack.c.b16 %v9282, %v9277
      %v9303 = vpack.c.b16 %v9283, %v9278
      %v9304 = vpack.c.b16 %v9284, %v9279
      %v9305 = vpack.c.b16 %v9285, %v9280
      %v9323 = vsel %vm1517, %v9290, 0
      %v9326 = vsel %vm1517, %v9295, 0
      %v9329 = vsel %vm1517, %v9300, 0
      %v9332 = vsel %vm1517, %v9305, 0
      %9334 = vmatprep.subr.bf16.mxu0 %v9151
      %9335 = vmatpush1.bf16.msra.mxu0 %v9150
      %9336 = vmatprep.subr.bf16.mxu0 %v9153
      %9337 = vmatpush1.bf16.msra.mxu0 %v9152
      %9338 = vmatprep.subr.bf16.mxu0 %v9155
      %9339 = vmatpush1.bf16.msra.mxu0 %v9154
      %9340 = vmatprep.subr.bf16.mxu0 %v9157
      %9341 = vmatpush1.bf16.msra.mxu0 %v9156
      %9342 = vmatprep.subr.bf16.mxu0 %v9159
      %9343 = vmatpush1.bf16.msra.mxu0 %v9158
      %9344 = vmatprep.subr.bf16.mxu0 %v9161
      %9345 = vmatpush1.bf16.msra.mxu0 %v9160
      %9346 = vmatprep.subr.bf16.mxu0 %v9163
      %9347 = vmatpush1.bf16.msra.mxu0 %v9162
      %9348 = vmatprep.subr.bf16.mxu0 %v9165
      %9349 = vmatpush1.bf16.msra.mxu0 %v9164
      %9350 = vmatprep.subr.bf16.mxu0 %v9167
      %9351 = vmatpush1.bf16.msra.mxu0 %v9166
      %9352 = vmatprep.subr.bf16.mxu0 %v9169
      %9353 = vmatpush1.bf16.msra.mxu0 %v9168
      %9354 = vmatprep.subr.bf16.mxu0 %v9171
      %9355 = vmatpush1.bf16.msra.mxu0 %v9170
      %9356 = vmatprep.subr.bf16.mxu0 %v9173
      %9357 = vmatpush1.bf16.msra.mxu0 %v9172
      %9358 = vmatprep.subr.bf16.mxu0 %v9175
      %9359 = vmatpush1.bf16.msra.mxu0 %v9174
      %9360 = vmatprep.subr.bf16.mxu0 %v9177
      %9361 = vmatpush1.bf16.msra.mxu0 %v9176
      %9362 = vmatprep.subr.bf16.mxu0 %v9179
      %9363 = vmatpush1.bf16.msra.mxu0 %v9178
      %9364 = vmatprep.subr.bf16.mxu0 %v9181
      %9365 = vmatpush1.bf16.msra.mxu0 %v9180
      %9366 = vmatprep.mubr.bf16.mxu0 %v9287
      %9367 = vmatmul.mubr.bf16.gmra.mrb[0].mxu0 %v9286
      %v9368 = vpop.f32.mrb[0].mxu0
      %v9369 = vadd.f32 0.0, %v9368
      %v9370 = vpop.f32.mrb[0].mxu0
      %v9371 = vadd.f32 0.0, %v9370
      %v9372 = vpop.f32.mrb[0].mxu0
      %v9373 = vadd.f32 0.0, %v9372
      %v9374 = vpop.f32.mrb[0].mxu0
      %v9375 = vadd.f32 0.0, %v9374
      %9376 = vmatprep.mubr.bf16.mxu0 %v9292
      %9377 = vmatmul.mubr.bf16.gmra.mrb[0].mxu0 %v9291
      %v9378 = vpop.f32.mrb[0].mxu0
      %v9379 = vadd.f32 0.0, %v9378
      %v9380 = vpop.f32.mrb[0].mxu0
      %v9381 = vadd.f32 0.0, %v9380
      %v9382 = vpop.f32.mrb[0].mxu0
      %v9383 = vadd.f32 0.0, %v9382
      %v9384 = vpop.f32.mrb[0].mxu0
      %v9385 = vadd.f32 0.0, %v9384
      %9386 = vmatprep.mubr.bf16.mxu0 %v9297
      %9387 = vmatmul.mubr.bf16.gmra.mrb[0].mxu0 %v9296
      %v9388 = vpop.f32.mrb[0].mxu0
      %v9389 = vadd.f32 0.0, %v9388
      %v9390 = vpop.f32.mrb[0].mxu0
      %v9391 = vadd.f32 0.0, %v9390
      %v9392 = vpop.f32.mrb[0].mxu0
      %v9393 = vadd.f32 0.0, %v9392
      %v9394 = vpop.f32.mrb[0].mxu0
      %v9395 = vadd.f32 0.0, %v9394
      %9396 = vmatprep.mubr.bf16.mxu0 %v9302
      %9397 = vmatmul.mubr.bf16.gmra.mrb[0].mxu0 %v9301
      %v9398 = vpop.f32.mrb[0].mxu0
      %v9399 = vadd.f32 0.0, %v9398
      %v9400 = vpop.f32.mrb[0].mxu0
      %v9401 = vadd.f32 0.0, %v9400
      %v9402 = vpop.f32.mrb[0].mxu0
      %v9403 = vadd.f32 0.0, %v9402
      %v9404 = vpop.f32.mrb[0].mxu0
      %v9405 = vadd.f32 0.0, %v9404
      %9406 = vdwg.mxu0
      %9407 = vmatprep.subr.bf16.mxu0 %v9183
      %9408 = vmatpush1.bf16.msra.mxu0 %v9182
      %9409 = vmatprep.subr.bf16.mxu0 %v9185
      %9410 = vmatpush1.bf16.msra.mxu0 %v9184
      %9411 = vmatprep.subr.bf16.mxu0 %v9187
      %9412 = vmatpush1.bf16.msra.mxu0 %v9186
      %9413 = vmatprep.subr.bf16.mxu0 %v9189
      %9414 = vmatpush1.bf16.msra.mxu0 %v9188
      %9415 = vmatprep.subr.bf16.mxu0 %v9191
      %9416 = vmatpush1.bf16.msra.mxu0 %v9190
      %9417 = vmatprep.subr.bf16.mxu0 %v9193
      %9418 = vmatpush1.bf16.msra.mxu0 %v9192
      %9419 = vmatprep.subr.bf16.mxu0 %v9195
      %9420 = vmatpush1.bf16.msra.mxu0 %v9194
      %9421 = vmatprep.subr.bf16.mxu0 %v9197
      %9422 = vmatpush1.bf16.msra.mxu0 %v9196
      %9423 = vmatprep.subr.bf16.mxu0 %v9199
      %9424 = vmatpush1.bf16.msra.mxu0 %v9198
      %9425 = vmatprep.subr.bf16.mxu0 %v9201
      %9426 = vmatpush1.bf16.msra.mxu0 %v9200
      %9427 = vmatprep.subr.bf16.mxu0 %v9203
      %9428 = vmatpush1.bf16.msra.mxu0 %v9202
      %9429 = vmatprep.subr.bf16.mxu0 %v9205
      %9430 = vmatpush1.bf16.msra.mxu0 %v9204
      %9431 = vmatprep.subr.bf16.mxu0 %v9207
      %9432 = vmatpush1.bf16.msra.mxu0 %v9206
      %9433 = vmatprep.subr.bf16.mxu0 %v9209
      %9434 = vmatpush1.bf16.msra.mxu0 %v9208
      %9435 = vmatprep.subr.bf16.mxu0 %v9211
      %9436 = vmatpush1.bf16.msra.mxu0 %v9210
      %9437 = vmatprep.subr.bf16.mxu0 %v9213
      %9438 = vmatpush1.bf16.msra.mxu0 %v9212
      %9439 = vmatprep.mubr.bf16.mxu0 %v9289
      %9440 = vmatmul.mubr.bf16.gmra.mrb[0].mxu0 %v9288
      %v9441 = vpop.f32.mrb[0].mxu0
      %v9442 = vadd.f32 %v9369, %v9441
      %v9443 = vpop.f32.mrb[0].mxu0
      %v9444 = vadd.f32 %v9371, %v9443
      %v9445 = vpop.f32.mrb[0].mxu0
      %v9446 = vadd.f32 %v9373, %v9445
      %v9447 = vpop.f32.mrb[0].mxu0
      %v9448 = vadd.f32 %v9375, %v9447
      %9449 = vmatprep.mubr.bf16.mxu0 %v9294
      %9450 = vmatmul.mubr.bf16.gmra.mrb[0].mxu0 %v9293
      %v9451 = vpop.f32.mrb[0].mxu0
      %v9452 = vadd.f32 %v9379, %v9451
      %v9453 = vpop.f32.mrb[0].mxu0
      %v9454 = vadd.f32 %v9381, %v9453
      %v9455 = vpop.f32.mrb[0].mxu0
      %v9456 = vadd.f32 %v9383, %v9455
      %v9457 = vpop.f32.mrb[0].mxu0
      %v9458 = vadd.f32 %v9385, %v9457
      %9459 = vmatprep.mubr.bf16.mxu0 %v9299
      %9460 = vmatmul.mubr.bf16.gmra.mrb[0].mxu0 %v9298
      %v9461 = vpop.f32.mrb[0].mxu0
      %v9462 = vadd.f32 %v9389, %v9461
      %v9463 = vpop.f32.mrb[0].mxu0
      %v9464 = vadd.f32 %v9391, %v9463
      %v9465 = vpop.f32.mrb[0].mxu0
      %v9466 = vadd.f32 %v9393, %v9465
      %v9467 = vpop.f32.mrb[0].mxu0
      %v9468 = vadd.f32 %v9395, %v9467
      %9469 = vmatprep.mubr.bf16.mxu0 %v9304
      %9470 = vmatmul.mubr.bf16.gmra.mrb[0].mxu0 %v9303
      %v9471 = vpop.f32.mrb[0].mxu0
      %v9472 = vadd.f32 %v9399, %v9471
      %v9473 = vpop.f32.mrb[0].mxu0
      %v9474 = vadd.f32 %v9401, %v9473
      %v9475 = vpop.f32.mrb[0].mxu0
      %v9476 = vadd.f32 %v9403, %v9475
      %v9477 = vpop.f32.mrb[0].mxu0
      %v9478 = vadd.f32 %v9405, %v9477
      %9479 = vdwg.mxu0
      %9480 = vmatprep.subr.bf16.mxu0 %v9215
      %9481 = vmatpush1.bf16.msra.mxu0 %v9214
      %9482 = vmatprep.subr.bf16.mxu0 %v9217
      %9483 = vmatpush1.bf16.msra.mxu0 %v9216
      %9484 = vmatprep.subr.bf16.mxu0 %v9219
      %9485 = vmatpush1.bf16.msra.mxu0 %v9218
      %9486 = vmatprep.subr.bf16.mxu0 %v9221
      %9487 = vmatpush1.bf16.msra.mxu0 %v9220
      %9488 = vmatprep.subr.bf16.mxu0 0
      %9489 = vmatpush1.bf16.msra.mxu0 0
      %9490 = vmatprep.subr.bf16.mxu0 0
      %9491 = vmatpush1.bf16.msra.mxu0 0
      %9492 = vmatprep.subr.bf16.mxu0 0
      %9493 = vmatpush1.bf16.msra.mxu0 0
      %9494 = vmatprep.subr.bf16.mxu0 0
      %9495 = vmatpush1.bf16.msra.mxu0 0
      %9496 = vmatprep.subr.bf16.mxu0 0
      %9497 = vmatpush1.bf16.msra.mxu0 0
      %9498 = vmatprep.subr.bf16.mxu0 0
      %9499 = vmatpush1.bf16.msra.mxu0 0
      %9500 = vmatprep.subr.bf16.mxu0 0
      %9501 = vmatpush1.bf16.msra.mxu0 0
      %9502 = vmatprep.subr.bf16.mxu0 0
      %9503 = vmatpush1.bf16.msra.mxu0 0
      %9504 = vmatprep.subr.bf16.mxu0 0
      %9505 = vmatpush1.bf16.msra.mxu0 0
      %9506 = vmatprep.subr.bf16.mxu0 0
      %9507 = vmatpush1.bf16.msra.mxu0 0
      %9508 = vmatprep.subr.bf16.mxu0 0
      %9509 = vmatpush1.bf16.msra.mxu0 0
      %9510 = vmatprep.subr.bf16.mxu0 0
      %9511 = vmatpush1.bf16.msra.mxu0 0
      %9512 = vmatprep.mubr.bf16.mxu0 0
      %9513 = vmatmul.mubr.bf16.gmra.mrb[0].mxu0 %v9323
      %v9514 = vpop.f32.mrb[0].mxu0
      %v9515 = vadd.f32 %v9442, %v9514
      %v9516 = vpop.f32.mrb[0].mxu0
      %v9517 = vadd.f32 %v9444, %v9516
      %v9518 = vpop.f32.mrb[0].mxu0
      %v9519 = vadd.f32 %v9446, %v9518
      %v9520 = vpop.f32.mrb[0].mxu0
      %v9521 = vadd.f32 %v9448, %v9520
      %9522 = vmatprep.mubr.bf16.mxu0 0
      %9523 = vmatmul.mubr.bf16.gmra.mrb[0].mxu0 %v9326
      %v9524 = vpop.f32.mrb[0].mxu0
      %v9525 = vadd.f32 %v9452, %v9524
      %v9526 = vpop.f32.mrb[0].mxu0
      %v9527 = vadd.f32 %v9454, %v9526
      %v9528 = vpop.f32.mrb[0].mxu0
      %v9529 = vadd.f32 %v9456, %v9528
      %v9530 = vpop.f32.mrb[0].mxu0
      %v9531 = vadd.f32 %v9458, %v9530
      %9532 = vmatprep.mubr.bf16.mxu0 0
      %9533 = vmatmul.mubr.bf16.gmra.mrb[0].mxu0 %v9329
      %v9534 = vpop.f32.mrb[0].mxu0
      %v9535 = vadd.f32 %v9462, %v9534
      %v9536 = vpop.f32.mrb[0].mxu0
      %v9537 = vadd.f32 %v9464, %v9536
      %v9538 = vpop.f32.mrb[0].mxu0
      %v9539 = vadd.f32 %v9466, %v9538
      %v9540 = vpop.f32.mrb[0].mxu0
      %v9541 = vadd.f32 %v9468, %v9540
      %9542 = vmatprep.mubr.bf16.mxu0 0
      %9543 = vmatmul.mubr.bf16.gmra.mrb[0].mxu0 %v9332
      %v9544 = vpop.f32.mrb[0].mxu0
      %v9545 = vadd.f32 %v9472, %v9544
      %v9546 = vpop.f32.mrb[0].mxu0
      %v9547 = vadd.f32 %v9474, %v9546
      %v9548 = vpop.f32.mrb[0].mxu0
      %v9549 = vadd.f32 %v9476, %v9548
      %v9550 = vpop.f32.mrb[0].mxu0
      %v9551 = vadd.f32 %v9478, %v9550
      %9552 = vdwg.mxu0
      %s9553 = scalar_lea.vmem %s3, 320
      %v9554 = vld [vmem:[%s9553] sm:$0xff]
      %v9555 = vld [vmem:[%s9553 + $0x8] sm:$0xff]
      %v9556 = vld [vmem:[%s9553 + $0x10] sm:$0xff]
      %v9557 = vld [vmem:[%s9553 + $0x18] sm:$0xff]
      %v9558 = vld [vmem:[%s9553 + $0x20] sm:$0xff]
      %v9559 = vld [vmem:[%s9553 + $0x28] sm:$0xff]
      %v9560 = vld [vmem:[%s9553 + $0x30] sm:$0xff]
      %v9561 = vld [vmem:[%s9553 + $0x38] sm:$0xff]
      %9563 = vset.pattern.permute.xlu0 0
      %9564 = vperm.xlu0 %9563, %v9554
      %v9565 = vpop.permute.xlu0 %9564
      %9568 = vset.pattern.permute.xlu0 0
      %9569 = vperm.xlu0 %9568, %v9555
      %v9570 = vpop.permute.xlu0 %9569
      %9573 = vset.pattern.permute.xlu0 0
      %9574 = vperm.xlu0 %9573, %v9556
      %v9575 = vpop.permute.xlu0 %9574
      %9578 = vset.pattern.permute.xlu0 0
      %9579 = vperm.xlu0 %9578, %v9557
      %v9580 = vpop.permute.xlu0 %9579
      %9583 = vset.pattern.permute.xlu0 0
      %9584 = vperm.xlu0 %9583, %v9558
      %v9585 = vpop.permute.xlu0 %9584
      %9588 = vset.pattern.permute.xlu0 0
      %9589 = vperm.xlu0 %9588, %v9559
      %v9590 = vpop.permute.xlu0 %9589
      %9593 = vset.pattern.permute.xlu0 0
      %9594 = vperm.xlu0 %9593, %v9560
      %v9595 = vpop.permute.xlu0 %9594
      %9598 = vset.pattern.permute.xlu0 0
      %9599 = vperm.xlu0 %9598, %v9561
      %v9600 = vpop.permute.xlu0 %9599
      %v9602 = vmul.f32 %v9515, %v9565
      %v9603 = vmul.f32 %v9517, %v9565
      %v9604 = vmul.f32 %v9519, %v9570
      %v9605 = vmul.f32 %v9521, %v9570
      %v9606 = vmul.f32 %v9525, %v9575
      %v9607 = vmul.f32 %v9527, %v9575
      %v9608 = vmul.f32 %v9529, %v9580
      %v9609 = vmul.f32 %v9531, %v9580
      %v9610 = vmul.f32 %v9535, %v9585
      %v9611 = vmul.f32 %v9537, %v9585
      %v9612 = vmul.f32 %v9539, %v9590
      %v9613 = vmul.f32 %v9541, %v9590
      %v9614 = vmul.f32 %v9545, %v9595
      %v9615 = vmul.f32 %v9547, %v9595
      %v9616 = vmul.f32 %v9549, %v9600
      %v9617 = vmul.f32 %v9551, %v9600
      %s9618 = scalar_lea.vmem %s4, 320
      %v9619 = vld [vmem:[%s9618] sm:$0xff]
      %v9620 = vld [vmem:[%s9618 + $0x8] sm:$0xff]
      %v9621 = vld [vmem:[%s9618 + $0x10] sm:$0xff]
      %v9622 = vld [vmem:[%s9618 + $0x18] sm:$0xff]
      %v9623 = vld [vmem:[%s9618 + $0x20] sm:$0xff]
      %v9624 = vld [vmem:[%s9618 + $0x28] sm:$0xff]
      %v9625 = vld [vmem:[%s9618 + $0x30] sm:$0xff]
      %v9626 = vld [vmem:[%s9618 + $0x38] sm:$0xff]
      %9628 = vset.pattern.permute.xlu0 0
      %9629 = vperm.xlu0 %9628, %v9619
      %v9630 = vpop.permute.xlu0 %9629
      %9633 = vset.pattern.permute.xlu0 0
      %9634 = vperm.xlu0 %9633, %v9620
      %v9635 = vpop.permute.xlu0 %9634
      %9638 = vset.pattern.permute.xlu0 0
      %9639 = vperm.xlu0 %9638, %v9621
      %v9640 = vpop.permute.xlu0 %9639
      %9643 = vset.pattern.permute.xlu0 0
      %9644 = vperm.xlu0 %9643, %v9622
      %v9645 = vpop.permute.xlu0 %9644
      %9648 = vset.pattern.permute.xlu0 0
      %9649 = vperm.xlu0 %9648, %v9623
      %v9650 = vpop.permute.xlu0 %9649
      %9653 = vset.pattern.permute.xlu0 0
      %9654 = vperm.xlu0 %9653, %v9624
      %v9655 = vpop.permute.xlu0 %9654
      %9658 = vset.pattern.permute.xlu0 0
      %9659 = vperm.xlu0 %9658, %v9625
      %v9660 = vpop.permute.xlu0 %9659
      %9663 = vset.pattern.permute.xlu0 0
      %9664 = vperm.xlu0 %9663, %v9626
      %v9665 = vpop.permute.xlu0 %9664
      %v9667 = vadd.f32 %v9602, %v9630
      %v9668 = vadd.f32 %v9603, %v9630
      %v9669 = vadd.f32 %v9604, %v9635
      %v9670 = vadd.f32 %v9605, %v9635
      %v9671 = vadd.f32 %v9606, %v9640
      %v9672 = vadd.f32 %v9607, %v9640
      %v9673 = vadd.f32 %v9608, %v9645
      %v9674 = vadd.f32 %v9609, %v9645
      %v9675 = vadd.f32 %v9610, %v9650
      %v9676 = vadd.f32 %v9611, %v9650
      %v9677 = vadd.f32 %v9612, %v9655
      %v9678 = vadd.f32 %v9613, %v9655
      %v9679 = vadd.f32 %v9614, %v9660
      %v9680 = vadd.f32 %v9615, %v9660
      %v9681 = vadd.f32 %v9616, %v9665
      %v9682 = vadd.f32 %v9617, %v9665
      %v9683 = vmax.f32 %v9667, 0.0
      %v9684 = vmax.f32 %v9668, 0.0
      %v9685 = vmax.f32 %v9669, 0.0
      %v9686 = vmax.f32 %v9670, 0.0
      %v9687 = vmax.f32 %v9671, 0.0
      %v9688 = vmax.f32 %v9672, 0.0
      %v9689 = vmax.f32 %v9673, 0.0
      %v9690 = vmax.f32 %v9674, 0.0
      %v9691 = vmax.f32 %v9675, 0.0
      %v9692 = vmax.f32 %v9676, 0.0
      %v9693 = vmax.f32 %v9677, 0.0
      %v9694 = vmax.f32 %v9678, 0.0
      %v9695 = vmax.f32 %v9679, 0.0
      %v9696 = vmax.f32 %v9680, 0.0
      %v9697 = vmax.f32 %v9681, 0.0
      %v9698 = vmax.f32 %v9682, 0.0
      %v9699 = vadd.f32 %v9683, %v6615
      %v9700 = vadd.f32 %v9684, %v6616
      %v9701 = vadd.f32 %v9685, %v6617
      %v9702 = vadd.f32 %v9686, %v6618
      %v9703 = vadd.f32 %v9687, %v6619
      %v9704 = vadd.f32 %v9688, %v6620
      %v9705 = vadd.f32 %v9689, %v6621
      %v9706 = vadd.f32 %v9690, %v6622
      %v9707 = vadd.f32 %v9691, %v6623
      %v9708 = vadd.f32 %v9692, %v6624
      %v9709 = vadd.f32 %v9693, %v6625
      %v9710 = vadd.f32 %v9694, %v6626
      %v9711 = vadd.f32 %v9695, %v6627
      %v9712 = vadd.f32 %v9696, %v6628
      %v9713 = vadd.f32 %v9697, %v6629
      %v9714 = vadd.f32 %v9698, %v6630
      %9715 = vst [vmem:[%s244] sm:$0xff] %v9699
      %9716 = vst [vmem:[%s244 + $0x8] sm:$0xff] %v9700
      %9717 = vst [vmem:[%s244 + $0x10] sm:$0xff] %v9701
      %9718 = vst [vmem:[%s244 + $0x18] sm:$0xff] %v9702
      %9719 = vst [vmem:[%s244 + $0x20] sm:$0xff] %v9703
      %9720 = vst [vmem:[%s244 + $0x28] sm:$0xff] %v9704
      %9721 = vst [vmem:[%s244 + $0x30] sm:$0xff] %v9705
      %9722 = vst [vmem:[%s244 + $0x38] sm:$0xff] %v9706
      %9723 = vst [vmem:[%s244 + $0x40] sm:$0xff] %v9707
      %9724 = vst [vmem:[%s244 + $0x48] sm:$0xff] %v9708
      %9725 = vst [vmem:[%s244 + $0x50] sm:$0xff] %v9709
      %9726 = vst [vmem:[%s244 + $0x58] sm:$0xff] %v9710
      %9727 = vst [vmem:[%s244 + $0x60] sm:$0xff] %v9711
      %9728 = vst [vmem:[%s244 + $0x68] sm:$0xff] %v9712
      %9729 = vst [vmem:[%s244 + $0x70] sm:$0xff] %v9713
      %9730 = vst [vmem:[%s244 + $0x78] sm:$0xff] %v9714
      %p9731 = scmp.lt.s32.totalorder %s16, 1
      %s9732 = scalar_select %p9731, %s16, 1
      %s9733 = smul.addr %s9732, 16
      %s9734 = smul.addr %s9733, 8
      %s9735 = scalar_lea.vmem %s5, %s9734
      // Predicated region
      $region41: #{rgc_forward.1} parent=39 // pred_check
        %p9736 = pneg %p149
      $region42: #{rgc_forward.1} parent=39 // pred_check_branch
        %9738 = sbr.rel (%p9736) target = $region44
      $region43: #{rgc_forward.1} parent=39 // pred_region
        _
      $region44: #{rgc_forward.1} parent=39 // pred_fallthru
        _
    $region40: #{rgc_forward.1} parent=5 // pred_fallthru
      _
    %p9739 = scmp.le.s32.totalorder 2, %s11
    // Predicated region
    $region45: #{rgc_forward.1} parent=5 // pred_check
      %p9740 = pneg %p9739
    $region46: #{rgc_forward.1} parent=5 // pred_check_branch
      %9742 = sbr.rel (%p9740) target = $region48
    $region47: #{rgc_forward.1} parent=5 // pred_region
      %s9743 = ssub.s32 %s11, 2
      // Predicated region
      $region49: #{rgc_forward.1} parent=47 // pred_check
        %p9744 = pneg %p155
      $region50: #{rgc_forward.1} parent=47 // pred_check_branch
        %9746 = sbr.rel (%p9744) target = $region52
      $region51: #{rgc_forward.1} parent=47 // pred_region
        %p9747 = scmp.lt.s32.totalorder %s17, 1
        %s9748 = scalar_select %p9747, %s17, 1
        %s9749 = smul.addr %s9748, 16
        %s9750 = smul.addr %s9749, 8
        %s9751 = scalar_lea.vmem %s5, %s9750
      $region52: #{rgc_forward.1} parent=47 // pred_fallthru
        _
    $region48: #{rgc_forward.1} parent=5 // pred_fallthru
      _
  $region6: #{rgc_forward.1} parent=0 // loop_footer
    %s15 = sadd.s32 1, %s11
  $region7: #{rgc_forward.1} parent=0 // loop_footer_branch
    %10 = sbr.rel target = $region3
  $region8: #{rgc_forward.1} parent=0 // loop_exit
    _

</llo_original>
